<compile_context>
chip_gen: v6e
topology: v6e:2x2x1
jax: 0.10.0
libtpu: 0.0.40
codegen_flags: <defaults>
</compile_context>

<pallas_src>
import functools

import numpy as np

import jax
import jax.numpy as jnp
from jax import lax
from jax.experimental import pallas as pl
from jax.experimental.pallas import tpu as pltpu

LEAKY_SLOPE = 0.2
BN_EPS = 1e-5


# ----------------------------------------------------------------------------
# Small helpers
# ----------------------------------------------------------------------------
def _mm(a, b):
    """MXU matmul: bf16 operands, f32 accumulation."""
    return jnp.dot(a.astype(jnp.bfloat16), b.astype(jnp.bfloat16),
                   preferred_element_type=jnp.float32)


def _leaky(x):
    return jnp.where(x >= 0.0, x, LEAKY_SLOPE * x)


# ----------------------------------------------------------------------------
# Static network plan
# ----------------------------------------------------------------------------
def make_plan(cdim, channels, image_size):
    assert image_size % (2 ** len(channels)) == 0
    plan = []
    H = image_size
    cc = channels[0]
    plan.append(dict(kind="stem", H=H, W=H, cin=cdim, cout=cc, pool=True))
    H //= 2
    for ch in channels[1:]:
        plan.append(dict(kind="res", H=H, W=H, cin=cc, cmid=int(ch * 1.0),
                         cout=ch, pool=True))
        cc = ch
        H //= 2
    plan.append(dict(kind="res", H=H, W=H, cin=cc, cmid=cc, cout=cc, pool=False))
    return plan


# ----------------------------------------------------------------------------
# Fully fused kernel: conv trunk (both views) + FC head in one body
# ----------------------------------------------------------------------------
def build_fused_kernel(plan, hf):
    def kernel(*refs):
        o_ref = refs[-1]
        it = iter(refs[:-1])

        def nxt():
            return next(it)

        x = nxt()[...]                                  # (B*H0, view*cdim*W0) f32

        def conv_bn(xin, band_ref, sc_ref, sh_ref, sd_ref, su_ref, leaky):
            # 3x3 "same" conv = banded matmuls + folded eval-mode BN affine.
            if sd_ref is not None:
                xu = _mm(sd_ref[...], xin)              # row h-1 (zero at image top)
                xd = _mm(su_ref[...], xin)              # row h+1 (zero at image bottom)
                acc = (_mm(xu, band_ref[0]) + _mm(xin, band_ref[1])
                       + _mm(xd, band_ref[2]))
            else:                                       # H == 1: centre tap only
                acc = _mm(xin, band_ref[0])
            y = acc * sc_ref[...] + sh_ref[...]
            return _leaky(y) if leaky else y

        for st in plan:
            if st["H"] > 1:
                sd = nxt()
                su = nxt()
            else:
                sd = su = None
            if st["kind"] == "stem":
                band = nxt(); sc = nxt(); sh = nxt()
                x = conv_bn(x, band, sc, sh, sd, su, leaky=True)
            else:
                if st["cin"] != st["cout"]:
                    ident = _mm(x, nxt()[...])          # block-diag 1x1 conv_expand
                else:
                    ident = x
                b1 = nxt(); s1 = nxt(); sh1 = nxt()
                t = conv_bn(x, b1, s1, sh1, sd, su, leaky=True)
                b2 = nxt(); s2 = nxt(); sh2 = nxt()
                u = conv_bn(t, b2, s2, sh2, sd, su, leaky=False)
                x = jnp.tanh(_leaky(u + ident))         # fused residual tail
            if st["pool"]:
                q = nxt(); p = nxt()
                x = _mm(_mm(q[...], x), p[...])         # 2x2 avg pool

        # ------- fused FC head -------
        if hf > 1:
            # gather rows of each image height into lanes: f = concat_h(Sel_h @ x)
            parts = [_mm(nxt()[...], x) for _ in range(hf)]
            f = jnp.concatenate(parts, axis=-1)
        else:
            f = x
        w1 = nxt(); c1 = nxt()
        w2 = nxt(); c2 = nxt()
        w3 = nxt(); c3 = nxt()
        h = jnp.maximum(_mm(f, w1[...]) + c1[...], 0.0)
        h = jnp.maximum(_mm(h, w2[...]) + c2[...], 0.0)
        o_ref[...] = (_mm(h, w3[...]) + c3[...]).astype(o_ref.dtype)

    return kernel


def _whole_spec(a):
    nd = a.ndim
    return pl.BlockSpec(tuple(int(s) for s in a.shape),
                        lambda i, _n=nd: (0,) * _n)


# ----------------------------------------------------------------------------
# Forward pass wrapper (single pallas_call)
# ----------------------------------------------------------------------------
def forward(prep, config, obs):
    plan = prep["plan"]
    zdim, view, cdim = config["zdim"], config["view"], config["cdim"]
    B, Ctot, H, W = obs.shape
    assert B == prep["batch"], "constants were built for a different batch size"
    assert Ctot == view * cdim

    # NCHW -> lane-dense (B*H, Ctot*W); stem band expects lane order (chan, w).
    x0 = jnp.transpose(obs, (0, 2, 1, 3)).reshape(B * H, Ctot * W)
    x0 = x0.astype(jnp.float32)

    operands = [x0] + list(prep["ops"])
    y = pl.pallas_call(
        build_fused_kernel(plan, prep["hf"]),
        out_shape=jax.ShapeDtypeStruct((B, zdim), jnp.float32),
        grid=(1,),
        in_specs=[_whole_spec(a) for a in operands],
        out_specs=pl.BlockSpec((B, zdim), lambda i: (0, 0)),
        compiler_params=pltpu.CompilerParams(
            dimension_semantics=("arbitrary",)),
    )(*operands)
    return y


# ----------------------------------------------------------------------------
# Host-side weight preprocessing (numpy, one-time)
# ----------------------------------------------------------------------------
def _lane_wc(W, C):
    # interior activation lane order: lane = (v*W + w)*C + c
    return lambda v, c, w: (v * W + w) * C + c


def _lane_cw(W, C):
    # stem-input lane order (NCHW transpose): lane = (v*C + c)*W + w
    return lambda v, c, w: (v * C + c) * W + w


def _conv_band(w4s, W, cin, cout, view, in_lane, stacked):
    """w4s: per-view HWIO (3,3,cin,cout) -> (3 or 1, view*W*cin, view*W*cout)."""
    Lin, Lout = view * W * cin, view * W * cout
    khs = (0, 1, 2) if stacked else (1,)
    M = np.zeros((len(khs), Lin, Lout), np.float32)
    for bi, kh in enumerate(khs):
        for v in range(view):
            w4 = np.asarray(w4s[v], np.float32)
            for kw in range(3):
                dw = kw - 1
                for w in range(W):
                    wp = w + dw
                    if not (0 <= wp < W):
                        continue
                    ocol = (v * W + w) * cout
                    for ci in range(cin):
                        M[bi, in_lane(v, ci, wp), ocol:ocol + cout] = w4[kh, kw, ci]
    return M


def _shift_mats(R, H):
    sd = np.zeros((R, R), np.float32)
    su = np.zeros((R, R), np.float32)
    for r in range(R):
        if r % H != 0:
            sd[r, r - 1] = 1.0
        if r % H != H - 1:
            su[r, r + 1] = 1.0
    return sd, su


def _pool_mats(R, W, C, view):
    q = np.zeros((R // 2, R), np.float32)
    for i in range(R // 2):
        q[i, 2 * i] = 0.5
        q[i, 2 * i + 1] = 0.5
    p = np.zeros((view * W * C, view * (W // 2) * C), np.float32)
    for v in range(view):
        for w in range(W):
            for c in range(C):
                p[(v * W + w) * C + c, (v * (W // 2) + w // 2) * C + c] = 0.5
    return q, p


def _fold_bn_lanes(bns, W):
    scs, shs = [], []
    for bn in bns:
        g, b, m, v = (np.asarray(t, np.float32) for t in bn)
        sc = g / np.sqrt(v + BN_EPS)
        sh = b - m * sc
        scs.append(np.tile(sc, W))
        shs.append(np.tile(sh, W))
    return np.concatenate(scs)[None, :], np.concatenate(shs)[None, :]


def _expand_mat(w1s, W, cin, cout, view):
    E = np.zeros((view * W * cin, view * W * cout), np.float32)
    for v in range(view):
        wv = np.asarray(w1s[v], np.float32)
        for w in range(W):
            E[(v * W + w) * cin:(v * W + w) * cin + cin,
              (v * W + w) * cout:(v * W + w) * cout + cout] = wv
    return E


def _sel_mats(B, Hf):
    mats = []
    for h in range(Hf):
        s = np.zeros((B, B * Hf), np.float32)
        for b in range(B):
            s[b, b * Hf + h] = 1.0
        mats.append(s)
    return mats


def prepare_params(raw, config, batch):
    cdim, channels = config["cdim"], config["channels"]
    image_size, view, zdim = config["image_size"], config["view"], config["zdim"]
    plan = make_plan(cdim, channels, image_size)
    branches = raw["branches"]

    def bf16(a):
        return jnp.asarray(a, jnp.bfloat16)

    def f32(a):
        return jnp.asarray(a, jnp.float32)

    ops = []
    for si, st in enumerate(plan):
        H, W = st["H"], st["W"]
        R = batch * H
        stacked = H > 1
        if stacked:
            sd, su = _shift_mats(R, H)
            ops += [bf16(sd), bf16(su)]
        if st["kind"] == "stem":
            band = _conv_band([branches[v]["stem_w"] for v in range(view)],
                              W, cdim, st["cout"], view, _lane_cw(W, cdim), stacked)
            sc, sh = _fold_bn_lanes([branches[v]["stem_bn"] for v in range(view)], W)
            ops += [bf16(band), f32(sc), f32(sh)]
        else:
            blks = [branches[v]["blocks"][si - 1] for v in range(view)]
            cin, cmid, cout = st["cin"], st["cmid"], st["cout"]
            if cin != cout:
                ops.append(bf16(_expand_mat([b["expand_w"] for b in blks],
                                            W, cin, cout, view)))
            band1 = _conv_band([b["conv1_w"] for b in blks], W, cin, cmid, view,
                               _lane_wc(W, cin), stacked)
            sc1, sh1 = _fold_bn_lanes([b["bn1"] for b in blks], W)
            band2 = _conv_band([b["conv2_w"] for b in blks], W, cmid, cout, view,
                               _lane_wc(W, cmid), stacked)
            sc2, sh2 = _fold_bn_lanes([b["bn2"] for b in blks], W)
            ops += [bf16(band1), f32(sc1), f32(sh1),
                    bf16(band2), f32(sc2), f32(sh2)]
        if st["pool"]:
            q, p = _pool_mats(R, W, st["cout"], view)
            ops += [bf16(q), bf16(p)]

    last = plan[-1]
    Hf, Wf, Cl = last["H"], last["W"], last["cout"]
    if Hf > 1:
        for s in _sel_mats(batch, Hf):
            ops.append(bf16(s))

    # FC: permute w1 rows from PyTorch (view, c, h, w) flatten order to the
    # kernel's native (h, view, w, c) order; pad hidden width 50*zdim -> x128.
    F = view * Cl * Hf * Wf
    perm = np.zeros((F,), np.int64)
    for h in range(Hf):
        for v in range(view):
            for w in range(Wf):
                for c in range(Cl):
                    kidx = ((h * view + v) * Wf + w) * Cl + c
                    tidx = ((v * Cl + c) * Hf + h) * Wf + w
                    perm[kidx] = tidx
    fc = raw["fc"]
    w1 = np.asarray(fc["w1"], np.float32)[perm, :]
    b1 = np.asarray(fc["b1"], np.float32)
    w2 = np.asarray(fc["w2"], np.float32)
    b2 = np.asarray(fc["b2"], np.float32)
    w3 = np.asarray(fc["w3"], np.float32)
    b3 = np.asarray(fc["b3"], np.float32)
    hid = w1.shape[1]
    hidp = ((hid + 127) // 128) * 128
    w1p = np.zeros((F, hidp), np.float32); w1p[:, :hid] = w1
    b1p = np.zeros((1, hidp), np.float32); b1p[0, :hid] = b1
    w2p = np.zeros((hidp, hidp), np.float32); w2p[:hid, :hid] = w2
    b2p = np.zeros((1, hidp), np.float32); b2p[0, :hid] = b2
    w3p = np.zeros((hidp, zdim), np.float32); w3p[:hid, :] = w3
    ops += [bf16(w1p), f32(b1p), bf16(w2p), f32(b2p), bf16(w3p), f32(b3[None, :])]

    return {"plan": plan, "ops": ops, "hf": Hf, "batch": batch}


# ----------------------------------------------------------------------------
# Deterministic synthetic parameter initialization (raw, PyTorch-like layout)
# ----------------------------------------------------------------------------
def _make_bn_raw(key, c):
    k1, k2, k3, k4 = jax.random.split(key, 4)
    gamma = 1.0 + 0.1 * jax.random.normal(k1, (c,))
    beta = 0.1 * jax.random.normal(k2, (c,))
    mean = 0.1 * jax.random.normal(k3, (c,))
    var = 1.0 + 0.1 * jax.random.uniform(k4, (c,))
    return tuple(t.astype(jnp.float32) for t in (gamma, beta, mean, var))


def _make_conv3x3(key, cin, cout):
    return (jax.random.normal(key, (3, 3, cin, cout)) / jnp.sqrt(9.0 * cin)).astype(jnp.float32)


def _make_linear(key, fin, fout):
    kw, kb = jax.random.split(key)
    w = jax.random.normal(kw, (fin, fout)) / jnp.sqrt(float(fin))
    b = 0.01 * jax.random.normal(kb, (fout,))
    return w.astype(jnp.float32), b.astype(jnp.float32)


def _make_resblock(key, inc, outc, scale=1.0):
    midc = int(outc * scale)
    k1, k2, k3, k4, k5 = jax.random.split(key, 5)
    p = {"conv1_w": _make_conv3x3(k1, inc, midc), "bn1": _make_bn_raw(k2, midc),
         "conv2_w": _make_conv3x3(k3, midc, outc), "bn2": _make_bn_raw(k4, outc)}
    if inc != outc:
        p["expand_w"] = (jax.random.normal(k5, (inc, outc)) / jnp.sqrt(float(inc))).astype(jnp.float32)
    return p


def init_params(key, cdim, zdim, channels, image_size, view):
    branches = []
    for _ in range(view):
        key, ks, kb = jax.random.split(key, 3)
        cc = channels[0]
        branch = {"stem_w": _make_conv3x3(ks, cdim, cc), "stem_bn": _make_bn_raw(kb, cc)}
        blocks = []
        for ch in channels[1:]:
            key, kr = jax.random.split(key)
            blocks.append(_make_resblock(kr, cc, ch, scale=1.0))
            cc = ch
        key, kr = jax.random.split(key)
        blocks.append(_make_resblock(kr, cc, cc, scale=1.0))
        branch["blocks"] = blocks
        branches.append(branch)

    sz = image_size // (2 ** len(channels))
    num_fc_features = view * channels[-1] * sz * sz
    key, k1, k2, k3 = jax.random.split(key, 4)
    w1, b1 = _make_linear(k1, num_fc_features, 50 * zdim)
    w2, b2 = _make_linear(k2, 50 * zdim, 50 * zdim)
    w3, b3 = _make_linear(k3, 50 * zdim, zdim)
    return {"branches": branches,
            "fc": {"w1": w1, "b1": b1, "w2": w2, "b2": b2, "w3": w3, "b3": b3}}


# ----------------------------------------------------------------------------
# Plain-JAX float32 reference of the same module (for a correctness check)
# ----------------------------------------------------------------------------
def reference_forward(raw, config, obs):
    B = obs.shape[0]
    cdim, view = config["cdim"], config["view"]

    def conv3x3(x, w4):
        return lax.conv_general_dilated(
            x, w4, window_strides=(1, 1), padding="SAME",
            dimension_numbers=("NHWC", "HWIO", "NHWC"))

    def bn(x, p):
        g, b, m, v = p
        return (x - m) * (g / jnp.sqrt(v + BN_EPS)) + b

    def pool(x):
        b_, h, w, c = x.shape
        return x.reshape(b_, h // 2, 2, w // 2, 2, c).mean(axis=(2, 4))

    feats = []
    for vi in range(view):
        x = jnp.transpose(obs[:, vi * cdim:(vi + 1) * cdim], (0, 2, 3, 1))
        br = raw["branches"][vi]
        x = pool(_leaky(bn(conv3x3(x, br["stem_w"]), br["stem_bn"])))
        nb = len(br["blocks"])
        for i, blk in enumerate(br["blocks"]):
            if "expand_w" in blk:
                ident = jnp.einsum("bhwc,cd->bhwd", x, blk["expand_w"])
            else:
                ident = x
            t = _leaky(bn(conv3x3(x, blk["conv1_w"]), blk["bn1"]))
            u = bn(conv3x3(t, blk["conv2_w"]), blk["bn2"])
            x = jnp.tanh(_leaky(u + ident))
            if i < nb - 1:
                x = pool(x)
        feats.append(jnp.transpose(x, (0, 3, 1, 2)).reshape(B, -1))
    y = jnp.concatenate(feats, axis=1) if view > 1 else feats[0]
    fc = raw["fc"]
    y = jnp.maximum(y @ fc["w1"] + fc["b1"], 0.0)
    y = jnp.maximum(y @ fc["w2"] + fc["b2"], 0.0)
    return y @ fc["w3"] + fc["b3"]


# ----------------------------------------------------------------------------
if __name__ == "__main__":
    # Small config consistent with the module: view=2, cdim=3 per view,
    # channels=(8, 8, 8, 8), image_size=16, zdim=8, batch=2.
    config = dict(cdim=3, zdim=8, channels=(8, 8, 8, 8), image_size=16, view=2)
    B = 2

    key = jax.random.PRNGKey(0)
    kp, kx = jax.random.split(key)
    raw = init_params(kp, config["cdim"], config["zdim"], config["channels"],
                      config["image_size"], config["view"])
    prep = prepare_params(raw, config, batch=B)

    obs = jax.random.normal(
        kx, (B, config["view"] * config["cdim"],
             config["image_size"], config["image_size"]), dtype=jnp.float32)

    fwd = jax.jit(functools.partial(forward, prep, config))
    y = jax.block_until_ready(fwd(obs))

    assert y.shape == (B, config["zdim"]), y.shape
    assert bool(jnp.all(jnp.isfinite(y)))

    # Cross-check against a plain-JAX float32 reference of the same module
    # (loose tolerance: the kernel uses bf16 MXU operands, f32 accumulation).
    y_ref = reference_forward(raw, config, obs)
    max_err = float(jnp.max(jnp.abs(y - y_ref)))
    assert max_err < 0.15, f"mismatch vs reference: {max_err}"

    print("KERNEL_OK")
</pallas_src>

<mosaic_0001>
module attributes {stable_mosaic.version = 11 : i64} {
  func.func @kernel(%arg0: i32, %arg1: memref<32x96xf32, #tpu.memory_space<vmem>>, %arg2: memref<32x32xbf16, #tpu.memory_space<vmem>>, %arg3: memref<32x32xbf16, #tpu.memory_space<vmem>>, %arg4: memref<3x96x256xbf16, #tpu.memory_space<vmem>>, %arg5: memref<1x256xf32, #tpu.memory_space<vmem>>, %arg6: memref<1x256xf32, #tpu.memory_space<vmem>>, %arg7: memref<16x32xbf16, #tpu.memory_space<vmem>>, %arg8: memref<256x128xbf16, #tpu.memory_space<vmem>>, %arg9: memref<16x16xbf16, #tpu.memory_space<vmem>>, %arg10: memref<16x16xbf16, #tpu.memory_space<vmem>>, %arg11: memref<3x128x128xbf16, #tpu.memory_space<vmem>>, %arg12: memref<1x128xf32, #tpu.memory_space<vmem>>, %arg13: memref<1x128xf32, #tpu.memory_space<vmem>>, %arg14: memref<3x128x128xbf16, #tpu.memory_space<vmem>>, %arg15: memref<1x128xf32, #tpu.memory_space<vmem>>, %arg16: memref<1x128xf32, #tpu.memory_space<vmem>>, %arg17: memref<8x16xbf16, #tpu.memory_space<vmem>>, %arg18: memref<128x64xbf16, #tpu.memory_space<vmem>>, %arg19: memref<8x8xbf16, #tpu.memory_space<vmem>>, %arg20: memref<8x8xbf16, #tpu.memory_space<vmem>>, %arg21: memref<3x64x64xbf16, #tpu.memory_space<vmem>>, %arg22: memref<1x64xf32, #tpu.memory_space<vmem>>, %arg23: memref<1x64xf32, #tpu.memory_space<vmem>>, %arg24: memref<3x64x64xbf16, #tpu.memory_space<vmem>>, %arg25: memref<1x64xf32, #tpu.memory_space<vmem>>, %arg26: memref<1x64xf32, #tpu.memory_space<vmem>>, %arg27: memref<4x8xbf16, #tpu.memory_space<vmem>>, %arg28: memref<64x32xbf16, #tpu.memory_space<vmem>>, %arg29: memref<4x4xbf16, #tpu.memory_space<vmem>>, %arg30: memref<4x4xbf16, #tpu.memory_space<vmem>>, %arg31: memref<3x32x32xbf16, #tpu.memory_space<vmem>>, %arg32: memref<1x32xf32, #tpu.memory_space<vmem>>, %arg33: memref<1x32xf32, #tpu.memory_space<vmem>>, %arg34: memref<3x32x32xbf16, #tpu.memory_space<vmem>>, %arg35: memref<1x32xf32, #tpu.memory_space<vmem>>, %arg36: memref<1x32xf32, #tpu.memory_space<vmem>>, %arg37: memref<2x4xbf16, #tpu.memory_space<vmem>>, %arg38: memref<32x16xbf16, #tpu.memory_space<vmem>>, %arg39: memref<1x16x16xbf16, #tpu.memory_space<vmem>>, %arg40: memref<1x16xf32, #tpu.memory_space<vmem>>, %arg41: memref<1x16xf32, #tpu.memory_space<vmem>>, %arg42: memref<1x16x16xbf16, #tpu.memory_space<vmem>>, %arg43: memref<1x16xf32, #tpu.memory_space<vmem>>, %arg44: memref<1x16xf32, #tpu.memory_space<vmem>>, %arg45: memref<16x512xbf16, #tpu.memory_space<vmem>>, %arg46: memref<1x512xf32, #tpu.memory_space<vmem>>, %arg47: memref<512x512xbf16, #tpu.memory_space<vmem>>, %arg48: memref<1x512xf32, #tpu.memory_space<vmem>>, %arg49: memref<512x8xbf16, #tpu.memory_space<vmem>>, %arg50: memref<1x8xf32, #tpu.memory_space<vmem>>, %arg51: memref<2x8xf32, #tpu.memory_space<vmem>>) attributes {dimension_semantics = [#tpu.dimension_semantics<arbitrary>], iteration_bounds = array<i64: 1>, scalar_prefetch = 0 : i64, scratch_operands = 0 : i64, tpu.core_type = #tpu.core_type<tc>, window_params = [{pipeline_mode = #tpu.pipeline_mode<synchronous>, transform_indices = @transform_0, window_bounds = array<i64: 32, 96>}, {pipeline_mode = #tpu.pipeline_mode<synchronous>, transform_indices = @transform_1, window_bounds = array<i64: 32, 32>}, {pipeline_mode = #tpu.pipeline_mode<synchronous>, transform_indices = @transform_2, window_bounds = array<i64: 32, 32>}, {pipeline_mode = #tpu.pipeline_mode<synchronous>, transform_indices = @transform_3, window_bounds = array<i64: 3, 96, 256>}, {pipeline_mode = #tpu.pipeline_mode<synchronous>, transform_indices = @transform_4, window_bounds = array<i64: 1, 256>}, {pipeline_mode = #tpu.pipeline_mode<synchronous>, transform_indices = @transform_5, window_bounds = array<i64: 1, 256>}, {pipeline_mode = #tpu.pipeline_mode<synchronous>, transform_indices = @transform_6, window_bounds = array<i64: 16, 32>}, {pipeline_mode = #tpu.pipeline_mode<synchronous>, transform_indices = @transform_7, window_bounds = array<i64: 256, 128>}, {pipeline_mode = #tpu.pipeline_mode<synchronous>, transform_indices = @transform_8, window_bounds = array<i64: 16, 16>}, {pipeline_mode = #tpu.pipeline_mode<synchronous>, transform_indices = @transform_9, window_bounds = array<i64: 16, 16>}, {pipeline_mode = #tpu.pipeline_mode<synchronous>, transform_indices = @transform_10, window_bounds = array<i64: 3, 128, 128>}, {pipeline_mode = #tpu.pipeline_mode<synchronous>, transform_indices = @transform_11, window_bounds = array<i64: 1, 128>}, {pipeline_mode = #tpu.pipeline_mode<synchronous>, transform_indices = @transform_12, window_bounds = array<i64: 1, 128>}, {pipeline_mode = #tpu.pipeline_mode<synchronous>, transform_indices = @transform_13, window_bounds = array<i64: 3, 128, 128>}, {pipeline_mode = #tpu.pipeline_mode<synchronous>, transform_indices = @transform_14, window_bounds = array<i64: 1, 128>}, {pipeline_mode = #tpu.pipeline_mode<synchronous>, transform_indices = @transform_15, window_bounds = array<i64: 1, 128>}, {pipeline_mode = #tpu.pipeline_mode<synchronous>, transform_indices = @transform_16, window_bounds = array<i64: 8, 16>}, {pipeline_mode = #tpu.pipeline_mode<synchronous>, transform_indices = @transform_17, window_bounds = array<i64: 128, 64>}, {pipeline_mode = #tpu.pipeline_mode<synchronous>, transform_indices = @transform_18, window_bounds = array<i64: 8, 8>}, {pipeline_mode = #tpu.pipeline_mode<synchronous>, transform_indices = @transform_19, window_bounds = array<i64: 8, 8>}, {pipeline_mode = #tpu.pipeline_mode<synchronous>, transform_indices = @transform_20, window_bounds = array<i64: 3, 64, 64>}, {pipeline_mode = #tpu.pipeline_mode<synchronous>, transform_indices = @transform_21, window_bounds = array<i64: 1, 64>}, {pipeline_mode = #tpu.pipeline_mode<synchronous>, transform_indices = @transform_22, window_bounds = array<i64: 1, 64>}, {pipeline_mode = #tpu.pipeline_mode<synchronous>, transform_indices = @transform_23, window_bounds = array<i64: 3, 64, 64>}, {pipeline_mode = #tpu.pipeline_mode<synchronous>, transform_indices = @transform_24, window_bounds = array<i64: 1, 64>}, {pipeline_mode = #tpu.pipeline_mode<synchronous>, transform_indices = @transform_25, window_bounds = array<i64: 1, 64>}, {pipeline_mode = #tpu.pipeline_mode<synchronous>, transform_indices = @transform_26, window_bounds = array<i64: 4, 8>}, {pipeline_mode = #tpu.pipeline_mode<synchronous>, transform_indices = @transform_27, window_bounds = array<i64: 64, 32>}, {pipeline_mode = #tpu.pipeline_mode<synchronous>, transform_indices = @transform_28, window_bounds = array<i64: 4, 4>}, {pipeline_mode = #tpu.pipeline_mode<synchronous>, transform_indices = @transform_29, window_bounds = array<i64: 4, 4>}, {pipeline_mode = #tpu.pipeline_mode<synchronous>, transform_indices = @transform_30, window_bounds = array<i64: 3, 32, 32>}, {pipeline_mode = #tpu.pipeline_mode<synchronous>, transform_indices = @transform_31, window_bounds = array<i64: 1, 32>}, {pipeline_mode = #tpu.pipeline_mode<synchronous>, transform_indices = @transform_32, window_bounds = array<i64: 1, 32>}, {pipeline_mode = #tpu.pipeline_mode<synchronous>, transform_indices = @transform_33, window_bounds = array<i64: 3, 32, 32>}, {pipeline_mode = #tpu.pipeline_mode<synchronous>, transform_indices = @transform_34, window_bounds = array<i64: 1, 32>}, {pipeline_mode = #tpu.pipeline_mode<synchronous>, transform_indices = @transform_35, window_bounds = array<i64: 1, 32>}, {pipeline_mode = #tpu.pipeline_mode<synchronous>, transform_indices = @transform_36, window_bounds = array<i64: 2, 4>}, {pipeline_mode = #tpu.pipeline_mode<synchronous>, transform_indices = @transform_37, window_bounds = array<i64: 32, 16>}, {pipeline_mode = #tpu.pipeline_mode<synchronous>, transform_indices = @transform_38, window_bounds = array<i64: 1, 16, 16>}, {pipeline_mode = #tpu.pipeline_mode<synchronous>, transform_indices = @transform_39, window_bounds = array<i64: 1, 16>}, {pipeline_mode = #tpu.pipeline_mode<synchronous>, transform_indices = @transform_40, window_bounds = array<i64: 1, 16>}, {pipeline_mode = #tpu.pipeline_mode<synchronous>, transform_indices = @transform_41, window_bounds = array<i64: 1, 16, 16>}, {pipeline_mode = #tpu.pipeline_mode<synchronous>, transform_indices = @transform_42, window_bounds = array<i64: 1, 16>}, {pipeline_mode = #tpu.pipeline_mode<synchronous>, transform_indices = @transform_43, window_bounds = array<i64: 1, 16>}, {pipeline_mode = #tpu.pipeline_mode<synchronous>, transform_indices = @transform_44, window_bounds = array<i64: 16, 512>}, {pipeline_mode = #tpu.pipeline_mode<synchronous>, transform_indices = @transform_45, window_bounds = array<i64: 1, 512>}, {pipeline_mode = #tpu.pipeline_mode<synchronous>, transform_indices = @transform_46, window_bounds = array<i64: 512, 512>}, {pipeline_mode = #tpu.pipeline_mode<synchronous>, transform_indices = @transform_47, window_bounds = array<i64: 1, 512>}, {pipeline_mode = #tpu.pipeline_mode<synchronous>, transform_indices = @transform_48, window_bounds = array<i64: 512, 8>}, {pipeline_mode = #tpu.pipeline_mode<synchronous>, transform_indices = @transform_49, window_bounds = array<i64: 1, 8>}, {pipeline_mode = #tpu.pipeline_mode<synchronous>, transform_indices = @transform_50, window_bounds = array<i64: 2, 8>}]} {
    %c0 = arith.constant 0 : index
    %c0_0 = arith.constant 0 : index
    %0 = vector.load %arg1[%c0, %c0_0] : memref<32x96xf32, #tpu.memory_space<vmem>>, vector<32x96xf32>
    %c0_1 = arith.constant 0 : index
    %c0_2 = arith.constant 0 : index
    %1 = vector.load %arg2[%c0_1, %c0_2] : memref<32x32xbf16, #tpu.memory_space<vmem>>, vector<32x32xbf16>
    %2 = arith.truncf %0 : vector<32x96xf32> to vector<32x96xbf16>
    %cst = arith.constant dense<0.000000e+00> : vector<32x96xf32>
    %3 = tpu.matmul %1, %2, %cst {dimension_numbers = #tpu.dot_dimension_numbers<[1], [0], [0], [1], [0, 0, 1, 1], [], []>} : vector<32x32xbf16>, vector<32x96xbf16>, vector<32x96xf32> -> vector<32x96xf32>
    %c0_3 = arith.constant 0 : index
    %c0_4 = arith.constant 0 : index
    %4 = vector.load %arg3[%c0_3, %c0_4] : memref<32x32xbf16, #tpu.memory_space<vmem>>, vector<32x32xbf16>
    %5 = arith.truncf %0 : vector<32x96xf32> to vector<32x96xbf16>
    %cst_5 = arith.constant dense<0.000000e+00> : vector<32x96xf32>
    %6 = tpu.matmul %4, %5, %cst_5 {dimension_numbers = #tpu.dot_dimension_numbers<[1], [0], [0], [1], [0, 0, 1, 1], [], []>} : vector<32x32xbf16>, vector<32x96xbf16>, vector<32x96xf32> -> vector<32x96xf32>
    %c0_6 = arith.constant 0 : index
    %c0_7 = arith.constant 0 : index
    %c0_8 = arith.constant 0 : index
    %7 = vector.load %arg4[%c0_6, %c0_7, %c0_8] : memref<3x96x256xbf16, #tpu.memory_space<vmem>>, vector<1x96x256xbf16>
    %8 = vector.shape_cast %7 : vector<1x96x256xbf16> to vector<96x256xbf16>
    %9 = arith.truncf %3 : vector<32x96xf32> to vector<32x96xbf16>
    %cst_9 = arith.constant dense<0.000000e+00> : vector<32x256xf32>
    %10 = tpu.matmul %9, %8, %cst_9 {dimension_numbers = #tpu.dot_dimension_numbers<[1], [0], [0], [1], [0, 0, 1, 1], [], []>} : vector<32x96xbf16>, vector<96x256xbf16>, vector<32x256xf32> -> vector<32x256xf32>
    %c1 = arith.constant 1 : index
    %c0_10 = arith.constant 0 : index
    %c0_11 = arith.constant 0 : index
    %11 = vector.load %arg4[%c1, %c0_10, %c0_11] : memref<3x96x256xbf16, #tpu.memory_space<vmem>>, vector<1x96x256xbf16>
    %12 = vector.shape_cast %11 : vector<1x96x256xbf16> to vector<96x256xbf16>
    %13 = arith.truncf %0 : vector<32x96xf32> to vector<32x96xbf16>
    %cst_12 = arith.constant dense<0.000000e+00> : vector<32x256xf32>
    %14 = tpu.matmul %13, %12, %cst_12 {dimension_numbers = #tpu.dot_dimension_numbers<[1], [0], [0], [1], [0, 0, 1, 1], [], []>} : vector<32x96xbf16>, vector<96x256xbf16>, vector<32x256xf32> -> vector<32x256xf32>
    %15 = arith.addf %10, %14 : vector<32x256xf32>
    %c2 = arith.constant 2 : index
    %c0_13 = arith.constant 0 : index
    %c0_14 = arith.constant 0 : index
    %16 = vector.load %arg4[%c2, %c0_13, %c0_14] : memref<3x96x256xbf16, #tpu.memory_space<vmem>>, vector<1x96x256xbf16>
    %17 = vector.shape_cast %16 : vector<1x96x256xbf16> to vector<96x256xbf16>
    %18 = arith.truncf %6 : vector<32x96xf32> to vector<32x96xbf16>
    %cst_15 = arith.constant dense<0.000000e+00> : vector<32x256xf32>
    %19 = tpu.matmul %18, %17, %cst_15 {dimension_numbers = #tpu.dot_dimension_numbers<[1], [0], [0], [1], [0, 0, 1, 1], [], []>} : vector<32x96xbf16>, vector<96x256xbf16>, vector<32x256xf32> -> vector<32x256xf32>
    %20 = arith.addf %15, %19 : vector<32x256xf32>
    %c0_16 = arith.constant 0 : index
    %c0_17 = arith.constant 0 : index
    %21 = vector.load %arg5[%c0_16, %c0_17] : memref<1x256xf32, #tpu.memory_space<vmem>>, vector<1x256xf32>
    %22 = vector.broadcast %21 : vector<1x256xf32> to vector<32x256xf32>
    %23 = arith.mulf %20, %22 : vector<32x256xf32>
    %c0_18 = arith.constant 0 : index
    %c0_19 = arith.constant 0 : index
    %24 = vector.load %arg6[%c0_18, %c0_19] : memref<1x256xf32, #tpu.memory_space<vmem>>, vector<1x256xf32>
    %25 = vector.broadcast %24 : vector<1x256xf32> to vector<32x256xf32>
    %26 = arith.addf %23, %25 : vector<32x256xf32>
    %cst_20 = arith.constant 0.000000e+00 : f32
    %27 = vector.broadcast %cst_20 : f32 to vector<32x256xf32>
    %28 = arith.cmpf oge, %26, %27 : vector<32x256xf32>
    %cst_21 = arith.constant 2.000000e-01 : f32
    %29 = vector.broadcast %cst_21 : f32 to vector<32x256xf32>
    %30 = arith.mulf %29, %26 : vector<32x256xf32>
    %31 = arith.select %28, %26, %30 : vector<32x256xi1>, vector<32x256xf32>
    %c0_22 = arith.constant 0 : index
    %c0_23 = arith.constant 0 : index
    %32 = vector.load %arg7[%c0_22, %c0_23] : memref<16x32xbf16, #tpu.memory_space<vmem>>, vector<16x32xbf16>
    %33 = arith.truncf %31 : vector<32x256xf32> to vector<32x256xbf16>
    %cst_24 = arith.constant dense<0.000000e+00> : vector<16x256xf32>
    %34 = tpu.matmul %32, %33, %cst_24 {dimension_numbers = #tpu.dot_dimension_numbers<[1], [0], [0], [1], [0, 0, 1, 1], [], []>} : vector<16x32xbf16>, vector<32x256xbf16>, vector<16x256xf32> -> vector<16x256xf32>
    %c0_25 = arith.constant 0 : index
    %c0_26 = arith.constant 0 : index
    %35 = vector.load %arg8[%c0_25, %c0_26] : memref<256x128xbf16, #tpu.memory_space<vmem>>, vector<256x128xbf16>
    %36 = arith.truncf %34 : vector<16x256xf32> to vector<16x256xbf16>
    %cst_27 = arith.constant dense<0.000000e+00> : vector<16x128xf32>
    %37 = tpu.matmul %36, %35, %cst_27 {dimension_numbers = #tpu.dot_dimension_numbers<[1], [0], [0], [1], [0, 0, 1, 1], [], []>} : vector<16x256xbf16>, vector<256x128xbf16>, vector<16x128xf32> -> vector<16x128xf32>
    %c0_28 = arith.constant 0 : index
    %c0_29 = arith.constant 0 : index
    %38 = vector.load %arg9[%c0_28, %c0_29] : memref<16x16xbf16, #tpu.memory_space<vmem>>, vector<16x16xbf16>
    %39 = arith.truncf %37 : vector<16x128xf32> to vector<16x128xbf16>
    %cst_30 = arith.constant dense<0.000000e+00> : vector<16x128xf32>
    %40 = tpu.matmul %38, %39, %cst_30 {dimension_numbers = #tpu.dot_dimension_numbers<[1], [0], [0], [1], [0, 0, 1, 1], [], []>} : vector<16x16xbf16>, vector<16x128xbf16>, vector<16x128xf32> -> vector<16x128xf32>
    %c0_31 = arith.constant 0 : index
    %c0_32 = arith.constant 0 : index
    %41 = vector.load %arg10[%c0_31, %c0_32] : memref<16x16xbf16, #tpu.memory_space<vmem>>, vector<16x16xbf16>
    %42 = arith.truncf %37 : vector<16x128xf32> to vector<16x128xbf16>
    %cst_33 = arith.constant dense<0.000000e+00> : vector<16x128xf32>
    %43 = tpu.matmul %41, %42, %cst_33 {dimension_numbers = #tpu.dot_dimension_numbers<[1], [0], [0], [1], [0, 0, 1, 1], [], []>} : vector<16x16xbf16>, vector<16x128xbf16>, vector<16x128xf32> -> vector<16x128xf32>
    %c0_34 = arith.constant 0 : index
    %c0_35 = arith.constant 0 : index
    %c0_36 = arith.constant 0 : index
    %44 = vector.load %arg11[%c0_34, %c0_35, %c0_36] : memref<3x128x128xbf16, #tpu.memory_space<vmem>>, vector<1x128x128xbf16>
    %45 = vector.shape_cast %44 : vector<1x128x128xbf16> to vector<128x128xbf16>
    %46 = arith.truncf %40 : vector<16x128xf32> to vector<16x128xbf16>
    %cst_37 = arith.constant dense<0.000000e+00> : vector<16x128xf32>
    %47 = tpu.matmul %46, %45, %cst_37 {dimension_numbers = #tpu.dot_dimension_numbers<[1], [0], [0], [1], [0, 0, 1, 1], [], []>} : vector<16x128xbf16>, vector<128x128xbf16>, vector<16x128xf32> -> vector<16x128xf32>
    %c1_38 = arith.constant 1 : index
    %c0_39 = arith.constant 0 : index
    %c0_40 = arith.constant 0 : index
    %48 = vector.load %arg11[%c1_38, %c0_39, %c0_40] : memref<3x128x128xbf16, #tpu.memory_space<vmem>>, vector<1x128x128xbf16>
    %49 = vector.shape_cast %48 : vector<1x128x128xbf16> to vector<128x128xbf16>
    %50 = arith.truncf %37 : vector<16x128xf32> to vector<16x128xbf16>
    %cst_41 = arith.constant dense<0.000000e+00> : vector<16x128xf32>
    %51 = tpu.matmul %50, %49, %cst_41 {dimension_numbers = #tpu.dot_dimension_numbers<[1], [0], [0], [1], [0, 0, 1, 1], [], []>} : vector<16x128xbf16>, vector<128x128xbf16>, vector<16x128xf32> -> vector<16x128xf32>
    %52 = arith.addf %47, %51 : vector<16x128xf32>
    %c2_42 = arith.constant 2 : index
    %c0_43 = arith.constant 0 : index
    %c0_44 = arith.constant 0 : index
    %53 = vector.load %arg11[%c2_42, %c0_43, %c0_44] : memref<3x128x128xbf16, #tpu.memory_space<vmem>>, vector<1x128x128xbf16>
    %54 = vector.shape_cast %53 : vector<1x128x128xbf16> to vector<128x128xbf16>
    %55 = arith.truncf %43 : vector<16x128xf32> to vector<16x128xbf16>
    %cst_45 = arith.constant dense<0.000000e+00> : vector<16x128xf32>
    %56 = tpu.matmul %55, %54, %cst_45 {dimension_numbers = #tpu.dot_dimension_numbers<[1], [0], [0], [1], [0, 0, 1, 1], [], []>} : vector<16x128xbf16>, vector<128x128xbf16>, vector<16x128xf32> -> vector<16x128xf32>
    %57 = arith.addf %52, %56 : vector<16x128xf32>
    %c0_46 = arith.constant 0 : index
    %c0_47 = arith.constant 0 : index
    %58 = vector.load %arg12[%c0_46, %c0_47] : memref<1x128xf32, #tpu.memory_space<vmem>>, vector<1x128xf32>
    %59 = vector.broadcast %58 : vector<1x128xf32> to vector<16x128xf32>
    %60 = arith.mulf %57, %59 : vector<16x128xf32>
    %c0_48 = arith.constant 0 : index
    %c0_49 = arith.constant 0 : index
    %61 = vector.load %arg13[%c0_48, %c0_49] : memref<1x128xf32, #tpu.memory_space<vmem>>, vector<1x128xf32>
    %62 = vector.broadcast %61 : vector<1x128xf32> to vector<16x128xf32>
    %63 = arith.addf %60, %62 : vector<16x128xf32>
    %cst_50 = arith.constant 0.000000e+00 : f32
    %64 = vector.broadcast %cst_50 : f32 to vector<16x128xf32>
    %65 = arith.cmpf oge, %63, %64 : vector<16x128xf32>
    %cst_51 = arith.constant 2.000000e-01 : f32
    %66 = vector.broadcast %cst_51 : f32 to vector<16x128xf32>
    %67 = arith.mulf %66, %63 : vector<16x128xf32>
    %68 = arith.select %65, %63, %67 : vector<16x128xi1>, vector<16x128xf32>
    %c0_52 = arith.constant 0 : index
    %c0_53 = arith.constant 0 : index
    %69 = vector.load %arg9[%c0_52, %c0_53] : memref<16x16xbf16, #tpu.memory_space<vmem>>, vector<16x16xbf16>
    %70 = arith.truncf %68 : vector<16x128xf32> to vector<16x128xbf16>
    %cst_54 = arith.constant dense<0.000000e+00> : vector<16x128xf32>
    %71 = tpu.matmul %69, %70, %cst_54 {dimension_numbers = #tpu.dot_dimension_numbers<[1], [0], [0], [1], [0, 0, 1, 1], [], []>} : vector<16x16xbf16>, vector<16x128xbf16>, vector<16x128xf32> -> vector<16x128xf32>
    %c0_55 = arith.constant 0 : index
    %c0_56 = arith.constant 0 : index
    %72 = vector.load %arg10[%c0_55, %c0_56] : memref<16x16xbf16, #tpu.memory_space<vmem>>, vector<16x16xbf16>
    %73 = arith.truncf %68 : vector<16x128xf32> to vector<16x128xbf16>
    %cst_57 = arith.constant dense<0.000000e+00> : vector<16x128xf32>
    %74 = tpu.matmul %72, %73, %cst_57 {dimension_numbers = #tpu.dot_dimension_numbers<[1], [0], [0], [1], [0, 0, 1, 1], [], []>} : vector<16x16xbf16>, vector<16x128xbf16>, vector<16x128xf32> -> vector<16x128xf32>
    %c0_58 = arith.constant 0 : index
    %c0_59 = arith.constant 0 : index
    %c0_60 = arith.constant 0 : index
    %75 = vector.load %arg14[%c0_58, %c0_59, %c0_60] : memref<3x128x128xbf16, #tpu.memory_space<vmem>>, vector<1x128x128xbf16>
    %76 = vector.shape_cast %75 : vector<1x128x128xbf16> to vector<128x128xbf16>
    %77 = arith.truncf %71 : vector<16x128xf32> to vector<16x128xbf16>
    %cst_61 = arith.constant dense<0.000000e+00> : vector<16x128xf32>
    %78 = tpu.matmul %77, %76, %cst_61 {dimension_numbers = #tpu.dot_dimension_numbers<[1], [0], [0], [1], [0, 0, 1, 1], [], []>} : vector<16x128xbf16>, vector<128x128xbf16>, vector<16x128xf32> -> vector<16x128xf32>
    %c1_62 = arith.constant 1 : index
    %c0_63 = arith.constant 0 : index
    %c0_64 = arith.constant 0 : index
    %79 = vector.load %arg14[%c1_62, %c0_63, %c0_64] : memref<3x128x128xbf16, #tpu.memory_space<vmem>>, vector<1x128x128xbf16>
    %80 = vector.shape_cast %79 : vector<1x128x128xbf16> to vector<128x128xbf16>
    %81 = arith.truncf %68 : vector<16x128xf32> to vector<16x128xbf16>
    %cst_65 = arith.constant dense<0.000000e+00> : vector<16x128xf32>
    %82 = tpu.matmul %81, %80, %cst_65 {dimension_numbers = #tpu.dot_dimension_numbers<[1], [0], [0], [1], [0, 0, 1, 1], [], []>} : vector<16x128xbf16>, vector<128x128xbf16>, vector<16x128xf32> -> vector<16x128xf32>
    %83 = arith.addf %78, %82 : vector<16x128xf32>
    %c2_66 = arith.constant 2 : index
    %c0_67 = arith.constant 0 : index
    %c0_68 = arith.constant 0 : index
    %84 = vector.load %arg14[%c2_66, %c0_67, %c0_68] : memref<3x128x128xbf16, #tpu.memory_space<vmem>>, vector<1x128x128xbf16>
    %85 = vector.shape_cast %84 : vector<1x128x128xbf16> to vector<128x128xbf16>
    %86 = arith.truncf %74 : vector<16x128xf32> to vector<16x128xbf16>
    %cst_69 = arith.constant dense<0.000000e+00> : vector<16x128xf32>
    %87 = tpu.matmul %86, %85, %cst_69 {dimension_numbers = #tpu.dot_dimension_numbers<[1], [0], [0], [1], [0, 0, 1, 1], [], []>} : vector<16x128xbf16>, vector<128x128xbf16>, vector<16x128xf32> -> vector<16x128xf32>
    %88 = arith.addf %83, %87 : vector<16x128xf32>
    %c0_70 = arith.constant 0 : index
    %c0_71 = arith.constant 0 : index
    %89 = vector.load %arg15[%c0_70, %c0_71] : memref<1x128xf32, #tpu.memory_space<vmem>>, vector<1x128xf32>
    %90 = vector.broadcast %89 : vector<1x128xf32> to vector<16x128xf32>
    %91 = arith.mulf %88, %90 : vector<16x128xf32>
    %c0_72 = arith.constant 0 : index
    %c0_73 = arith.constant 0 : index
    %92 = vector.load %arg16[%c0_72, %c0_73] : memref<1x128xf32, #tpu.memory_space<vmem>>, vector<1x128xf32>
    %93 = vector.broadcast %92 : vector<1x128xf32> to vector<16x128xf32>
    %94 = arith.addf %91, %93 : vector<16x128xf32>
    %95 = arith.addf %94, %37 : vector<16x128xf32>
    %cst_74 = arith.constant 0.000000e+00 : f32
    %96 = vector.broadcast %cst_74 : f32 to vector<16x128xf32>
    %97 = arith.cmpf oge, %95, %96 : vector<16x128xf32>
    %cst_75 = arith.constant 2.000000e-01 : f32
    %98 = vector.broadcast %cst_75 : f32 to vector<16x128xf32>
    %99 = arith.mulf %98, %95 : vector<16x128xf32>
    %100 = arith.select %97, %95, %99 : vector<16x128xi1>, vector<16x128xf32>
    %101 = math.tanh %100 : vector<16x128xf32>
    %c0_76 = arith.constant 0 : index
    %c0_77 = arith.constant 0 : index
    %102 = vector.load %arg17[%c0_76, %c0_77] : memref<8x16xbf16, #tpu.memory_space<vmem>>, vector<8x16xbf16>
    %103 = arith.truncf %101 : vector<16x128xf32> to vector<16x128xbf16>
    %cst_78 = arith.constant dense<0.000000e+00> : vector<8x128xf32>
    %104 = tpu.matmul %102, %103, %cst_78 {dimension_numbers = #tpu.dot_dimension_numbers<[1], [0], [0], [1], [0, 0, 1, 1], [], []>} : vector<8x16xbf16>, vector<16x128xbf16>, vector<8x128xf32> -> vector<8x128xf32>
    %c0_79 = arith.constant 0 : index
    %c0_80 = arith.constant 0 : index
    %105 = vector.load %arg18[%c0_79, %c0_80] : memref<128x64xbf16, #tpu.memory_space<vmem>>, vector<128x64xbf16>
    %106 = arith.truncf %104 : vector<8x128xf32> to vector<8x128xbf16>
    %cst_81 = arith.constant dense<0.000000e+00> : vector<8x64xf32>
    %107 = tpu.matmul %106, %105, %cst_81 {dimension_numbers = #tpu.dot_dimension_numbers<[1], [0], [0], [1], [0, 0, 1, 1], [], []>} : vector<8x128xbf16>, vector<128x64xbf16>, vector<8x64xf32> -> vector<8x64xf32>
    %c0_82 = arith.constant 0 : index
    %c0_83 = arith.constant 0 : index
    %108 = vector.load %arg19[%c0_82, %c0_83] : memref<8x8xbf16, #tpu.memory_space<vmem>>, vector<8x8xbf16>
    %109 = arith.truncf %107 : vector<8x64xf32> to vector<8x64xbf16>
    %cst_84 = arith.constant dense<0.000000e+00> : vector<8x64xf32>
    %110 = tpu.matmul %108, %109, %cst_84 {dimension_numbers = #tpu.dot_dimension_numbers<[1], [0], [0], [1], [0, 0, 1, 1], [], []>} : vector<8x8xbf16>, vector<8x64xbf16>, vector<8x64xf32> -> vector<8x64xf32>
    %c0_85 = arith.constant 0 : index
    %c0_86 = arith.constant 0 : index
    %111 = vector.load %arg20[%c0_85, %c0_86] : memref<8x8xbf16, #tpu.memory_space<vmem>>, vector<8x8xbf16>
    %112 = arith.truncf %107 : vector<8x64xf32> to vector<8x64xbf16>
    %cst_87 = arith.constant dense<0.000000e+00> : vector<8x64xf32>
    %113 = tpu.matmul %111, %112, %cst_87 {dimension_numbers = #tpu.dot_dimension_numbers<[1], [0], [0], [1], [0, 0, 1, 1], [], []>} : vector<8x8xbf16>, vector<8x64xbf16>, vector<8x64xf32> -> vector<8x64xf32>
    %c0_88 = arith.constant 0 : index
    %c0_89 = arith.constant 0 : index
    %c0_90 = arith.constant 0 : index
    %114 = vector.load %arg21[%c0_88, %c0_89, %c0_90] : memref<3x64x64xbf16, #tpu.memory_space<vmem>>, vector<1x64x64xbf16>
    %115 = vector.shape_cast %114 : vector<1x64x64xbf16> to vector<64x64xbf16>
    %116 = arith.truncf %110 : vector<8x64xf32> to vector<8x64xbf16>
    %cst_91 = arith.constant dense<0.000000e+00> : vector<8x64xf32>
    %117 = tpu.matmul %116, %115, %cst_91 {dimension_numbers = #tpu.dot_dimension_numbers<[1], [0], [0], [1], [0, 0, 1, 1], [], []>} : vector<8x64xbf16>, vector<64x64xbf16>, vector<8x64xf32> -> vector<8x64xf32>
    %c1_92 = arith.constant 1 : index
    %c0_93 = arith.constant 0 : index
    %c0_94 = arith.constant 0 : index
    %118 = vector.load %arg21[%c1_92, %c0_93, %c0_94] : memref<3x64x64xbf16, #tpu.memory_space<vmem>>, vector<1x64x64xbf16>
    %119 = vector.shape_cast %118 : vector<1x64x64xbf16> to vector<64x64xbf16>
    %120 = arith.truncf %107 : vector<8x64xf32> to vector<8x64xbf16>
    %cst_95 = arith.constant dense<0.000000e+00> : vector<8x64xf32>
    %121 = tpu.matmul %120, %119, %cst_95 {dimension_numbers = #tpu.dot_dimension_numbers<[1], [0], [0], [1], [0, 0, 1, 1], [], []>} : vector<8x64xbf16>, vector<64x64xbf16>, vector<8x64xf32> -> vector<8x64xf32>
    %122 = arith.addf %117, %121 : vector<8x64xf32>
    %c2_96 = arith.constant 2 : index
    %c0_97 = arith.constant 0 : index
    %c0_98 = arith.constant 0 : index
    %123 = vector.load %arg21[%c2_96, %c0_97, %c0_98] : memref<3x64x64xbf16, #tpu.memory_space<vmem>>, vector<1x64x64xbf16>
    %124 = vector.shape_cast %123 : vector<1x64x64xbf16> to vector<64x64xbf16>
    %125 = arith.truncf %113 : vector<8x64xf32> to vector<8x64xbf16>
    %cst_99 = arith.constant dense<0.000000e+00> : vector<8x64xf32>
    %126 = tpu.matmul %125, %124, %cst_99 {dimension_numbers = #tpu.dot_dimension_numbers<[1], [0], [0], [1], [0, 0, 1, 1], [], []>} : vector<8x64xbf16>, vector<64x64xbf16>, vector<8x64xf32> -> vector<8x64xf32>
    %127 = arith.addf %122, %126 : vector<8x64xf32>
    %c0_100 = arith.constant 0 : index
    %c0_101 = arith.constant 0 : index
    %128 = vector.load %arg22[%c0_100, %c0_101] : memref<1x64xf32, #tpu.memory_space<vmem>>, vector<1x64xf32>
    %129 = vector.broadcast %128 : vector<1x64xf32> to vector<8x64xf32>
    %130 = arith.mulf %127, %129 : vector<8x64xf32>
    %c0_102 = arith.constant 0 : index
    %c0_103 = arith.constant 0 : index
    %131 = vector.load %arg23[%c0_102, %c0_103] : memref<1x64xf32, #tpu.memory_space<vmem>>, vector<1x64xf32>
    %132 = vector.broadcast %131 : vector<1x64xf32> to vector<8x64xf32>
    %133 = arith.addf %130, %132 : vector<8x64xf32>
    %cst_104 = arith.constant 0.000000e+00 : f32
    %134 = vector.broadcast %cst_104 : f32 to vector<8x64xf32>
    %135 = arith.cmpf oge, %133, %134 : vector<8x64xf32>
    %cst_105 = arith.constant 2.000000e-01 : f32
    %136 = vector.broadcast %cst_105 : f32 to vector<8x64xf32>
    %137 = arith.mulf %136, %133 : vector<8x64xf32>
    %138 = arith.select %135, %133, %137 : vector<8x64xi1>, vector<8x64xf32>
    %c0_106 = arith.constant 0 : index
    %c0_107 = arith.constant 0 : index
    %139 = vector.load %arg19[%c0_106, %c0_107] : memref<8x8xbf16, #tpu.memory_space<vmem>>, vector<8x8xbf16>
    %140 = arith.truncf %138 : vector<8x64xf32> to vector<8x64xbf16>
    %cst_108 = arith.constant dense<0.000000e+00> : vector<8x64xf32>
    %141 = tpu.matmul %139, %140, %cst_108 {dimension_numbers = #tpu.dot_dimension_numbers<[1], [0], [0], [1], [0, 0, 1, 1], [], []>} : vector<8x8xbf16>, vector<8x64xbf16>, vector<8x64xf32> -> vector<8x64xf32>
    %c0_109 = arith.constant 0 : index
    %c0_110 = arith.constant 0 : index
    %142 = vector.load %arg20[%c0_109, %c0_110] : memref<8x8xbf16, #tpu.memory_space<vmem>>, vector<8x8xbf16>
    %143 = arith.truncf %138 : vector<8x64xf32> to vector<8x64xbf16>
    %cst_111 = arith.constant dense<0.000000e+00> : vector<8x64xf32>
    %144 = tpu.matmul %142, %143, %cst_111 {dimension_numbers = #tpu.dot_dimension_numbers<[1], [0], [0], [1], [0, 0, 1, 1], [], []>} : vector<8x8xbf16>, vector<8x64xbf16>, vector<8x64xf32> -> vector<8x64xf32>
    %c0_112 = arith.constant 0 : index
    %c0_113 = arith.constant 0 : index
    %c0_114 = arith.constant 0 : index
    %145 = vector.load %arg24[%c0_112, %c0_113, %c0_114] : memref<3x64x64xbf16, #tpu.memory_space<vmem>>, vector<1x64x64xbf16>
    %146 = vector.shape_cast %145 : vector<1x64x64xbf16> to vector<64x64xbf16>
    %147 = arith.truncf %141 : vector<8x64xf32> to vector<8x64xbf16>
    %cst_115 = arith.constant dense<0.000000e+00> : vector<8x64xf32>
    %148 = tpu.matmul %147, %146, %cst_115 {dimension_numbers = #tpu.dot_dimension_numbers<[1], [0], [0], [1], [0, 0, 1, 1], [], []>} : vector<8x64xbf16>, vector<64x64xbf16>, vector<8x64xf32> -> vector<8x64xf32>
    %c1_116 = arith.constant 1 : index
    %c0_117 = arith.constant 0 : index
    %c0_118 = arith.constant 0 : index
    %149 = vector.load %arg24[%c1_116, %c0_117, %c0_118] : memref<3x64x64xbf16, #tpu.memory_space<vmem>>, vector<1x64x64xbf16>
    %150 = vector.shape_cast %149 : vector<1x64x64xbf16> to vector<64x64xbf16>
    %151 = arith.truncf %138 : vector<8x64xf32> to vector<8x64xbf16>
    %cst_119 = arith.constant dense<0.000000e+00> : vector<8x64xf32>
    %152 = tpu.matmul %151, %150, %cst_119 {dimension_numbers = #tpu.dot_dimension_numbers<[1], [0], [0], [1], [0, 0, 1, 1], [], []>} : vector<8x64xbf16>, vector<64x64xbf16>, vector<8x64xf32> -> vector<8x64xf32>
    %153 = arith.addf %148, %152 : vector<8x64xf32>
    %c2_120 = arith.constant 2 : index
    %c0_121 = arith.constant 0 : index
    %c0_122 = arith.constant 0 : index
    %154 = vector.load %arg24[%c2_120, %c0_121, %c0_122] : memref<3x64x64xbf16, #tpu.memory_space<vmem>>, vector<1x64x64xbf16>
    %155 = vector.shape_cast %154 : vector<1x64x64xbf16> to vector<64x64xbf16>
    %156 = arith.truncf %144 : vector<8x64xf32> to vector<8x64xbf16>
    %cst_123 = arith.constant dense<0.000000e+00> : vector<8x64xf32>
    %157 = tpu.matmul %156, %155, %cst_123 {dimension_numbers = #tpu.dot_dimension_numbers<[1], [0], [0], [1], [0, 0, 1, 1], [], []>} : vector<8x64xbf16>, vector<64x64xbf16>, vector<8x64xf32> -> vector<8x64xf32>
    %158 = arith.addf %153, %157 : vector<8x64xf32>
    %c0_124 = arith.constant 0 : index
    %c0_125 = arith.constant 0 : index
    %159 = vector.load %arg25[%c0_124, %c0_125] : memref<1x64xf32, #tpu.memory_space<vmem>>, vector<1x64xf32>
    %160 = vector.broadcast %159 : vector<1x64xf32> to vector<8x64xf32>
    %161 = arith.mulf %158, %160 : vector<8x64xf32>
    %c0_126 = arith.constant 0 : index
    %c0_127 = arith.constant 0 : index
    %162 = vector.load %arg26[%c0_126, %c0_127] : memref<1x64xf32, #tpu.memory_space<vmem>>, vector<1x64xf32>
    %163 = vector.broadcast %162 : vector<1x64xf32> to vector<8x64xf32>
    %164 = arith.addf %161, %163 : vector<8x64xf32>
    %165 = arith.addf %164, %107 : vector<8x64xf32>
    %cst_128 = arith.constant 0.000000e+00 : f32
    %166 = vector.broadcast %cst_128 : f32 to vector<8x64xf32>
    %167 = arith.cmpf oge, %165, %166 : vector<8x64xf32>
    %cst_129 = arith.constant 2.000000e-01 : f32
    %168 = vector.broadcast %cst_129 : f32 to vector<8x64xf32>
    %169 = arith.mulf %168, %165 : vector<8x64xf32>
    %170 = arith.select %167, %165, %169 : vector<8x64xi1>, vector<8x64xf32>
    %171 = math.tanh %170 : vector<8x64xf32>
    %c0_130 = arith.constant 0 : index
    %c0_131 = arith.constant 0 : index
    %172 = vector.load %arg27[%c0_130, %c0_131] : memref<4x8xbf16, #tpu.memory_space<vmem>>, vector<4x8xbf16>
    %173 = arith.truncf %171 : vector<8x64xf32> to vector<8x64xbf16>
    %cst_132 = arith.constant dense<0.000000e+00> : vector<4x64xf32>
    %174 = tpu.matmul %172, %173, %cst_132 {dimension_numbers = #tpu.dot_dimension_numbers<[1], [0], [0], [1], [0, 0, 1, 1], [], []>} : vector<4x8xbf16>, vector<8x64xbf16>, vector<4x64xf32> -> vector<4x64xf32>
    %c0_133 = arith.constant 0 : index
    %c0_134 = arith.constant 0 : index
    %175 = vector.load %arg28[%c0_133, %c0_134] : memref<64x32xbf16, #tpu.memory_space<vmem>>, vector<64x32xbf16>
    %176 = arith.truncf %174 : vector<4x64xf32> to vector<4x64xbf16>
    %cst_135 = arith.constant dense<0.000000e+00> : vector<4x32xf32>
    %177 = tpu.matmul %176, %175, %cst_135 {dimension_numbers = #tpu.dot_dimension_numbers<[1], [0], [0], [1], [0, 0, 1, 1], [], []>} : vector<4x64xbf16>, vector<64x32xbf16>, vector<4x32xf32> -> vector<4x32xf32>
    %c0_136 = arith.constant 0 : index
    %c0_137 = arith.constant 0 : index
    %178 = vector.load %arg29[%c0_136, %c0_137] : memref<4x4xbf16, #tpu.memory_space<vmem>>, vector<4x4xbf16>
    %179 = arith.truncf %177 : vector<4x32xf32> to vector<4x32xbf16>
    %cst_138 = arith.constant dense<0.000000e+00> : vector<4x32xf32>
    %180 = tpu.matmul %178, %179, %cst_138 {dimension_numbers = #tpu.dot_dimension_numbers<[1], [0], [0], [1], [0, 0, 1, 1], [], []>} : vector<4x4xbf16>, vector<4x32xbf16>, vector<4x32xf32> -> vector<4x32xf32>
    %c0_139 = arith.constant 0 : index
    %c0_140 = arith.constant 0 : index
    %181 = vector.load %arg30[%c0_139, %c0_140] : memref<4x4xbf16, #tpu.memory_space<vmem>>, vector<4x4xbf16>
    %182 = arith.truncf %177 : vector<4x32xf32> to vector<4x32xbf16>
    %cst_141 = arith.constant dense<0.000000e+00> : vector<4x32xf32>
    %183 = tpu.matmul %181, %182, %cst_141 {dimension_numbers = #tpu.dot_dimension_numbers<[1], [0], [0], [1], [0, 0, 1, 1], [], []>} : vector<4x4xbf16>, vector<4x32xbf16>, vector<4x32xf32> -> vector<4x32xf32>
    %c0_142 = arith.constant 0 : index
    %c0_143 = arith.constant 0 : index
    %c0_144 = arith.constant 0 : index
    %184 = vector.load %arg31[%c0_142, %c0_143, %c0_144] : memref<3x32x32xbf16, #tpu.memory_space<vmem>>, vector<1x32x32xbf16>
    %185 = vector.shape_cast %184 : vector<1x32x32xbf16> to vector<32x32xbf16>
    %186 = arith.truncf %180 : vector<4x32xf32> to vector<4x32xbf16>
    %cst_145 = arith.constant dense<0.000000e+00> : vector<4x32xf32>
    %187 = tpu.matmul %186, %185, %cst_145 {dimension_numbers = #tpu.dot_dimension_numbers<[1], [0], [0], [1], [0, 0, 1, 1], [], []>} : vector<4x32xbf16>, vector<32x32xbf16>, vector<4x32xf32> -> vector<4x32xf32>
    %c1_146 = arith.constant 1 : index
    %c0_147 = arith.constant 0 : index
    %c0_148 = arith.constant 0 : index
    %188 = vector.load %arg31[%c1_146, %c0_147, %c0_148] : memref<3x32x32xbf16, #tpu.memory_space<vmem>>, vector<1x32x32xbf16>
    %189 = vector.shape_cast %188 : vector<1x32x32xbf16> to vector<32x32xbf16>
    %190 = arith.truncf %177 : vector<4x32xf32> to vector<4x32xbf16>
    %cst_149 = arith.constant dense<0.000000e+00> : vector<4x32xf32>
    %191 = tpu.matmul %190, %189, %cst_149 {dimension_numbers = #tpu.dot_dimension_numbers<[1], [0], [0], [1], [0, 0, 1, 1], [], []>} : vector<4x32xbf16>, vector<32x32xbf16>, vector<4x32xf32> -> vector<4x32xf32>
    %192 = arith.addf %187, %191 : vector<4x32xf32>
    %c2_150 = arith.constant 2 : index
    %c0_151 = arith.constant 0 : index
    %c0_152 = arith.constant 0 : index
    %193 = vector.load %arg31[%c2_150, %c0_151, %c0_152] : memref<3x32x32xbf16, #tpu.memory_space<vmem>>, vector<1x32x32xbf16>
    %194 = vector.shape_cast %193 : vector<1x32x32xbf16> to vector<32x32xbf16>
    %195 = arith.truncf %183 : vector<4x32xf32> to vector<4x32xbf16>
    %cst_153 = arith.constant dense<0.000000e+00> : vector<4x32xf32>
    %196 = tpu.matmul %195, %194, %cst_153 {dimension_numbers = #tpu.dot_dimension_numbers<[1], [0], [0], [1], [0, 0, 1, 1], [], []>} : vector<4x32xbf16>, vector<32x32xbf16>, vector<4x32xf32> -> vector<4x32xf32>
    %197 = arith.addf %192, %196 : vector<4x32xf32>
    %c0_154 = arith.constant 0 : index
    %c0_155 = arith.constant 0 : index
    %198 = vector.load %arg32[%c0_154, %c0_155] : memref<1x32xf32, #tpu.memory_space<vmem>>, vector<1x32xf32>
    %199 = vector.broadcast %198 : vector<1x32xf32> to vector<4x32xf32>
    %200 = arith.mulf %197, %199 : vector<4x32xf32>
    %c0_156 = arith.constant 0 : index
    %c0_157 = arith.constant 0 : index
    %201 = vector.load %arg33[%c0_156, %c0_157] : memref<1x32xf32, #tpu.memory_space<vmem>>, vector<1x32xf32>
    %202 = vector.broadcast %201 : vector<1x32xf32> to vector<4x32xf32>
    %203 = arith.addf %200, %202 : vector<4x32xf32>
    %cst_158 = arith.constant 0.000000e+00 : f32
    %204 = vector.broadcast %cst_158 : f32 to vector<4x32xf32>
    %205 = arith.cmpf oge, %203, %204 : vector<4x32xf32>
    %cst_159 = arith.constant 2.000000e-01 : f32
    %206 = vector.broadcast %cst_159 : f32 to vector<4x32xf32>
    %207 = arith.mulf %206, %203 : vector<4x32xf32>
    %208 = arith.select %205, %203, %207 : vector<4x32xi1>, vector<4x32xf32>
    %c0_160 = arith.constant 0 : index
    %c0_161 = arith.constant 0 : index
    %209 = vector.load %arg29[%c0_160, %c0_161] : memref<4x4xbf16, #tpu.memory_space<vmem>>, vector<4x4xbf16>
    %210 = arith.truncf %208 : vector<4x32xf32> to vector<4x32xbf16>
    %cst_162 = arith.constant dense<0.000000e+00> : vector<4x32xf32>
    %211 = tpu.matmul %209, %210, %cst_162 {dimension_numbers = #tpu.dot_dimension_numbers<[1], [0], [0], [1], [0, 0, 1, 1], [], []>} : vector<4x4xbf16>, vector<4x32xbf16>, vector<4x32xf32> -> vector<4x32xf32>
    %c0_163 = arith.constant 0 : index
    %c0_164 = arith.constant 0 : index
    %212 = vector.load %arg30[%c0_163, %c0_164] : memref<4x4xbf16, #tpu.memory_space<vmem>>, vector<4x4xbf16>
    %213 = arith.truncf %208 : vector<4x32xf32> to vector<4x32xbf16>
    %cst_165 = arith.constant dense<0.000000e+00> : vector<4x32xf32>
    %214 = tpu.matmul %212, %213, %cst_165 {dimension_numbers = #tpu.dot_dimension_numbers<[1], [0], [0], [1], [0, 0, 1, 1], [], []>} : vector<4x4xbf16>, vector<4x32xbf16>, vector<4x32xf32> -> vector<4x32xf32>
    %c0_166 = arith.constant 0 : index
    %c0_167 = arith.constant 0 : index
    %c0_168 = arith.constant 0 : index
    %215 = vector.load %arg34[%c0_166, %c0_167, %c0_168] : memref<3x32x32xbf16, #tpu.memory_space<vmem>>, vector<1x32x32xbf16>
    %216 = vector.shape_cast %215 : vector<1x32x32xbf16> to vector<32x32xbf16>
    %217 = arith.truncf %211 : vector<4x32xf32> to vector<4x32xbf16>
    %cst_169 = arith.constant dense<0.000000e+00> : vector<4x32xf32>
    %218 = tpu.matmul %217, %216, %cst_169 {dimension_numbers = #tpu.dot_dimension_numbers<[1], [0], [0], [1], [0, 0, 1, 1], [], []>} : vector<4x32xbf16>, vector<32x32xbf16>, vector<4x32xf32> -> vector<4x32xf32>
    %c1_170 = arith.constant 1 : index
    %c0_171 = arith.constant 0 : index
    %c0_172 = arith.constant 0 : index
    %219 = vector.load %arg34[%c1_170, %c0_171, %c0_172] : memref<3x32x32xbf16, #tpu.memory_space<vmem>>, vector<1x32x32xbf16>
    %220 = vector.shape_cast %219 : vector<1x32x32xbf16> to vector<32x32xbf16>
    %221 = arith.truncf %208 : vector<4x32xf32> to vector<4x32xbf16>
    %cst_173 = arith.constant dense<0.000000e+00> : vector<4x32xf32>
    %222 = tpu.matmul %221, %220, %cst_173 {dimension_numbers = #tpu.dot_dimension_numbers<[1], [0], [0], [1], [0, 0, 1, 1], [], []>} : vector<4x32xbf16>, vector<32x32xbf16>, vector<4x32xf32> -> vector<4x32xf32>
    %223 = arith.addf %218, %222 : vector<4x32xf32>
    %c2_174 = arith.constant 2 : index
    %c0_175 = arith.constant 0 : index
    %c0_176 = arith.constant 0 : index
    %224 = vector.load %arg34[%c2_174, %c0_175, %c0_176] : memref<3x32x32xbf16, #tpu.memory_space<vmem>>, vector<1x32x32xbf16>
    %225 = vector.shape_cast %224 : vector<1x32x32xbf16> to vector<32x32xbf16>
    %226 = arith.truncf %214 : vector<4x32xf32> to vector<4x32xbf16>
    %cst_177 = arith.constant dense<0.000000e+00> : vector<4x32xf32>
    %227 = tpu.matmul %226, %225, %cst_177 {dimension_numbers = #tpu.dot_dimension_numbers<[1], [0], [0], [1], [0, 0, 1, 1], [], []>} : vector<4x32xbf16>, vector<32x32xbf16>, vector<4x32xf32> -> vector<4x32xf32>
    %228 = arith.addf %223, %227 : vector<4x32xf32>
    %c0_178 = arith.constant 0 : index
    %c0_179 = arith.constant 0 : index
    %229 = vector.load %arg35[%c0_178, %c0_179] : memref<1x32xf32, #tpu.memory_space<vmem>>, vector<1x32xf32>
    %230 = vector.broadcast %229 : vector<1x32xf32> to vector<4x32xf32>
    %231 = arith.mulf %228, %230 : vector<4x32xf32>
    %c0_180 = arith.constant 0 : index
    %c0_181 = arith.constant 0 : index
    %232 = vector.load %arg36[%c0_180, %c0_181] : memref<1x32xf32, #tpu.memory_space<vmem>>, vector<1x32xf32>
    %233 = vector.broadcast %232 : vector<1x32xf32> to vector<4x32xf32>
    %234 = arith.addf %231, %233 : vector<4x32xf32>
    %235 = arith.addf %234, %177 : vector<4x32xf32>
    %cst_182 = arith.constant 0.000000e+00 : f32
    %236 = vector.broadcast %cst_182 : f32 to vector<4x32xf32>
    %237 = arith.cmpf oge, %235, %236 : vector<4x32xf32>
    %cst_183 = arith.constant 2.000000e-01 : f32
    %238 = vector.broadcast %cst_183 : f32 to vector<4x32xf32>
    %239 = arith.mulf %238, %235 : vector<4x32xf32>
    %240 = arith.select %237, %235, %239 : vector<4x32xi1>, vector<4x32xf32>
    %241 = math.tanh %240 : vector<4x32xf32>
    %c0_184 = arith.constant 0 : index
    %c0_185 = arith.constant 0 : index
    %242 = vector.load %arg37[%c0_184, %c0_185] : memref<2x4xbf16, #tpu.memory_space<vmem>>, vector<2x4xbf16>
    %243 = arith.truncf %241 : vector<4x32xf32> to vector<4x32xbf16>
    %cst_186 = arith.constant dense<0.000000e+00> : vector<2x32xf32>
    %244 = tpu.matmul %242, %243, %cst_186 {dimension_numbers = #tpu.dot_dimension_numbers<[1], [0], [0], [1], [0, 0, 1, 1], [], []>} : vector<2x4xbf16>, vector<4x32xbf16>, vector<2x32xf32> -> vector<2x32xf32>
    %c0_187 = arith.constant 0 : index
    %c0_188 = arith.constant 0 : index
    %245 = vector.load %arg38[%c0_187, %c0_188] : memref<32x16xbf16, #tpu.memory_space<vmem>>, vector<32x16xbf16>
    %246 = arith.truncf %244 : vector<2x32xf32> to vector<2x32xbf16>
    %cst_189 = arith.constant dense<0.000000e+00> : vector<2x16xf32>
    %247 = tpu.matmul %246, %245, %cst_189 {dimension_numbers = #tpu.dot_dimension_numbers<[1], [0], [0], [1], [0, 0, 1, 1], [], []>} : vector<2x32xbf16>, vector<32x16xbf16>, vector<2x16xf32> -> vector<2x16xf32>
    %c0_190 = arith.constant 0 : index
    %c0_191 = arith.constant 0 : index
    %c0_192 = arith.constant 0 : index
    %248 = vector.load %arg39[%c0_190, %c0_191, %c0_192] : memref<1x16x16xbf16, #tpu.memory_space<vmem>>, vector<1x16x16xbf16>
    %249 = vector.shape_cast %248 : vector<1x16x16xbf16> to vector<16x16xbf16>
    %250 = arith.truncf %247 : vector<2x16xf32> to vector<2x16xbf16>
    %cst_193 = arith.constant dense<0.000000e+00> : vector<2x16xf32>
    %251 = tpu.matmul %250, %249, %cst_193 {dimension_numbers = #tpu.dot_dimension_numbers<[1], [0], [0], [1], [0, 0, 1, 1], [], []>} : vector<2x16xbf16>, vector<16x16xbf16>, vector<2x16xf32> -> vector<2x16xf32>
    %c0_194 = arith.constant 0 : index
    %c0_195 = arith.constant 0 : index
    %252 = vector.load %arg40[%c0_194, %c0_195] : memref<1x16xf32, #tpu.memory_space<vmem>>, vector<1x16xf32>
    %253 = vector.broadcast %252 : vector<1x16xf32> to vector<2x16xf32>
    %254 = arith.mulf %251, %253 : vector<2x16xf32>
    %c0_196 = arith.constant 0 : index
    %c0_197 = arith.constant 0 : index
    %255 = vector.load %arg41[%c0_196, %c0_197] : memref<1x16xf32, #tpu.memory_space<vmem>>, vector<1x16xf32>
    %256 = vector.broadcast %255 : vector<1x16xf32> to vector<2x16xf32>
    %257 = arith.addf %254, %256 : vector<2x16xf32>
    %cst_198 = arith.constant 0.000000e+00 : f32
    %258 = vector.broadcast %cst_198 : f32 to vector<2x16xf32>
    %259 = arith.cmpf oge, %257, %258 : vector<2x16xf32>
    %cst_199 = arith.constant 2.000000e-01 : f32
    %260 = vector.broadcast %cst_199 : f32 to vector<2x16xf32>
    %261 = arith.mulf %260, %257 : vector<2x16xf32>
    %262 = arith.select %259, %257, %261 : vector<2x16xi1>, vector<2x16xf32>
    %c0_200 = arith.constant 0 : index
    %c0_201 = arith.constant 0 : index
    %c0_202 = arith.constant 0 : index
    %263 = vector.load %arg42[%c0_200, %c0_201, %c0_202] : memref<1x16x16xbf16, #tpu.memory_space<vmem>>, vector<1x16x16xbf16>
    %264 = vector.shape_cast %263 : vector<1x16x16xbf16> to vector<16x16xbf16>
    %265 = arith.truncf %262 : vector<2x16xf32> to vector<2x16xbf16>
    %cst_203 = arith.constant dense<0.000000e+00> : vector<2x16xf32>
    %266 = tpu.matmul %265, %264, %cst_203 {dimension_numbers = #tpu.dot_dimension_numbers<[1], [0], [0], [1], [0, 0, 1, 1], [], []>} : vector<2x16xbf16>, vector<16x16xbf16>, vector<2x16xf32> -> vector<2x16xf32>
    %c0_204 = arith.constant 0 : index
    %c0_205 = arith.constant 0 : index
    %267 = vector.load %arg43[%c0_204, %c0_205] : memref<1x16xf32, #tpu.memory_space<vmem>>, vector<1x16xf32>
    %268 = vector.broadcast %267 : vector<1x16xf32> to vector<2x16xf32>
    %269 = arith.mulf %266, %268 : vector<2x16xf32>
    %c0_206 = arith.constant 0 : index
    %c0_207 = arith.constant 0 : index
    %270 = vector.load %arg44[%c0_206, %c0_207] : memref<1x16xf32, #tpu.memory_space<vmem>>, vector<1x16xf32>
    %271 = vector.broadcast %270 : vector<1x16xf32> to vector<2x16xf32>
    %272 = arith.addf %269, %271 : vector<2x16xf32>
    %273 = arith.addf %272, %247 : vector<2x16xf32>
    %cst_208 = arith.constant 0.000000e+00 : f32
    %274 = vector.broadcast %cst_208 : f32 to vector<2x16xf32>
    %275 = arith.cmpf oge, %273, %274 : vector<2x16xf32>
    %cst_209 = arith.constant 2.000000e-01 : f32
    %276 = vector.broadcast %cst_209 : f32 to vector<2x16xf32>
    %277 = arith.mulf %276, %273 : vector<2x16xf32>
    %278 = arith.select %275, %273, %277 : vector<2x16xi1>, vector<2x16xf32>
    %279 = math.tanh %278 : vector<2x16xf32>
    %c0_210 = arith.constant 0 : index
    %c0_211 = arith.constant 0 : index
    %280 = vector.load %arg45[%c0_210, %c0_211] : memref<16x512xbf16, #tpu.memory_space<vmem>>, vector<16x512xbf16>
    %281 = arith.truncf %279 : vector<2x16xf32> to vector<2x16xbf16>
    %cst_212 = arith.constant dense<0.000000e+00> : vector<2x512xf32>
    %282 = tpu.matmul %281, %280, %cst_212 {dimension_numbers = #tpu.dot_dimension_numbers<[1], [0], [0], [1], [0, 0, 1, 1], [], []>} : vector<2x16xbf16>, vector<16x512xbf16>, vector<2x512xf32> -> vector<2x512xf32>
    %c0_213 = arith.constant 0 : index
    %c0_214 = arith.constant 0 : index
    %283 = vector.load %arg46[%c0_213, %c0_214] : memref<1x512xf32, #tpu.memory_space<vmem>>, vector<1x512xf32>
    %284 = vector.broadcast %283 : vector<1x512xf32> to vector<2x512xf32>
    %285 = arith.addf %282, %284 : vector<2x512xf32>
    %cst_215 = arith.constant 0.000000e+00 : f32
    %286 = vector.broadcast %cst_215 : f32 to vector<2x512xf32>
    %287 = arith.maximumf %285, %286 : vector<2x512xf32>
    %c0_216 = arith.constant 0 : index
    %c0_217 = arith.constant 0 : index
    %288 = vector.load %arg47[%c0_216, %c0_217] : memref<512x512xbf16, #tpu.memory_space<vmem>>, vector<512x512xbf16>
    %289 = arith.truncf %287 : vector<2x512xf32> to vector<2x512xbf16>
    %cst_218 = arith.constant dense<0.000000e+00> : vector<2x512xf32>
    %290 = tpu.matmul %289, %288, %cst_218 {dimension_numbers = #tpu.dot_dimension_numbers<[1], [0], [0], [1], [0, 0, 1, 1], [], []>} : vector<2x512xbf16>, vector<512x512xbf16>, vector<2x512xf32> -> vector<2x512xf32>
    %c0_219 = arith.constant 0 : index
    %c0_220 = arith.constant 0 : index
    %291 = vector.load %arg48[%c0_219, %c0_220] : memref<1x512xf32, #tpu.memory_space<vmem>>, vector<1x512xf32>
    %292 = vector.broadcast %291 : vector<1x512xf32> to vector<2x512xf32>
    %293 = arith.addf %290, %292 : vector<2x512xf32>
    %cst_221 = arith.constant 0.000000e+00 : f32
    %294 = vector.broadcast %cst_221 : f32 to vector<2x512xf32>
    %295 = arith.maximumf %293, %294 : vector<2x512xf32>
    %c0_222 = arith.constant 0 : index
    %c0_223 = arith.constant 0 : index
    %296 = vector.load %arg49[%c0_222, %c0_223] : memref<512x8xbf16, #tpu.memory_space<vmem>>, vector<512x8xbf16>
    %297 = arith.truncf %295 : vector<2x512xf32> to vector<2x512xbf16>
    %cst_224 = arith.constant dense<0.000000e+00> : vector<2x8xf32>
    %298 = tpu.matmul %297, %296, %cst_224 {dimension_numbers = #tpu.dot_dimension_numbers<[1], [0], [0], [1], [0, 0, 1, 1], [], []>} : vector<2x512xbf16>, vector<512x8xbf16>, vector<2x8xf32> -> vector<2x8xf32>
    %c0_225 = arith.constant 0 : index
    %c0_226 = arith.constant 0 : index
    %299 = vector.load %arg50[%c0_225, %c0_226] : memref<1x8xf32, #tpu.memory_space<vmem>>, vector<1x8xf32>
    %300 = vector.broadcast %299 : vector<1x8xf32> to vector<2x8xf32>
    %301 = arith.addf %298, %300 : vector<2x8xf32>
    %c0_227 = arith.constant 0 : index
    %c0_228 = arith.constant 0 : index
    %302 = vector.load %arg51[%c0_227, %c0_228] : memref<2x8xf32, #tpu.memory_space<vmem>>, vector<2x8xf32>
    tpu.vector_store %arg51[%c0_227, %c0_228], %301 {strides = array<i32>} : memref<2x8xf32, #tpu.memory_space<vmem>>, vector<2x8xf32>,
    return
  }
  func.func @transform_0(%arg0: i32) -> (i32, i32) {
    %c0_i32 = arith.constant 0 : i32
    %c0_i32_0 = arith.constant 0 : i32
    %c0_i32_1 = arith.constant 0 : i32
    return %c0_i32, %c0_i32_0 : i32, i32
  }
  func.func @transform_1(%arg0: i32) -> (i32, i32) {
    %c0_i32 = arith.constant 0 : i32
    %c0_i32_0 = arith.constant 0 : i32
    %c0_i32_1 = arith.constant 0 : i32
    return %c0_i32, %c0_i32_0 : i32, i32
  }
  func.func @transform_2(%arg0: i32) -> (i32, i32) {
    %c0_i32 = arith.constant 0 : i32
    %c0_i32_0 = arith.constant 0 : i32
    %c0_i32_1 = arith.constant 0 : i32
    return %c0_i32, %c0_i32_0 : i32, i32
  }
  func.func @transform_3(%arg0: i32) -> (i32, i32, i32) {
    %c0_i32 = arith.constant 0 : i32
    %c0_i32_0 = arith.constant 0 : i32
    %c0_i32_1 = arith.constant 0 : i32
    %c0_i32_2 = arith.constant 0 : i32
    return %c0_i32, %c0_i32_0, %c0_i32_1 : i32, i32, i32
  }
  func.func @transform_4(%arg0: i32) -> (i32, i32) {
    %c0_i32 = arith.constant 0 : i32
    %c0_i32_0 = arith.constant 0 : i32
    %c0_i32_1 = arith.constant 0 : i32
    return %c0_i32, %c0_i32_0 : i32, i32
  }
  func.func @transform_5(%arg0: i32) -> (i32, i32) {
    %c0_i32 = arith.constant 0 : i32
    %c0_i32_0 = arith.constant 0 : i32
    %c0_i32_1 = arith.constant 0 : i32
    return %c0_i32, %c0_i32_0 : i32, i32
  }
  func.func @transform_6(%arg0: i32) -> (i32, i32) {
    %c0_i32 = arith.constant 0 : i32
    %c0_i32_0 = arith.constant 0 : i32
    %c0_i32_1 = arith.constant 0 : i32
    return %c0_i32, %c0_i32_0 : i32, i32
  }
  func.func @transform_7(%arg0: i32) -> (i32, i32) {
    %c0_i32 = arith.constant 0 : i32
    %c0_i32_0 = arith.constant 0 : i32
    %c0_i32_1 = arith.constant 0 : i32
    return %c0_i32, %c0_i32_0 : i32, i32
  }
  func.func @transform_8(%arg0: i32) -> (i32, i32) {
    %c0_i32 = arith.constant 0 : i32
    %c0_i32_0 = arith.constant 0 : i32
    %c0_i32_1 = arith.constant 0 : i32
    return %c0_i32, %c0_i32_0 : i32, i32
  }
  func.func @transform_9(%arg0: i32) -> (i32, i32) {
    %c0_i32 = arith.constant 0 : i32
    %c0_i32_0 = arith.constant 0 : i32
    %c0_i32_1 = arith.constant 0 : i32
    return %c0_i32, %c0_i32_0 : i32, i32
  }
  func.func @transform_10(%arg0: i32) -> (i32, i32, i32) {
    %c0_i32 = arith.constant 0 : i32
    %c0_i32_0 = arith.constant 0 : i32
    %c0_i32_1 = arith.constant 0 : i32
    %c0_i32_2 = arith.constant 0 : i32
    return %c0_i32, %c0_i32_0, %c0_i32_1 : i32, i32, i32
  }
  func.func @transform_11(%arg0: i32) -> (i32, i32) {
    %c0_i32 = arith.constant 0 : i32
    %c0_i32_0 = arith.constant 0 : i32
    %c0_i32_1 = arith.constant 0 : i32
    return %c0_i32, %c0_i32_0 : i32, i32
  }
  func.func @transform_12(%arg0: i32) -> (i32, i32) {
    %c0_i32 = arith.constant 0 : i32
    %c0_i32_0 = arith.constant 0 : i32
    %c0_i32_1 = arith.constant 0 : i32
    return %c0_i32, %c0_i32_0 : i32, i32
  }
  func.func @transform_13(%arg0: i32) -> (i32, i32, i32) {
    %c0_i32 = arith.constant 0 : i32
    %c0_i32_0 = arith.constant 0 : i32
    %c0_i32_1 = arith.constant 0 : i32
    %c0_i32_2 = arith.constant 0 : i32
    return %c0_i32, %c0_i32_0, %c0_i32_1 : i32, i32, i32
  }
  func.func @transform_14(%arg0: i32) -> (i32, i32) {
    %c0_i32 = arith.constant 0 : i32
    %c0_i32_0 = arith.constant 0 : i32
    %c0_i32_1 = arith.constant 0 : i32
    return %c0_i32, %c0_i32_0 : i32, i32
  }
  func.func @transform_15(%arg0: i32) -> (i32, i32) {
    %c0_i32 = arith.constant 0 : i32
    %c0_i32_0 = arith.constant 0 : i32
    %c0_i32_1 = arith.constant 0 : i32
    return %c0_i32, %c0_i32_0 : i32, i32
  }
  func.func @transform_16(%arg0: i32) -> (i32, i32) {
    %c0_i32 = arith.constant 0 : i32
    %c0_i32_0 = arith.constant 0 : i32
    %c0_i32_1 = arith.constant 0 : i32
    return %c0_i32, %c0_i32_0 : i32, i32
  }
  func.func @transform_17(%arg0: i32) -> (i32, i32) {
    %c0_i32 = arith.constant 0 : i32
    %c0_i32_0 = arith.constant 0 : i32
    %c0_i32_1 = arith.constant 0 : i32
    return %c0_i32, %c0_i32_0 : i32, i32
  }
  func.func @transform_18(%arg0: i32) -> (i32, i32) {
    %c0_i32 = arith.constant 0 : i32
    %c0_i32_0 = arith.constant 0 : i32
    %c0_i32_1 = arith.constant 0 : i32
    return %c0_i32, %c0_i32_0 : i32, i32
  }
  func.func @transform_19(%arg0: i32) -> (i32, i32) {
    %c0_i32 = arith.constant 0 : i32
    %c0_i32_0 = arith.constant 0 : i32
    %c0_i32_1 = arith.constant 0 : i32
    return %c0_i32, %c0_i32_0 : i32, i32
  }
  func.func @transform_20(%arg0: i32) -> (i32, i32, i32) {
    %c0_i32 = arith.constant 0 : i32
    %c0_i32_0 = arith.constant 0 : i32
    %c0_i32_1 = arith.constant 0 : i32
    %c0_i32_2 = arith.constant 0 : i32
    return %c0_i32, %c0_i32_0, %c0_i32_1 : i32, i32, i32
  }
  func.func @transform_21(%arg0: i32) -> (i32, i32) {
    %c0_i32 = arith.constant 0 : i32
    %c0_i32_0 = arith.constant 0 : i32
    %c0_i32_1 = arith.constant 0 : i32
    return %c0_i32, %c0_i32_0 : i32, i32
  }
  func.func @transform_22(%arg0: i32) -> (i32, i32) {
    %c0_i32 = arith.constant 0 : i32
    %c0_i32_0 = arith.constant 0 : i32
    %c0_i32_1 = arith.constant 0 : i32
    return %c0_i32, %c0_i32_0 : i32, i32
  }
  func.func @transform_23(%arg0: i32) -> (i32, i32, i32) {
    %c0_i32 = arith.constant 0 : i32
    %c0_i32_0 = arith.constant 0 : i32
    %c0_i32_1 = arith.constant 0 : i32
    %c0_i32_2 = arith.constant 0 : i32
    return %c0_i32, %c0_i32_0, %c0_i32_1 : i32, i32, i32
  }
  func.func @transform_24(%arg0: i32) -> (i32, i32) {
    %c0_i32 = arith.constant 0 : i32
    %c0_i32_0 = arith.constant 0 : i32
    %c0_i32_1 = arith.constant 0 : i32
    return %c0_i32, %c0_i32_0 : i32, i32
  }
  func.func @transform_25(%arg0: i32) -> (i32, i32) {
    %c0_i32 = arith.constant 0 : i32
    %c0_i32_0 = arith.constant 0 : i32
    %c0_i32_1 = arith.constant 0 : i32
    return %c0_i32, %c0_i32_0 : i32, i32
  }
  func.func @transform_26(%arg0: i32) -> (i32, i32) {
    %c0_i32 = arith.constant 0 : i32
    %c0_i32_0 = arith.constant 0 : i32
    %c0_i32_1 = arith.constant 0 : i32
    return %c0_i32, %c0_i32_0 : i32, i32
  }
  func.func @transform_27(%arg0: i32) -> (i32, i32) {
    %c0_i32 = arith.constant 0 : i32
    %c0_i32_0 = arith.constant 0 : i32
    %c0_i32_1 = arith.constant 0 : i32
    return %c0_i32, %c0_i32_0 : i32, i32
  }
  func.func @transform_28(%arg0: i32) -> (i32, i32) {
    %c0_i32 = arith.constant 0 : i32
    %c0_i32_0 = arith.constant 0 : i32
    %c0_i32_1 = arith.constant 0 : i32
    return %c0_i32, %c0_i32_0 : i32, i32
  }
  func.func @transform_29(%arg0: i32) -> (i32, i32) {
    %c0_i32 = arith.constant 0 : i32
    %c0_i32_0 = arith.constant 0 : i32
    %c0_i32_1 = arith.constant 0 : i32
    return %c0_i32, %c0_i32_0 : i32, i32
  }
  func.func @transform_30(%arg0: i32) -> (i32, i32, i32) {
    %c0_i32 = arith.constant 0 : i32
    %c0_i32_0 = arith.constant 0 : i32
    %c0_i32_1 = arith.constant 0 : i32
    %c0_i32_2 = arith.constant 0 : i32
    return %c0_i32, %c0_i32_0, %c0_i32_1 : i32, i32, i32
  }
  func.func @transform_31(%arg0: i32) -> (i32, i32) {
    %c0_i32 = arith.constant 0 : i32
    %c0_i32_0 = arith.constant 0 : i32
    %c0_i32_1 = arith.constant 0 : i32
    return %c0_i32, %c0_i32_0 : i32, i32
  }
  func.func @transform_32(%arg0: i32) -> (i32, i32) {
    %c0_i32 = arith.constant 0 : i32
    %c0_i32_0 = arith.constant 0 : i32
    %c0_i32_1 = arith.constant 0 : i32
    return %c0_i32, %c0_i32_0 : i32, i32
  }
  func.func @transform_33(%arg0: i32) -> (i32, i32, i32) {
    %c0_i32 = arith.constant 0 : i32
    %c0_i32_0 = arith.constant 0 : i32
    %c0_i32_1 = arith.constant 0 : i32
    %c0_i32_2 = arith.constant 0 : i32
    return %c0_i32, %c0_i32_0, %c0_i32_1 : i32, i32, i32
  }
  func.func @transform_34(%arg0: i32) -> (i32, i32) {
    %c0_i32 = arith.constant 0 : i32
    %c0_i32_0 = arith.constant 0 : i32
    %c0_i32_1 = arith.constant 0 : i32
    return %c0_i32, %c0_i32_0 : i32, i32
  }
  func.func @transform_35(%arg0: i32) -> (i32, i32) {
    %c0_i32 = arith.constant 0 : i32
    %c0_i32_0 = arith.constant 0 : i32
    %c0_i32_1 = arith.constant 0 : i32
    return %c0_i32, %c0_i32_0 : i32, i32
  }
  func.func @transform_36(%arg0: i32) -> (i32, i32) {
    %c0_i32 = arith.constant 0 : i32
    %c0_i32_0 = arith.constant 0 : i32
    %c0_i32_1 = arith.constant 0 : i32
    return %c0_i32, %c0_i32_0 : i32, i32
  }
  func.func @transform_37(%arg0: i32) -> (i32, i32) {
    %c0_i32 = arith.constant 0 : i32
    %c0_i32_0 = arith.constant 0 : i32
    %c0_i32_1 = arith.constant 0 : i32
    return %c0_i32, %c0_i32_0 : i32, i32
  }
  func.func @transform_38(%arg0: i32) -> (i32, i32, i32) {
    %c0_i32 = arith.constant 0 : i32
    %c0_i32_0 = arith.constant 0 : i32
    %c0_i32_1 = arith.constant 0 : i32
    %c0_i32_2 = arith.constant 0 : i32
    return %c0_i32, %c0_i32_0, %c0_i32_1 : i32, i32, i32
  }
  func.func @transform_39(%arg0: i32) -> (i32, i32) {
    %c0_i32 = arith.constant 0 : i32
    %c0_i32_0 = arith.constant 0 : i32
    %c0_i32_1 = arith.constant 0 : i32
    return %c0_i32, %c0_i32_0 : i32, i32
  }
  func.func @transform_40(%arg0: i32) -> (i32, i32) {
    %c0_i32 = arith.constant 0 : i32
    %c0_i32_0 = arith.constant 0 : i32
    %c0_i32_1 = arith.constant 0 : i32
    return %c0_i32, %c0_i32_0 : i32, i32
  }
  func.func @transform_41(%arg0: i32) -> (i32, i32, i32) {
    %c0_i32 = arith.constant 0 : i32
    %c0_i32_0 = arith.constant 0 : i32
    %c0_i32_1 = arith.constant 0 : i32
    %c0_i32_2 = arith.constant 0 : i32
    return %c0_i32, %c0_i32_0, %c0_i32_1 : i32, i32, i32
  }
  func.func @transform_42(%arg0: i32) -> (i32, i32) {
    %c0_i32 = arith.constant 0 : i32
    %c0_i32_0 = arith.constant 0 : i32
    %c0_i32_1 = arith.constant 0 : i32
    return %c0_i32, %c0_i32_0 : i32, i32
  }
  func.func @transform_43(%arg0: i32) -> (i32, i32) {
    %c0_i32 = arith.constant 0 : i32
    %c0_i32_0 = arith.constant 0 : i32
    %c0_i32_1 = arith.constant 0 : i32
    return %c0_i32, %c0_i32_0 : i32, i32
  }
  func.func @transform_44(%arg0: i32) -> (i32, i32) {
    %c0_i32 = arith.constant 0 : i32
    %c0_i32_0 = arith.constant 0 : i32
    %c0_i32_1 = arith.constant 0 : i32
    return %c0_i32, %c0_i32_0 : i32, i32
  }
  func.func @transform_45(%arg0: i32) -> (i32, i32) {
    %c0_i32 = arith.constant 0 : i32
    %c0_i32_0 = arith.constant 0 : i32
    %c0_i32_1 = arith.constant 0 : i32
    return %c0_i32, %c0_i32_0 : i32, i32
  }
  func.func @transform_46(%arg0: i32) -> (i32, i32) {
    %c0_i32 = arith.constant 0 : i32
    %c0_i32_0 = arith.constant 0 : i32
    %c0_i32_1 = arith.constant 0 : i32
    return %c0_i32, %c0_i32_0 : i32, i32
  }
  func.func @transform_47(%arg0: i32) -> (i32, i32) {
    %c0_i32 = arith.constant 0 : i32
    %c0_i32_0 = arith.constant 0 : i32
    %c0_i32_1 = arith.constant 0 : i32
    return %c0_i32, %c0_i32_0 : i32, i32
  }
  func.func @transform_48(%arg0: i32) -> (i32, i32) {
    %c0_i32 = arith.constant 0 : i32
    %c0_i32_0 = arith.constant 0 : i32
    %c0_i32_1 = arith.constant 0 : i32
    return %c0_i32, %c0_i32_0 : i32, i32
  }
  func.func @transform_49(%arg0: i32) -> (i32, i32) {
    %c0_i32 = arith.constant 0 : i32
    %c0_i32_0 = arith.constant 0 : i32
    %c0_i32_1 = arith.constant 0 : i32
    return %c0_i32, %c0_i32_0 : i32, i32
  }
  func.func @transform_50(%arg0: i32) -> (i32, i32) {
    %c0_i32 = arith.constant 0 : i32
    %c0_i32_0 = arith.constant 0 : i32
    %c0_i32_1 = arith.constant 0 : i32
    return %c0_i32, %c0_i32_0 : i32, i32
  }
}

</mosaic_0001>

<llo_original>
// kernel: forward.1
$region0: #{forward.1}
  #allocation0 [shape = 'u32[]', space=smem, size = 0x4, offset = 0x4, fixed_abs, tag = 'smem constant byte address 0x4 - core index']
  #allocation1 [shape = 'u32[144,128]{1,0:T(1,128)}', space=vmem, size = 0x12000, scoped, tag = 'internal scratch']
  %s0 = inlined_call_operand.smem [shape: u32[51], index: -1, kind: input, shape index: {}]
  %s1 = sld [smem:[%s0]]
  %s2 = scalar_lea.smem %s0, 1
  %s3 = sld [smem:[%s2]]
  %s4 = scalar_lea.smem %s0, 2
  %s5 = sld [smem:[%s4]]
  %s6 = scalar_lea.smem %s0, 3
  %s7 = sld [smem:[%s6]]
  %s8 = scalar_lea.smem %s0, 4
  %s9 = sld [smem:[%s8]]
  %s10 = scalar_lea.smem %s0, 5
  %s11 = sld [smem:[%s10]]
  %s12 = scalar_lea.smem %s0, 6
  %s13 = sld [smem:[%s12]]
  %s14 = scalar_lea.smem %s0, 7
  %s15 = sld [smem:[%s14]]
  %s16 = scalar_lea.smem %s0, 8
  %s17 = sld [smem:[%s16]]
  %s18 = scalar_lea.smem %s0, 9
  %s19 = sld [smem:[%s18]]
  %s20 = scalar_lea.smem %s0, 10
  %s21 = sld [smem:[%s20]]
  %s22 = scalar_lea.smem %s0, 11
  %s23 = sld [smem:[%s22]]
  %s24 = scalar_lea.smem %s0, 12
  %s25 = sld [smem:[%s24]]
  %s26 = scalar_lea.smem %s0, 13
  %s27 = sld [smem:[%s26]]
  %s28 = scalar_lea.smem %s0, 14
  %s29 = sld [smem:[%s28]]
  %s30 = scalar_lea.smem %s0, 15
  %s31 = sld [smem:[%s30]]
  %s32 = scalar_lea.smem %s0, 16
  %s33 = sld [smem:[%s32]]
  %s34 = scalar_lea.smem %s0, 17
  %s35 = sld [smem:[%s34]]
  %s36 = scalar_lea.smem %s0, 18
  %s37 = sld [smem:[%s36]]
  %s38 = scalar_lea.smem %s0, 19
  %s39 = sld [smem:[%s38]]
  %s40 = scalar_lea.smem %s0, 20
  %s41 = sld [smem:[%s40]]
  %s42 = scalar_lea.smem %s0, 21
  %s43 = sld [smem:[%s42]]
  %s44 = scalar_lea.smem %s0, 22
  %s45 = sld [smem:[%s44]]
  %s46 = scalar_lea.smem %s0, 23
  %s47 = sld [smem:[%s46]]
  %s48 = scalar_lea.smem %s0, 24
  %s49 = sld [smem:[%s48]]
  %s50 = scalar_lea.smem %s0, 25
  %s51 = sld [smem:[%s50]]
  %s52 = scalar_lea.smem %s0, 26
  %s53 = sld [smem:[%s52]]
  %s54 = scalar_lea.smem %s0, 27
  %s55 = sld [smem:[%s54]]
  %s56 = scalar_lea.smem %s0, 28
  %s57 = sld [smem:[%s56]]
  %s58 = scalar_lea.smem %s0, 29
  %s59 = sld [smem:[%s58]]
  %s60 = scalar_lea.smem %s0, 30
  %s61 = sld [smem:[%s60]]
  %s62 = scalar_lea.smem %s0, 31
  %s63 = sld [smem:[%s62]]
  %s64 = scalar_lea.smem %s0, 32
  %s65 = sld [smem:[%s64]]
  %s66 = scalar_lea.smem %s0, 33
  %s67 = sld [smem:[%s66]]
  %s68 = scalar_lea.smem %s0, 34
  %s69 = sld [smem:[%s68]]
  %s70 = scalar_lea.smem %s0, 35
  %s71 = sld [smem:[%s70]]
  %s72 = scalar_lea.smem %s0, 36
  %s73 = sld [smem:[%s72]]
  %s74 = scalar_lea.smem %s0, 37
  %s75 = sld [smem:[%s74]]
  %s76 = scalar_lea.smem %s0, 38
  %s77 = sld [smem:[%s76]]
  %s78 = scalar_lea.smem %s0, 39
  %s79 = sld [smem:[%s78]]
  %s80 = scalar_lea.smem %s0, 40
  %s81 = sld [smem:[%s80]]
  %s82 = scalar_lea.smem %s0, 41
  %s83 = sld [smem:[%s82]]
  %s84 = scalar_lea.smem %s0, 42
  %s85 = sld [smem:[%s84]]
  %s86 = scalar_lea.smem %s0, 43
  %s87 = sld [smem:[%s86]]
  %s88 = scalar_lea.smem %s0, 44
  %s89 = sld [smem:[%s88]]
  %s90 = scalar_lea.smem %s0, 45
  %s91 = sld [smem:[%s90]]
  %s92 = scalar_lea.smem %s0, 46
  %s93 = sld [smem:[%s92]]
  %s94 = scalar_lea.smem %s0, 47
  %s95 = sld [smem:[%s94]]
  %s96 = scalar_lea.smem %s0, 48
  %s97 = sld [smem:[%s96]]
  %s98 = scalar_lea.smem %s0, 49
  %s99 = sld [smem:[%s98]]
  %s100 = scalar_lea.smem %s0, 50
  %s101 = sld [smem:[%s100]]
  %s102 = sld [smem:[#allocation0]]
  $region378: #{forward.1} parent=0
    _
  %s104 = ssub.s32 1, %s102
  %s105 = scalar_select 0, %s104, %s102
  $region1: #{forward.1} parent=0
    #allocation2 [shape = 'u8[8192]{0}', space=vmem, size = 0x2000, scoped, tag = 'input window, operand 1, single buffered']
    #allocation3 [shape = 's32[1]{0}', space=sflag, size = 0x4, scoped, tag = 'scoped memory for forward.1']
    #allocation4 [shape = 's32[1]{0}', space=sflag, size = 0x4, scoped, tag = 'scoped memory for forward.1']
    #allocation5 [shape = 'u8[8192]{0}', space=vmem, size = 0x2000, scoped, tag = 'input window, operand 2, single buffered']
    #allocation6 [shape = 's32[1]{0}', space=sflag, size = 0x4, scoped, tag = 'scoped memory for forward.1']
    #allocation7 [shape = 'u8[1024]{0}', space=vmem, size = 0x400, scoped, tag = 'input window, operand 4, single buffered']
    #allocation8 [shape = 'u8[1024]{0}', space=vmem, size = 0x400, scoped, tag = 'input window, operand 5, single buffered']
    #allocation9 [shape = 's32[1]{0}', space=sflag, size = 0x4, scoped, tag = 'scoped memory for forward.1']
    #allocation10 [shape = 'u8[4096]{0}', space=vmem, size = 0x1000, scoped, tag = 'input window, operand 6, single buffered']
    #allocation11 [shape = 'u8[65536]{0}', space=vmem, size = 0x10000, scoped, tag = 'input window, operand 7, single buffered']
    #allocation12 [shape = 's32[1]{0}', space=sflag, size = 0x4, scoped, tag = 'scoped memory for forward.1']
    #allocation13 [shape = 'u8[4096]{0}', space=vmem, size = 0x1000, scoped, tag = 'input window, operand 8, single buffered']
    #allocation14 [shape = 'u8[4096]{0}', space=vmem, size = 0x1000, scoped, tag = 'input window, operand 9, single buffered']
    #allocation15 [shape = 's32[1]{0}', space=sflag, size = 0x4, scoped, tag = 'scoped memory for forward.1']
    #allocation16 [shape = 'u8[98304]{0}', space=vmem, size = 0x18000, scoped, tag = 'input window, operand 10, single buffered']
    #allocation17 [shape = 'u8[512]{0}', space=vmem, size = 0x400, scoped, tag = 'input window, operand 11, single buffered']
    #allocation18 [shape = 's32[1]{0}', space=sflag, size = 0x4, scoped, tag = 'scoped memory for forward.1']
    #allocation19 [shape = 'u8[512]{0}', space=vmem, size = 0x400, scoped, tag = 'input window, operand 12, single buffered']
    #allocation20 [shape = 'u8[512]{0}', space=vmem, size = 0x400, scoped, tag = 'input window, operand 14, single buffered']
    #allocation21 [shape = 's32[1]{0}', space=sflag, size = 0x4, scoped, tag = 'scoped memory for forward.1']
    #allocation22 [shape = 'u8[512]{0}', space=vmem, size = 0x400, scoped, tag = 'input window, operand 15, single buffered']
    #allocation23 [shape = 'u8[2048]{0}', space=vmem, size = 0x800, scoped, tag = 'input window, operand 16, single buffered']
    #allocation24 [shape = 's32[1]{0}', space=sflag, size = 0x4, scoped, tag = 'scoped memory for forward.1']
    #allocation25 [shape = 'u8[32768]{0}', space=vmem, size = 0x8000, scoped, tag = 'input window, operand 17, single buffered']
    #allocation26 [shape = 'u8[2048]{0}', space=vmem, size = 0x800, scoped, tag = 'input window, operand 18, single buffered']
    #allocation27 [shape = 's32[1]{0}', space=sflag, size = 0x4, scoped, tag = 'scoped memory for forward.1']
    #allocation28 [shape = 'u8[2048]{0}', space=vmem, size = 0x800, scoped, tag = 'input window, operand 19, single buffered']
    #allocation29 [shape = 'u8[49152]{0}', space=vmem, size = 0xc000, scoped, tag = 'input window, operand 20, single buffered']
    #allocation30 [shape = 's32[1]{0}', space=sflag, size = 0x4, scoped, tag = 'scoped memory for forward.1']
    #allocation31 [shape = 'u8[512]{0}', space=vmem, size = 0x400, scoped, tag = 'input window, operand 21, single buffered']
    #allocation32 [shape = 'u8[512]{0}', space=vmem, size = 0x400, scoped, tag = 'input window, operand 22, single buffered']
    #allocation33 [shape = 's32[1]{0}', space=sflag, size = 0x4, scoped, tag = 'scoped memory for forward.1']
    #allocation34 [shape = 'u8[49152]{0}', space=vmem, size = 0xc000, scoped, tag = 'input window, operand 23, single buffered']
    #allocation35 [shape = 'u8[512]{0}', space=vmem, size = 0x400, scoped, tag = 'input window, operand 24, single buffered']
    #allocation36 [shape = 's32[1]{0}', space=sflag, size = 0x4, scoped, tag = 'scoped memory for forward.1']
    #allocation37 [shape = 'u8[512]{0}', space=vmem, size = 0x400, scoped, tag = 'input window, operand 25, single buffered']
    #allocation38 [shape = 'u8[1024]{0}', space=vmem, size = 0x400, scoped, tag = 'input window, operand 26, single buffered']
    #allocation39 [shape = 's32[1]{0}', space=sflag, size = 0x4, scoped, tag = 'scoped memory for forward.1']
    #allocation40 [shape = 'u8[16384]{0}', space=vmem, size = 0x4000, scoped, tag = 'input window, operand 27, single buffered']
    #allocation41 [shape = 'u8[1024]{0}', space=vmem, size = 0x400, scoped, tag = 'input window, operand 28, single buffered']
    #allocation42 [shape = 's32[1]{0}', space=sflag, size = 0x4, scoped, tag = 'scoped memory for forward.1']
    #allocation43 [shape = 'u8[24576]{0}', space=vmem, size = 0x6000, scoped, tag = 'input window, operand 30, single buffered']
    #allocation44 [shape = 'u8[512]{0}', space=vmem, size = 0x400, scoped, tag = 'input window, operand 31, single buffered']
    #allocation45 [shape = 's32[1]{0}', space=sflag, size = 0x4, scoped, tag = 'scoped memory for forward.1']
    #allocation46 [shape = 'u8[512]{0}', space=vmem, size = 0x400, scoped, tag = 'input window, operand 32, single buffered']
    #allocation47 [shape = 'u8[512]{0}', space=vmem, size = 0x400, scoped, tag = 'input window, operand 34, single buffered']
    #allocation48 [shape = 's32[1]{0}', space=sflag, size = 0x4, scoped, tag = 'scoped memory for forward.1']
    #allocation49 [shape = 'u8[512]{0}', space=vmem, size = 0x400, scoped, tag = 'input window, operand 35, single buffered']
    #allocation50 [shape = 'u8[512]{0}', space=vmem, size = 0x400, scoped, tag = 'input window, operand 36, single buffered']
    #allocation51 [shape = 's32[1]{0}', space=sflag, size = 0x4, scoped, tag = 'scoped memory for forward.1']
    #allocation52 [shape = 'u8[8192]{0}', space=vmem, size = 0x2000, scoped, tag = 'input window, operand 37, single buffered']
    #allocation53 [shape = 'u8[4096]{0}', space=vmem, size = 0x1000, scoped, tag = 'input window, operand 38, single buffered']
    #allocation54 [shape = 's32[1]{0}', space=sflag, size = 0x4, scoped, tag = 'scoped memory for forward.1']
    #allocation55 [shape = 'u8[512]{0}', space=vmem, size = 0x400, scoped, tag = 'input window, operand 39, single buffered']
    #allocation56 [shape = 'u8[512]{0}', space=vmem, size = 0x400, scoped, tag = 'input window, operand 40, single buffered']
    #allocation57 [shape = 's32[1]{0}', space=sflag, size = 0x4, scoped, tag = 'scoped memory for forward.1']
    #allocation58 [shape = 'u8[4096]{0}', space=vmem, size = 0x1000, scoped, tag = 'input window, operand 41, single buffered']
    #allocation59 [shape = 'u8[512]{0}', space=vmem, size = 0x400, scoped, tag = 'input window, operand 42, single buffered']
    #allocation60 [shape = 's32[1]{0}', space=sflag, size = 0x4, scoped, tag = 'scoped memory for forward.1']
    #allocation61 [shape = 'u8[512]{0}', space=vmem, size = 0x400, scoped, tag = 'input window, operand 43, single buffered']
    #allocation62 [shape = 'u8[2048]{0}', space=vmem, size = 0x800, scoped, tag = 'input window, operand 45, single buffered']
    #allocation63 [shape = 's32[1]{0}', space=sflag, size = 0x4, scoped, tag = 'scoped memory for forward.1']
    #allocation64 [shape = 'u8[524288]{0}', space=vmem, size = 0x80000, scoped, tag = 'input window, operand 46, single buffered']
    #allocation65 [shape = 'u8[2048]{0}', space=vmem, size = 0x800, scoped, tag = 'input window, operand 47, single buffered']
    #allocation66 [shape = 's32[1]{0}', space=sflag, size = 0x4, scoped, tag = 'scoped memory for forward.1']
    #allocation67 [shape = 'u8[1024]{0}', space=vmem, size = 0x400, scoped, tag = 'output window, operand 0, single buffered']
    %106 = vsyncpa [#allocation3], 0
    %107 = vsyncpa [#allocation6], 0
    %108 = vsyncpa [#allocation9], 0
    %109 = vsyncpa [#allocation12], 0
    %110 = vsyncpa [#allocation15], 0
    %111 = vsyncpa [#allocation18], 0
    %112 = vsyncpa [#allocation21], 0
    %113 = vsyncpa [#allocation24], 0
    %114 = vsyncpa [#allocation27], 0
    %115 = vsyncpa [#allocation30], 0
    %116 = vsyncpa [#allocation33], 0
    %117 = vsyncpa [#allocation36], 0
    %118 = vsyncpa [#allocation39], 0
    %119 = vsyncpa [#allocation42], 0
    %120 = vsyncpa [#allocation45], 0
    %121 = vsyncpa [#allocation48], 0
    %122 = vsyncpa [#allocation51], 0
    %123 = vsyncpa [#allocation54], 0
    %124 = vsyncpa [#allocation57], 0
    %125 = vsyncpa [#allocation60], 0
    %126 = vsyncpa [#allocation63], 0
    %127 = vsyncpa [#allocation66], 0
    %128 = vsyncpa [#allocation4], 0
    // Predicated region
    $region2: #{forward.1} parent=1 // pred_check
      _
    $region3: #{forward.1} parent=1 // pred_check_branch
      %130 = sbr.rel (0) target = $region5
    $region4: #{forward.1} parent=1 // pred_region
      _
    $region5: #{forward.1} parent=1 // pred_fallthru
      _
    // Predicated region
    $region6: #{forward.1} parent=1 // pred_check
      _
    $region7: #{forward.1} parent=1 // pred_check_branch
      %132 = sbr.rel (0) target = $region9
    $region8: #{forward.1} parent=1 // pred_region
      %s134 = ssub.s32 256, 256
      %135 = vsyncadd [#allocation3], %s134
      %s136 = sshll.u32 [#allocation2], 4
      %s137 = int_to_ptr.vmem [resolvable:$true] %s136
      %142 = dma.hbm_to_vmem [thread:$0]  %s3, 256, %s137, [#allocation3], 64, 64, 4
    $region9: #{forward.1} parent=1 // pred_fallthru
      _
    // Predicated region
    $region10: #{forward.1} parent=1 // pred_check
      _
    $region11: #{forward.1} parent=1 // pred_check_branch
      %144 = sbr.rel (0) target = $region13
    $region12: #{forward.1} parent=1 // pred_region
      %s146 = ssub.s32 256, 256
      %147 = vsyncadd [#allocation6], %s146
      %s148 = sshll.u32 [#allocation5], 4
      %s149 = int_to_ptr.vmem [resolvable:$true] %s148
      %154 = dma.hbm_to_vmem [thread:$0]  %s5, 256, %s149, [#allocation6], 64, 64, 4
    $region13: #{forward.1} parent=1 // pred_fallthru
      _
    // Predicated region
    $region14: #{forward.1} parent=1 // pred_check
      _
    $region15: #{forward.1} parent=1 // pred_check_branch
      %156 = sbr.rel (0) target = $region17
    $region16: #{forward.1} parent=1 // pred_region
      _
    $region17: #{forward.1} parent=1 // pred_fallthru
      _
    // Predicated region
    $region18: #{forward.1} parent=1 // pred_check
      _
    $region19: #{forward.1} parent=1 // pred_check_branch
      %158 = sbr.rel (0) target = $region21
    $region20: #{forward.1} parent=1 // pred_region
      %s160 = ssub.s32 32, 32
      %161 = vsyncadd [#allocation6], %s160
      %s163 = sshll.u32 [#allocation7], 4
      %s164 = int_to_ptr.vmem [resolvable:$true] %s163
      %166 = dma.hbm_to_vmem [thread:$0]  %s9, 32, %s164, [#allocation6]
    $region21: #{forward.1} parent=1 // pred_fallthru
      _
    // Predicated region
    $region22: #{forward.1} parent=1 // pred_check
      _
    $region23: #{forward.1} parent=1 // pred_check_branch
      %168 = sbr.rel (0) target = $region25
    $region24: #{forward.1} parent=1 // pred_region
      %s170 = ssub.s32 32, 32
      %171 = vsyncadd [#allocation9], %s170
      %s173 = sshll.u32 [#allocation8], 4
      %s174 = int_to_ptr.vmem [resolvable:$true] %s173
      %176 = dma.hbm_to_vmem [thread:$0]  %s11, 32, %s174, [#allocation9]
    $region25: #{forward.1} parent=1 // pred_fallthru
      _
    // Predicated region
    $region26: #{forward.1} parent=1 // pred_check
      _
    $region27: #{forward.1} parent=1 // pred_check_branch
      %178 = sbr.rel (0) target = $region29
    $region28: #{forward.1} parent=1 // pred_region
      %s180 = ssub.s32 128, 128
      %181 = vsyncadd [#allocation9], %s180
      %s182 = sshll.u32 [#allocation10], 4
      %s183 = int_to_ptr.vmem [resolvable:$true] %s182
      %188 = dma.hbm_to_vmem [thread:$0]  %s13, 128, %s183, [#allocation9], 64, 64, 4
    $region29: #{forward.1} parent=1 // pred_fallthru
      _
    // Predicated region
    $region30: #{forward.1} parent=1 // pred_check
      _
    $region31: #{forward.1} parent=1 // pred_check_branch
      %190 = sbr.rel (0) target = $region33
    $region32: #{forward.1} parent=1 // pred_region
      %s192 = ssub.s32 2048, 2048
      %193 = vsyncadd [#allocation12], %s192
      %s194 = sshll.u32 [#allocation11], 4
      %s195 = int_to_ptr.vmem [resolvable:$true] %s194
      %200 = dma.hbm_to_vmem [thread:$0]  %s15, 2048, %s195, [#allocation12], 64, 64, 4
    $region33: #{forward.1} parent=1 // pred_fallthru
      _
    // Predicated region
    $region34: #{forward.1} parent=1 // pred_check
      _
    $region35: #{forward.1} parent=1 // pred_check_branch
      %202 = sbr.rel (0) target = $region37
    $region36: #{forward.1} parent=1 // pred_region
      %s204 = ssub.s32 128, 128
      %205 = vsyncadd [#allocation12], %s204
      %s206 = sshll.u32 [#allocation13], 4
      %s207 = int_to_ptr.vmem [resolvable:$true] %s206
      %212 = dma.hbm_to_vmem [thread:$0]  %s17, 128, %s207, [#allocation12], 64, 64, 4
    $region37: #{forward.1} parent=1 // pred_fallthru
      _
    // Predicated region
    $region38: #{forward.1} parent=1 // pred_check
      _
    $region39: #{forward.1} parent=1 // pred_check_branch
      %214 = sbr.rel (0) target = $region41
    $region40: #{forward.1} parent=1 // pred_region
      %s216 = ssub.s32 128, 128
      %217 = vsyncadd [#allocation15], %s216
      %s218 = sshll.u32 [#allocation14], 4
      %s219 = int_to_ptr.vmem [resolvable:$true] %s218
      %224 = dma.hbm_to_vmem [thread:$0]  %s19, 128, %s219, [#allocation15], 64, 64, 4
    $region41: #{forward.1} parent=1 // pred_fallthru
      _
    // Predicated region
    $region42: #{forward.1} parent=1 // pred_check
      _
    $region43: #{forward.1} parent=1 // pred_check_branch
      %226 = sbr.rel (0) target = $region45
    $region44: #{forward.1} parent=1 // pred_region
      %s228 = ssub.s32 3072, 3072
      %229 = vsyncadd [#allocation15], %s228
      %s230 = sshll.u32 [#allocation16], 4
      %s231 = int_to_ptr.vmem [resolvable:$true] %s230
      %236 = dma.hbm_to_vmem [thread:$0]  %s21, 3072, %s231, [#allocation15], 64, 64, 4
    $region45: #{forward.1} parent=1 // pred_fallthru
      _
    // Predicated region
    $region46: #{forward.1} parent=1 // pred_check
      _
    $region47: #{forward.1} parent=1 // pred_check_branch
      %238 = sbr.rel (0) target = $region49
    $region48: #{forward.1} parent=1 // pred_region
      %s240 = ssub.s32 16, 16
      %241 = vsyncadd [#allocation18], %s240
      %s243 = sshll.u32 [#allocation17], 4
      %s244 = int_to_ptr.vmem [resolvable:$true] %s243
      %246 = dma.hbm_to_vmem [thread:$0]  %s23, 16, %s244, [#allocation18]
    $region49: #{forward.1} parent=1 // pred_fallthru
      _
    // Predicated region
    $region50: #{forward.1} parent=1 // pred_check
      _
    $region51: #{forward.1} parent=1 // pred_check_branch
      %248 = sbr.rel (0) target = $region53
    $region52: #{forward.1} parent=1 // pred_region
      %s250 = ssub.s32 16, 16
      %251 = vsyncadd [#allocation18], %s250
      %s253 = sshll.u32 [#allocation19], 4
      %s254 = int_to_ptr.vmem [resolvable:$true] %s253
      %256 = dma.hbm_to_vmem [thread:$0]  %s25, 16, %s254, [#allocation18]
    $region53: #{forward.1} parent=1 // pred_fallthru
      _
    // Predicated region
    $region54: #{forward.1} parent=1 // pred_check
      _
    $region55: #{forward.1} parent=1 // pred_check_branch
      %258 = sbr.rel (0) target = $region57
    $region56: #{forward.1} parent=1 // pred_region
      _
    $region57: #{forward.1} parent=1 // pred_fallthru
      _
    // Predicated region
    $region58: #{forward.1} parent=1 // pred_check
      _
    $region59: #{forward.1} parent=1 // pred_check_branch
      %260 = sbr.rel (0) target = $region61
    $region60: #{forward.1} parent=1 // pred_region
      %s262 = ssub.s32 16, 16
      %263 = vsyncadd [#allocation21], %s262
      %s265 = sshll.u32 [#allocation20], 4
      %s266 = int_to_ptr.vmem [resolvable:$true] %s265
      %268 = dma.hbm_to_vmem [thread:$0]  %s29, 16, %s266, [#allocation21]
    $region61: #{forward.1} parent=1 // pred_fallthru
      _
    // Predicated region
    $region62: #{forward.1} parent=1 // pred_check
      _
    $region63: #{forward.1} parent=1 // pred_check_branch
      %270 = sbr.rel (0) target = $region65
    $region64: #{forward.1} parent=1 // pred_region
      %s272 = ssub.s32 16, 16
      %273 = vsyncadd [#allocation21], %s272
      %s275 = sshll.u32 [#allocation22], 4
      %s276 = int_to_ptr.vmem [resolvable:$true] %s275
      %278 = dma.hbm_to_vmem [thread:$0]  %s31, 16, %s276, [#allocation21]
    $region65: #{forward.1} parent=1 // pred_fallthru
      _
    // Predicated region
    $region66: #{forward.1} parent=1 // pred_check
      _
    $region67: #{forward.1} parent=1 // pred_check_branch
      %280 = sbr.rel (0) target = $region69
    $region68: #{forward.1} parent=1 // pred_region
      %s282 = ssub.s32 64, 64
      %283 = vsyncadd [#allocation24], %s282
      %s285 = sshll.u32 [#allocation23], 4
      %s286 = int_to_ptr.vmem [resolvable:$true] %s285
      %288 = dma.hbm_to_vmem [thread:$0]  %s33, 64, %s286, [#allocation24]
    $region69: #{forward.1} parent=1 // pred_fallthru
      _
    // Predicated region
    $region70: #{forward.1} parent=1 // pred_check
      _
    $region71: #{forward.1} parent=1 // pred_check_branch
      %290 = sbr.rel (0) target = $region73
    $region72: #{forward.1} parent=1 // pred_region
      %s292 = ssub.s32 1024, 1024
      %293 = vsyncadd [#allocation24], %s292
      %s294 = sshll.u32 [#allocation25], 4
      %s295 = int_to_ptr.vmem [resolvable:$true] %s294
      %300 = dma.hbm_to_vmem [thread:$0]  %s35, 1024, %s295, [#allocation24], 64, 64, 4
    $region73: #{forward.1} parent=1 // pred_fallthru
      _
    // Predicated region
    $region74: #{forward.1} parent=1 // pred_check
      _
    $region75: #{forward.1} parent=1 // pred_check_branch
      %302 = sbr.rel (0) target = $region77
    $region76: #{forward.1} parent=1 // pred_region
      %s304 = ssub.s32 64, 64
      %305 = vsyncadd [#allocation27], %s304
      %s307 = sshll.u32 [#allocation26], 4
      %s308 = int_to_ptr.vmem [resolvable:$true] %s307
      %310 = dma.hbm_to_vmem [thread:$0]  %s37, 64, %s308, [#allocation27]
    $region77: #{forward.1} parent=1 // pred_fallthru
      _
    // Predicated region
    $region78: #{forward.1} parent=1 // pred_check
      _
    $region79: #{forward.1} parent=1 // pred_check_branch
      %312 = sbr.rel (0) target = $region81
    $region80: #{forward.1} parent=1 // pred_region
      %s314 = ssub.s32 64, 64
      %315 = vsyncadd [#allocation27], %s314
      %s317 = sshll.u32 [#allocation28], 4
      %s318 = int_to_ptr.vmem [resolvable:$true] %s317
      %320 = dma.hbm_to_vmem [thread:$0]  %s39, 64, %s318, [#allocation27]
    $region81: #{forward.1} parent=1 // pred_fallthru
      _
    // Predicated region
    $region82: #{forward.1} parent=1 // pred_check
      _
    $region83: #{forward.1} parent=1 // pred_check_branch
      %322 = sbr.rel (0) target = $region85
    $region84: #{forward.1} parent=1 // pred_region
      %s324 = ssub.s32 1536, 1536
      %325 = vsyncadd [#allocation30], %s324
      %s326 = sshll.u32 [#allocation29], 4
      %s327 = int_to_ptr.vmem [resolvable:$true] %s326
      %332 = dma.hbm_to_vmem [thread:$0]  %s41, 1536, %s327, [#allocation30], 64, 64, 4
    $region85: #{forward.1} parent=1 // pred_fallthru
      _
    // Predicated region
    $region86: #{forward.1} parent=1 // pred_check
      _
    $region87: #{forward.1} parent=1 // pred_check_branch
      %334 = sbr.rel (0) target = $region89
    $region88: #{forward.1} parent=1 // pred_region
      %s336 = ssub.s32 16, 16
      %337 = vsyncadd [#allocation30], %s336
      %s339 = sshll.u32 [#allocation31], 4
      %s340 = int_to_ptr.vmem [resolvable:$true] %s339
      %342 = dma.hbm_to_vmem [thread:$0]  %s43, 16, %s340, [#allocation30]
    $region89: #{forward.1} parent=1 // pred_fallthru
      _
    // Predicated region
    $region90: #{forward.1} parent=1 // pred_check
      _
    $region91: #{forward.1} parent=1 // pred_check_branch
      %344 = sbr.rel (0) target = $region93
    $region92: #{forward.1} parent=1 // pred_region
      %s346 = ssub.s32 16, 16
      %347 = vsyncadd [#allocation33], %s346
      %s349 = sshll.u32 [#allocation32], 4
      %s350 = int_to_ptr.vmem [resolvable:$true] %s349
      %352 = dma.hbm_to_vmem [thread:$0]  %s45, 16, %s350, [#allocation33]
    $region93: #{forward.1} parent=1 // pred_fallthru
      _
    // Predicated region
    $region94: #{forward.1} parent=1 // pred_check
      _
    $region95: #{forward.1} parent=1 // pred_check_branch
      %354 = sbr.rel (0) target = $region97
    $region96: #{forward.1} parent=1 // pred_region
      %s356 = ssub.s32 1536, 1536
      %357 = vsyncadd [#allocation33], %s356
      %s358 = sshll.u32 [#allocation34], 4
      %s359 = int_to_ptr.vmem [resolvable:$true] %s358
      %364 = dma.hbm_to_vmem [thread:$0]  %s47, 1536, %s359, [#allocation33], 64, 64, 4
    $region97: #{forward.1} parent=1 // pred_fallthru
      _
    // Predicated region
    $region98: #{forward.1} parent=1 // pred_check
      _
    $region99: #{forward.1} parent=1 // pred_check_branch
      %366 = sbr.rel (0) target = $region101
    $region100: #{forward.1} parent=1 // pred_region
      %s368 = ssub.s32 16, 16
      %369 = vsyncadd [#allocation36], %s368
      %s371 = sshll.u32 [#allocation35], 4
      %s372 = int_to_ptr.vmem [resolvable:$true] %s371
      %374 = dma.hbm_to_vmem [thread:$0]  %s49, 16, %s372, [#allocation36]
    $region101: #{forward.1} parent=1 // pred_fallthru
      _
    // Predicated region
    $region102: #{forward.1} parent=1 // pred_check
      _
    $region103: #{forward.1} parent=1 // pred_check_branch
      %376 = sbr.rel (0) target = $region105
    $region104: #{forward.1} parent=1 // pred_region
      %s378 = ssub.s32 16, 16
      %379 = vsyncadd [#allocation36], %s378
      %s381 = sshll.u32 [#allocation37], 4
      %s382 = int_to_ptr.vmem [resolvable:$true] %s381
      %384 = dma.hbm_to_vmem [thread:$0]  %s51, 16, %s382, [#allocation36]
    $region105: #{forward.1} parent=1 // pred_fallthru
      _
    // Predicated region
    $region106: #{forward.1} parent=1 // pred_check
      _
    $region107: #{forward.1} parent=1 // pred_check_branch
      %386 = sbr.rel (0) target = $region109
    $region108: #{forward.1} parent=1 // pred_region
      %s388 = ssub.s32 32, 32
      %389 = vsyncadd [#allocation39], %s388
      %s391 = sshll.u32 [#allocation38], 4
      %s392 = int_to_ptr.vmem [resolvable:$true] %s391
      %394 = dma.hbm_to_vmem [thread:$0]  %s53, 32, %s392, [#allocation39]
    $region109: #{forward.1} parent=1 // pred_fallthru
      _
    // Predicated region
    $region110: #{forward.1} parent=1 // pred_check
      _
    $region111: #{forward.1} parent=1 // pred_check_branch
      %396 = sbr.rel (0) target = $region113
    $region112: #{forward.1} parent=1 // pred_region
      %s398 = ssub.s32 512, 512
      %399 = vsyncadd [#allocation39], %s398
      %s400 = sshll.u32 [#allocation40], 4
      %s401 = int_to_ptr.vmem [resolvable:$true] %s400
      %406 = dma.hbm_to_vmem [thread:$0]  %s55, 512, %s401, [#allocation39], 64, 64, 4
    $region113: #{forward.1} parent=1 // pred_fallthru
      _
    // Predicated region
    $region114: #{forward.1} parent=1 // pred_check
      _
    $region115: #{forward.1} parent=1 // pred_check_branch
      %408 = sbr.rel (0) target = $region117
    $region116: #{forward.1} parent=1 // pred_region
      %s410 = ssub.s32 32, 32
      %411 = vsyncadd [#allocation42], %s410
      %s413 = sshll.u32 [#allocation41], 4
      %s414 = int_to_ptr.vmem [resolvable:$true] %s413
      %416 = dma.hbm_to_vmem [thread:$0]  %s57, 32, %s414, [#allocation42]
    $region117: #{forward.1} parent=1 // pred_fallthru
      _
    // Predicated region
    $region118: #{forward.1} parent=1 // pred_check
      _
    $region119: #{forward.1} parent=1 // pred_check_branch
      %418 = sbr.rel (0) target = $region121
    $region120: #{forward.1} parent=1 // pred_region
      _
    $region121: #{forward.1} parent=1 // pred_fallthru
      _
    // Predicated region
    $region122: #{forward.1} parent=1 // pred_check
      _
    $region123: #{forward.1} parent=1 // pred_check_branch
      %420 = sbr.rel (0) target = $region125
    $region124: #{forward.1} parent=1 // pred_region
      %s422 = ssub.s32 768, 768
      %423 = vsyncadd [#allocation42], %s422
      %s424 = sshll.u32 [#allocation43], 4
      %s425 = int_to_ptr.vmem [resolvable:$true] %s424
      %430 = dma.hbm_to_vmem [thread:$0]  %s61, 768, %s425, [#allocation42], 64, 64, 4
    $region125: #{forward.1} parent=1 // pred_fallthru
      _
    // Predicated region
    $region126: #{forward.1} parent=1 // pred_check
      _
    $region127: #{forward.1} parent=1 // pred_check_branch
      %432 = sbr.rel (0) target = $region129
    $region128: #{forward.1} parent=1 // pred_region
      %s434 = ssub.s32 16, 16
      %435 = vsyncadd [#allocation45], %s434
      %s437 = sshll.u32 [#allocation44], 4
      %s438 = int_to_ptr.vmem [resolvable:$true] %s437
      %440 = dma.hbm_to_vmem [thread:$0]  %s63, 16, %s438, [#allocation45]
    $region129: #{forward.1} parent=1 // pred_fallthru
      _
    // Predicated region
    $region130: #{forward.1} parent=1 // pred_check
      _
    $region131: #{forward.1} parent=1 // pred_check_branch
      %442 = sbr.rel (0) target = $region133
    $region132: #{forward.1} parent=1 // pred_region
      %s444 = ssub.s32 16, 16
      %445 = vsyncadd [#allocation45], %s444
      %s447 = sshll.u32 [#allocation46], 4
      %s448 = int_to_ptr.vmem [resolvable:$true] %s447
      %450 = dma.hbm_to_vmem [thread:$0]  %s65, 16, %s448, [#allocation45]
    $region133: #{forward.1} parent=1 // pred_fallthru
      _
    // Predicated region
    $region134: #{forward.1} parent=1 // pred_check
      _
    $region135: #{forward.1} parent=1 // pred_check_branch
      %452 = sbr.rel (0) target = $region137
    $region136: #{forward.1} parent=1 // pred_region
      _
    $region137: #{forward.1} parent=1 // pred_fallthru
      _
    // Predicated region
    $region138: #{forward.1} parent=1 // pred_check
      _
    $region139: #{forward.1} parent=1 // pred_check_branch
      %454 = sbr.rel (0) target = $region141
    $region140: #{forward.1} parent=1 // pred_region
      %s456 = ssub.s32 16, 16
      %457 = vsyncadd [#allocation48], %s456
      %s459 = sshll.u32 [#allocation47], 4
      %s460 = int_to_ptr.vmem [resolvable:$true] %s459
      %462 = dma.hbm_to_vmem [thread:$0]  %s69, 16, %s460, [#allocation48]
    $region141: #{forward.1} parent=1 // pred_fallthru
      _
    // Predicated region
    $region142: #{forward.1} parent=1 // pred_check
      _
    $region143: #{forward.1} parent=1 // pred_check_branch
      %464 = sbr.rel (0) target = $region145
    $region144: #{forward.1} parent=1 // pred_region
      %s466 = ssub.s32 16, 16
      %467 = vsyncadd [#allocation48], %s466
      %s469 = sshll.u32 [#allocation49], 4
      %s470 = int_to_ptr.vmem [resolvable:$true] %s469
      %472 = dma.hbm_to_vmem [thread:$0]  %s71, 16, %s470, [#allocation48]
    $region145: #{forward.1} parent=1 // pred_fallthru
      _
    // Predicated region
    $region146: #{forward.1} parent=1 // pred_check
      _
    $region147: #{forward.1} parent=1 // pred_check_branch
      %474 = sbr.rel (0) target = $region149
    $region148: #{forward.1} parent=1 // pred_region
      %s476 = ssub.s32 16, 16
      %477 = vsyncadd [#allocation51], %s476
      %s479 = sshll.u32 [#allocation50], 4
      %s480 = int_to_ptr.vmem [resolvable:$true] %s479
      %482 = dma.hbm_to_vmem [thread:$0]  %s73, 16, %s480, [#allocation51]
    $region149: #{forward.1} parent=1 // pred_fallthru
      _
    // Predicated region
    $region150: #{forward.1} parent=1 // pred_check
      _
    $region151: #{forward.1} parent=1 // pred_check_branch
      %484 = sbr.rel (0) target = $region153
    $region152: #{forward.1} parent=1 // pred_region
      %s486 = ssub.s32 256, 256
      %487 = vsyncadd [#allocation51], %s486
      %s488 = sshll.u32 [#allocation52], 4
      %s489 = int_to_ptr.vmem [resolvable:$true] %s488
      %494 = dma.hbm_to_vmem [thread:$0]  %s75, 256, %s489, [#allocation51], 64, 64, 4
    $region153: #{forward.1} parent=1 // pred_fallthru
      _
    // Predicated region
    $region154: #{forward.1} parent=1 // pred_check
      _
    $region155: #{forward.1} parent=1 // pred_check_branch
      %496 = sbr.rel (0) target = $region157
    $region156: #{forward.1} parent=1 // pred_region
      %s498 = ssub.s32 128, 128
      %499 = vsyncadd [#allocation54], %s498
      %s500 = sshll.u32 [#allocation53], 4
      %s501 = int_to_ptr.vmem [resolvable:$true] %s500
      %506 = dma.hbm_to_vmem [thread:$0]  %s77, 128, %s501, [#allocation54], 64, 64, 4
    $region157: #{forward.1} parent=1 // pred_fallthru
      _
    // Predicated region
    $region158: #{forward.1} parent=1 // pred_check
      _
    $region159: #{forward.1} parent=1 // pred_check_branch
      %508 = sbr.rel (0) target = $region161
    $region160: #{forward.1} parent=1 // pred_region
      %s510 = ssub.s32 16, 16
      %511 = vsyncadd [#allocation54], %s510
      %s513 = sshll.u32 [#allocation55], 4
      %s514 = int_to_ptr.vmem [resolvable:$true] %s513
      %516 = dma.hbm_to_vmem [thread:$0]  %s79, 16, %s514, [#allocation54]
    $region161: #{forward.1} parent=1 // pred_fallthru
      _
    // Predicated region
    $region162: #{forward.1} parent=1 // pred_check
      _
    $region163: #{forward.1} parent=1 // pred_check_branch
      %518 = sbr.rel (0) target = $region165
    $region164: #{forward.1} parent=1 // pred_region
      %s520 = ssub.s32 16, 16
      %521 = vsyncadd [#allocation57], %s520
      %s523 = sshll.u32 [#allocation56], 4
      %s524 = int_to_ptr.vmem [resolvable:$true] %s523
      %526 = dma.hbm_to_vmem [thread:$0]  %s81, 16, %s524, [#allocation57]
    $region165: #{forward.1} parent=1 // pred_fallthru
      _
    // Predicated region
    $region166: #{forward.1} parent=1 // pred_check
      _
    $region167: #{forward.1} parent=1 // pred_check_branch
      %528 = sbr.rel (0) target = $region169
    $region168: #{forward.1} parent=1 // pred_region
      %s530 = ssub.s32 128, 128
      %531 = vsyncadd [#allocation57], %s530
      %s532 = sshll.u32 [#allocation58], 4
      %s533 = int_to_ptr.vmem [resolvable:$true] %s532
      %538 = dma.hbm_to_vmem [thread:$0]  %s83, 128, %s533, [#allocation57], 64, 64, 4
    $region169: #{forward.1} parent=1 // pred_fallthru
      _
    // Predicated region
    $region170: #{forward.1} parent=1 // pred_check
      _
    $region171: #{forward.1} parent=1 // pred_check_branch
      %540 = sbr.rel (0) target = $region173
    $region172: #{forward.1} parent=1 // pred_region
      %s542 = ssub.s32 16, 16
      %543 = vsyncadd [#allocation60], %s542
      %s545 = sshll.u32 [#allocation59], 4
      %s546 = int_to_ptr.vmem [resolvable:$true] %s545
      %548 = dma.hbm_to_vmem [thread:$0]  %s85, 16, %s546, [#allocation60]
    $region173: #{forward.1} parent=1 // pred_fallthru
      _
    // Predicated region
    $region174: #{forward.1} parent=1 // pred_check
      _
    $region175: #{forward.1} parent=1 // pred_check_branch
      %550 = sbr.rel (0) target = $region177
    $region176: #{forward.1} parent=1 // pred_region
      %s552 = ssub.s32 16, 16
      %553 = vsyncadd [#allocation60], %s552
      %s555 = sshll.u32 [#allocation61], 4
      %s556 = int_to_ptr.vmem [resolvable:$true] %s555
      %558 = dma.hbm_to_vmem [thread:$0]  %s87, 16, %s556, [#allocation60]
    $region177: #{forward.1} parent=1 // pred_fallthru
      _
    // Predicated region
    $region178: #{forward.1} parent=1 // pred_check
      _
    $region179: #{forward.1} parent=1 // pred_check_branch
      %560 = sbr.rel (0) target = $region181
    $region180: #{forward.1} parent=1 // pred_region
      _
    $region181: #{forward.1} parent=1 // pred_fallthru
      _
    // Predicated region
    $region182: #{forward.1} parent=1 // pred_check
      _
    $region183: #{forward.1} parent=1 // pred_check_branch
      %562 = sbr.rel (0) target = $region185
    $region184: #{forward.1} parent=1 // pred_region
      %s564 = ssub.s32 64, 64
      %565 = vsyncadd [#allocation63], %s564
      %s567 = sshll.u32 [#allocation62], 4
      %s568 = int_to_ptr.vmem [resolvable:$true] %s567
      %570 = dma.hbm_to_vmem [thread:$0]  %s91, 64, %s568, [#allocation63]
    $region185: #{forward.1} parent=1 // pred_fallthru
      _
    // Predicated region
    $region186: #{forward.1} parent=1 // pred_check
      _
    $region187: #{forward.1} parent=1 // pred_check_branch
      %572 = sbr.rel (0) target = $region189
    $region188: #{forward.1} parent=1 // pred_region
      %s574 = ssub.s32 16384, 16384
      %575 = vsyncadd [#allocation63], %s574
      %s576 = sshll.u32 [#allocation64], 4
      %s577 = int_to_ptr.vmem [resolvable:$true] %s576
      %582 = dma.hbm_to_vmem [thread:$0]  %s93, 16384, %s577, [#allocation63], 256, 256, 16
    $region189: #{forward.1} parent=1 // pred_fallthru
      _
    // Predicated region
    $region190: #{forward.1} parent=1 // pred_check
      _
    $region191: #{forward.1} parent=1 // pred_check_branch
      %584 = sbr.rel (0) target = $region193
    $region192: #{forward.1} parent=1 // pred_region
      %s586 = ssub.s32 64, 64
      %587 = vsyncadd [#allocation66], %s586
      %s589 = sshll.u32 [#allocation65], 4
      %s590 = int_to_ptr.vmem [resolvable:$true] %s589
      %592 = dma.hbm_to_vmem [thread:$0]  %s95, 64, %s590, [#allocation66]
    $region193: #{forward.1} parent=1 // pred_fallthru
      _
    // Predicated region
    $region194: #{forward.1} parent=1 // pred_check
      _
    $region195: #{forward.1} parent=1 // pred_check_branch
      %594 = sbr.rel (0) target = $region197
    $region196: #{forward.1} parent=1 // pred_region
      _
    $region197: #{forward.1} parent=1 // pred_fallthru
      _
    // Predicated region
    $region198: #{forward.1} parent=1 // pred_check
      _
    $region199: #{forward.1} parent=1 // pred_check_branch
      %596 = sbr.rel (0) target = $region201
    $region200: #{forward.1} parent=1 // pred_region
      _
    $region201: #{forward.1} parent=1 // pred_fallthru
      _
    // Predicated region
    $region202: #{forward.1} parent=1 // pred_check
      _
    $region203: #{forward.1} parent=1 // pred_check_branch
      %598 = sbr.rel (0) target = $region205
    $region204: #{forward.1} parent=1 // pred_region
      %599 = dma.done [#allocation3], 256
    $region205: #{forward.1} parent=1 // pred_fallthru
      _
    // Predicated region
    $region206: #{forward.1} parent=1 // pred_check
      _
    $region207: #{forward.1} parent=1 // pred_check_branch
      %601 = sbr.rel (0) target = $region209
    $region208: #{forward.1} parent=1 // pred_region
      %602 = dma.done [#allocation6], 256
    $region209: #{forward.1} parent=1 // pred_fallthru
      _
    // Predicated region
    $region210: #{forward.1} parent=1 // pred_check
      _
    $region211: #{forward.1} parent=1 // pred_check_branch
      %604 = sbr.rel (0) target = $region213
    $region212: #{forward.1} parent=1 // pred_region
      %605 = dma.done [#allocation6], 32
    $region213: #{forward.1} parent=1 // pred_fallthru
      _
    // Predicated region
    $region214: #{forward.1} parent=1 // pred_check
      _
    $region215: #{forward.1} parent=1 // pred_check_branch
      %607 = sbr.rel (0) target = $region217
    $region216: #{forward.1} parent=1 // pred_region
      %608 = dma.done [#allocation9], 32
    $region217: #{forward.1} parent=1 // pred_fallthru
      _
    // Predicated region
    $region218: #{forward.1} parent=1 // pred_check
      _
    $region219: #{forward.1} parent=1 // pred_check_branch
      %610 = sbr.rel (0) target = $region221
    $region220: #{forward.1} parent=1 // pred_region
      %611 = dma.done [#allocation9], 128
    $region221: #{forward.1} parent=1 // pred_fallthru
      _
    // Predicated region
    $region222: #{forward.1} parent=1 // pred_check
      _
    $region223: #{forward.1} parent=1 // pred_check_branch
      %613 = sbr.rel (0) target = $region225
    $region224: #{forward.1} parent=1 // pred_region
      %614 = dma.done [#allocation12], 2048
    $region225: #{forward.1} parent=1 // pred_fallthru
      _
    // Predicated region
    $region226: #{forward.1} parent=1 // pred_check
      _
    $region227: #{forward.1} parent=1 // pred_check_branch
      %616 = sbr.rel (0) target = $region229
    $region228: #{forward.1} parent=1 // pred_region
      %617 = dma.done [#allocation12], 128
    $region229: #{forward.1} parent=1 // pred_fallthru
      _
    // Predicated region
    $region230: #{forward.1} parent=1 // pred_check
      _
    $region231: #{forward.1} parent=1 // pred_check_branch
      %619 = sbr.rel (0) target = $region233
    $region232: #{forward.1} parent=1 // pred_region
      %620 = dma.done [#allocation15], 128
    $region233: #{forward.1} parent=1 // pred_fallthru
      _
    // Predicated region
    $region234: #{forward.1} parent=1 // pred_check
      _
    $region235: #{forward.1} parent=1 // pred_check_branch
      %622 = sbr.rel (0) target = $region237
    $region236: #{forward.1} parent=1 // pred_region
      %623 = dma.done [#allocation15], 3072
    $region237: #{forward.1} parent=1 // pred_fallthru
      _
    // Predicated region
    $region238: #{forward.1} parent=1 // pred_check
      _
    $region239: #{forward.1} parent=1 // pred_check_branch
      %625 = sbr.rel (0) target = $region241
    $region240: #{forward.1} parent=1 // pred_region
      %626 = dma.done [#allocation18], 16
    $region241: #{forward.1} parent=1 // pred_fallthru
      _
    // Predicated region
    $region242: #{forward.1} parent=1 // pred_check
      _
    $region243: #{forward.1} parent=1 // pred_check_branch
      %628 = sbr.rel (0) target = $region245
    $region244: #{forward.1} parent=1 // pred_region
      %629 = dma.done [#allocation18], 16
    $region245: #{forward.1} parent=1 // pred_fallthru
      _
    // Predicated region
    $region246: #{forward.1} parent=1 // pred_check
      _
    $region247: #{forward.1} parent=1 // pred_check_branch
      %631 = sbr.rel (0) target = $region249
    $region248: #{forward.1} parent=1 // pred_region
      %632 = dma.done [#allocation21], 16
    $region249: #{forward.1} parent=1 // pred_fallthru
      _
    // Predicated region
    $region250: #{forward.1} parent=1 // pred_check
      _
    $region251: #{forward.1} parent=1 // pred_check_branch
      %634 = sbr.rel (0) target = $region253
    $region252: #{forward.1} parent=1 // pred_region
      %635 = dma.done [#allocation21], 16
    $region253: #{forward.1} parent=1 // pred_fallthru
      _
    // Predicated region
    $region254: #{forward.1} parent=1 // pred_check
      _
    $region255: #{forward.1} parent=1 // pred_check_branch
      %637 = sbr.rel (0) target = $region257
    $region256: #{forward.1} parent=1 // pred_region
      %638 = dma.done [#allocation24], 64
    $region257: #{forward.1} parent=1 // pred_fallthru
      _
    // Predicated region
    $region258: #{forward.1} parent=1 // pred_check
      _
    $region259: #{forward.1} parent=1 // pred_check_branch
      %640 = sbr.rel (0) target = $region261
    $region260: #{forward.1} parent=1 // pred_region
      %641 = dma.done [#allocation24], 1024
    $region261: #{forward.1} parent=1 // pred_fallthru
      _
    // Predicated region
    $region262: #{forward.1} parent=1 // pred_check
      _
    $region263: #{forward.1} parent=1 // pred_check_branch
      %643 = sbr.rel (0) target = $region265
    $region264: #{forward.1} parent=1 // pred_region
      %644 = dma.done [#allocation27], 64
    $region265: #{forward.1} parent=1 // pred_fallthru
      _
    // Predicated region
    $region266: #{forward.1} parent=1 // pred_check
      _
    $region267: #{forward.1} parent=1 // pred_check_branch
      %646 = sbr.rel (0) target = $region269
    $region268: #{forward.1} parent=1 // pred_region
      %647 = dma.done [#allocation27], 64
    $region269: #{forward.1} parent=1 // pred_fallthru
      _
    // Predicated region
    $region270: #{forward.1} parent=1 // pred_check
      _
    $region271: #{forward.1} parent=1 // pred_check_branch
      %649 = sbr.rel (0) target = $region273
    $region272: #{forward.1} parent=1 // pred_region
      %650 = dma.done [#allocation30], 1536
    $region273: #{forward.1} parent=1 // pred_fallthru
      _
    // Predicated region
    $region274: #{forward.1} parent=1 // pred_check
      _
    $region275: #{forward.1} parent=1 // pred_check_branch
      %652 = sbr.rel (0) target = $region277
    $region276: #{forward.1} parent=1 // pred_region
      %653 = dma.done [#allocation30], 16
    $region277: #{forward.1} parent=1 // pred_fallthru
      _
    // Predicated region
    $region278: #{forward.1} parent=1 // pred_check
      _
    $region279: #{forward.1} parent=1 // pred_check_branch
      %655 = sbr.rel (0) target = $region281
    $region280: #{forward.1} parent=1 // pred_region
      %656 = dma.done [#allocation33], 16
    $region281: #{forward.1} parent=1 // pred_fallthru
      _
    // Predicated region
    $region282: #{forward.1} parent=1 // pred_check
      _
    $region283: #{forward.1} parent=1 // pred_check_branch
      %658 = sbr.rel (0) target = $region285
    $region284: #{forward.1} parent=1 // pred_region
      %659 = dma.done [#allocation33], 1536
    $region285: #{forward.1} parent=1 // pred_fallthru
      _
    // Predicated region
    $region286: #{forward.1} parent=1 // pred_check
      _
    $region287: #{forward.1} parent=1 // pred_check_branch
      %661 = sbr.rel (0) target = $region289
    $region288: #{forward.1} parent=1 // pred_region
      %662 = dma.done [#allocation36], 16
    $region289: #{forward.1} parent=1 // pred_fallthru
      _
    // Predicated region
    $region290: #{forward.1} parent=1 // pred_check
      _
    $region291: #{forward.1} parent=1 // pred_check_branch
      %664 = sbr.rel (0) target = $region293
    $region292: #{forward.1} parent=1 // pred_region
      %665 = dma.done [#allocation36], 16
    $region293: #{forward.1} parent=1 // pred_fallthru
      _
    // Predicated region
    $region294: #{forward.1} parent=1 // pred_check
      _
    $region295: #{forward.1} parent=1 // pred_check_branch
      %667 = sbr.rel (0) target = $region297
    $region296: #{forward.1} parent=1 // pred_region
      %668 = dma.done [#allocation39], 32
    $region297: #{forward.1} parent=1 // pred_fallthru
      _
    // Predicated region
    $region298: #{forward.1} parent=1 // pred_check
      _
    $region299: #{forward.1} parent=1 // pred_check_branch
      %670 = sbr.rel (0) target = $region301
    $region300: #{forward.1} parent=1 // pred_region
      %671 = dma.done [#allocation39], 512
    $region301: #{forward.1} parent=1 // pred_fallthru
      _
    // Predicated region
    $region302: #{forward.1} parent=1 // pred_check
      _
    $region303: #{forward.1} parent=1 // pred_check_branch
      %673 = sbr.rel (0) target = $region305
    $region304: #{forward.1} parent=1 // pred_region
      %674 = dma.done [#allocation42], 32
    $region305: #{forward.1} parent=1 // pred_fallthru
      _
    // Predicated region
    $region306: #{forward.1} parent=1 // pred_check
      _
    $region307: #{forward.1} parent=1 // pred_check_branch
      %676 = sbr.rel (0) target = $region309
    $region308: #{forward.1} parent=1 // pred_region
      %677 = dma.done [#allocation42], 768
    $region309: #{forward.1} parent=1 // pred_fallthru
      _
    // Predicated region
    $region310: #{forward.1} parent=1 // pred_check
      _
    $region311: #{forward.1} parent=1 // pred_check_branch
      %679 = sbr.rel (0) target = $region313
    $region312: #{forward.1} parent=1 // pred_region
      %680 = dma.done [#allocation45], 16
    $region313: #{forward.1} parent=1 // pred_fallthru
      _
    // Predicated region
    $region314: #{forward.1} parent=1 // pred_check
      _
    $region315: #{forward.1} parent=1 // pred_check_branch
      %682 = sbr.rel (0) target = $region317
    $region316: #{forward.1} parent=1 // pred_region
      %683 = dma.done [#allocation45], 16
    $region317: #{forward.1} parent=1 // pred_fallthru
      _
    // Predicated region
    $region318: #{forward.1} parent=1 // pred_check
      _
    $region319: #{forward.1} parent=1 // pred_check_branch
      %685 = sbr.rel (0) target = $region321
    $region320: #{forward.1} parent=1 // pred_region
      %686 = dma.done [#allocation48], 16
    $region321: #{forward.1} parent=1 // pred_fallthru
      _
    // Predicated region
    $region322: #{forward.1} parent=1 // pred_check
      _
    $region323: #{forward.1} parent=1 // pred_check_branch
      %688 = sbr.rel (0) target = $region325
    $region324: #{forward.1} parent=1 // pred_region
      %689 = dma.done [#allocation48], 16
    $region325: #{forward.1} parent=1 // pred_fallthru
      _
    // Predicated region
    $region326: #{forward.1} parent=1 // pred_check
      _
    $region327: #{forward.1} parent=1 // pred_check_branch
      %691 = sbr.rel (0) target = $region329
    $region328: #{forward.1} parent=1 // pred_region
      %692 = dma.done [#allocation51], 16
    $region329: #{forward.1} parent=1 // pred_fallthru
      _
    // Predicated region
    $region330: #{forward.1} parent=1 // pred_check
      _
    $region331: #{forward.1} parent=1 // pred_check_branch
      %694 = sbr.rel (0) target = $region333
    $region332: #{forward.1} parent=1 // pred_region
      %695 = dma.done [#allocation51], 256
    $region333: #{forward.1} parent=1 // pred_fallthru
      _
    // Predicated region
    $region334: #{forward.1} parent=1 // pred_check
      _
    $region335: #{forward.1} parent=1 // pred_check_branch
      %697 = sbr.rel (0) target = $region337
    $region336: #{forward.1} parent=1 // pred_region
      %698 = dma.done [#allocation54], 128
    $region337: #{forward.1} parent=1 // pred_fallthru
      _
    // Predicated region
    $region338: #{forward.1} parent=1 // pred_check
      _
    $region339: #{forward.1} parent=1 // pred_check_branch
      %700 = sbr.rel (0) target = $region341
    $region340: #{forward.1} parent=1 // pred_region
      %701 = dma.done [#allocation54], 16
    $region341: #{forward.1} parent=1 // pred_fallthru
      _
    // Predicated region
    $region342: #{forward.1} parent=1 // pred_check
      _
    $region343: #{forward.1} parent=1 // pred_check_branch
      %703 = sbr.rel (0) target = $region345
    $region344: #{forward.1} parent=1 // pred_region
      %704 = dma.done [#allocation57], 16
    $region345: #{forward.1} parent=1 // pred_fallthru
      _
    // Predicated region
    $region346: #{forward.1} parent=1 // pred_check
      _
    $region347: #{forward.1} parent=1 // pred_check_branch
      %706 = sbr.rel (0) target = $region349
    $region348: #{forward.1} parent=1 // pred_region
      %707 = dma.done [#allocation57], 128
    $region349: #{forward.1} parent=1 // pred_fallthru
      _
    // Predicated region
    $region350: #{forward.1} parent=1 // pred_check
      _
    $region351: #{forward.1} parent=1 // pred_check_branch
      %709 = sbr.rel (0) target = $region353
    $region352: #{forward.1} parent=1 // pred_region
      %710 = dma.done [#allocation60], 16
    $region353: #{forward.1} parent=1 // pred_fallthru
      _
    // Predicated region
    $region354: #{forward.1} parent=1 // pred_check
      _
    $region355: #{forward.1} parent=1 // pred_check_branch
      %712 = sbr.rel (0) target = $region357
    $region356: #{forward.1} parent=1 // pred_region
      %713 = dma.done [#allocation60], 16
    $region357: #{forward.1} parent=1 // pred_fallthru
      _
    // Predicated region
    $region358: #{forward.1} parent=1 // pred_check
      _
    $region359: #{forward.1} parent=1 // pred_check_branch
      %715 = sbr.rel (0) target = $region361
    $region360: #{forward.1} parent=1 // pred_region
      %716 = dma.done [#allocation63], 64
    $region361: #{forward.1} parent=1 // pred_fallthru
      _
    // Predicated region
    $region362: #{forward.1} parent=1 // pred_check
      _
    $region363: #{forward.1} parent=1 // pred_check_branch
      %718 = sbr.rel (0) target = $region365
    $region364: #{forward.1} parent=1 // pred_region
      %719 = dma.done [#allocation63], 16384
    $region365: #{forward.1} parent=1 // pred_fallthru
      _
    // Predicated region
    $region366: #{forward.1} parent=1 // pred_check
      _
    $region367: #{forward.1} parent=1 // pred_check_branch
      %721 = sbr.rel (0) target = $region369
    $region368: #{forward.1} parent=1 // pred_region
      %722 = dma.done [#allocation66], 64
    $region369: #{forward.1} parent=1 // pred_fallthru
      _
    %v724 = vld [vmem:[%s1] sm:$0xff]
    %v725 = vld [vmem:[%s1 + $0x8] sm:$0xff]
    %v726 = vld [vmem:[%s1 + $0x10] sm:$0xff]
    %v727 = vld [vmem:[%s1 + $0x18] sm:$0xff]
    %v728 = vld [vmem:[#allocation2] sm:$0xf]
    %v729 = vld [vmem:[#allocation2 + $0x4] sm:$0xf]
    %v730 = vld [vmem:[#allocation2 + $0x8] sm:$0xf]
    %v731 = vld [vmem:[#allocation2 + $0xc] sm:$0xf]
    %v732 = vpack.c.bf16 %v725, %v724
    %v733 = vpack.c.bf16 %v727, %v726
    %v738 = vunpack.c.l.b16 %v728
    %v739 = vunpack.c.l.b16 %v729
    %v740 = vunpack.c.l.b16 %v730
    %v741 = vunpack.c.l.b16 %v731
    %v742 = vpack.c.b16 %v739, %v738
    %v743 = vpack.c.b16 %v741, %v740
    %vm744 = vcmask 261120
    %v746 = vsel %vm744, %v742, 0
    %v749 = vsel %vm744, %v743, 0
    %751 = vmatprep.subr.bf16.mxu0 0
    %752 = vmatpush1.bf16.msra.mxu0 0
    %753 = vmatprep.subr.bf16.mxu0 0
    %754 = vmatpush1.bf16.msra.mxu0 0
    %755 = vmatprep.subr.bf16.mxu0 0
    %756 = vmatpush1.bf16.msra.mxu0 0
    %757 = vmatprep.subr.bf16.mxu0 0
    %758 = vmatpush1.bf16.msra.mxu0 0
    %759 = vmatprep.subr.bf16.mxu0 0
    %760 = vmatpush1.bf16.msra.mxu0 0
    %761 = vmatprep.subr.bf16.mxu0 0
    %762 = vmatpush1.bf16.msra.mxu0 0
    %763 = vmatprep.subr.bf16.mxu0 0
    %764 = vmatpush1.bf16.msra.mxu0 %v733
    %765 = vmatprep.subr.bf16.mxu0 0
    %766 = vmatpush1.bf16.msra.mxu0 %v732
    %767 = vmatprep.subr.bf16.mxu0 0
    %768 = vmatpush2.bf16.msra.mxu0 0
    %769 = vmatprep.subr.bf16.mxu0 0
    %770 = vmatpush2.bf16.msra.mxu0 0
    %771 = vmatprep.subr.bf16.mxu0 0
    %772 = vmatpush2.bf16.msra.mxu0 0
    %773 = vmatprep.subr.bf16.mxu0 0
    %774 = vmatpush2.bf16.msra.mxu0 0
    %775 = vmatprep.subr.bf16.mxu0 0
    %776 = vmatpush2.bf16.msra.mxu0 0
    %777 = vmatprep.subr.bf16.mxu0 0
    %778 = vmatpush2.bf16.msra.mxu0 0
    %779 = vmatprep.subr.bf16.mxu0 0
    %780 = vmatpush2.bf16.msra.mxu0 0
    %781 = vmatprep.subr.bf16.mxu0 0
    %782 = vmatpush2.bf16.msra.mxu0 0
    %783 = vmatprep.mubr.bf16.mxu0 0
    %784 = vmatmul.mubr.bf16.gmra.mxu0 %v746
    %v785 = vpop.f32.mrf.mxu0
    %v786 = vadd.f32 0.0, %v785
    %v787 = vpop.f32.mrf.mxu0
    %v788 = vpop.f32.mrf.mxu0
    %v789 = vadd.f32 0.0, %v788
    %v790 = vpop.f32.mrf.mxu0
    %791 = vmatprep.mubr.bf16.mxu0 0
    %792 = vmatmul.mubr.bf16.gmra.mxu0 %v749
    %v793 = vpop.f32.mrf.mxu0
    %v794 = vadd.f32 0.0, %v793
    %v795 = vpop.f32.mrf.mxu0
    %v796 = vpop.f32.mrf.mxu0
    %v797 = vadd.f32 0.0, %v796
    %v798 = vpop.f32.mrf.mxu0
    %799 = vdwg.mxu0
    %v800 = vld [vmem:[#allocation5] sm:$0xf]
    %v801 = vld [vmem:[#allocation5 + $0x4] sm:$0xf]
    %v802 = vld [vmem:[#allocation5 + $0x8] sm:$0xf]
    %v803 = vld [vmem:[#allocation5 + $0xc] sm:$0xf]
    %v808 = vunpack.c.l.b16 %v800
    %v809 = vunpack.c.l.b16 %v801
    %v810 = vunpack.c.l.b16 %v802
    %v811 = vunpack.c.l.b16 %v803
    %v812 = vpack.c.b16 %v809, %v808
    %v813 = vpack.c.b16 %v811, %v810
    %v815 = vsel %vm744, %v812, 0
    %v818 = vsel %vm744, %v813, 0
    %820 = vmatprep.subr.bf16.mxu0 0
    %821 = vmatpush1.bf16.msra.mxu0 0
    %822 = vmatprep.subr.bf16.mxu0 0
    %823 = vmatpush1.bf16.msra.mxu0 0
    %824 = vmatprep.subr.bf16.mxu0 0
    %825 = vmatpush1.bf16.msra.mxu0 0
    %826 = vmatprep.subr.bf16.mxu0 0
    %827 = vmatpush1.bf16.msra.mxu0 0
    %828 = vmatprep.subr.bf16.mxu0 0
    %829 = vmatpush1.bf16.msra.mxu0 0
    %830 = vmatprep.subr.bf16.mxu0 0
    %831 = vmatpush1.bf16.msra.mxu0 0
    %832 = vmatprep.subr.bf16.mxu0 0
    %833 = vmatpush1.bf16.msra.mxu0 %v733
    %834 = vmatprep.subr.bf16.mxu0 0
    %835 = vmatpush1.bf16.msra.mxu0 %v732
    %836 = vmatprep.subr.bf16.mxu0 0
    %837 = vmatpush2.bf16.msra.mxu0 0
    %838 = vmatprep.subr.bf16.mxu0 0
    %839 = vmatpush2.bf16.msra.mxu0 0
    %840 = vmatprep.subr.bf16.mxu0 0
    %841 = vmatpush2.bf16.msra.mxu0 0
    %842 = vmatprep.subr.bf16.mxu0 0
    %843 = vmatpush2.bf16.msra.mxu0 0
    %844 = vmatprep.subr.bf16.mxu0 0
    %845 = vmatpush2.bf16.msra.mxu0 0
    %846 = vmatprep.subr.bf16.mxu0 0
    %847 = vmatpush2.bf16.msra.mxu0 0
    %848 = vmatprep.subr.bf16.mxu0 0
    %849 = vmatpush2.bf16.msra.mxu0 0
    %850 = vmatprep.subr.bf16.mxu0 0
    %851 = vmatpush2.bf16.msra.mxu0 0
    %852 = vmatprep.mubr.bf16.mxu0 0
    %853 = vmatmul.mubr.bf16.gmra.mxu0 %v815
    %v854 = vpop.f32.mrf.mxu0
    %v855 = vadd.f32 0.0, %v854
    %v856 = vpop.f32.mrf.mxu0
    %v857 = vpop.f32.mrf.mxu0
    %v858 = vadd.f32 0.0, %v857
    %v859 = vpop.f32.mrf.mxu0
    %860 = vmatprep.mubr.bf16.mxu0 0
    %861 = vmatmul.mubr.bf16.gmra.mxu0 %v818
    %v862 = vpop.f32.mrf.mxu0
    %v863 = vadd.f32 0.0, %v862
    %v864 = vpop.f32.mrf.mxu0
    %v865 = vpop.f32.mrf.mxu0
    %v866 = vadd.f32 0.0, %v865
    %v867 = vpop.f32.mrf.mxu0
    %868 = vdwg.mxu0
    %v869 = vld [vmem:[%s7] sm:$0xff]
    %v870 = vld [vmem:[%s7 + $0x8] sm:$0xff]
    %v871 = vld [vmem:[%s7 + $0x10] sm:$0xff]
    %v872 = vld [vmem:[%s7 + $0x18] sm:$0xff]
    %v873 = vld [vmem:[%s7 + $0x20] sm:$0xff]
    %v874 = vld [vmem:[%s7 + $0x28] sm:$0xff]
    %v875 = vld [vmem:[%s7 + $0x30] sm:$0xff]
    %v876 = vld [vmem:[%s7 + $0x38] sm:$0xff]
    %v877 = vld [vmem:[%s7 + $0x40] sm:$0xff]
    %v878 = vld [vmem:[%s7 + $0x48] sm:$0xff]
    %v879 = vld [vmem:[%s7 + $0x50] sm:$0xff]
    %v880 = vld [vmem:[%s7 + $0x58] sm:$0xff]
    %v881 = vpack.c.bf16 %v789, %v786
    %v882 = vpack.c.bf16 %v797, %v794
    %s883 = scalar_lea.vmem %s7, 96
    %v884 = vld [vmem:[%s883] sm:$0xff]
    %v885 = vld [vmem:[%s883 + $0x8] sm:$0xff]
    %v886 = vld [vmem:[%s883 + $0x10] sm:$0xff]
    %v887 = vld [vmem:[%s883 + $0x18] sm:$0xff]
    %v888 = vld [vmem:[%s883 + $0x20] sm:$0xff]
    %v889 = vld [vmem:[%s883 + $0x28] sm:$0xff]
    %v890 = vld [vmem:[%s883 + $0x30] sm:$0xff]
    %v891 = vld [vmem:[%s883 + $0x38] sm:$0xff]
    %v892 = vld [vmem:[%s883 + $0x40] sm:$0xff]
    %v893 = vld [vmem:[%s883 + $0x48] sm:$0xff]
    %v894 = vld [vmem:[%s883 + $0x50] sm:$0xff]
    %v895 = vld [vmem:[%s883 + $0x58] sm:$0xff]
    %v908 = vunpack.c.l.b16 %v884
    %v909 = vunpack.c.h.b16 %v884
    %v910 = vunpack.c.l.b16 %v885
    %v911 = vunpack.c.h.b16 %v885
    %v912 = vunpack.c.l.b16 %v886
    %v913 = vunpack.c.h.b16 %v886
    %v914 = vunpack.c.l.b16 %v887
    %v915 = vunpack.c.h.b16 %v887
    %v916 = vunpack.c.l.b16 %v888
    %v917 = vunpack.c.h.b16 %v888
    %v918 = vunpack.c.l.b16 %v889
    %v919 = vunpack.c.h.b16 %v889
    %v920 = vunpack.c.l.b16 %v890
    %v921 = vunpack.c.h.b16 %v890
    %v922 = vunpack.c.l.b16 %v891
    %v923 = vunpack.c.h.b16 %v891
    %v924 = vunpack.c.l.b16 %v892
    %v925 = vunpack.c.h.b16 %v892
    %v926 = vunpack.c.l.b16 %v893
    %v927 = vunpack.c.h.b16 %v893
    %v928 = vunpack.c.l.b16 %v894
    %v929 = vunpack.c.h.b16 %v894
    %v930 = vunpack.c.l.b16 %v895
    %v931 = vunpack.c.h.b16 %v895
    %v932 = vpack.c.b16 %v910, %v908
    %v933 = vpack.c.b16 %v911, %v909
    %v934 = vpack.c.b16 %v914, %v912
    %v935 = vpack.c.b16 %v915, %v913
    %v936 = vpack.c.b16 %v918, %v916
    %v937 = vpack.c.b16 %v919, %v917
    %v938 = vpack.c.b16 %v922, %v920
    %v939 = vpack.c.b16 %v923, %v921
    %v940 = vpack.c.b16 %v926, %v924
    %v941 = vpack.c.b16 %v927, %v925
    %v942 = vpack.c.b16 %v930, %v928
    %v943 = vpack.c.b16 %v931, %v929
    %vm956 = vcmask 785408
    %v958 = vsel %vm956, %v732, 0
    %v961 = vsel %vm956, %v733, 0
    %963 = vmatprep.subr.bf16.mxu0 0
    %964 = vmatpush1.bf16.msra.mxu0 0
    %965 = vmatprep.subr.bf16.mxu0 0
    %966 = vmatpush1.bf16.msra.mxu0 0
    %967 = vmatprep.subr.bf16.mxu0 %v943
    %968 = vmatpush1.bf16.msra.mxu0 %v942
    %969 = vmatprep.subr.bf16.mxu0 %v941
    %970 = vmatpush1.bf16.msra.mxu0 %v940
    %971 = vmatprep.subr.bf16.mxu0 %v939
    %972 = vmatpush1.bf16.msra.mxu0 %v938
    %973 = vmatprep.subr.bf16.mxu0 %v937
    %974 = vmatpush1.bf16.msra.mxu0 %v936
    %975 = vmatprep.subr.bf16.mxu0 %v935
    %976 = vmatpush1.bf16.msra.mxu0 %v934
    %977 = vmatprep.subr.bf16.mxu0 %v933
    %978 = vmatpush1.bf16.msra.mxu0 %v932
    %979 = vmatprep.subr.bf16.mxu0 0
    %980 = vmatpush2.bf16.msra.mxu0 0
    %981 = vmatprep.subr.bf16.mxu0 0
    %982 = vmatpush2.bf16.msra.mxu0 0
    %983 = vmatprep.subr.bf16.mxu0 0
    %984 = vmatpush2.bf16.msra.mxu0 0
    %985 = vmatprep.subr.bf16.mxu0 0
    %986 = vmatpush2.bf16.msra.mxu0 0
    %987 = vmatprep.subr.bf16.mxu0 0
    %988 = vmatpush2.bf16.msra.mxu0 0
    %989 = vmatprep.subr.bf16.mxu0 0
    %990 = vmatpush2.bf16.msra.mxu0 0
    %991 = vmatprep.subr.bf16.mxu0 0
    %992 = vmatpush2.bf16.msra.mxu0 0
    %993 = vmatprep.subr.bf16.mxu0 0
    %994 = vmatpush2.bf16.msra.mxu0 0
    %995 = vmatprep.mubr.bf16.mxu0 0
    %996 = vmatmul.mubr.bf16.gmra.mxu0 %v958
    %v997 = vpop.f32.mrf.mxu0
    %v998 = vadd.f32 0.0, %v997
    %v999 = vpop.f32.mrf.mxu0
    %v1000 = vadd.f32 0.0, %v999
    %v1001 = vpop.f32.mrf.mxu0
    %v1002 = vadd.f32 0.0, %v1001
    %v1003 = vpop.f32.mrf.mxu0
    %v1004 = vadd.f32 0.0, %v1003
    %1005 = vmatprep.mubr.bf16.mxu0 0
    %1006 = vmatmul.mubr.bf16.gmra.mxu0 %v961
    %v1007 = vpop.f32.mrf.mxu0
    %v1008 = vadd.f32 0.0, %v1007
    %v1009 = vpop.f32.mrf.mxu0
    %v1010 = vadd.f32 0.0, %v1009
    %v1011 = vpop.f32.mrf.mxu0
    %v1012 = vadd.f32 0.0, %v1011
    %v1013 = vpop.f32.mrf.mxu0
    %v1014 = vadd.f32 0.0, %v1013
    %1015 = vdwg.mxu0
    %v1028 = vunpack.c.l.b16 %v869
    %v1029 = vunpack.c.h.b16 %v869
    %v1030 = vunpack.c.l.b16 %v870
    %v1031 = vunpack.c.h.b16 %v870
    %v1032 = vunpack.c.l.b16 %v871
    %v1033 = vunpack.c.h.b16 %v871
    %v1034 = vunpack.c.l.b16 %v872
    %v1035 = vunpack.c.h.b16 %v872
    %v1036 = vunpack.c.l.b16 %v873
    %v1037 = vunpack.c.h.b16 %v873
    %v1038 = vunpack.c.l.b16 %v874
    %v1039 = vunpack.c.h.b16 %v874
    %v1040 = vunpack.c.l.b16 %v875
    %v1041 = vunpack.c.h.b16 %v875
    %v1042 = vunpack.c.l.b16 %v876
    %v1043 = vunpack.c.h.b16 %v876
    %v1044 = vunpack.c.l.b16 %v877
    %v1045 = vunpack.c.h.b16 %v877
    %v1046 = vunpack.c.l.b16 %v878
    %v1047 = vunpack.c.h.b16 %v878
    %v1048 = vunpack.c.l.b16 %v879
    %v1049 = vunpack.c.h.b16 %v879
    %v1050 = vunpack.c.l.b16 %v880
    %v1051 = vunpack.c.h.b16 %v880
    %v1052 = vpack.c.b16 %v1030, %v1028
    %v1053 = vpack.c.b16 %v1031, %v1029
    %v1054 = vpack.c.b16 %v1034, %v1032
    %v1055 = vpack.c.b16 %v1035, %v1033
    %v1056 = vpack.c.b16 %v1038, %v1036
    %v1057 = vpack.c.b16 %v1039, %v1037
    %v1058 = vpack.c.b16 %v1042, %v1040
    %v1059 = vpack.c.b16 %v1043, %v1041
    %v1060 = vpack.c.b16 %v1046, %v1044
    %v1061 = vpack.c.b16 %v1047, %v1045
    %v1062 = vpack.c.b16 %v1050, %v1048
    %v1063 = vpack.c.b16 %v1051, %v1049
    %v1077 = vsel %vm956, %v881, 0
    %v1080 = vsel %vm956, %v882, 0
    %1082 = vmatprep.subr.bf16.mxu0 0
    %1083 = vmatpush1.bf16.msra.mxu0 0
    %1084 = vmatprep.subr.bf16.mxu0 0
    %1085 = vmatpush1.bf16.msra.mxu0 0
    %1086 = vmatprep.subr.bf16.mxu0 %v1063
    %1087 = vmatpush1.bf16.msra.mxu0 %v1062
    %1088 = vmatprep.subr.bf16.mxu0 %v1061
    %1089 = vmatpush1.bf16.msra.mxu0 %v1060
    %1090 = vmatprep.subr.bf16.mxu0 %v1059
    %1091 = vmatpush1.bf16.msra.mxu0 %v1058
    %1092 = vmatprep.subr.bf16.mxu0 %v1057
    %1093 = vmatpush1.bf16.msra.mxu0 %v1056
    %1094 = vmatprep.subr.bf16.mxu0 %v1055
    %1095 = vmatpush1.bf16.msra.mxu0 %v1054
    %1096 = vmatprep.subr.bf16.mxu0 %v1053
    %1097 = vmatpush1.bf16.msra.mxu0 %v1052
    %1098 = vmatprep.subr.bf16.mxu0 0
    %1099 = vmatpush2.bf16.msra.mxu0 0
    %1100 = vmatprep.subr.bf16.mxu0 0
    %1101 = vmatpush2.bf16.msra.mxu0 0
    %1102 = vmatprep.subr.bf16.mxu0 0
    %1103 = vmatpush2.bf16.msra.mxu0 0
    %1104 = vmatprep.subr.bf16.mxu0 0
    %1105 = vmatpush2.bf16.msra.mxu0 0
    %1106 = vmatprep.subr.bf16.mxu0 0
    %1107 = vmatpush2.bf16.msra.mxu0 0
    %1108 = vmatprep.subr.bf16.mxu0 0
    %1109 = vmatpush2.bf16.msra.mxu0 0
    %1110 = vmatprep.subr.bf16.mxu0 0
    %1111 = vmatpush2.bf16.msra.mxu0 0
    %1112 = vmatprep.subr.bf16.mxu0 0
    %1113 = vmatpush2.bf16.msra.mxu0 0
    %1114 = vmatprep.mubr.bf16.mxu0 0
    %1115 = vmatmul.mubr.bf16.gmra.mxu0 %v1077
    %v1116 = vpop.f32.mrf.mxu0
    %v1117 = vadd.f32 %v998, %v1116
    %v1118 = vpop.f32.mrf.mxu0
    %v1119 = vadd.f32 %v1000, %v1118
    %v1120 = vpop.f32.mrf.mxu0
    %v1121 = vadd.f32 %v1002, %v1120
    %v1122 = vpop.f32.mrf.mxu0
    %v1123 = vadd.f32 %v1004, %v1122
    %1124 = vmatprep.mubr.bf16.mxu0 0
    %1125 = vmatmul.mubr.bf16.gmra.mxu0 %v1080
    %v1126 = vpop.f32.mrf.mxu0
    %v1127 = vadd.f32 %v1008, %v1126
    %v1128 = vpop.f32.mrf.mxu0
    %v1129 = vadd.f32 %v1010, %v1128
    %v1130 = vpop.f32.mrf.mxu0
    %v1131 = vadd.f32 %v1012, %v1130
    %v1132 = vpop.f32.mrf.mxu0
    %v1133 = vadd.f32 %v1014, %v1132
    %1134 = vdwg.mxu0
    %s1135 = scalar_lea.vmem %s7, 192
    %v1136 = vld [vmem:[%s1135] sm:$0xff]
    %v1137 = vld [vmem:[%s1135 + $0x8] sm:$0xff]
    %v1138 = vld [vmem:[%s1135 + $0x10] sm:$0xff]
    %v1139 = vld [vmem:[%s1135 + $0x18] sm:$0xff]
    %v1140 = vld [vmem:[%s1135 + $0x20] sm:$0xff]
    %v1141 = vld [vmem:[%s1135 + $0x28] sm:$0xff]
    %v1142 = vld [vmem:[%s1135 + $0x30] sm:$0xff]
    %v1143 = vld [vmem:[%s1135 + $0x38] sm:$0xff]
    %v1144 = vld [vmem:[%s1135 + $0x40] sm:$0xff]
    %v1145 = vld [vmem:[%s1135 + $0x48] sm:$0xff]
    %v1146 = vld [vmem:[%s1135 + $0x50] sm:$0xff]
    %v1147 = vld [vmem:[%s1135 + $0x58] sm:$0xff]
    %v1148 = vpack.c.bf16 %v858, %v855
    %v1149 = vpack.c.bf16 %v866, %v863
    %v1162 = vunpack.c.l.b16 %v1136
    %v1163 = vunpack.c.h.b16 %v1136
    %v1164 = vunpack.c.l.b16 %v1137
    %v1165 = vunpack.c.h.b16 %v1137
    %v1166 = vunpack.c.l.b16 %v1138
    %v1167 = vunpack.c.h.b16 %v1138
    %v1168 = vunpack.c.l.b16 %v1139
    %v1169 = vunpack.c.h.b16 %v1139
    %v1170 = vunpack.c.l.b16 %v1140
    %v1171 = vunpack.c.h.b16 %v1140
    %v1172 = vunpack.c.l.b16 %v1141
    %v1173 = vunpack.c.h.b16 %v1141
    %v1174 = vunpack.c.l.b16 %v1142
    %v1175 = vunpack.c.h.b16 %v1142
    %v1176 = vunpack.c.l.b16 %v1143
    %v1177 = vunpack.c.h.b16 %v1143
    %v1178 = vunpack.c.l.b16 %v1144
    %v1179 = vunpack.c.h.b16 %v1144
    %v1180 = vunpack.c.l.b16 %v1145
    %v1181 = vunpack.c.h.b16 %v1145
    %v1182 = vunpack.c.l.b16 %v1146
    %v1183 = vunpack.c.h.b16 %v1146
    %v1184 = vunpack.c.l.b16 %v1147
    %v1185 = vunpack.c.h.b16 %v1147
    %v1186 = vpack.c.b16 %v1164, %v1162
    %v1187 = vpack.c.b16 %v1165, %v1163
    %v1188 = vpack.c.b16 %v1168, %v1166
    %v1189 = vpack.c.b16 %v1169, %v1167
    %v1190 = vpack.c.b16 %v1172, %v1170
    %v1191 = vpack.c.b16 %v1173, %v1171
    %v1192 = vpack.c.b16 %v1176, %v1174
    %v1193 = vpack.c.b16 %v1177, %v1175
    %v1194 = vpack.c.b16 %v1180, %v1178
    %v1195 = vpack.c.b16 %v1181, %v1179
    %v1196 = vpack.c.b16 %v1184, %v1182
    %v1197 = vpack.c.b16 %v1185, %v1183
    %v1211 = vsel %vm956, %v1148, 0
    %v1214 = vsel %vm956, %v1149, 0
    %1216 = vmatprep.subr.bf16.mxu0 0
    %1217 = vmatpush1.bf16.msra.mxu0 0
    %1218 = vmatprep.subr.bf16.mxu0 0
    %1219 = vmatpush1.bf16.msra.mxu0 0
    %1220 = vmatprep.subr.bf16.mxu0 %v1197
    %1221 = vmatpush1.bf16.msra.mxu0 %v1196
    %1222 = vmatprep.subr.bf16.mxu0 %v1195
    %1223 = vmatpush1.bf16.msra.mxu0 %v1194
    %1224 = vmatprep.subr.bf16.mxu0 %v1193
    %1225 = vmatpush1.bf16.msra.mxu0 %v1192
    %1226 = vmatprep.subr.bf16.mxu0 %v1191
    %1227 = vmatpush1.bf16.msra.mxu0 %v1190
    %1228 = vmatprep.subr.bf16.mxu0 %v1189
    %1229 = vmatpush1.bf16.msra.mxu0 %v1188
    %1230 = vmatprep.subr.bf16.mxu0 %v1187
    %1231 = vmatpush1.bf16.msra.mxu0 %v1186
    %1232 = vmatprep.subr.bf16.mxu0 0
    %1233 = vmatpush2.bf16.msra.mxu0 0
    %1234 = vmatprep.subr.bf16.mxu0 0
    %1235 = vmatpush2.bf16.msra.mxu0 0
    %1236 = vmatprep.subr.bf16.mxu0 0
    %1237 = vmatpush2.bf16.msra.mxu0 0
    %1238 = vmatprep.subr.bf16.mxu0 0
    %1239 = vmatpush2.bf16.msra.mxu0 0
    %1240 = vmatprep.subr.bf16.mxu0 0
    %1241 = vmatpush2.bf16.msra.mxu0 0
    %1242 = vmatprep.subr.bf16.mxu0 0
    %1243 = vmatpush2.bf16.msra.mxu0 0
    %1244 = vmatprep.subr.bf16.mxu0 0
    %1245 = vmatpush2.bf16.msra.mxu0 0
    %1246 = vmatprep.subr.bf16.mxu0 0
    %1247 = vmatpush2.bf16.msra.mxu0 0
    %1248 = vmatprep.mubr.bf16.mxu0 0
    %1249 = vmatmul.mubr.bf16.gmra.mxu0 %v1211
    %v1250 = vpop.f32.mrf.mxu0
    %v1251 = vadd.f32 0.0, %v1250
    %v1252 = vpop.f32.mrf.mxu0
    %v1253 = vadd.f32 0.0, %v1252
    %v1254 = vpop.f32.mrf.mxu0
    %v1255 = vadd.f32 0.0, %v1254
    %v1256 = vpop.f32.mrf.mxu0
    %v1257 = vadd.f32 0.0, %v1256
    %1258 = vmatprep.mubr.bf16.mxu0 0
    %1259 = vmatmul.mubr.bf16.gmra.mxu0 %v1214
    %v1260 = vpop.f32.mrf.mxu0
    %v1261 = vadd.f32 0.0, %v1260
    %v1262 = vpop.f32.mrf.mxu0
    %v1263 = vadd.f32 0.0, %v1262
    %v1264 = vpop.f32.mrf.mxu0
    %v1265 = vadd.f32 0.0, %v1264
    %v1266 = vpop.f32.mrf.mxu0
    %v1267 = vadd.f32 0.0, %v1266
    %1268 = vdwg.mxu0
    %v1269 = vadd.f32 %v1117, %v1251
    %v1270 = vadd.f32 %v1119, %v1253
    %v1271 = vadd.f32 %v1121, %v1255
    %v1272 = vadd.f32 %v1123, %v1257
    %v1273 = vadd.f32 %v1127, %v1261
    %v1274 = vadd.f32 %v1129, %v1263
    %v1275 = vadd.f32 %v1131, %v1265
    %v1276 = vadd.f32 %v1133, %v1267
    %v1277 = vld [vmem:[#allocation7] sm:$0x3]
    %v1279 = vlaneseq
    %v1280 = vshrl.u32 %v1279, 7
    %v1281 = vsub.s32 0, %v1280
    %v1282 = vrot.slane %v1277, %v1281
    %v1283 = vlaneseq
    %v1284 = vshrl.u32 %v1283, 7
    %v1285 = vsub.s32 1, %v1284
    %v1286 = vrot.slane %v1277, %v1285
    %v1289 = vmul.f32 %v1269, %v1282
    %v1290 = vmul.f32 %v1270, %v1286
    %v1291 = vmul.f32 %v1271, %v1282
    %v1292 = vmul.f32 %v1272, %v1286
    %v1293 = vmul.f32 %v1273, %v1282
    %v1294 = vmul.f32 %v1274, %v1286
    %v1295 = vmul.f32 %v1275, %v1282
    %v1296 = vmul.f32 %v1276, %v1286
    %v1297 = vld [vmem:[#allocation8] sm:$0x3]
    %v1299 = vlaneseq
    %v1300 = vshrl.u32 %v1299, 7
    %v1301 = vsub.s32 0, %v1300
    %v1302 = vrot.slane %v1297, %v1301
    %v1303 = vlaneseq
    %v1304 = vshrl.u32 %v1303, 7
    %v1305 = vsub.s32 1, %v1304
    %v1306 = vrot.slane %v1297, %v1305
    %v1309 = vadd.f32 %v1289, %v1302
    %v1310 = vadd.f32 %v1290, %v1306
    %v1311 = vadd.f32 %v1291, %v1302
    %v1312 = vadd.f32 %v1292, %v1306
    %v1313 = vadd.f32 %v1293, %v1302
    %v1314 = vadd.f32 %v1294, %v1306
    %v1315 = vadd.f32 %v1295, %v1302
    %v1316 = vadd.f32 %v1296, %v1306
    %vm1317 = vcmp.ge.f32.partialorder %v1309, 0.0
    %vm1318 = vcmp.ge.f32.partialorder %v1310, 0.0
    %vm1319 = vcmp.ge.f32.partialorder %v1311, 0.0
    %vm1320 = vcmp.ge.f32.partialorder %v1312, 0.0
    %vm1321 = vcmp.ge.f32.partialorder %v1313, 0.0
    %vm1322 = vcmp.ge.f32.partialorder %v1314, 0.0
    %vm1323 = vcmp.ge.f32.partialorder %v1315, 0.0
    %vm1324 = vcmp.ge.f32.partialorder %v1316, 0.0
    %v1325 = vmul.f32 %v1309, 0.2
    %v1326 = vmul.f32 %v1310, 0.2
    %v1327 = vmul.f32 %v1311, 0.2
    %v1328 = vmul.f32 %v1312, 0.2
    %v1329 = vmul.f32 %v1313, 0.2
    %v1330 = vmul.f32 %v1314, 0.2
    %v1331 = vmul.f32 %v1315, 0.2
    %v1332 = vmul.f32 %v1316, 0.2
    %v1333 = vsel %vm1317, %v1309, %v1325
    %v1334 = vsel %vm1318, %v1310, %v1326
    %v1335 = vsel %vm1319, %v1311, %v1327
    %v1336 = vsel %vm1320, %v1312, %v1328
    %v1337 = vsel %vm1321, %v1313, %v1329
    %v1338 = vsel %vm1322, %v1314, %v1330
    %v1339 = vsel %vm1323, %v1315, %v1331
    %v1340 = vsel %vm1324, %v1316, %v1332
    %v1341 = vld [vmem:[#allocation10] sm:$0xf]
    %v1342 = vld [vmem:[#allocation10 + $0x4] sm:$0xf]
    %v1343 = vpack.c.bf16 %v1335, %v1333
    %v1344 = vpack.c.bf16 %v1336, %v1334
    %v1345 = vpack.c.bf16 %v1339, %v1337
    %v1346 = vpack.c.bf16 %v1340, %v1338
    %v1349 = vunpack.c.l.b16 %v1341
    %v1350 = vunpack.c.l.b16 %v1342
    %v1351 = vpack.c.b16 %v1350, %v1349
    %v1353 = vsel %vm744, %v1351, 0
    %1355 = vmatprep.subr.bf16.mxu0 0
    %1356 = vmatpush1.bf16.msra.mxu0 0
    %1357 = vmatprep.subr.bf16.mxu0 0
    %1358 = vmatpush1.bf16.msra.mxu0 0
    %1359 = vmatprep.subr.bf16.mxu0 0
    %1360 = vmatpush1.bf16.msra.mxu0 0
    %1361 = vmatprep.subr.bf16.mxu0 0
    %1362 = vmatpush1.bf16.msra.mxu0 0
    %1363 = vmatprep.subr.bf16.mxu0 0
    %1364 = vmatpush1.bf16.msra.mxu0 0
    %1365 = vmatprep.subr.bf16.mxu0 0
    %1366 = vmatpush1.bf16.msra.mxu0 0
    %1367 = vmatprep.subr.bf16.mxu0 %v1346
    %1368 = vmatpush1.bf16.msra.mxu0 %v1345
    %1369 = vmatprep.subr.bf16.mxu0 %v1344
    %1370 = vmatpush1.bf16.msra.mxu0 %v1343
    %1371 = vmatprep.subr.bf16.mxu0 0
    %1372 = vmatpush2.bf16.msra.mxu0 0
    %1373 = vmatprep.subr.bf16.mxu0 0
    %1374 = vmatpush2.bf16.msra.mxu0 0
    %1375 = vmatprep.subr.bf16.mxu0 0
    %1376 = vmatpush2.bf16.msra.mxu0 0
    %1377 = vmatprep.subr.bf16.mxu0 0
    %1378 = vmatpush2.bf16.msra.mxu0 0
    %1379 = vmatprep.subr.bf16.mxu0 0
    %1380 = vmatpush2.bf16.msra.mxu0 0
    %1381 = vmatprep.subr.bf16.mxu0 0
    %1382 = vmatpush2.bf16.msra.mxu0 0
    %1383 = vmatprep.subr.bf16.mxu0 0
    %1384 = vmatpush2.bf16.msra.mxu0 0
    %1385 = vmatprep.subr.bf16.mxu0 0
    %1386 = vmatpush2.bf16.msra.mxu0 0
    %1387 = vmatprep.mubr.bf16.mxu0 0
    %1388 = vmatmul.mubr.bf16.gmra.mxu0 %v1353
    %v1389 = vpop.f32.mrf.mxu0
    %v1390 = vadd.f32 0.0, %v1389
    %v1391 = vpop.f32.mrf.mxu0
    %v1392 = vadd.f32 0.0, %v1391
    %v1393 = vpop.f32.mrf.mxu0
    %v1394 = vadd.f32 0.0, %v1393
    %v1395 = vpop.f32.mrf.mxu0
    %v1396 = vadd.f32 0.0, %v1395
    %1397 = vdwg.mxu0
    %v1398 = vld [vmem:[#allocation11] sm:$0xf]
    %v1399 = vld [vmem:[#allocation11 + $0x4] sm:$0xf]
    %v1400 = vld [vmem:[#allocation11 + $0x8] sm:$0xf]
    %v1401 = vld [vmem:[#allocation11 + $0xc] sm:$0xf]
    %v1402 = vld [vmem:[#allocation11 + $0x10] sm:$0xf]
    %v1403 = vld [vmem:[#allocation11 + $0x14] sm:$0xf]
    %v1404 = vld [vmem:[#allocation11 + $0x18] sm:$0xf]
    %v1405 = vld [vmem:[#allocation11 + $0x1c] sm:$0xf]
    %v1406 = vld [vmem:[#allocation11 + $0x20] sm:$0xf]
    %v1407 = vld [vmem:[#allocation11 + $0x24] sm:$0xf]
    %v1408 = vld [vmem:[#allocation11 + $0x28] sm:$0xf]
    %v1409 = vld [vmem:[#allocation11 + $0x2c] sm:$0xf]
    %v1410 = vld [vmem:[#allocation11 + $0x30] sm:$0xf]
    %v1411 = vld [vmem:[#allocation11 + $0x34] sm:$0xf]
    %v1412 = vld [vmem:[#allocation11 + $0x38] sm:$0xf]
    %v1413 = vld [vmem:[#allocation11 + $0x3c] sm:$0xf]
    %v1414 = vld [vmem:[#allocation11 + $0x40] sm:$0xf]
    %v1415 = vld [vmem:[#allocation11 + $0x44] sm:$0xf]
    %v1416 = vld [vmem:[#allocation11 + $0x48] sm:$0xf]
    %v1417 = vld [vmem:[#allocation11 + $0x4c] sm:$0xf]
    %v1418 = vld [vmem:[#allocation11 + $0x50] sm:$0xf]
    %v1419 = vld [vmem:[#allocation11 + $0x54] sm:$0xf]
    %v1420 = vld [vmem:[#allocation11 + $0x58] sm:$0xf]
    %v1421 = vld [vmem:[#allocation11 + $0x5c] sm:$0xf]
    %v1422 = vld [vmem:[#allocation11 + $0x60] sm:$0xf]
    %v1423 = vld [vmem:[#allocation11 + $0x64] sm:$0xf]
    %v1424 = vld [vmem:[#allocation11 + $0x68] sm:$0xf]
    %v1425 = vld [vmem:[#allocation11 + $0x6c] sm:$0xf]
    %v1426 = vld [vmem:[#allocation11 + $0x70] sm:$0xf]
    %v1427 = vld [vmem:[#allocation11 + $0x74] sm:$0xf]
    %v1428 = vld [vmem:[#allocation11 + $0x78] sm:$0xf]
    %v1429 = vld [vmem:[#allocation11 + $0x7c] sm:$0xf]
    %v1430 = vpack.c.bf16 %v1394, %v1390
    %v1431 = vpack.c.bf16 %v1396, %v1392
    %v1464 = vunpack.c.l.b16 %v1398
    %v1465 = vunpack.c.l.b16 %v1399
    %v1466 = vunpack.c.l.b16 %v1400
    %v1467 = vunpack.c.l.b16 %v1401
    %v1468 = vunpack.c.l.b16 %v1402
    %v1469 = vunpack.c.l.b16 %v1403
    %v1470 = vunpack.c.l.b16 %v1404
    %v1471 = vunpack.c.l.b16 %v1405
    %v1472 = vunpack.c.l.b16 %v1406
    %v1473 = vunpack.c.l.b16 %v1407
    %v1474 = vunpack.c.l.b16 %v1408
    %v1475 = vunpack.c.l.b16 %v1409
    %v1476 = vunpack.c.l.b16 %v1410
    %v1477 = vunpack.c.l.b16 %v1411
    %v1478 = vunpack.c.l.b16 %v1412
    %v1479 = vunpack.c.l.b16 %v1413
    %v1480 = vunpack.c.l.b16 %v1414
    %v1481 = vunpack.c.l.b16 %v1415
    %v1482 = vunpack.c.l.b16 %v1416
    %v1483 = vunpack.c.l.b16 %v1417
    %v1484 = vunpack.c.l.b16 %v1418
    %v1485 = vunpack.c.l.b16 %v1419
    %v1486 = vunpack.c.l.b16 %v1420
    %v1487 = vunpack.c.l.b16 %v1421
    %v1488 = vunpack.c.l.b16 %v1422
    %v1489 = vunpack.c.l.b16 %v1423
    %v1490 = vunpack.c.l.b16 %v1424
    %v1491 = vunpack.c.l.b16 %v1425
    %v1492 = vunpack.c.l.b16 %v1426
    %v1493 = vunpack.c.l.b16 %v1427
    %v1494 = vunpack.c.l.b16 %v1428
    %v1495 = vunpack.c.l.b16 %v1429
    %v1496 = vpack.c.b16 %v1465, %v1464
    %v1497 = vpack.c.b16 %v1467, %v1466
    %v1498 = vpack.c.b16 %v1469, %v1468
    %v1499 = vpack.c.b16 %v1471, %v1470
    %v1500 = vpack.c.b16 %v1473, %v1472
    %v1501 = vpack.c.b16 %v1475, %v1474
    %v1502 = vpack.c.b16 %v1477, %v1476
    %v1503 = vpack.c.b16 %v1479, %v1478
    %v1504 = vpack.c.b16 %v1481, %v1480
    %v1505 = vpack.c.b16 %v1483, %v1482
    %v1506 = vpack.c.b16 %v1485, %v1484
    %v1507 = vpack.c.b16 %v1487, %v1486
    %v1508 = vpack.c.b16 %v1489, %v1488
    %v1509 = vpack.c.b16 %v1491, %v1490
    %v1510 = vpack.c.b16 %v1493, %v1492
    %v1511 = vpack.c.b16 %v1495, %v1494
    %1528 = vmatprep.subr.bf16.mxu0 0
    %1529 = vmatpush1.bf16.msra.mxu0 %v1503
    %1530 = vmatprep.subr.bf16.mxu0 0
    %1531 = vmatpush1.bf16.msra.mxu0 %v1502
    %1532 = vmatprep.subr.bf16.mxu0 0
    %1533 = vmatpush1.bf16.msra.mxu0 %v1501
    %1534 = vmatprep.subr.bf16.mxu0 0
    %1535 = vmatpush1.bf16.msra.mxu0 %v1500
    %1536 = vmatprep.subr.bf16.mxu0 0
    %1537 = vmatpush1.bf16.msra.mxu0 %v1499
    %1538 = vmatprep.subr.bf16.mxu0 0
    %1539 = vmatpush1.bf16.msra.mxu0 %v1498
    %1540 = vmatprep.subr.bf16.mxu0 0
    %1541 = vmatpush1.bf16.msra.mxu0 %v1497
    %1542 = vmatprep.subr.bf16.mxu0 0
    %1543 = vmatpush1.bf16.msra.mxu0 %v1496
    %1544 = vmatprep.subr.bf16.mxu0 0
    %1545 = vmatpush2.bf16.msra.mxu0 %v1511
    %1546 = vmatprep.subr.bf16.mxu0 0
    %1547 = vmatpush2.bf16.msra.mxu0 %v1510
    %1548 = vmatprep.subr.bf16.mxu0 0
    %1549 = vmatpush2.bf16.msra.mxu0 %v1509
    %1550 = vmatprep.subr.bf16.mxu0 0
    %1551 = vmatpush2.bf16.msra.mxu0 %v1508
    %1552 = vmatprep.subr.bf16.mxu0 0
    %1553 = vmatpush2.bf16.msra.mxu0 %v1507
    %1554 = vmatprep.subr.bf16.mxu0 0
    %1555 = vmatpush2.bf16.msra.mxu0 %v1506
    %1556 = vmatprep.subr.bf16.mxu0 0
    %1557 = vmatpush2.bf16.msra.mxu0 %v1505
    %1558 = vmatprep.subr.bf16.mxu0 0
    %1559 = vmatpush2.bf16.msra.mxu0 %v1504
    %1560 = vmatprep.mubr.bf16.mxu0 %v1431
    %1561 = vmatmul.mubr.bf16.gmra.mxu0 %v1430
    %v1562 = vpop.f32.mrf.mxu0
    %v1563 = vadd.f32 0.0, %v1562
    %v1564 = vpop.f32.mrf.mxu0
    %v1565 = vpop.f32.mrf.mxu0
    %v1566 = vadd.f32 0.0, %v1565
    %v1567 = vpop.f32.mrf.mxu0
    %1568 = vdwg.mxu0
    %v1569 = vld [vmem:[#allocation13] sm:$0xf]
    %v1570 = vld [vmem:[#allocation13 + $0x4] sm:$0xf]
    %v1571 = vpack.c.bf16 %v1566, %v1563
    %v1574 = vunpack.c.l.b16 %v1569
    %v1575 = vunpack.c.l.b16 %v1570
    %v1576 = vpack.c.b16 %v1575, %v1574
    %vm1577 = vcmask 130048
    %v1579 = vsel %vm1577, %v1576, 0
    %1581 = vmatprep.subr.bf16.mxu0 0
    %1582 = vmatpush1.bf16.msra.mxu0 0
    %1583 = vmatprep.subr.bf16.mxu0 0
    %1584 = vmatpush1.bf16.msra.mxu0 0
    %1585 = vmatprep.subr.bf16.mxu0 0
    %1586 = vmatpush1.bf16.msra.mxu0 0
    %1587 = vmatprep.subr.bf16.mxu0 0
    %1588 = vmatpush1.bf16.msra.mxu0 0
    %1589 = vmatprep.subr.bf16.mxu0 0
    %1590 = vmatpush1.bf16.msra.mxu0 0
    %1591 = vmatprep.subr.bf16.mxu0 0
    %1592 = vmatpush1.bf16.msra.mxu0 0
    %1593 = vmatprep.subr.bf16.mxu0 0
    %1594 = vmatpush1.bf16.msra.mxu0 0
    %1595 = vmatprep.subr.bf16.mxu0 0
    %1596 = vmatpush1.bf16.msra.mxu0 %v1571
    %1597 = vmatprep.subr.bf16.mxu0 0
    %1598 = vmatpush2.bf16.msra.mxu0 0
    %1599 = vmatprep.subr.bf16.mxu0 0
    %1600 = vmatpush2.bf16.msra.mxu0 0
    %1601 = vmatprep.subr.bf16.mxu0 0
    %1602 = vmatpush2.bf16.msra.mxu0 0
    %1603 = vmatprep.subr.bf16.mxu0 0
    %1604 = vmatpush2.bf16.msra.mxu0 0
    %1605 = vmatprep.subr.bf16.mxu0 0
    %1606 = vmatpush2.bf16.msra.mxu0 0
    %1607 = vmatprep.subr.bf16.mxu0 0
    %1608 = vmatpush2.bf16.msra.mxu0 0
    %1609 = vmatprep.subr.bf16.mxu0 0
    %1610 = vmatpush2.bf16.msra.mxu0 0
    %1611 = vmatprep.subr.bf16.mxu0 0
    %1612 = vmatpush2.bf16.msra.mxu0 0
    %1613 = vmatprep.mubr.bf16.mxu0 0
    %1614 = vmatmul.mubr.bf16.gmra.mxu0 %v1579
    %v1615 = vpop.f32.mrf.mxu0
    %v1616 = vadd.f32 0.0, %v1615
    %v1617 = vpop.f32.mrf.mxu0
    %v1618 = vpop.f32.mrf.mxu0
    %v1619 = vadd.f32 0.0, %v1618
    %v1620 = vpop.f32.mrf.mxu0
    %1621 = vdwg.mxu0
    %v1622 = vld [vmem:[#allocation14] sm:$0xf]
    %v1623 = vld [vmem:[#allocation14 + $0x4] sm:$0xf]
    %v1626 = vunpack.c.l.b16 %v1622
    %v1627 = vunpack.c.l.b16 %v1623
    %v1628 = vpack.c.b16 %v1627, %v1626
    %v1630 = vsel %vm1577, %v1628, 0
    %1632 = vmatprep.subr.bf16.mxu0 0
    %1633 = vmatpush1.bf16.msra.mxu0 0
    %1634 = vmatprep.subr.bf16.mxu0 0
    %1635 = vmatpush1.bf16.msra.mxu0 0
    %1636 = vmatprep.subr.bf16.mxu0 0
    %1637 = vmatpush1.bf16.msra.mxu0 0
    %1638 = vmatprep.subr.bf16.mxu0 0
    %1639 = vmatpush1.bf16.msra.mxu0 0
    %1640 = vmatprep.subr.bf16.mxu0 0
    %1641 = vmatpush1.bf16.msra.mxu0 0
    %1642 = vmatprep.subr.bf16.mxu0 0
    %1643 = vmatpush1.bf16.msra.mxu0 0
    %1644 = vmatprep.subr.bf16.mxu0 0
    %1645 = vmatpush1.bf16.msra.mxu0 0
    %1646 = vmatprep.subr.bf16.mxu0 0
    %1647 = vmatpush1.bf16.msra.mxu0 %v1571
    %1648 = vmatprep.subr.bf16.mxu0 0
    %1649 = vmatpush2.bf16.msra.mxu0 0
    %1650 = vmatprep.subr.bf16.mxu0 0
    %1651 = vmatpush2.bf16.msra.mxu0 0
    %1652 = vmatprep.subr.bf16.mxu0 0
    %1653 = vmatpush2.bf16.msra.mxu0 0
    %1654 = vmatprep.subr.bf16.mxu0 0
    %1655 = vmatpush2.bf16.msra.mxu0 0
    %1656 = vmatprep.subr.bf16.mxu0 0
    %1657 = vmatpush2.bf16.msra.mxu0 0
    %1658 = vmatprep.subr.bf16.mxu0 0
    %1659 = vmatpush2.bf16.msra.mxu0 0
    %1660 = vmatprep.subr.bf16.mxu0 0
    %1661 = vmatpush2.bf16.msra.mxu0 0
    %1662 = vmatprep.subr.bf16.mxu0 0
    %1663 = vmatpush2.bf16.msra.mxu0 0
    %1664 = vmatprep.mubr.bf16.mxu0 0
    %1665 = vmatmul.mubr.bf16.gmra.mxu0 %v1630
    %v1666 = vpop.f32.mrf.mxu0
    %v1667 = vadd.f32 0.0, %v1666
    %v1668 = vpop.f32.mrf.mxu0
    %v1669 = vpop.f32.mrf.mxu0
    %v1670 = vadd.f32 0.0, %v1669
    %v1671 = vpop.f32.mrf.mxu0
    %1672 = vdwg.mxu0
    %v1673 = vld [vmem:[#allocation16] sm:$0xf]
    %v1674 = vld [vmem:[#allocation16 + $0x4] sm:$0xf]
    %v1675 = vld [vmem:[#allocation16 + $0x8] sm:$0xf]
    %v1676 = vld [vmem:[#allocation16 + $0xc] sm:$0xf]
    %v1677 = vld [vmem:[#allocation16 + $0x10] sm:$0xf]
    %v1678 = vld [vmem:[#allocation16 + $0x14] sm:$0xf]
    %v1679 = vld [vmem:[#allocation16 + $0x18] sm:$0xf]
    %v1680 = vld [vmem:[#allocation16 + $0x1c] sm:$0xf]
    %v1681 = vld [vmem:[#allocation16 + $0x20] sm:$0xf]
    %v1682 = vld [vmem:[#allocation16 + $0x24] sm:$0xf]
    %v1683 = vld [vmem:[#allocation16 + $0x28] sm:$0xf]
    %v1684 = vld [vmem:[#allocation16 + $0x2c] sm:$0xf]
    %v1685 = vld [vmem:[#allocation16 + $0x30] sm:$0xf]
    %v1686 = vld [vmem:[#allocation16 + $0x34] sm:$0xf]
    %v1687 = vld [vmem:[#allocation16 + $0x38] sm:$0xf]
    %v1688 = vld [vmem:[#allocation16 + $0x3c] sm:$0xf]
    %v1689 = vpack.c.bf16 %v1619, %v1616
    %s1690 = scalar_lea.vmem [#allocation16], 64
    %v1691 = vld [vmem:[%s1690] sm:$0xf]
    %v1692 = vld [vmem:[%s1690 + $0x4] sm:$0xf]
    %v1693 = vld [vmem:[%s1690 + $0x8] sm:$0xf]
    %v1694 = vld [vmem:[%s1690 + $0xc] sm:$0xf]
    %v1695 = vld [vmem:[%s1690 + $0x10] sm:$0xf]
    %v1696 = vld [vmem:[%s1690 + $0x14] sm:$0xf]
    %v1697 = vld [vmem:[%s1690 + $0x18] sm:$0xf]
    %v1698 = vld [vmem:[%s1690 + $0x1c] sm:$0xf]
    %v1699 = vld [vmem:[%s1690 + $0x20] sm:$0xf]
    %v1700 = vld [vmem:[%s1690 + $0x24] sm:$0xf]
    %v1701 = vld [vmem:[%s1690 + $0x28] sm:$0xf]
    %v1702 = vld [vmem:[%s1690 + $0x2c] sm:$0xf]
    %v1703 = vld [vmem:[%s1690 + $0x30] sm:$0xf]
    %v1704 = vld [vmem:[%s1690 + $0x34] sm:$0xf]
    %v1705 = vld [vmem:[%s1690 + $0x38] sm:$0xf]
    %v1706 = vld [vmem:[%s1690 + $0x3c] sm:$0xf]
    %v1723 = vunpack.c.l.b16 %v1691
    %v1724 = vunpack.c.l.b16 %v1692
    %v1725 = vunpack.c.l.b16 %v1693
    %v1726 = vunpack.c.l.b16 %v1694
    %v1727 = vunpack.c.l.b16 %v1695
    %v1728 = vunpack.c.l.b16 %v1696
    %v1729 = vunpack.c.l.b16 %v1697
    %v1730 = vunpack.c.l.b16 %v1698
    %v1731 = vunpack.c.l.b16 %v1699
    %v1732 = vunpack.c.l.b16 %v1700
    %v1733 = vunpack.c.l.b16 %v1701
    %v1734 = vunpack.c.l.b16 %v1702
    %v1735 = vunpack.c.l.b16 %v1703
    %v1736 = vunpack.c.l.b16 %v1704
    %v1737 = vunpack.c.l.b16 %v1705
    %v1738 = vunpack.c.l.b16 %v1706
    %v1739 = vpack.c.b16 %v1724, %v1723
    %v1740 = vpack.c.b16 %v1726, %v1725
    %v1741 = vpack.c.b16 %v1728, %v1727
    %v1742 = vpack.c.b16 %v1730, %v1729
    %v1743 = vpack.c.b16 %v1732, %v1731
    %v1744 = vpack.c.b16 %v1734, %v1733
    %v1745 = vpack.c.b16 %v1736, %v1735
    %v1746 = vpack.c.b16 %v1738, %v1737
    %1755 = vmatprep.subr.bf16.mxu0 0
    %1756 = vmatpush1.bf16.msra.mxu0 %v1746
    %1757 = vmatprep.subr.bf16.mxu0 0
    %1758 = vmatpush1.bf16.msra.mxu0 %v1745
    %1759 = vmatprep.subr.bf16.mxu0 0
    %1760 = vmatpush1.bf16.msra.mxu0 %v1744
    %1761 = vmatprep.subr.bf16.mxu0 0
    %1762 = vmatpush1.bf16.msra.mxu0 %v1743
    %1763 = vmatprep.subr.bf16.mxu0 0
    %1764 = vmatpush1.bf16.msra.mxu0 %v1742
    %1765 = vmatprep.subr.bf16.mxu0 0
    %1766 = vmatpush1.bf16.msra.mxu0 %v1741
    %1767 = vmatprep.subr.bf16.mxu0 0
    %1768 = vmatpush1.bf16.msra.mxu0 %v1740
    %1769 = vmatprep.subr.bf16.mxu0 0
    %1770 = vmatpush1.bf16.msra.mxu0 %v1739
    %1771 = vmatprep.subr.bf16.mxu0 0
    %1772 = vmatpush2.bf16.msra.mxu0 0
    %1773 = vmatprep.subr.bf16.mxu0 0
    %1774 = vmatpush2.bf16.msra.mxu0 0
    %1775 = vmatprep.subr.bf16.mxu0 0
    %1776 = vmatpush2.bf16.msra.mxu0 0
    %1777 = vmatprep.subr.bf16.mxu0 0
    %1778 = vmatpush2.bf16.msra.mxu0 0
    %1779 = vmatprep.subr.bf16.mxu0 0
    %1780 = vmatpush2.bf16.msra.mxu0 0
    %1781 = vmatprep.subr.bf16.mxu0 0
    %1782 = vmatpush2.bf16.msra.mxu0 0
    %1783 = vmatprep.subr.bf16.mxu0 0
    %1784 = vmatpush2.bf16.msra.mxu0 0
    %1785 = vmatprep.subr.bf16.mxu0 0
    %1786 = vmatpush2.bf16.msra.mxu0 0
    %1787 = vmatprep.mubr.bf16.mxu0 0
    %1788 = vmatmul.mubr.bf16.gmra.mxu0 %v1571
    %v1789 = vpop.f32.mrf.mxu0
    %v1790 = vadd.f32 0.0, %v1789
    %v1791 = vpop.f32.mrf.mxu0
    %v1792 = vpop.f32.mrf.mxu0
    %v1793 = vadd.f32 0.0, %v1792
    %v1794 = vpop.f32.mrf.mxu0
    %1795 = vdwg.mxu0
    %v1812 = vunpack.c.l.b16 %v1673
    %v1813 = vunpack.c.l.b16 %v1674
    %v1814 = vunpack.c.l.b16 %v1675
    %v1815 = vunpack.c.l.b16 %v1676
    %v1816 = vunpack.c.l.b16 %v1677
    %v1817 = vunpack.c.l.b16 %v1678
    %v1818 = vunpack.c.l.b16 %v1679
    %v1819 = vunpack.c.l.b16 %v1680
    %v1820 = vunpack.c.l.b16 %v1681
    %v1821 = vunpack.c.l.b16 %v1682
    %v1822 = vunpack.c.l.b16 %v1683
    %v1823 = vunpack.c.l.b16 %v1684
    %v1824 = vunpack.c.l.b16 %v1685
    %v1825 = vunpack.c.l.b16 %v1686
    %v1826 = vunpack.c.l.b16 %v1687
    %v1827 = vunpack.c.l.b16 %v1688
    %v1828 = vpack.c.b16 %v1813, %v1812
    %v1829 = vpack.c.b16 %v1815, %v1814
    %v1830 = vpack.c.b16 %v1817, %v1816
    %v1831 = vpack.c.b16 %v1819, %v1818
    %v1832 = vpack.c.b16 %v1821, %v1820
    %v1833 = vpack.c.b16 %v1823, %v1822
    %v1834 = vpack.c.b16 %v1825, %v1824
    %v1835 = vpack.c.b16 %v1827, %v1826
    %1844 = vmatprep.subr.bf16.mxu0 0
    %1845 = vmatpush1.bf16.msra.mxu0 %v1835
    %1846 = vmatprep.subr.bf16.mxu0 0
    %1847 = vmatpush1.bf16.msra.mxu0 %v1834
    %1848 = vmatprep.subr.bf16.mxu0 0
    %1849 = vmatpush1.bf16.msra.mxu0 %v1833
    %1850 = vmatprep.subr.bf16.mxu0 0
    %1851 = vmatpush1.bf16.msra.mxu0 %v1832
    %1852 = vmatprep.subr.bf16.mxu0 0
    %1853 = vmatpush1.bf16.msra.mxu0 %v1831
    %1854 = vmatprep.subr.bf16.mxu0 0
    %1855 = vmatpush1.bf16.msra.mxu0 %v1830
    %1856 = vmatprep.subr.bf16.mxu0 0
    %1857 = vmatpush1.bf16.msra.mxu0 %v1829
    %1858 = vmatprep.subr.bf16.mxu0 0
    %1859 = vmatpush1.bf16.msra.mxu0 %v1828
    %1860 = vmatprep.subr.bf16.mxu0 0
    %1861 = vmatpush2.bf16.msra.mxu0 0
    %1862 = vmatprep.subr.bf16.mxu0 0
    %1863 = vmatpush2.bf16.msra.mxu0 0
    %1864 = vmatprep.subr.bf16.mxu0 0
    %1865 = vmatpush2.bf16.msra.mxu0 0
    %1866 = vmatprep.subr.bf16.mxu0 0
    %1867 = vmatpush2.bf16.msra.mxu0 0
    %1868 = vmatprep.subr.bf16.mxu0 0
    %1869 = vmatpush2.bf16.msra.mxu0 0
    %1870 = vmatprep.subr.bf16.mxu0 0
    %1871 = vmatpush2.bf16.msra.mxu0 0
    %1872 = vmatprep.subr.bf16.mxu0 0
    %1873 = vmatpush2.bf16.msra.mxu0 0
    %1874 = vmatprep.subr.bf16.mxu0 0
    %1875 = vmatpush2.bf16.msra.mxu0 0
    %1876 = vmatprep.mubr.bf16.mxu0 0
    %1877 = vmatmul.mubr.bf16.gmra.mxu0 %v1689
    %v1878 = vpop.f32.mrf.mxu0
    %v1879 = vadd.f32 %v1790, %v1878
    %v1880 = vpop.f32.mrf.mxu0
    %v1881 = vpop.f32.mrf.mxu0
    %v1882 = vadd.f32 %v1793, %v1881
    %v1883 = vpop.f32.mrf.mxu0
    %1884 = vdwg.mxu0
    %s1885 = scalar_lea.vmem [#allocation16], 128
    %v1886 = vld [vmem:[%s1885] sm:$0xf]
    %v1887 = vld [vmem:[%s1885 + $0x4] sm:$0xf]
    %v1888 = vld [vmem:[%s1885 + $0x8] sm:$0xf]
    %v1889 = vld [vmem:[%s1885 + $0xc] sm:$0xf]
    %v1890 = vld [vmem:[%s1885 + $0x10] sm:$0xf]
    %v1891 = vld [vmem:[%s1885 + $0x14] sm:$0xf]
    %v1892 = vld [vmem:[%s1885 + $0x18] sm:$0xf]
    %v1893 = vld [vmem:[%s1885 + $0x1c] sm:$0xf]
    %v1894 = vld [vmem:[%s1885 + $0x20] sm:$0xf]
    %v1895 = vld [vmem:[%s1885 + $0x24] sm:$0xf]
    %v1896 = vld [vmem:[%s1885 + $0x28] sm:$0xf]
    %v1897 = vld [vmem:[%s1885 + $0x2c] sm:$0xf]
    %v1898 = vld [vmem:[%s1885 + $0x30] sm:$0xf]
    %v1899 = vld [vmem:[%s1885 + $0x34] sm:$0xf]
    %v1900 = vld [vmem:[%s1885 + $0x38] sm:$0xf]
    %v1901 = vld [vmem:[%s1885 + $0x3c] sm:$0xf]
    %v1902 = vpack.c.bf16 %v1670, %v1667
    %v1919 = vunpack.c.l.b16 %v1886
    %v1920 = vunpack.c.l.b16 %v1887
    %v1921 = vunpack.c.l.b16 %v1888
    %v1922 = vunpack.c.l.b16 %v1889
    %v1923 = vunpack.c.l.b16 %v1890
    %v1924 = vunpack.c.l.b16 %v1891
    %v1925 = vunpack.c.l.b16 %v1892
    %v1926 = vunpack.c.l.b16 %v1893
    %v1927 = vunpack.c.l.b16 %v1894
    %v1928 = vunpack.c.l.b16 %v1895
    %v1929 = vunpack.c.l.b16 %v1896
    %v1930 = vunpack.c.l.b16 %v1897
    %v1931 = vunpack.c.l.b16 %v1898
    %v1932 = vunpack.c.l.b16 %v1899
    %v1933 = vunpack.c.l.b16 %v1900
    %v1934 = vunpack.c.l.b16 %v1901
    %v1935 = vpack.c.b16 %v1920, %v1919
    %v1936 = vpack.c.b16 %v1922, %v1921
    %v1937 = vpack.c.b16 %v1924, %v1923
    %v1938 = vpack.c.b16 %v1926, %v1925
    %v1939 = vpack.c.b16 %v1928, %v1927
    %v1940 = vpack.c.b16 %v1930, %v1929
    %v1941 = vpack.c.b16 %v1932, %v1931
    %v1942 = vpack.c.b16 %v1934, %v1933
    %1951 = vmatprep.subr.bf16.mxu0 0
    %1952 = vmatpush1.bf16.msra.mxu0 %v1942
    %1953 = vmatprep.subr.bf16.mxu0 0
    %1954 = vmatpush1.bf16.msra.mxu0 %v1941
    %1955 = vmatprep.subr.bf16.mxu0 0
    %1956 = vmatpush1.bf16.msra.mxu0 %v1940
    %1957 = vmatprep.subr.bf16.mxu0 0
    %1958 = vmatpush1.bf16.msra.mxu0 %v1939
    %1959 = vmatprep.subr.bf16.mxu0 0
    %1960 = vmatpush1.bf16.msra.mxu0 %v1938
    %1961 = vmatprep.subr.bf16.mxu0 0
    %1962 = vmatpush1.bf16.msra.mxu0 %v1937
    %1963 = vmatprep.subr.bf16.mxu0 0
    %1964 = vmatpush1.bf16.msra.mxu0 %v1936
    %1965 = vmatprep.subr.bf16.mxu0 0
    %1966 = vmatpush1.bf16.msra.mxu0 %v1935
    %1967 = vmatprep.subr.bf16.mxu0 0
    %1968 = vmatpush2.bf16.msra.mxu0 0
    %1969 = vmatprep.subr.bf16.mxu0 0
    %1970 = vmatpush2.bf16.msra.mxu0 0
    %1971 = vmatprep.subr.bf16.mxu0 0
    %1972 = vmatpush2.bf16.msra.mxu0 0
    %1973 = vmatprep.subr.bf16.mxu0 0
    %1974 = vmatpush2.bf16.msra.mxu0 0
    %1975 = vmatprep.subr.bf16.mxu0 0
    %1976 = vmatpush2.bf16.msra.mxu0 0
    %1977 = vmatprep.subr.bf16.mxu0 0
    %1978 = vmatpush2.bf16.msra.mxu0 0
    %1979 = vmatprep.subr.bf16.mxu0 0
    %1980 = vmatpush2.bf16.msra.mxu0 0
    %1981 = vmatprep.subr.bf16.mxu0 0
    %1982 = vmatpush2.bf16.msra.mxu0 0
    %1983 = vmatprep.mubr.bf16.mxu0 0
    %1984 = vmatmul.mubr.bf16.gmra.mxu0 %v1902
    %v1985 = vpop.f32.mrf.mxu0
    %v1986 = vadd.f32 0.0, %v1985
    %v1987 = vpop.f32.mrf.mxu0
    %v1988 = vpop.f32.mrf.mxu0
    %v1989 = vadd.f32 0.0, %v1988
    %v1990 = vpop.f32.mrf.mxu0
    %1991 = vdwg.mxu0
    %v1992 = vadd.f32 %v1879, %v1986
    %v1993 = vadd.f32 %v1882, %v1989
    %v1994 = vld [vmem:[#allocation17] sm:$0x1]
    %v1996 = vlaneseq
    %v1997 = vshrl.u32 %v1996, 7
    %v1998 = vsub.s32 0, %v1997
    %v1999 = vrot.slane %v1994, %v1998
    %v2001 = vmul.f32 %v1992, %v1999
    %v2002 = vmul.f32 %v1993, %v1999
    %v2003 = vld [vmem:[#allocation19] sm:$0x1]
    %v2005 = vlaneseq
    %v2006 = vshrl.u32 %v2005, 7
    %v2007 = vsub.s32 0, %v2006
    %v2008 = vrot.slane %v2003, %v2007
    %v2010 = vadd.f32 %v2001, %v2008
    %v2011 = vadd.f32 %v2002, %v2008
    %vm2012 = vcmp.ge.f32.partialorder %v2010, 0.0
    %vm2013 = vcmp.ge.f32.partialorder %v2011, 0.0
    %v2014 = vmul.f32 %v2010, 0.2
    %v2015 = vmul.f32 %v2011, 0.2
    %v2016 = vsel %vm2012, %v2010, %v2014
    %v2017 = vsel %vm2013, %v2011, %v2015
    %v2018 = vpack.c.bf16 %v2017, %v2016
    %2019 = vmatprep.subr.bf16.mxu0 0
    %2020 = vmatpush1.bf16.msra.mxu0 0
    %2021 = vmatprep.subr.bf16.mxu0 0
    %2022 = vmatpush1.bf16.msra.mxu0 0
    %2023 = vmatprep.subr.bf16.mxu0 0
    %2024 = vmatpush1.bf16.msra.mxu0 0
    %2025 = vmatprep.subr.bf16.mxu0 0
    %2026 = vmatpush1.bf16.msra.mxu0 0
    %2027 = vmatprep.subr.bf16.mxu0 0
    %2028 = vmatpush1.bf16.msra.mxu0 0
    %2029 = vmatprep.subr.bf16.mxu0 0
    %2030 = vmatpush1.bf16.msra.mxu0 0
    %2031 = vmatprep.subr.bf16.mxu0 0
    %2032 = vmatpush1.bf16.msra.mxu0 0
    %2033 = vmatprep.subr.bf16.mxu0 0
    %2034 = vmatpush1.bf16.msra.mxu0 %v2018
    %2035 = vmatprep.subr.bf16.mxu0 0
    %2036 = vmatpush2.bf16.msra.mxu0 0
    %2037 = vmatprep.subr.bf16.mxu0 0
    %2038 = vmatpush2.bf16.msra.mxu0 0
    %2039 = vmatprep.subr.bf16.mxu0 0
    %2040 = vmatpush2.bf16.msra.mxu0 0
    %2041 = vmatprep.subr.bf16.mxu0 0
    %2042 = vmatpush2.bf16.msra.mxu0 0
    %2043 = vmatprep.subr.bf16.mxu0 0
    %2044 = vmatpush2.bf16.msra.mxu0 0
    %2045 = vmatprep.subr.bf16.mxu0 0
    %2046 = vmatpush2.bf16.msra.mxu0 0
    %2047 = vmatprep.subr.bf16.mxu0 0
    %2048 = vmatpush2.bf16.msra.mxu0 0
    %2049 = vmatprep.subr.bf16.mxu0 0
    %2050 = vmatpush2.bf16.msra.mxu0 0
    %2051 = vmatprep.mubr.bf16.mxu0 0
    %2052 = vmatmul.mubr.bf16.gmra.mxu0 %v1579
    %v2053 = vpop.f32.mrf.mxu0
    %v2054 = vadd.f32 0.0, %v2053
    %v2055 = vpop.f32.mrf.mxu0
    %v2056 = vpop.f32.mrf.mxu0
    %v2057 = vadd.f32 0.0, %v2056
    %v2058 = vpop.f32.mrf.mxu0
    %2059 = vdwg.mxu0
    %2060 = vmatprep.subr.bf16.mxu0 0
    %2061 = vmatpush1.bf16.msra.mxu0 0
    %2062 = vmatprep.subr.bf16.mxu0 0
    %2063 = vmatpush1.bf16.msra.mxu0 0
    %2064 = vmatprep.subr.bf16.mxu0 0
    %2065 = vmatpush1.bf16.msra.mxu0 0
    %2066 = vmatprep.subr.bf16.mxu0 0
    %2067 = vmatpush1.bf16.msra.mxu0 0
    %2068 = vmatprep.subr.bf16.mxu0 0
    %2069 = vmatpush1.bf16.msra.mxu0 0
    %2070 = vmatprep.subr.bf16.mxu0 0
    %2071 = vmatpush1.bf16.msra.mxu0 0
    %2072 = vmatprep.subr.bf16.mxu0 0
    %2073 = vmatpush1.bf16.msra.mxu0 0
    %2074 = vmatprep.subr.bf16.mxu0 0
    %2075 = vmatpush1.bf16.msra.mxu0 %v2018
    %2076 = vmatprep.subr.bf16.mxu0 0
    %2077 = vmatpush2.bf16.msra.mxu0 0
    %2078 = vmatprep.subr.bf16.mxu0 0
    %2079 = vmatpush2.bf16.msra.mxu0 0
    %2080 = vmatprep.subr.bf16.mxu0 0
    %2081 = vmatpush2.bf16.msra.mxu0 0
    %2082 = vmatprep.subr.bf16.mxu0 0
    %2083 = vmatpush2.bf16.msra.mxu0 0
    %2084 = vmatprep.subr.bf16.mxu0 0
    %2085 = vmatpush2.bf16.msra.mxu0 0
    %2086 = vmatprep.subr.bf16.mxu0 0
    %2087 = vmatpush2.bf16.msra.mxu0 0
    %2088 = vmatprep.subr.bf16.mxu0 0
    %2089 = vmatpush2.bf16.msra.mxu0 0
    %2090 = vmatprep.subr.bf16.mxu0 0
    %2091 = vmatpush2.bf16.msra.mxu0 0
    %2092 = vmatprep.mubr.bf16.mxu0 0
    %2093 = vmatmul.mubr.bf16.gmra.mxu0 %v1630
    %v2094 = vpop.f32.mrf.mxu0
    %v2095 = vadd.f32 0.0, %v2094
    %v2096 = vpop.f32.mrf.mxu0
    %v2097 = vpop.f32.mrf.mxu0
    %v2098 = vadd.f32 0.0, %v2097
    %v2099 = vpop.f32.mrf.mxu0
    %2100 = vdwg.mxu0
    %v2101 = vld [vmem:[%s27] sm:$0xf]
    %v2102 = vld [vmem:[%s27 + $0x4] sm:$0xf]
    %v2103 = vld [vmem:[%s27 + $0x8] sm:$0xf]
    %v2104 = vld [vmem:[%s27 + $0xc] sm:$0xf]
    %v2105 = vld [vmem:[%s27 + $0x10] sm:$0xf]
    %v2106 = vld [vmem:[%s27 + $0x14] sm:$0xf]
    %v2107 = vld [vmem:[%s27 + $0x18] sm:$0xf]
    %v2108 = vld [vmem:[%s27 + $0x1c] sm:$0xf]
    %v2109 = vld [vmem:[%s27 + $0x20] sm:$0xf]
    %v2110 = vld [vmem:[%s27 + $0x24] sm:$0xf]
    %v2111 = vld [vmem:[%s27 + $0x28] sm:$0xf]
    %v2112 = vld [vmem:[%s27 + $0x2c] sm:$0xf]
    %v2113 = vld [vmem:[%s27 + $0x30] sm:$0xf]
    %v2114 = vld [vmem:[%s27 + $0x34] sm:$0xf]
    %v2115 = vld [vmem:[%s27 + $0x38] sm:$0xf]
    %v2116 = vld [vmem:[%s27 + $0x3c] sm:$0xf]
    %v2117 = vpack.c.bf16 %v2057, %v2054
    %s2118 = scalar_lea.vmem %s27, 64
    %v2119 = vld [vmem:[%s2118] sm:$0xf]
    %v2120 = vld [vmem:[%s2118 + $0x4] sm:$0xf]
    %v2121 = vld [vmem:[%s2118 + $0x8] sm:$0xf]
    %v2122 = vld [vmem:[%s2118 + $0xc] sm:$0xf]
    %v2123 = vld [vmem:[%s2118 + $0x10] sm:$0xf]
    %v2124 = vld [vmem:[%s2118 + $0x14] sm:$0xf]
    %v2125 = vld [vmem:[%s2118 + $0x18] sm:$0xf]
    %v2126 = vld [vmem:[%s2118 + $0x1c] sm:$0xf]
    %v2127 = vld [vmem:[%s2118 + $0x20] sm:$0xf]
    %v2128 = vld [vmem:[%s2118 + $0x24] sm:$0xf]
    %v2129 = vld [vmem:[%s2118 + $0x28] sm:$0xf]
    %v2130 = vld [vmem:[%s2118 + $0x2c] sm:$0xf]
    %v2131 = vld [vmem:[%s2118 + $0x30] sm:$0xf]
    %v2132 = vld [vmem:[%s2118 + $0x34] sm:$0xf]
    %v2133 = vld [vmem:[%s2118 + $0x38] sm:$0xf]
    %v2134 = vld [vmem:[%s2118 + $0x3c] sm:$0xf]
    %v2151 = vunpack.c.l.b16 %v2119
    %v2152 = vunpack.c.l.b16 %v2120
    %v2153 = vunpack.c.l.b16 %v2121
    %v2154 = vunpack.c.l.b16 %v2122
    %v2155 = vunpack.c.l.b16 %v2123
    %v2156 = vunpack.c.l.b16 %v2124
    %v2157 = vunpack.c.l.b16 %v2125
    %v2158 = vunpack.c.l.b16 %v2126
    %v2159 = vunpack.c.l.b16 %v2127
    %v2160 = vunpack.c.l.b16 %v2128
    %v2161 = vunpack.c.l.b16 %v2129
    %v2162 = vunpack.c.l.b16 %v2130
    %v2163 = vunpack.c.l.b16 %v2131
    %v2164 = vunpack.c.l.b16 %v2132
    %v2165 = vunpack.c.l.b16 %v2133
    %v2166 = vunpack.c.l.b16 %v2134
    %v2167 = vpack.c.b16 %v2152, %v2151
    %v2168 = vpack.c.b16 %v2154, %v2153
    %v2169 = vpack.c.b16 %v2156, %v2155
    %v2170 = vpack.c.b16 %v2158, %v2157
    %v2171 = vpack.c.b16 %v2160, %v2159
    %v2172 = vpack.c.b16 %v2162, %v2161
    %v2173 = vpack.c.b16 %v2164, %v2163
    %v2174 = vpack.c.b16 %v2166, %v2165
    %2183 = vmatprep.subr.bf16.mxu0 0
    %2184 = vmatpush1.bf16.msra.mxu0 %v2174
    %2185 = vmatprep.subr.bf16.mxu0 0
    %2186 = vmatpush1.bf16.msra.mxu0 %v2173
    %2187 = vmatprep.subr.bf16.mxu0 0
    %2188 = vmatpush1.bf16.msra.mxu0 %v2172
    %2189 = vmatprep.subr.bf16.mxu0 0
    %2190 = vmatpush1.bf16.msra.mxu0 %v2171
    %2191 = vmatprep.subr.bf16.mxu0 0
    %2192 = vmatpush1.bf16.msra.mxu0 %v2170
    %2193 = vmatprep.subr.bf16.mxu0 0
    %2194 = vmatpush1.bf16.msra.mxu0 %v2169
    %2195 = vmatprep.subr.bf16.mxu0 0
    %2196 = vmatpush1.bf16.msra.mxu0 %v2168
    %2197 = vmatprep.subr.bf16.mxu0 0
    %2198 = vmatpush1.bf16.msra.mxu0 %v2167
    %2199 = vmatprep.subr.bf16.mxu0 0
    %2200 = vmatpush2.bf16.msra.mxu0 0
    %2201 = vmatprep.subr.bf16.mxu0 0
    %2202 = vmatpush2.bf16.msra.mxu0 0
    %2203 = vmatprep.subr.bf16.mxu0 0
    %2204 = vmatpush2.bf16.msra.mxu0 0
    %2205 = vmatprep.subr.bf16.mxu0 0
    %2206 = vmatpush2.bf16.msra.mxu0 0
    %2207 = vmatprep.subr.bf16.mxu0 0
    %2208 = vmatpush2.bf16.msra.mxu0 0
    %2209 = vmatprep.subr.bf16.mxu0 0
    %2210 = vmatpush2.bf16.msra.mxu0 0
    %2211 = vmatprep.subr.bf16.mxu0 0
    %2212 = vmatpush2.bf16.msra.mxu0 0
    %2213 = vmatprep.subr.bf16.mxu0 0
    %2214 = vmatpush2.bf16.msra.mxu0 0
    %2215 = vmatprep.mubr.bf16.mxu0 0
    %2216 = vmatmul.mubr.bf16.gmra.mxu0 %v2018
    %v2217 = vpop.f32.mrf.mxu0
    %v2218 = vadd.f32 0.0, %v2217
    %v2219 = vpop.f32.mrf.mxu0
    %v2220 = vpop.f32.mrf.mxu0
    %v2221 = vadd.f32 0.0, %v2220
    %v2222 = vpop.f32.mrf.mxu0
    %2223 = vdwg.mxu0
    %v2240 = vunpack.c.l.b16 %v2101
    %v2241 = vunpack.c.l.b16 %v2102
    %v2242 = vunpack.c.l.b16 %v2103
    %v2243 = vunpack.c.l.b16 %v2104
    %v2244 = vunpack.c.l.b16 %v2105
    %v2245 = vunpack.c.l.b16 %v2106
    %v2246 = vunpack.c.l.b16 %v2107
    %v2247 = vunpack.c.l.b16 %v2108
    %v2248 = vunpack.c.l.b16 %v2109
    %v2249 = vunpack.c.l.b16 %v2110
    %v2250 = vunpack.c.l.b16 %v2111
    %v2251 = vunpack.c.l.b16 %v2112
    %v2252 = vunpack.c.l.b16 %v2113
    %v2253 = vunpack.c.l.b16 %v2114
    %v2254 = vunpack.c.l.b16 %v2115
    %v2255 = vunpack.c.l.b16 %v2116
    %v2256 = vpack.c.b16 %v2241, %v2240
    %v2257 = vpack.c.b16 %v2243, %v2242
    %v2258 = vpack.c.b16 %v2245, %v2244
    %v2259 = vpack.c.b16 %v2247, %v2246
    %v2260 = vpack.c.b16 %v2249, %v2248
    %v2261 = vpack.c.b16 %v2251, %v2250
    %v2262 = vpack.c.b16 %v2253, %v2252
    %v2263 = vpack.c.b16 %v2255, %v2254
    %2272 = vmatprep.subr.bf16.mxu0 0
    %2273 = vmatpush1.bf16.msra.mxu0 %v2263
    %2274 = vmatprep.subr.bf16.mxu0 0
    %2275 = vmatpush1.bf16.msra.mxu0 %v2262
    %2276 = vmatprep.subr.bf16.mxu0 0
    %2277 = vmatpush1.bf16.msra.mxu0 %v2261
    %2278 = vmatprep.subr.bf16.mxu0 0
    %2279 = vmatpush1.bf16.msra.mxu0 %v2260
    %2280 = vmatprep.subr.bf16.mxu0 0
    %2281 = vmatpush1.bf16.msra.mxu0 %v2259
    %2282 = vmatprep.subr.bf16.mxu0 0
    %2283 = vmatpush1.bf16.msra.mxu0 %v2258
    %2284 = vmatprep.subr.bf16.mxu0 0
    %2285 = vmatpush1.bf16.msra.mxu0 %v2257
    %2286 = vmatprep.subr.bf16.mxu0 0
    %2287 = vmatpush1.bf16.msra.mxu0 %v2256
    %2288 = vmatprep.subr.bf16.mxu0 0
    %2289 = vmatpush2.bf16.msra.mxu0 0
    %2290 = vmatprep.subr.bf16.mxu0 0
    %2291 = vmatpush2.bf16.msra.mxu0 0
    %2292 = vmatprep.subr.bf16.mxu0 0
    %2293 = vmatpush2.bf16.msra.mxu0 0
    %2294 = vmatprep.subr.bf16.mxu0 0
    %2295 = vmatpush2.bf16.msra.mxu0 0
    %2296 = vmatprep.subr.bf16.mxu0 0
    %2297 = vmatpush2.bf16.msra.mxu0 0
    %2298 = vmatprep.subr.bf16.mxu0 0
    %2299 = vmatpush2.bf16.msra.mxu0 0
    %2300 = vmatprep.subr.bf16.mxu0 0
    %2301 = vmatpush2.bf16.msra.mxu0 0
    %2302 = vmatprep.subr.bf16.mxu0 0
    %2303 = vmatpush2.bf16.msra.mxu0 0
    %2304 = vmatprep.mubr.bf16.mxu0 0
    %2305 = vmatmul.mubr.bf16.gmra.mxu0 %v2117
    %v2306 = vpop.f32.mrf.mxu0
    %v2307 = vadd.f32 %v2218, %v2306
    %v2308 = vpop.f32.mrf.mxu0
    %v2309 = vpop.f32.mrf.mxu0
    %v2310 = vadd.f32 %v2221, %v2309
    %v2311 = vpop.f32.mrf.mxu0
    %2312 = vdwg.mxu0
    %s2313 = scalar_lea.vmem %s27, 128
    %v2314 = vld [vmem:[%s2313] sm:$0xf]
    %v2315 = vld [vmem:[%s2313 + $0x4] sm:$0xf]
    %v2316 = vld [vmem:[%s2313 + $0x8] sm:$0xf]
    %v2317 = vld [vmem:[%s2313 + $0xc] sm:$0xf]
    %v2318 = vld [vmem:[%s2313 + $0x10] sm:$0xf]
    %v2319 = vld [vmem:[%s2313 + $0x14] sm:$0xf]
    %v2320 = vld [vmem:[%s2313 + $0x18] sm:$0xf]
    %v2321 = vld [vmem:[%s2313 + $0x1c] sm:$0xf]
    %v2322 = vld [vmem:[%s2313 + $0x20] sm:$0xf]
    %v2323 = vld [vmem:[%s2313 + $0x24] sm:$0xf]
    %v2324 = vld [vmem:[%s2313 + $0x28] sm:$0xf]
    %v2325 = vld [vmem:[%s2313 + $0x2c] sm:$0xf]
    %v2326 = vld [vmem:[%s2313 + $0x30] sm:$0xf]
    %v2327 = vld [vmem:[%s2313 + $0x34] sm:$0xf]
    %v2328 = vld [vmem:[%s2313 + $0x38] sm:$0xf]
    %v2329 = vld [vmem:[%s2313 + $0x3c] sm:$0xf]
    %v2330 = vpack.c.bf16 %v2098, %v2095
    %v2347 = vunpack.c.l.b16 %v2314
    %v2348 = vunpack.c.l.b16 %v2315
    %v2349 = vunpack.c.l.b16 %v2316
    %v2350 = vunpack.c.l.b16 %v2317
    %v2351 = vunpack.c.l.b16 %v2318
    %v2352 = vunpack.c.l.b16 %v2319
    %v2353 = vunpack.c.l.b16 %v2320
    %v2354 = vunpack.c.l.b16 %v2321
    %v2355 = vunpack.c.l.b16 %v2322
    %v2356 = vunpack.c.l.b16 %v2323
    %v2357 = vunpack.c.l.b16 %v2324
    %v2358 = vunpack.c.l.b16 %v2325
    %v2359 = vunpack.c.l.b16 %v2326
    %v2360 = vunpack.c.l.b16 %v2327
    %v2361 = vunpack.c.l.b16 %v2328
    %v2362 = vunpack.c.l.b16 %v2329
    %v2363 = vpack.c.b16 %v2348, %v2347
    %v2364 = vpack.c.b16 %v2350, %v2349
    %v2365 = vpack.c.b16 %v2352, %v2351
    %v2366 = vpack.c.b16 %v2354, %v2353
    %v2367 = vpack.c.b16 %v2356, %v2355
    %v2368 = vpack.c.b16 %v2358, %v2357
    %v2369 = vpack.c.b16 %v2360, %v2359
    %v2370 = vpack.c.b16 %v2362, %v2361
    %2379 = vmatprep.subr.bf16.mxu0 0
    %2380 = vmatpush1.bf16.msra.mxu0 %v2370
    %2381 = vmatprep.subr.bf16.mxu0 0
    %2382 = vmatpush1.bf16.msra.mxu0 %v2369
    %2383 = vmatprep.subr.bf16.mxu0 0
    %2384 = vmatpush1.bf16.msra.mxu0 %v2368
    %2385 = vmatprep.subr.bf16.mxu0 0
    %2386 = vmatpush1.bf16.msra.mxu0 %v2367
    %2387 = vmatprep.subr.bf16.mxu0 0
    %2388 = vmatpush1.bf16.msra.mxu0 %v2366
    %2389 = vmatprep.subr.bf16.mxu0 0
    %2390 = vmatpush1.bf16.msra.mxu0 %v2365
    %2391 = vmatprep.subr.bf16.mxu0 0
    %2392 = vmatpush1.bf16.msra.mxu0 %v2364
    %2393 = vmatprep.subr.bf16.mxu0 0
    %2394 = vmatpush1.bf16.msra.mxu0 %v2363
    %2395 = vmatprep.subr.bf16.mxu0 0
    %2396 = vmatpush2.bf16.msra.mxu0 0
    %2397 = vmatprep.subr.bf16.mxu0 0
    %2398 = vmatpush2.bf16.msra.mxu0 0
    %2399 = vmatprep.subr.bf16.mxu0 0
    %2400 = vmatpush2.bf16.msra.mxu0 0
    %2401 = vmatprep.subr.bf16.mxu0 0
    %2402 = vmatpush2.bf16.msra.mxu0 0
    %2403 = vmatprep.subr.bf16.mxu0 0
    %2404 = vmatpush2.bf16.msra.mxu0 0
    %2405 = vmatprep.subr.bf16.mxu0 0
    %2406 = vmatpush2.bf16.msra.mxu0 0
    %2407 = vmatprep.subr.bf16.mxu0 0
    %2408 = vmatpush2.bf16.msra.mxu0 0
    %2409 = vmatprep.subr.bf16.mxu0 0
    %2410 = vmatpush2.bf16.msra.mxu0 0
    %2411 = vmatprep.mubr.bf16.mxu0 0
    %2412 = vmatmul.mubr.bf16.gmra.mxu0 %v2330
    %v2413 = vpop.f32.mrf.mxu0
    %v2414 = vadd.f32 0.0, %v2413
    %v2415 = vpop.f32.mrf.mxu0
    %v2416 = vpop.f32.mrf.mxu0
    %v2417 = vadd.f32 0.0, %v2416
    %v2418 = vpop.f32.mrf.mxu0
    %2419 = vdwg.mxu0
    %v2420 = vadd.f32 %v2307, %v2414
    %v2421 = vadd.f32 %v2310, %v2417
    %v2422 = vld [vmem:[#allocation20] sm:$0x1]
    %v2424 = vlaneseq
    %v2425 = vshrl.u32 %v2424, 7
    %v2426 = vsub.s32 0, %v2425
    %v2427 = vrot.slane %v2422, %v2426
    %v2429 = vmul.f32 %v2420, %v2427
    %v2430 = vmul.f32 %v2421, %v2427
    %v2431 = vld [vmem:[#allocation22] sm:$0x1]
    %v2433 = vlaneseq
    %v2434 = vshrl.u32 %v2433, 7
    %v2435 = vsub.s32 0, %v2434
    %v2436 = vrot.slane %v2431, %v2435
    %v2438 = vadd.f32 %v2429, %v2436
    %v2439 = vadd.f32 %v2430, %v2436
    %v2440 = vadd.f32 %v2438, %v1563
    %v2441 = vadd.f32 %v2439, %v1566
    %vm2442 = vcmp.ge.f32.partialorder %v2440, 0.0
    %vm2443 = vcmp.ge.f32.partialorder %v2441, 0.0
    %v2444 = vmul.f32 %v2440, 0.2
    %v2445 = vmul.f32 %v2441, 0.2
    %v2446 = vsel %vm2442, %v2440, %v2444
    %v2447 = vsel %vm2443, %v2441, %v2445
    %v2448 = vtanh.pop %v2446
    %v2449 = vtanh.pop %v2447
    %v2450 = vld [vmem:[#allocation23] sm:$0xf]
    %v2451 = vpack.c.bf16 %v2449, %v2448
    %v2453 = vsel %vm1577, %v2450, 0
    %2455 = vmatprep.subr.bf16.mxu0 0
    %2456 = vmatpush1.bf16.msra.mxu0 0
    %2457 = vmatprep.subr.bf16.mxu0 0
    %2458 = vmatpush1.bf16.msra.mxu0 0
    %2459 = vmatprep.subr.bf16.mxu0 0
    %2460 = vmatpush1.bf16.msra.mxu0 0
    %2461 = vmatprep.subr.bf16.mxu0 0
    %2462 = vmatpush1.bf16.msra.mxu0 0
    %2463 = vmatprep.subr.bf16.mxu0 0
    %2464 = vmatpush1.bf16.msra.mxu0 0
    %2465 = vmatprep.subr.bf16.mxu0 0
    %2466 = vmatpush1.bf16.msra.mxu0 0
    %2467 = vmatprep.subr.bf16.mxu0 0
    %2468 = vmatpush1.bf16.msra.mxu0 0
    %2469 = vmatprep.subr.bf16.mxu0 0
    %2470 = vmatpush1.bf16.msra.mxu0 %v2451
    %2471 = vmatprep.subr.bf16.mxu0 0
    %2472 = vmatpush2.bf16.msra.mxu0 0
    %2473 = vmatprep.subr.bf16.mxu0 0
    %2474 = vmatpush2.bf16.msra.mxu0 0
    %2475 = vmatprep.subr.bf16.mxu0 0
    %2476 = vmatpush2.bf16.msra.mxu0 0
    %2477 = vmatprep.subr.bf16.mxu0 0
    %2478 = vmatpush2.bf16.msra.mxu0 0
    %2479 = vmatprep.subr.bf16.mxu0 0
    %2480 = vmatpush2.bf16.msra.mxu0 0
    %2481 = vmatprep.subr.bf16.mxu0 0
    %2482 = vmatpush2.bf16.msra.mxu0 0
    %2483 = vmatprep.subr.bf16.mxu0 0
    %2484 = vmatpush2.bf16.msra.mxu0 0
    %2485 = vmatprep.subr.bf16.mxu0 0
    %2486 = vmatpush2.bf16.msra.mxu0 0
    %2487 = vmatprep.mubr.bf16.mxu0 0
    %2488 = vmatmul.mubr.bf16.gmra.mxu0 %v2453
    %v2489 = vpop.f32.mrf.mxu0
    %v2490 = vadd.f32 0.0, %v2489
    %v2491 = vpop.f32.mrf.mxu0
    %v2492 = vpop.f32.mrf.mxu0
    %v2493 = vpop.f32.mrf.mxu0
    %2494 = vdwg.mxu0
    %v2495 = vld [vmem:[#allocation25] sm:$0xf]
    %v2496 = vld [vmem:[#allocation25 + $0x4] sm:$0xf]
    %v2497 = vld [vmem:[#allocation25 + $0x8] sm:$0xf]
    %v2498 = vld [vmem:[#allocation25 + $0xc] sm:$0xf]
    %v2499 = vld [vmem:[#allocation25 + $0x10] sm:$0xf]
    %v2500 = vld [vmem:[#allocation25 + $0x14] sm:$0xf]
    %v2501 = vld [vmem:[#allocation25 + $0x18] sm:$0xf]
    %v2502 = vld [vmem:[#allocation25 + $0x1c] sm:$0xf]
    %v2503 = vld [vmem:[#allocation25 + $0x20] sm:$0xf]
    %v2504 = vld [vmem:[#allocation25 + $0x24] sm:$0xf]
    %v2505 = vld [vmem:[#allocation25 + $0x28] sm:$0xf]
    %v2506 = vld [vmem:[#allocation25 + $0x2c] sm:$0xf]
    %v2507 = vld [vmem:[#allocation25 + $0x30] sm:$0xf]
    %v2508 = vld [vmem:[#allocation25 + $0x34] sm:$0xf]
    %v2509 = vld [vmem:[#allocation25 + $0x38] sm:$0xf]
    %v2510 = vld [vmem:[#allocation25 + $0x3c] sm:$0xf]
    %v2511 = vpack.c.bf16 %v2490, %v2490
    %v2528 = vunpack.c.l.b16 %v2495
    %v2529 = vunpack.c.l.b16 %v2496
    %v2530 = vunpack.c.l.b16 %v2497
    %v2531 = vunpack.c.l.b16 %v2498
    %v2532 = vunpack.c.l.b16 %v2499
    %v2533 = vunpack.c.l.b16 %v2500
    %v2534 = vunpack.c.l.b16 %v2501
    %v2535 = vunpack.c.l.b16 %v2502
    %v2536 = vunpack.c.l.b16 %v2503
    %v2537 = vunpack.c.l.b16 %v2504
    %v2538 = vunpack.c.l.b16 %v2505
    %v2539 = vunpack.c.l.b16 %v2506
    %v2540 = vunpack.c.l.b16 %v2507
    %v2541 = vunpack.c.l.b16 %v2508
    %v2542 = vunpack.c.l.b16 %v2509
    %v2543 = vunpack.c.l.b16 %v2510
    %v2544 = vpack.c.b16 %v2529, %v2528
    %v2545 = vpack.c.b16 %v2531, %v2530
    %v2546 = vpack.c.b16 %v2533, %v2532
    %v2547 = vpack.c.b16 %v2535, %v2534
    %v2548 = vpack.c.b16 %v2537, %v2536
    %v2549 = vpack.c.b16 %v2539, %v2538
    %v2550 = vpack.c.b16 %v2541, %v2540
    %v2551 = vpack.c.b16 %v2543, %v2542
    %2560 = vmatprep.subr.bf16.mxu0 0
    %2561 = vmatpush1.bf16.msra.mxu0 %v2551
    %2562 = vmatprep.subr.bf16.mxu0 0
    %2563 = vmatpush1.bf16.msra.mxu0 %v2550
    %2564 = vmatprep.subr.bf16.mxu0 0
    %2565 = vmatpush1.bf16.msra.mxu0 %v2549
    %2566 = vmatprep.subr.bf16.mxu0 0
    %2567 = vmatpush1.bf16.msra.mxu0 %v2548
    %2568 = vmatprep.subr.bf16.mxu0 0
    %2569 = vmatpush1.bf16.msra.mxu0 %v2547
    %2570 = vmatprep.subr.bf16.mxu0 0
    %2571 = vmatpush1.bf16.msra.mxu0 %v2546
    %2572 = vmatprep.subr.bf16.mxu0 0
    %2573 = vmatpush1.bf16.msra.mxu0 %v2545
    %2574 = vmatprep.subr.bf16.mxu0 0
    %2575 = vmatpush1.bf16.msra.mxu0 %v2544
    %2576 = vmatprep.subr.bf16.mxu0 0
    %2577 = vmatpush2.bf16.msra.mxu0 0
    %2578 = vmatprep.subr.bf16.mxu0 0
    %2579 = vmatpush2.bf16.msra.mxu0 0
    %2580 = vmatprep.subr.bf16.mxu0 0
    %2581 = vmatpush2.bf16.msra.mxu0 0
    %2582 = vmatprep.subr.bf16.mxu0 0
    %2583 = vmatpush2.bf16.msra.mxu0 0
    %2584 = vmatprep.subr.bf16.mxu0 0
    %2585 = vmatpush2.bf16.msra.mxu0 0
    %2586 = vmatprep.subr.bf16.mxu0 0
    %2587 = vmatpush2.bf16.msra.mxu0 0
    %2588 = vmatprep.subr.bf16.mxu0 0
    %2589 = vmatpush2.bf16.msra.mxu0 0
    %2590 = vmatprep.subr.bf16.mxu0 0
    %2591 = vmatpush2.bf16.msra.mxu0 0
    %2592 = vmatprep.mubr.bf16.mxu0 0
    %2593 = vmatmul.mubr.bf16.gmra.mxu0 %v2511
    %v2594 = vpop.f32.mrf.mxu0
    %v2595 = vadd.f32 0.0, %v2594
    %v2596 = vpop.f32.mrf.mxu0
    %v2597 = vpop.f32.mrf.mxu0
    %v2598 = vpop.f32.mrf.mxu0
    %2599 = vdwg.mxu0
    %v2600 = vld [vmem:[#allocation26] sm:$0xf]
    %v2601 = vpack.c.bf16 %v2595, %v2595
    %vm2602 = vcmask 64512
    %v2604 = vsel %vm2602, %v2600, 0
    %vm2606 = vcmask 1043456
    %v2608 = vsel %vm2606, %v2601, 0
    %2610 = vmatprep.subr.bf16.mxu0 0
    %2611 = vmatpush1.bf16.msra.mxu0 0
    %2612 = vmatprep.subr.bf16.mxu0 0
    %2613 = vmatpush1.bf16.msra.mxu0 0
    %2614 = vmatprep.subr.bf16.mxu0 0
    %2615 = vmatpush1.bf16.msra.mxu0 0
    %2616 = vmatprep.subr.bf16.mxu0 0
    %2617 = vmatpush1.bf16.msra.mxu0 0
    %2618 = vmatprep.subr.bf16.mxu0 0
    %2619 = vmatpush1.bf16.msra.mxu0 0
    %2620 = vmatprep.subr.bf16.mxu0 0
    %2621 = vmatpush1.bf16.msra.mxu0 0
    %2622 = vmatprep.subr.bf16.mxu0 0
    %2623 = vmatpush1.bf16.msra.mxu0 0
    %2624 = vmatprep.subr.bf16.mxu0 0
    %2625 = vmatpush1.bf16.msra.mxu0 %v2608
    %2626 = vmatprep.subr.bf16.mxu0 0
    %2627 = vmatpush2.bf16.msra.mxu0 0
    %2628 = vmatprep.subr.bf16.mxu0 0
    %2629 = vmatpush2.bf16.msra.mxu0 0
    %2630 = vmatprep.subr.bf16.mxu0 0
    %2631 = vmatpush2.bf16.msra.mxu0 0
    %2632 = vmatprep.subr.bf16.mxu0 0
    %2633 = vmatpush2.bf16.msra.mxu0 0
    %2634 = vmatprep.subr.bf16.mxu0 0
    %2635 = vmatpush2.bf16.msra.mxu0 0
    %2636 = vmatprep.subr.bf16.mxu0 0
    %2637 = vmatpush2.bf16.msra.mxu0 0
    %2638 = vmatprep.subr.bf16.mxu0 0
    %2639 = vmatpush2.bf16.msra.mxu0 0
    %2640 = vmatprep.subr.bf16.mxu0 0
    %2641 = vmatpush2.bf16.msra.mxu0 0
    %2642 = vmatprep.mubr.bf16.mxu0 0
    %2643 = vmatmul.mubr.bf16.gmra.mxu0 %v2604
    %v2644 = vpop.f32.mrf.mxu0
    %v2645 = vadd.f32 0.0, %v2644
    %v2646 = vpop.f32.mrf.mxu0
    %v2647 = vpop.f32.mrf.mxu0
    %v2648 = vpop.f32.mrf.mxu0
    %2649 = vdwg.mxu0
    %v2650 = vld [vmem:[#allocation28] sm:$0xf]
    %v2652 = vsel %vm2602, %v2650, 0
    %2654 = vmatprep.subr.bf16.mxu0 0
    %2655 = vmatpush1.bf16.msra.mxu0 0
    %2656 = vmatprep.subr.bf16.mxu0 0
    %2657 = vmatpush1.bf16.msra.mxu0 0
    %2658 = vmatprep.subr.bf16.mxu0 0
    %2659 = vmatpush1.bf16.msra.mxu0 0
    %2660 = vmatprep.subr.bf16.mxu0 0
    %2661 = vmatpush1.bf16.msra.mxu0 0
    %2662 = vmatprep.subr.bf16.mxu0 0
    %2663 = vmatpush1.bf16.msra.mxu0 0
    %2664 = vmatprep.subr.bf16.mxu0 0
    %2665 = vmatpush1.bf16.msra.mxu0 0
    %2666 = vmatprep.subr.bf16.mxu0 0
    %2667 = vmatpush1.bf16.msra.mxu0 0
    %2668 = vmatprep.subr.bf16.mxu0 0
    %2669 = vmatpush1.bf16.msra.mxu0 %v2608
    %2670 = vmatprep.subr.bf16.mxu0 0
    %2671 = vmatpush2.bf16.msra.mxu0 0
    %2672 = vmatprep.subr.bf16.mxu0 0
    %2673 = vmatpush2.bf16.msra.mxu0 0
    %2674 = vmatprep.subr.bf16.mxu0 0
    %2675 = vmatpush2.bf16.msra.mxu0 0
    %2676 = vmatprep.subr.bf16.mxu0 0
    %2677 = vmatpush2.bf16.msra.mxu0 0
    %2678 = vmatprep.subr.bf16.mxu0 0
    %2679 = vmatpush2.bf16.msra.mxu0 0
    %2680 = vmatprep.subr.bf16.mxu0 0
    %2681 = vmatpush2.bf16.msra.mxu0 0
    %2682 = vmatprep.subr.bf16.mxu0 0
    %2683 = vmatpush2.bf16.msra.mxu0 0
    %2684 = vmatprep.subr.bf16.mxu0 0
    %2685 = vmatpush2.bf16.msra.mxu0 0
    %2686 = vmatprep.mubr.bf16.mxu0 0
    %2687 = vmatmul.mubr.bf16.gmra.mxu0 %v2652
    %v2688 = vpop.f32.mrf.mxu0
    %v2689 = vadd.f32 0.0, %v2688
    %v2690 = vpop.f32.mrf.mxu0
    %v2691 = vpop.f32.mrf.mxu0
    %v2692 = vpop.f32.mrf.mxu0
    %2693 = vdwg.mxu0
    %v2694 = vld [vmem:[#allocation29] sm:$0xf]
    %v2695 = vld [vmem:[#allocation29 + $0x4] sm:$0xf]
    %v2696 = vld [vmem:[#allocation29 + $0x8] sm:$0xf]
    %v2697 = vld [vmem:[#allocation29 + $0xc] sm:$0xf]
    %v2698 = vld [vmem:[#allocation29 + $0x10] sm:$0xf]
    %v2699 = vld [vmem:[#allocation29 + $0x14] sm:$0xf]
    %v2700 = vld [vmem:[#allocation29 + $0x18] sm:$0xf]
    %v2701 = vld [vmem:[#allocation29 + $0x1c] sm:$0xf]
    %v2702 = vpack.c.bf16 %v2645, %v2645
    %s2703 = scalar_lea.vmem [#allocation29], 32
    %v2704 = vld [vmem:[%s2703] sm:$0xf]
    %v2705 = vld [vmem:[%s2703 + $0x4] sm:$0xf]
    %v2706 = vld [vmem:[%s2703 + $0x8] sm:$0xf]
    %v2707 = vld [vmem:[%s2703 + $0xc] sm:$0xf]
    %v2708 = vld [vmem:[%s2703 + $0x10] sm:$0xf]
    %v2709 = vld [vmem:[%s2703 + $0x14] sm:$0xf]
    %v2710 = vld [vmem:[%s2703 + $0x18] sm:$0xf]
    %v2711 = vld [vmem:[%s2703 + $0x1c] sm:$0xf]
    %v2720 = vunpack.c.l.b16 %v2704
    %v2721 = vunpack.c.l.b16 %v2705
    %v2722 = vunpack.c.l.b16 %v2706
    %v2723 = vunpack.c.l.b16 %v2707
    %v2724 = vunpack.c.l.b16 %v2708
    %v2725 = vunpack.c.l.b16 %v2709
    %v2726 = vunpack.c.l.b16 %v2710
    %v2727 = vunpack.c.l.b16 %v2711
    %v2728 = vpack.c.b16 %v2721, %v2720
    %v2729 = vpack.c.b16 %v2723, %v2722
    %v2730 = vpack.c.b16 %v2725, %v2724
    %v2731 = vpack.c.b16 %v2727, %v2726
    %vm2736 = vcmask 523264
    %v2737 = vsel %vm2736, %v2601, 0
    %2739 = vmatprep.subr.bf16.mxu0 0
    %2740 = vmatpush1.bf16.msra.mxu0 0
    %2741 = vmatprep.subr.bf16.mxu0 0
    %2742 = vmatpush1.bf16.msra.mxu0 0
    %2743 = vmatprep.subr.bf16.mxu0 0
    %2744 = vmatpush1.bf16.msra.mxu0 0
    %2745 = vmatprep.subr.bf16.mxu0 0
    %2746 = vmatpush1.bf16.msra.mxu0 0
    %2747 = vmatprep.subr.bf16.mxu0 0
    %2748 = vmatpush1.bf16.msra.mxu0 %v2731
    %2749 = vmatprep.subr.bf16.mxu0 0
    %2750 = vmatpush1.bf16.msra.mxu0 %v2730
    %2751 = vmatprep.subr.bf16.mxu0 0
    %2752 = vmatpush1.bf16.msra.mxu0 %v2729
    %2753 = vmatprep.subr.bf16.mxu0 0
    %2754 = vmatpush1.bf16.msra.mxu0 %v2728
    %2755 = vmatprep.subr.bf16.mxu0 0
    %2756 = vmatpush2.bf16.msra.mxu0 0
    %2757 = vmatprep.subr.bf16.mxu0 0
    %2758 = vmatpush2.bf16.msra.mxu0 0
    %2759 = vmatprep.subr.bf16.mxu0 0
    %2760 = vmatpush2.bf16.msra.mxu0 0
    %2761 = vmatprep.subr.bf16.mxu0 0
    %2762 = vmatpush2.bf16.msra.mxu0 0
    %2763 = vmatprep.subr.bf16.mxu0 0
    %2764 = vmatpush2.bf16.msra.mxu0 0
    %2765 = vmatprep.subr.bf16.mxu0 0
    %2766 = vmatpush2.bf16.msra.mxu0 0
    %2767 = vmatprep.subr.bf16.mxu0 0
    %2768 = vmatpush2.bf16.msra.mxu0 0
    %2769 = vmatprep.subr.bf16.mxu0 0
    %2770 = vmatpush2.bf16.msra.mxu0 0
    %2771 = vmatprep.mubr.bf16.mxu0 0
    %2772 = vmatmul.mubr.bf16.gmra.mxu0 %v2737
    %v2773 = vpop.f32.mrf.mxu0
    %v2774 = vadd.f32 0.0, %v2773
    %v2775 = vpop.f32.mrf.mxu0
    %v2776 = vpop.f32.mrf.mxu0
    %v2777 = vpop.f32.mrf.mxu0
    %2778 = vdwg.mxu0
    %v2787 = vunpack.c.l.b16 %v2694
    %v2788 = vunpack.c.l.b16 %v2695
    %v2789 = vunpack.c.l.b16 %v2696
    %v2790 = vunpack.c.l.b16 %v2697
    %v2791 = vunpack.c.l.b16 %v2698
    %v2792 = vunpack.c.l.b16 %v2699
    %v2793 = vunpack.c.l.b16 %v2700
    %v2794 = vunpack.c.l.b16 %v2701
    %v2795 = vpack.c.b16 %v2788, %v2787
    %v2796 = vpack.c.b16 %v2790, %v2789
    %v2797 = vpack.c.b16 %v2792, %v2791
    %v2798 = vpack.c.b16 %v2794, %v2793
    %v2804 = vsel %vm2736, %v2702, 0
    %2806 = vmatprep.subr.bf16.mxu0 0
    %2807 = vmatpush1.bf16.msra.mxu0 0
    %2808 = vmatprep.subr.bf16.mxu0 0
    %2809 = vmatpush1.bf16.msra.mxu0 0
    %2810 = vmatprep.subr.bf16.mxu0 0
    %2811 = vmatpush1.bf16.msra.mxu0 0
    %2812 = vmatprep.subr.bf16.mxu0 0
    %2813 = vmatpush1.bf16.msra.mxu0 0
    %2814 = vmatprep.subr.bf16.mxu0 0
    %2815 = vmatpush1.bf16.msra.mxu0 %v2798
    %2816 = vmatprep.subr.bf16.mxu0 0
    %2817 = vmatpush1.bf16.msra.mxu0 %v2797
    %2818 = vmatprep.subr.bf16.mxu0 0
    %2819 = vmatpush1.bf16.msra.mxu0 %v2796
    %2820 = vmatprep.subr.bf16.mxu0 0
    %2821 = vmatpush1.bf16.msra.mxu0 %v2795
    %2822 = vmatprep.subr.bf16.mxu0 0
    %2823 = vmatpush2.bf16.msra.mxu0 0
    %2824 = vmatprep.subr.bf16.mxu0 0
    %2825 = vmatpush2.bf16.msra.mxu0 0
    %2826 = vmatprep.subr.bf16.mxu0 0
    %2827 = vmatpush2.bf16.msra.mxu0 0
    %2828 = vmatprep.subr.bf16.mxu0 0
    %2829 = vmatpush2.bf16.msra.mxu0 0
    %2830 = vmatprep.subr.bf16.mxu0 0
    %2831 = vmatpush2.bf16.msra.mxu0 0
    %2832 = vmatprep.subr.bf16.mxu0 0
    %2833 = vmatpush2.bf16.msra.mxu0 0
    %2834 = vmatprep.subr.bf16.mxu0 0
    %2835 = vmatpush2.bf16.msra.mxu0 0
    %2836 = vmatprep.subr.bf16.mxu0 0
    %2837 = vmatpush2.bf16.msra.mxu0 0
    %2838 = vmatprep.mubr.bf16.mxu0 0
    %2839 = vmatmul.mubr.bf16.gmra.mxu0 %v2804
    %v2840 = vpop.f32.mrf.mxu0
    %v2841 = vadd.f32 %v2774, %v2840
    %v2842 = vpop.f32.mrf.mxu0
    %v2843 = vpop.f32.mrf.mxu0
    %v2844 = vpop.f32.mrf.mxu0
    %2845 = vdwg.mxu0
    %s2846 = scalar_lea.vmem [#allocation29], 64
    %v2847 = vld [vmem:[%s2846] sm:$0xf]
    %v2848 = vld [vmem:[%s2846 + $0x4] sm:$0xf]
    %v2849 = vld [vmem:[%s2846 + $0x8] sm:$0xf]
    %v2850 = vld [vmem:[%s2846 + $0xc] sm:$0xf]
    %v2851 = vld [vmem:[%s2846 + $0x10] sm:$0xf]
    %v2852 = vld [vmem:[%s2846 + $0x14] sm:$0xf]
    %v2853 = vld [vmem:[%s2846 + $0x18] sm:$0xf]
    %v2854 = vld [vmem:[%s2846 + $0x1c] sm:$0xf]
    %v2855 = vpack.c.bf16 %v2689, %v2689
    %v2864 = vunpack.c.l.b16 %v2847
    %v2865 = vunpack.c.l.b16 %v2848
    %v2866 = vunpack.c.l.b16 %v2849
    %v2867 = vunpack.c.l.b16 %v2850
    %v2868 = vunpack.c.l.b16 %v2851
    %v2869 = vunpack.c.l.b16 %v2852
    %v2870 = vunpack.c.l.b16 %v2853
    %v2871 = vunpack.c.l.b16 %v2854
    %v2872 = vpack.c.b16 %v2865, %v2864
    %v2873 = vpack.c.b16 %v2867, %v2866
    %v2874 = vpack.c.b16 %v2869, %v2868
    %v2875 = vpack.c.b16 %v2871, %v2870
    %v2881 = vsel %vm2736, %v2855, 0
    %2883 = vmatprep.subr.bf16.mxu0 0
    %2884 = vmatpush1.bf16.msra.mxu0 0
    %2885 = vmatprep.subr.bf16.mxu0 0
    %2886 = vmatpush1.bf16.msra.mxu0 0
    %2887 = vmatprep.subr.bf16.mxu0 0
    %2888 = vmatpush1.bf16.msra.mxu0 0
    %2889 = vmatprep.subr.bf16.mxu0 0
    %2890 = vmatpush1.bf16.msra.mxu0 0
    %2891 = vmatprep.subr.bf16.mxu0 0
    %2892 = vmatpush1.bf16.msra.mxu0 %v2875
    %2893 = vmatprep.subr.bf16.mxu0 0
    %2894 = vmatpush1.bf16.msra.mxu0 %v2874
    %2895 = vmatprep.subr.bf16.mxu0 0
    %2896 = vmatpush1.bf16.msra.mxu0 %v2873
    %2897 = vmatprep.subr.bf16.mxu0 0
    %2898 = vmatpush1.bf16.msra.mxu0 %v2872
    %2899 = vmatprep.subr.bf16.mxu0 0
    %2900 = vmatpush2.bf16.msra.mxu0 0
    %2901 = vmatprep.subr.bf16.mxu0 0
    %2902 = vmatpush2.bf16.msra.mxu0 0
    %2903 = vmatprep.subr.bf16.mxu0 0
    %2904 = vmatpush2.bf16.msra.mxu0 0
    %2905 = vmatprep.subr.bf16.mxu0 0
    %2906 = vmatpush2.bf16.msra.mxu0 0
    %2907 = vmatprep.subr.bf16.mxu0 0
    %2908 = vmatpush2.bf16.msra.mxu0 0
    %2909 = vmatprep.subr.bf16.mxu0 0
    %2910 = vmatpush2.bf16.msra.mxu0 0
    %2911 = vmatprep.subr.bf16.mxu0 0
    %2912 = vmatpush2.bf16.msra.mxu0 0
    %2913 = vmatprep.subr.bf16.mxu0 0
    %2914 = vmatpush2.bf16.msra.mxu0 0
    %2915 = vmatprep.mubr.bf16.mxu0 0
    %2916 = vmatmul.mubr.bf16.gmra.mxu0 %v2881
    %v2917 = vpop.f32.mrf.mxu0
    %v2918 = vadd.f32 0.0, %v2917
    %v2919 = vpop.f32.mrf.mxu0
    %v2920 = vpop.f32.mrf.mxu0
    %v2921 = vpop.f32.mrf.mxu0
    %2922 = vdwg.mxu0
    %v2923 = vadd.f32 %v2841, %v2918
    %v2924 = vld [vmem:[#allocation31] sm:$0x1]
    %v2926 = vlaneseq
    %v2927 = vshrl.u32 %v2926, 7
    %v2928 = vsub.s32 0, %v2927
    %v2929 = vrot.slane %v2924, %v2928
    %v2931 = vmul.f32 %v2923, %v2929
    %v2932 = vld [vmem:[#allocation32] sm:$0x1]
    %v2934 = vlaneseq
    %v2935 = vshrl.u32 %v2934, 7
    %v2936 = vsub.s32 0, %v2935
    %v2937 = vrot.slane %v2932, %v2936
    %v2939 = vadd.f32 %v2931, %v2937
    %vm2940 = vcmp.ge.f32.partialorder %v2939, 0.0
    %v2941 = vmul.f32 %v2939, 0.2
    %v2942 = vsel %vm2940, %v2939, %v2941
    %v2943 = vpack.c.bf16 %v2942, %v2942
    %v2945 = vsel %vm2606, %v2943, 0
    %2947 = vmatprep.subr.bf16.mxu0 0
    %2948 = vmatpush1.bf16.msra.mxu0 0
    %2949 = vmatprep.subr.bf16.mxu0 0
    %2950 = vmatpush1.bf16.msra.mxu0 0
    %2951 = vmatprep.subr.bf16.mxu0 0
    %2952 = vmatpush1.bf16.msra.mxu0 0
    %2953 = vmatprep.subr.bf16.mxu0 0
    %2954 = vmatpush1.bf16.msra.mxu0 0
    %2955 = vmatprep.subr.bf16.mxu0 0
    %2956 = vmatpush1.bf16.msra.mxu0 0
    %2957 = vmatprep.subr.bf16.mxu0 0
    %2958 = vmatpush1.bf16.msra.mxu0 0
    %2959 = vmatprep.subr.bf16.mxu0 0
    %2960 = vmatpush1.bf16.msra.mxu0 0
    %2961 = vmatprep.subr.bf16.mxu0 0
    %2962 = vmatpush1.bf16.msra.mxu0 %v2945
    %2963 = vmatprep.subr.bf16.mxu0 0
    %2964 = vmatpush2.bf16.msra.mxu0 0
    %2965 = vmatprep.subr.bf16.mxu0 0
    %2966 = vmatpush2.bf16.msra.mxu0 0
    %2967 = vmatprep.subr.bf16.mxu0 0
    %2968 = vmatpush2.bf16.msra.mxu0 0
    %2969 = vmatprep.subr.bf16.mxu0 0
    %2970 = vmatpush2.bf16.msra.mxu0 0
    %2971 = vmatprep.subr.bf16.mxu0 0
    %2972 = vmatpush2.bf16.msra.mxu0 0
    %2973 = vmatprep.subr.bf16.mxu0 0
    %2974 = vmatpush2.bf16.msra.mxu0 0
    %2975 = vmatprep.subr.bf16.mxu0 0
    %2976 = vmatpush2.bf16.msra.mxu0 0
    %2977 = vmatprep.subr.bf16.mxu0 0
    %2978 = vmatpush2.bf16.msra.mxu0 0
    %2979 = vmatprep.mubr.bf16.mxu0 0
    %2980 = vmatmul.mubr.bf16.gmra.mxu0 %v2604
    %v2981 = vpop.f32.mrf.mxu0
    %v2982 = vadd.f32 0.0, %v2981
    %v2983 = vpop.f32.mrf.mxu0
    %v2984 = vpop.f32.mrf.mxu0
    %v2985 = vpop.f32.mrf.mxu0
    %2986 = vdwg.mxu0
    %2987 = vmatprep.subr.bf16.mxu0 0
    %2988 = vmatpush1.bf16.msra.mxu0 0
    %2989 = vmatprep.subr.bf16.mxu0 0
    %2990 = vmatpush1.bf16.msra.mxu0 0
    %2991 = vmatprep.subr.bf16.mxu0 0
    %2992 = vmatpush1.bf16.msra.mxu0 0
    %2993 = vmatprep.subr.bf16.mxu0 0
    %2994 = vmatpush1.bf16.msra.mxu0 0
    %2995 = vmatprep.subr.bf16.mxu0 0
    %2996 = vmatpush1.bf16.msra.mxu0 0
    %2997 = vmatprep.subr.bf16.mxu0 0
    %2998 = vmatpush1.bf16.msra.mxu0 0
    %2999 = vmatprep.subr.bf16.mxu0 0
    %3000 = vmatpush1.bf16.msra.mxu0 0
    %3001 = vmatprep.subr.bf16.mxu0 0
    %3002 = vmatpush1.bf16.msra.mxu0 %v2945
    %3003 = vmatprep.subr.bf16.mxu0 0
    %3004 = vmatpush2.bf16.msra.mxu0 0
    %3005 = vmatprep.subr.bf16.mxu0 0
    %3006 = vmatpush2.bf16.msra.mxu0 0
    %3007 = vmatprep.subr.bf16.mxu0 0
    %3008 = vmatpush2.bf16.msra.mxu0 0
    %3009 = vmatprep.subr.bf16.mxu0 0
    %3010 = vmatpush2.bf16.msra.mxu0 0
    %3011 = vmatprep.subr.bf16.mxu0 0
    %3012 = vmatpush2.bf16.msra.mxu0 0
    %3013 = vmatprep.subr.bf16.mxu0 0
    %3014 = vmatpush2.bf16.msra.mxu0 0
    %3015 = vmatprep.subr.bf16.mxu0 0
    %3016 = vmatpush2.bf16.msra.mxu0 0
    %3017 = vmatprep.subr.bf16.mxu0 0
    %3018 = vmatpush2.bf16.msra.mxu0 0
    %3019 = vmatprep.mubr.bf16.mxu0 0
    %3020 = vmatmul.mubr.bf16.gmra.mxu0 %v2652
    %v3021 = vpop.f32.mrf.mxu0
    %v3022 = vadd.f32 0.0, %v3021
    %v3023 = vpop.f32.mrf.mxu0
    %v3024 = vpop.f32.mrf.mxu0
    %v3025 = vpop.f32.mrf.mxu0
    %3026 = vdwg.mxu0
    %v3027 = vld [vmem:[#allocation34] sm:$0xf]
    %v3028 = vld [vmem:[#allocation34 + $0x4] sm:$0xf]
    %v3029 = vld [vmem:[#allocation34 + $0x8] sm:$0xf]
    %v3030 = vld [vmem:[#allocation34 + $0xc] sm:$0xf]
    %v3031 = vld [vmem:[#allocation34 + $0x10] sm:$0xf]
    %v3032 = vld [vmem:[#allocation34 + $0x14] sm:$0xf]
    %v3033 = vld [vmem:[#allocation34 + $0x18] sm:$0xf]
    %v3034 = vld [vmem:[#allocation34 + $0x1c] sm:$0xf]
    %v3035 = vpack.c.bf16 %v2982, %v2982
    %s3036 = scalar_lea.vmem [#allocation34], 32
    %v3037 = vld [vmem:[%s3036] sm:$0xf]
    %v3038 = vld [vmem:[%s3036 + $0x4] sm:$0xf]
    %v3039 = vld [vmem:[%s3036 + $0x8] sm:$0xf]
    %v3040 = vld [vmem:[%s3036 + $0xc] sm:$0xf]
    %v3041 = vld [vmem:[%s3036 + $0x10] sm:$0xf]
    %v3042 = vld [vmem:[%s3036 + $0x14] sm:$0xf]
    %v3043 = vld [vmem:[%s3036 + $0x18] sm:$0xf]
    %v3044 = vld [vmem:[%s3036 + $0x1c] sm:$0xf]
    %v3053 = vunpack.c.l.b16 %v3037
    %v3054 = vunpack.c.l.b16 %v3038
    %v3055 = vunpack.c.l.b16 %v3039
    %v3056 = vunpack.c.l.b16 %v3040
    %v3057 = vunpack.c.l.b16 %v3041
    %v3058 = vunpack.c.l.b16 %v3042
    %v3059 = vunpack.c.l.b16 %v3043
    %v3060 = vunpack.c.l.b16 %v3044
    %v3061 = vpack.c.b16 %v3054, %v3053
    %v3062 = vpack.c.b16 %v3056, %v3055
    %v3063 = vpack.c.b16 %v3058, %v3057
    %v3064 = vpack.c.b16 %v3060, %v3059
    %v3069 = vsel %vm2736, %v2943, 0
    %3071 = vmatprep.subr.bf16.mxu0 0
    %3072 = vmatpush1.bf16.msra.mxu0 0
    %3073 = vmatprep.subr.bf16.mxu0 0
    %3074 = vmatpush1.bf16.msra.mxu0 0
    %3075 = vmatprep.subr.bf16.mxu0 0
    %3076 = vmatpush1.bf16.msra.mxu0 0
    %3077 = vmatprep.subr.bf16.mxu0 0
    %3078 = vmatpush1.bf16.msra.mxu0 0
    %3079 = vmatprep.subr.bf16.mxu0 0
    %3080 = vmatpush1.bf16.msra.mxu0 %v3064
    %3081 = vmatprep.subr.bf16.mxu0 0
    %3082 = vmatpush1.bf16.msra.mxu0 %v3063
    %3083 = vmatprep.subr.bf16.mxu0 0
    %3084 = vmatpush1.bf16.msra.mxu0 %v3062
    %3085 = vmatprep.subr.bf16.mxu0 0
    %3086 = vmatpush1.bf16.msra.mxu0 %v3061
    %3087 = vmatprep.subr.bf16.mxu0 0
    %3088 = vmatpush2.bf16.msra.mxu0 0
    %3089 = vmatprep.subr.bf16.mxu0 0
    %3090 = vmatpush2.bf16.msra.mxu0 0
    %3091 = vmatprep.subr.bf16.mxu0 0
    %3092 = vmatpush2.bf16.msra.mxu0 0
    %3093 = vmatprep.subr.bf16.mxu0 0
    %3094 = vmatpush2.bf16.msra.mxu0 0
    %3095 = vmatprep.subr.bf16.mxu0 0
    %3096 = vmatpush2.bf16.msra.mxu0 0
    %3097 = vmatprep.subr.bf16.mxu0 0
    %3098 = vmatpush2.bf16.msra.mxu0 0
    %3099 = vmatprep.subr.bf16.mxu0 0
    %3100 = vmatpush2.bf16.msra.mxu0 0
    %3101 = vmatprep.subr.bf16.mxu0 0
    %3102 = vmatpush2.bf16.msra.mxu0 0
    %3103 = vmatprep.mubr.bf16.mxu0 0
    %3104 = vmatmul.mubr.bf16.gmra.mxu0 %v3069
    %v3105 = vpop.f32.mrf.mxu0
    %v3106 = vadd.f32 0.0, %v3105
    %v3107 = vpop.f32.mrf.mxu0
    %v3108 = vpop.f32.mrf.mxu0
    %v3109 = vpop.f32.mrf.mxu0
    %3110 = vdwg.mxu0
    %v3119 = vunpack.c.l.b16 %v3027
    %v3120 = vunpack.c.l.b16 %v3028
    %v3121 = vunpack.c.l.b16 %v3029
    %v3122 = vunpack.c.l.b16 %v3030
    %v3123 = vunpack.c.l.b16 %v3031
    %v3124 = vunpack.c.l.b16 %v3032
    %v3125 = vunpack.c.l.b16 %v3033
    %v3126 = vunpack.c.l.b16 %v3034
    %v3127 = vpack.c.b16 %v3120, %v3119
    %v3128 = vpack.c.b16 %v3122, %v3121
    %v3129 = vpack.c.b16 %v3124, %v3123
    %v3130 = vpack.c.b16 %v3126, %v3125
    %v3136 = vsel %vm2736, %v3035, 0
    %3138 = vmatprep.subr.bf16.mxu0 0
    %3139 = vmatpush1.bf16.msra.mxu0 0
    %3140 = vmatprep.subr.bf16.mxu0 0
    %3141 = vmatpush1.bf16.msra.mxu0 0
    %3142 = vmatprep.subr.bf16.mxu0 0
    %3143 = vmatpush1.bf16.msra.mxu0 0
    %3144 = vmatprep.subr.bf16.mxu0 0
    %3145 = vmatpush1.bf16.msra.mxu0 0
    %3146 = vmatprep.subr.bf16.mxu0 0
    %3147 = vmatpush1.bf16.msra.mxu0 %v3130
    %3148 = vmatprep.subr.bf16.mxu0 0
    %3149 = vmatpush1.bf16.msra.mxu0 %v3129
    %3150 = vmatprep.subr.bf16.mxu0 0
    %3151 = vmatpush1.bf16.msra.mxu0 %v3128
    %3152 = vmatprep.subr.bf16.mxu0 0
    %3153 = vmatpush1.bf16.msra.mxu0 %v3127
    %3154 = vmatprep.subr.bf16.mxu0 0
    %3155 = vmatpush2.bf16.msra.mxu0 0
    %3156 = vmatprep.subr.bf16.mxu0 0
    %3157 = vmatpush2.bf16.msra.mxu0 0
    %3158 = vmatprep.subr.bf16.mxu0 0
    %3159 = vmatpush2.bf16.msra.mxu0 0
    %3160 = vmatprep.subr.bf16.mxu0 0
    %3161 = vmatpush2.bf16.msra.mxu0 0
    %3162 = vmatprep.subr.bf16.mxu0 0
    %3163 = vmatpush2.bf16.msra.mxu0 0
    %3164 = vmatprep.subr.bf16.mxu0 0
    %3165 = vmatpush2.bf16.msra.mxu0 0
    %3166 = vmatprep.subr.bf16.mxu0 0
    %3167 = vmatpush2.bf16.msra.mxu0 0
    %3168 = vmatprep.subr.bf16.mxu0 0
    %3169 = vmatpush2.bf16.msra.mxu0 0
    %3170 = vmatprep.mubr.bf16.mxu0 0
    %3171 = vmatmul.mubr.bf16.gmra.mxu0 %v3136
    %v3172 = vpop.f32.mrf.mxu0
    %v3173 = vadd.f32 %v3106, %v3172
    %v3174 = vpop.f32.mrf.mxu0
    %v3175 = vpop.f32.mrf.mxu0
    %v3176 = vpop.f32.mrf.mxu0
    %3177 = vdwg.mxu0
    %s3178 = scalar_lea.vmem [#allocation34], 64
    %v3179 = vld [vmem:[%s3178] sm:$0xf]
    %v3180 = vld [vmem:[%s3178 + $0x4] sm:$0xf]
    %v3181 = vld [vmem:[%s3178 + $0x8] sm:$0xf]
    %v3182 = vld [vmem:[%s3178 + $0xc] sm:$0xf]
    %v3183 = vld [vmem:[%s3178 + $0x10] sm:$0xf]
    %v3184 = vld [vmem:[%s3178 + $0x14] sm:$0xf]
    %v3185 = vld [vmem:[%s3178 + $0x18] sm:$0xf]
    %v3186 = vld [vmem:[%s3178 + $0x1c] sm:$0xf]
    %v3187 = vpack.c.bf16 %v3022, %v3022
    %v3196 = vunpack.c.l.b16 %v3179
    %v3197 = vunpack.c.l.b16 %v3180
    %v3198 = vunpack.c.l.b16 %v3181
    %v3199 = vunpack.c.l.b16 %v3182
    %v3200 = vunpack.c.l.b16 %v3183
    %v3201 = vunpack.c.l.b16 %v3184
    %v3202 = vunpack.c.l.b16 %v3185
    %v3203 = vunpack.c.l.b16 %v3186
    %v3204 = vpack.c.b16 %v3197, %v3196
    %v3205 = vpack.c.b16 %v3199, %v3198
    %v3206 = vpack.c.b16 %v3201, %v3200
    %v3207 = vpack.c.b16 %v3203, %v3202
    %v3213 = vsel %vm2736, %v3187, 0
    %3215 = vmatprep.subr.bf16.mxu0 0
    %3216 = vmatpush1.bf16.msra.mxu0 0
    %3217 = vmatprep.subr.bf16.mxu0 0
    %3218 = vmatpush1.bf16.msra.mxu0 0
    %3219 = vmatprep.subr.bf16.mxu0 0
    %3220 = vmatpush1.bf16.msra.mxu0 0
    %3221 = vmatprep.subr.bf16.mxu0 0
    %3222 = vmatpush1.bf16.msra.mxu0 0
    %3223 = vmatprep.subr.bf16.mxu0 0
    %3224 = vmatpush1.bf16.msra.mxu0 %v3207
    %3225 = vmatprep.subr.bf16.mxu0 0
    %3226 = vmatpush1.bf16.msra.mxu0 %v3206
    %3227 = vmatprep.subr.bf16.mxu0 0
    %3228 = vmatpush1.bf16.msra.mxu0 %v3205
    %3229 = vmatprep.subr.bf16.mxu0 0
    %3230 = vmatpush1.bf16.msra.mxu0 %v3204
    %3231 = vmatprep.subr.bf16.mxu0 0
    %3232 = vmatpush2.bf16.msra.mxu0 0
    %3233 = vmatprep.subr.bf16.mxu0 0
    %3234 = vmatpush2.bf16.msra.mxu0 0
    %3235 = vmatprep.subr.bf16.mxu0 0
    %3236 = vmatpush2.bf16.msra.mxu0 0
    %3237 = vmatprep.subr.bf16.mxu0 0
    %3238 = vmatpush2.bf16.msra.mxu0 0
    %3239 = vmatprep.subr.bf16.mxu0 0
    %3240 = vmatpush2.bf16.msra.mxu0 0
    %3241 = vmatprep.subr.bf16.mxu0 0
    %3242 = vmatpush2.bf16.msra.mxu0 0
    %3243 = vmatprep.subr.bf16.mxu0 0
    %3244 = vmatpush2.bf16.msra.mxu0 0
    %3245 = vmatprep.subr.bf16.mxu0 0
    %3246 = vmatpush2.bf16.msra.mxu0 0
    %3247 = vmatprep.mubr.bf16.mxu0 0
    %3248 = vmatmul.mubr.bf16.gmra.mxu0 %v3213
    %v3249 = vpop.f32.mrf.mxu0
    %v3250 = vadd.f32 0.0, %v3249
    %v3251 = vpop.f32.mrf.mxu0
    %v3252 = vpop.f32.mrf.mxu0
    %v3253 = vpop.f32.mrf.mxu0
    %3254 = vdwg.mxu0
    %v3255 = vadd.f32 %v3173, %v3250
    %v3256 = vld [vmem:[#allocation35] sm:$0x1]
    %v3258 = vlaneseq
    %v3259 = vshrl.u32 %v3258, 7
    %v3260 = vsub.s32 0, %v3259
    %v3261 = vrot.slane %v3256, %v3260
    %v3263 = vmul.f32 %v3255, %v3261
    %v3264 = vld [vmem:[#allocation37] sm:$0x1]
    %v3266 = vlaneseq
    %v3267 = vshrl.u32 %v3266, 7
    %v3268 = vsub.s32 0, %v3267
    %v3269 = vrot.slane %v3264, %v3268
    %v3271 = vadd.f32 %v3263, %v3269
    %v3272 = vadd.f32 %v3271, %v2595
    %vm3273 = vcmp.ge.f32.partialorder %v3272, 0.0
    %v3274 = vmul.f32 %v3272, 0.2
    %v3275 = vsel %vm3273, %v3272, %v3274
    %v3276 = vtanh.pop %v3275
    %v3277 = vld [vmem:[#allocation38] sm:$0x3]
    %v3278 = vpack.c.bf16 %v3276, %v3276
    %v3280 = vsel %vm2602, %v3277, 0
    %v3283 = vsel %vm2606, %v3278, 0
    %3285 = vmatprep.subr.bf16.mxu0 0
    %3286 = vmatpush1.bf16.msra.mxu0 0
    %3287 = vmatprep.subr.bf16.mxu0 0
    %3288 = vmatpush1.bf16.msra.mxu0 0
    %3289 = vmatprep.subr.bf16.mxu0 0
    %3290 = vmatpush1.bf16.msra.mxu0 0
    %3291 = vmatprep.subr.bf16.mxu0 0
    %3292 = vmatpush1.bf16.msra.mxu0 0
    %3293 = vmatprep.subr.bf16.mxu0 0
    %3294 = vmatpush1.bf16.msra.mxu0 0
    %3295 = vmatprep.subr.bf16.mxu0 0
    %3296 = vmatpush1.bf16.msra.mxu0 0
    %3297 = vmatprep.subr.bf16.mxu0 0
    %3298 = vmatpush1.bf16.msra.mxu0 0
    %3299 = vmatprep.subr.bf16.mxu0 0
    %3300 = vmatpush1.bf16.msra.mxu0 %v3283
    %3301 = vmatprep.subr.bf16.mxu0 0
    %3302 = vmatpush2.bf16.msra.mxu0 0
    %3303 = vmatprep.subr.bf16.mxu0 0
    %3304 = vmatpush2.bf16.msra.mxu0 0
    %3305 = vmatprep.subr.bf16.mxu0 0
    %3306 = vmatpush2.bf16.msra.mxu0 0
    %3307 = vmatprep.subr.bf16.mxu0 0
    %3308 = vmatpush2.bf16.msra.mxu0 0
    %3309 = vmatprep.subr.bf16.mxu0 0
    %3310 = vmatpush2.bf16.msra.mxu0 0
    %3311 = vmatprep.subr.bf16.mxu0 0
    %3312 = vmatpush2.bf16.msra.mxu0 0
    %3313 = vmatprep.subr.bf16.mxu0 0
    %3314 = vmatpush2.bf16.msra.mxu0 0
    %3315 = vmatprep.subr.bf16.mxu0 0
    %3316 = vmatpush2.bf16.msra.mxu0 0
    %3317 = vmatprep.mubr.bf16.mxu0 0
    %3318 = vmatmul.mubr.bf16.gmra.mxu0 %v3280
    %v3319 = vpop.f32.mrf.mxu0
    %v3320 = vadd.f32 0.0, %v3319
    %v3321 = vpop.f32.mrf.mxu0
    %v3322 = vpop.f32.mrf.mxu0
    %v3323 = vpop.f32.mrf.mxu0
    %3324 = vdwg.mxu0
    %v3325 = vld [vmem:[#allocation40] sm:$0xf]
    %v3326 = vld [vmem:[#allocation40 + $0x4] sm:$0xf]
    %v3327 = vld [vmem:[#allocation40 + $0x8] sm:$0xf]
    %v3328 = vld [vmem:[#allocation40 + $0xc] sm:$0xf]
    %v3329 = vld [vmem:[#allocation40 + $0x10] sm:$0xf]
    %v3330 = vld [vmem:[#allocation40 + $0x14] sm:$0xf]
    %v3331 = vld [vmem:[#allocation40 + $0x18] sm:$0xf]
    %v3332 = vld [vmem:[#allocation40 + $0x1c] sm:$0xf]
    %v3333 = vpack.c.bf16 %v3320, %v3320
    %v3342 = vunpack.c.l.b16 %v3325
    %v3343 = vunpack.c.l.b16 %v3326
    %v3344 = vunpack.c.l.b16 %v3327
    %v3345 = vunpack.c.l.b16 %v3328
    %v3346 = vunpack.c.l.b16 %v3329
    %v3347 = vunpack.c.l.b16 %v3330
    %v3348 = vunpack.c.l.b16 %v3331
    %v3349 = vunpack.c.l.b16 %v3332
    %v3350 = vpack.c.b16 %v3343, %v3342
    %v3351 = vpack.c.b16 %v3345, %v3344
    %v3352 = vpack.c.b16 %v3347, %v3346
    %v3353 = vpack.c.b16 %v3349, %v3348
    %v3359 = vsel %vm2736, %v3333, 0
    %3361 = vmatprep.subr.bf16.mxu0 0
    %3362 = vmatpush1.bf16.msra.mxu0 0
    %3363 = vmatprep.subr.bf16.mxu0 0
    %3364 = vmatpush1.bf16.msra.mxu0 0
    %3365 = vmatprep.subr.bf16.mxu0 0
    %3366 = vmatpush1.bf16.msra.mxu0 0
    %3367 = vmatprep.subr.bf16.mxu0 0
    %3368 = vmatpush1.bf16.msra.mxu0 0
    %3369 = vmatprep.subr.bf16.mxu0 0
    %3370 = vmatpush1.bf16.msra.mxu0 %v3353
    %3371 = vmatprep.subr.bf16.mxu0 0
    %3372 = vmatpush1.bf16.msra.mxu0 %v3352
    %3373 = vmatprep.subr.bf16.mxu0 0
    %3374 = vmatpush1.bf16.msra.mxu0 %v3351
    %3375 = vmatprep.subr.bf16.mxu0 0
    %3376 = vmatpush1.bf16.msra.mxu0 %v3350
    %3377 = vmatprep.subr.bf16.mxu0 0
    %3378 = vmatpush2.bf16.msra.mxu0 0
    %3379 = vmatprep.subr.bf16.mxu0 0
    %3380 = vmatpush2.bf16.msra.mxu0 0
    %3381 = vmatprep.subr.bf16.mxu0 0
    %3382 = vmatpush2.bf16.msra.mxu0 0
    %3383 = vmatprep.subr.bf16.mxu0 0
    %3384 = vmatpush2.bf16.msra.mxu0 0
    %3385 = vmatprep.subr.bf16.mxu0 0
    %3386 = vmatpush2.bf16.msra.mxu0 0
    %3387 = vmatprep.subr.bf16.mxu0 0
    %3388 = vmatpush2.bf16.msra.mxu0 0
    %3389 = vmatprep.subr.bf16.mxu0 0
    %3390 = vmatpush2.bf16.msra.mxu0 0
    %3391 = vmatprep.subr.bf16.mxu0 0
    %3392 = vmatpush2.bf16.msra.mxu0 0
    %3393 = vmatprep.mubr.bf16.mxu0 0
    %3394 = vmatmul.mubr.bf16.gmra.mxu0 %v3359
    %v3395 = vpop.f32.mrf.mxu0
    %v3396 = vadd.f32 0.0, %v3395
    %v3397 = vpop.f32.mrf.mxu0
    %v3398 = vpop.f32.mrf.mxu0
    %v3399 = vpop.f32.mrf.mxu0
    %3400 = vdwg.mxu0
    %v3401 = vld [vmem:[#allocation41] sm:$0x3]
    %v3402 = vpack.c.bf16 %v3396, %v3396
    %vm3403 = vcmask 31744
    %v3405 = vsel %vm3403, %v3401, 0
    %vm3407 = vcmask 1041408
    %v3409 = vsel %vm3407, %v3402, 0
    %3411 = vmatprep.subr.bf16.mxu0 0
    %3412 = vmatpush1.bf16.msra.mxu0 0
    %3413 = vmatprep.subr.bf16.mxu0 0
    %3414 = vmatpush1.bf16.msra.mxu0 0
    %3415 = vmatprep.subr.bf16.mxu0 0
    %3416 = vmatpush1.bf16.msra.mxu0 0
    %3417 = vmatprep.subr.bf16.mxu0 0
    %3418 = vmatpush1.bf16.msra.mxu0 0
    %3419 = vmatprep.subr.bf16.mxu0 0
    %3420 = vmatpush1.bf16.msra.mxu0 0
    %3421 = vmatprep.subr.bf16.mxu0 0
    %3422 = vmatpush1.bf16.msra.mxu0 0
    %3423 = vmatprep.subr.bf16.mxu0 0
    %3424 = vmatpush1.bf16.msra.mxu0 0
    %3425 = vmatprep.subr.bf16.mxu0 0
    %3426 = vmatpush1.bf16.msra.mxu0 %v3409
    %3427 = vmatprep.subr.bf16.mxu0 0
    %3428 = vmatpush2.bf16.msra.mxu0 0
    %3429 = vmatprep.subr.bf16.mxu0 0
    %3430 = vmatpush2.bf16.msra.mxu0 0
    %3431 = vmatprep.subr.bf16.mxu0 0
    %3432 = vmatpush2.bf16.msra.mxu0 0
    %3433 = vmatprep.subr.bf16.mxu0 0
    %3434 = vmatpush2.bf16.msra.mxu0 0
    %3435 = vmatprep.subr.bf16.mxu0 0
    %3436 = vmatpush2.bf16.msra.mxu0 0
    %3437 = vmatprep.subr.bf16.mxu0 0
    %3438 = vmatpush2.bf16.msra.mxu0 0
    %3439 = vmatprep.subr.bf16.mxu0 0
    %3440 = vmatpush2.bf16.msra.mxu0 0
    %3441 = vmatprep.subr.bf16.mxu0 0
    %3442 = vmatpush2.bf16.msra.mxu0 0
    %3443 = vmatprep.mubr.bf16.mxu0 0
    %3444 = vmatmul.mubr.bf16.gmra.mxu0 %v3405
    %v3445 = vpop.f32.mrf.mxu0
    %v3446 = vadd.f32 0.0, %v3445
    %v3447 = vpop.f32.mrf.mxu0
    %v3448 = vpop.f32.mrf.mxu0
    %v3449 = vpop.f32.mrf.mxu0
    %3450 = vdwg.mxu0
    %v3451 = vld [vmem:[%s59] sm:$0x3]
    %v3453 = vsel %vm3403, %v3451, 0
    %3455 = vmatprep.subr.bf16.mxu0 0
    %3456 = vmatpush1.bf16.msra.mxu0 0
    %3457 = vmatprep.subr.bf16.mxu0 0
    %3458 = vmatpush1.bf16.msra.mxu0 0
    %3459 = vmatprep.subr.bf16.mxu0 0
    %3460 = vmatpush1.bf16.msra.mxu0 0
    %3461 = vmatprep.subr.bf16.mxu0 0
    %3462 = vmatpush1.bf16.msra.mxu0 0
    %3463 = vmatprep.subr.bf16.mxu0 0
    %3464 = vmatpush1.bf16.msra.mxu0 0
    %3465 = vmatprep.subr.bf16.mxu0 0
    %3466 = vmatpush1.bf16.msra.mxu0 0
    %3467 = vmatprep.subr.bf16.mxu0 0
    %3468 = vmatpush1.bf16.msra.mxu0 0
    %3469 = vmatprep.subr.bf16.mxu0 0
    %3470 = vmatpush1.bf16.msra.mxu0 %v3409
    %3471 = vmatprep.subr.bf16.mxu0 0
    %3472 = vmatpush2.bf16.msra.mxu0 0
    %3473 = vmatprep.subr.bf16.mxu0 0
    %3474 = vmatpush2.bf16.msra.mxu0 0
    %3475 = vmatprep.subr.bf16.mxu0 0
    %3476 = vmatpush2.bf16.msra.mxu0 0
    %3477 = vmatprep.subr.bf16.mxu0 0
    %3478 = vmatpush2.bf16.msra.mxu0 0
    %3479 = vmatprep.subr.bf16.mxu0 0
    %3480 = vmatpush2.bf16.msra.mxu0 0
    %3481 = vmatprep.subr.bf16.mxu0 0
    %3482 = vmatpush2.bf16.msra.mxu0 0
    %3483 = vmatprep.subr.bf16.mxu0 0
    %3484 = vmatpush2.bf16.msra.mxu0 0
    %3485 = vmatprep.subr.bf16.mxu0 0
    %3486 = vmatpush2.bf16.msra.mxu0 0
    %3487 = vmatprep.mubr.bf16.mxu0 0
    %3488 = vmatmul.mubr.bf16.gmra.mxu0 %v3453
    %v3489 = vpop.f32.mrf.mxu0
    %v3490 = vadd.f32 0.0, %v3489
    %v3491 = vpop.f32.mrf.mxu0
    %v3492 = vpop.f32.mrf.mxu0
    %v3493 = vpop.f32.mrf.mxu0
    %3494 = vdwg.mxu0
    %v3495 = vld [vmem:[#allocation43] sm:$0xf]
    %v3496 = vld [vmem:[#allocation43 + $0x4] sm:$0xf]
    %v3497 = vld [vmem:[#allocation43 + $0x8] sm:$0xf]
    %v3498 = vld [vmem:[#allocation43 + $0xc] sm:$0xf]
    %v3499 = vpack.c.bf16 %v3446, %v3446
    %s3500 = scalar_lea.vmem [#allocation43], 16
    %v3501 = vld [vmem:[%s3500] sm:$0xf]
    %v3502 = vld [vmem:[%s3500 + $0x4] sm:$0xf]
    %v3503 = vld [vmem:[%s3500 + $0x8] sm:$0xf]
    %v3504 = vld [vmem:[%s3500 + $0xc] sm:$0xf]
    %v3509 = vunpack.c.l.b16 %v3501
    %v3510 = vunpack.c.l.b16 %v3502
    %v3511 = vunpack.c.l.b16 %v3503
    %v3512 = vunpack.c.l.b16 %v3504
    %v3513 = vpack.c.b16 %v3510, %v3509
    %v3514 = vpack.c.b16 %v3512, %v3511
    %v3517 = vsel %vm744, %v3402, 0
    %3519 = vmatprep.subr.bf16.mxu0 0
    %3520 = vmatpush1.bf16.msra.mxu0 0
    %3521 = vmatprep.subr.bf16.mxu0 0
    %3522 = vmatpush1.bf16.msra.mxu0 0
    %3523 = vmatprep.subr.bf16.mxu0 0
    %3524 = vmatpush1.bf16.msra.mxu0 0
    %3525 = vmatprep.subr.bf16.mxu0 0
    %3526 = vmatpush1.bf16.msra.mxu0 0
    %3527 = vmatprep.subr.bf16.mxu0 0
    %3528 = vmatpush1.bf16.msra.mxu0 0
    %3529 = vmatprep.subr.bf16.mxu0 0
    %3530 = vmatpush1.bf16.msra.mxu0 0
    %3531 = vmatprep.subr.bf16.mxu0 0
    %3532 = vmatpush1.bf16.msra.mxu0 %v3514
    %3533 = vmatprep.subr.bf16.mxu0 0
    %3534 = vmatpush1.bf16.msra.mxu0 %v3513
    %3535 = vmatprep.subr.bf16.mxu0 0
    %3536 = vmatpush2.bf16.msra.mxu0 0
    %3537 = vmatprep.subr.bf16.mxu0 0
    %3538 = vmatpush2.bf16.msra.mxu0 0
    %3539 = vmatprep.subr.bf16.mxu0 0
    %3540 = vmatpush2.bf16.msra.mxu0 0
    %3541 = vmatprep.subr.bf16.mxu0 0
    %3542 = vmatpush2.bf16.msra.mxu0 0
    %3543 = vmatprep.subr.bf16.mxu0 0
    %3544 = vmatpush2.bf16.msra.mxu0 0
    %3545 = vmatprep.subr.bf16.mxu0 0
    %3546 = vmatpush2.bf16.msra.mxu0 0
    %3547 = vmatprep.subr.bf16.mxu0 0
    %3548 = vmatpush2.bf16.msra.mxu0 0
    %3549 = vmatprep.subr.bf16.mxu0 0
    %3550 = vmatpush2.bf16.msra.mxu0 0
    %3551 = vmatprep.mubr.bf16.mxu0 0
    %3552 = vmatmul.mubr.bf16.gmra.mxu0 %v3517
    %v3553 = vpop.f32.mrf.mxu0
    %v3554 = vadd.f32 0.0, %v3553
    %v3555 = vpop.f32.mrf.mxu0
    %v3556 = vpop.f32.mrf.mxu0
    %v3557 = vpop.f32.mrf.mxu0
    %3558 = vdwg.mxu0
    %v3563 = vunpack.c.l.b16 %v3495
    %v3564 = vunpack.c.l.b16 %v3496
    %v3565 = vunpack.c.l.b16 %v3497
    %v3566 = vunpack.c.l.b16 %v3498
    %v3567 = vpack.c.b16 %v3564, %v3563
    %v3568 = vpack.c.b16 %v3566, %v3565
    %v3572 = vsel %vm744, %v3499, 0
    %3574 = vmatprep.subr.bf16.mxu0 0
    %3575 = vmatpush1.bf16.msra.mxu0 0
    %3576 = vmatprep.subr.bf16.mxu0 0
    %3577 = vmatpush1.bf16.msra.mxu0 0
    %3578 = vmatprep.subr.bf16.mxu0 0
    %3579 = vmatpush1.bf16.msra.mxu0 0
    %3580 = vmatprep.subr.bf16.mxu0 0
    %3581 = vmatpush1.bf16.msra.mxu0 0
    %3582 = vmatprep.subr.bf16.mxu0 0
    %3583 = vmatpush1.bf16.msra.mxu0 0
    %3584 = vmatprep.subr.bf16.mxu0 0
    %3585 = vmatpush1.bf16.msra.mxu0 0
    %3586 = vmatprep.subr.bf16.mxu0 0
    %3587 = vmatpush1.bf16.msra.mxu0 %v3568
    %3588 = vmatprep.subr.bf16.mxu0 0
    %3589 = vmatpush1.bf16.msra.mxu0 %v3567
    %3590 = vmatprep.subr.bf16.mxu0 0
    %3591 = vmatpush2.bf16.msra.mxu0 0
    %3592 = vmatprep.subr.bf16.mxu0 0
    %3593 = vmatpush2.bf16.msra.mxu0 0
    %3594 = vmatprep.subr.bf16.mxu0 0
    %3595 = vmatpush2.bf16.msra.mxu0 0
    %3596 = vmatprep.subr.bf16.mxu0 0
    %3597 = vmatpush2.bf16.msra.mxu0 0
    %3598 = vmatprep.subr.bf16.mxu0 0
    %3599 = vmatpush2.bf16.msra.mxu0 0
    %3600 = vmatprep.subr.bf16.mxu0 0
    %3601 = vmatpush2.bf16.msra.mxu0 0
    %3602 = vmatprep.subr.bf16.mxu0 0
    %3603 = vmatpush2.bf16.msra.mxu0 0
    %3604 = vmatprep.subr.bf16.mxu0 0
    %3605 = vmatpush2.bf16.msra.mxu0 0
    %3606 = vmatprep.mubr.bf16.mxu0 0
    %3607 = vmatmul.mubr.bf16.gmra.mxu0 %v3572
    %v3608 = vpop.f32.mrf.mxu0
    %v3609 = vadd.f32 %v3554, %v3608
    %v3610 = vpop.f32.mrf.mxu0
    %v3611 = vpop.f32.mrf.mxu0
    %v3612 = vpop.f32.mrf.mxu0
    %3613 = vdwg.mxu0
    %s3614 = scalar_lea.vmem [#allocation43], 32
    %v3615 = vld [vmem:[%s3614] sm:$0xf]
    %v3616 = vld [vmem:[%s3614 + $0x4] sm:$0xf]
    %v3617 = vld [vmem:[%s3614 + $0x8] sm:$0xf]
    %v3618 = vld [vmem:[%s3614 + $0xc] sm:$0xf]
    %v3619 = vpack.c.bf16 %v3490, %v3490
    %v3624 = vunpack.c.l.b16 %v3615
    %v3625 = vunpack.c.l.b16 %v3616
    %v3626 = vunpack.c.l.b16 %v3617
    %v3627 = vunpack.c.l.b16 %v3618
    %v3628 = vpack.c.b16 %v3625, %v3624
    %v3629 = vpack.c.b16 %v3627, %v3626
    %v3633 = vsel %vm744, %v3619, 0
    %3635 = vmatprep.subr.bf16.mxu0 0
    %3636 = vmatpush1.bf16.msra.mxu0 0
    %3637 = vmatprep.subr.bf16.mxu0 0
    %3638 = vmatpush1.bf16.msra.mxu0 0
    %3639 = vmatprep.subr.bf16.mxu0 0
    %3640 = vmatpush1.bf16.msra.mxu0 0
    %3641 = vmatprep.subr.bf16.mxu0 0
    %3642 = vmatpush1.bf16.msra.mxu0 0
    %3643 = vmatprep.subr.bf16.mxu0 0
    %3644 = vmatpush1.bf16.msra.mxu0 0
    %3645 = vmatprep.subr.bf16.mxu0 0
    %3646 = vmatpush1.bf16.msra.mxu0 0
    %3647 = vmatprep.subr.bf16.mxu0 0
    %3648 = vmatpush1.bf16.msra.mxu0 %v3629
    %3649 = vmatprep.subr.bf16.mxu0 0
    %3650 = vmatpush1.bf16.msra.mxu0 %v3628
    %3651 = vmatprep.subr.bf16.mxu0 0
    %3652 = vmatpush2.bf16.msra.mxu0 0
    %3653 = vmatprep.subr.bf16.mxu0 0
    %3654 = vmatpush2.bf16.msra.mxu0 0
    %3655 = vmatprep.subr.bf16.mxu0 0
    %3656 = vmatpush2.bf16.msra.mxu0 0
    %3657 = vmatprep.subr.bf16.mxu0 0
    %3658 = vmatpush2.bf16.msra.mxu0 0
    %3659 = vmatprep.subr.bf16.mxu0 0
    %3660 = vmatpush2.bf16.msra.mxu0 0
    %3661 = vmatprep.subr.bf16.mxu0 0
    %3662 = vmatpush2.bf16.msra.mxu0 0
    %3663 = vmatprep.subr.bf16.mxu0 0
    %3664 = vmatpush2.bf16.msra.mxu0 0
    %3665 = vmatprep.subr.bf16.mxu0 0
    %3666 = vmatpush2.bf16.msra.mxu0 0
    %3667 = vmatprep.mubr.bf16.mxu0 0
    %3668 = vmatmul.mubr.bf16.gmra.mxu0 %v3633
    %v3669 = vpop.f32.mrf.mxu0
    %v3670 = vadd.f32 0.0, %v3669
    %v3671 = vpop.f32.mrf.mxu0
    %v3672 = vpop.f32.mrf.mxu0
    %v3673 = vpop.f32.mrf.mxu0
    %3674 = vdwg.mxu0
    %v3675 = vadd.f32 %v3609, %v3670
    %v3676 = vld [vmem:[#allocation44] sm:$0x1]
    %v3678 = vlaneseq
    %v3679 = vshrl.u32 %v3678, 7
    %v3680 = vsub.s32 0, %v3679
    %v3681 = vrot.slane %v3676, %v3680
    %v3683 = vmul.f32 %v3675, %v3681
    %v3684 = vld [vmem:[#allocation46] sm:$0x1]
    %v3686 = vlaneseq
    %v3687 = vshrl.u32 %v3686, 7
    %v3688 = vsub.s32 0, %v3687
    %v3689 = vrot.slane %v3684, %v3688
    %v3691 = vadd.f32 %v3683, %v3689
    %vm3692 = vcmp.ge.f32.partialorder %v3691, 0.0
    %v3693 = vmul.f32 %v3691, 0.2
    %v3694 = vsel %vm3692, %v3691, %v3693
    %v3695 = vpack.c.bf16 %v3694, %v3694
    %v3697 = vsel %vm3407, %v3695, 0
    %3699 = vmatprep.subr.bf16.mxu0 0
    %3700 = vmatpush1.bf16.msra.mxu0 0
    %3701 = vmatprep.subr.bf16.mxu0 0
    %3702 = vmatpush1.bf16.msra.mxu0 0
    %3703 = vmatprep.subr.bf16.mxu0 0
    %3704 = vmatpush1.bf16.msra.mxu0 0
    %3705 = vmatprep.subr.bf16.mxu0 0
    %3706 = vmatpush1.bf16.msra.mxu0 0
    %3707 = vmatprep.subr.bf16.mxu0 0
    %3708 = vmatpush1.bf16.msra.mxu0 0
    %3709 = vmatprep.subr.bf16.mxu0 0
    %3710 = vmatpush1.bf16.msra.mxu0 0
    %3711 = vmatprep.subr.bf16.mxu0 0
    %3712 = vmatpush1.bf16.msra.mxu0 0
    %3713 = vmatprep.subr.bf16.mxu0 0
    %3714 = vmatpush1.bf16.msra.mxu0 %v3697
    %3715 = vmatprep.subr.bf16.mxu0 0
    %3716 = vmatpush2.bf16.msra.mxu0 0
    %3717 = vmatprep.subr.bf16.mxu0 0
    %3718 = vmatpush2.bf16.msra.mxu0 0
    %3719 = vmatprep.subr.bf16.mxu0 0
    %3720 = vmatpush2.bf16.msra.mxu0 0
    %3721 = vmatprep.subr.bf16.mxu0 0
    %3722 = vmatpush2.bf16.msra.mxu0 0
    %3723 = vmatprep.subr.bf16.mxu0 0
    %3724 = vmatpush2.bf16.msra.mxu0 0
    %3725 = vmatprep.subr.bf16.mxu0 0
    %3726 = vmatpush2.bf16.msra.mxu0 0
    %3727 = vmatprep.subr.bf16.mxu0 0
    %3728 = vmatpush2.bf16.msra.mxu0 0
    %3729 = vmatprep.subr.bf16.mxu0 0
    %3730 = vmatpush2.bf16.msra.mxu0 0
    %3731 = vmatprep.mubr.bf16.mxu0 0
    %3732 = vmatmul.mubr.bf16.gmra.mxu0 %v3405
    %v3733 = vpop.f32.mrf.mxu0
    %v3734 = vadd.f32 0.0, %v3733
    %v3735 = vpop.f32.mrf.mxu0
    %v3736 = vpop.f32.mrf.mxu0
    %v3737 = vpop.f32.mrf.mxu0
    %3738 = vdwg.mxu0
    %3739 = vmatprep.subr.bf16.mxu0 0
    %3740 = vmatpush1.bf16.msra.mxu0 0
    %3741 = vmatprep.subr.bf16.mxu0 0
    %3742 = vmatpush1.bf16.msra.mxu0 0
    %3743 = vmatprep.subr.bf16.mxu0 0
    %3744 = vmatpush1.bf16.msra.mxu0 0
    %3745 = vmatprep.subr.bf16.mxu0 0
    %3746 = vmatpush1.bf16.msra.mxu0 0
    %3747 = vmatprep.subr.bf16.mxu0 0
    %3748 = vmatpush1.bf16.msra.mxu0 0
    %3749 = vmatprep.subr.bf16.mxu0 0
    %3750 = vmatpush1.bf16.msra.mxu0 0
    %3751 = vmatprep.subr.bf16.mxu0 0
    %3752 = vmatpush1.bf16.msra.mxu0 0
    %3753 = vmatprep.subr.bf16.mxu0 0
    %3754 = vmatpush1.bf16.msra.mxu0 %v3697
    %3755 = vmatprep.subr.bf16.mxu0 0
    %3756 = vmatpush2.bf16.msra.mxu0 0
    %3757 = vmatprep.subr.bf16.mxu0 0
    %3758 = vmatpush2.bf16.msra.mxu0 0
    %3759 = vmatprep.subr.bf16.mxu0 0
    %3760 = vmatpush2.bf16.msra.mxu0 0
    %3761 = vmatprep.subr.bf16.mxu0 0
    %3762 = vmatpush2.bf16.msra.mxu0 0
    %3763 = vmatprep.subr.bf16.mxu0 0
    %3764 = vmatpush2.bf16.msra.mxu0 0
    %3765 = vmatprep.subr.bf16.mxu0 0
    %3766 = vmatpush2.bf16.msra.mxu0 0
    %3767 = vmatprep.subr.bf16.mxu0 0
    %3768 = vmatpush2.bf16.msra.mxu0 0
    %3769 = vmatprep.subr.bf16.mxu0 0
    %3770 = vmatpush2.bf16.msra.mxu0 0
    %3771 = vmatprep.mubr.bf16.mxu0 0
    %3772 = vmatmul.mubr.bf16.gmra.mxu0 %v3453
    %v3773 = vpop.f32.mrf.mxu0
    %v3774 = vadd.f32 0.0, %v3773
    %v3775 = vpop.f32.mrf.mxu0
    %v3776 = vpop.f32.mrf.mxu0
    %v3777 = vpop.f32.mrf.mxu0
    %3778 = vdwg.mxu0
    %v3779 = vld [vmem:[%s67] sm:$0xf]
    %v3780 = vld [vmem:[%s67 + $0x4] sm:$0xf]
    %v3781 = vld [vmem:[%s67 + $0x8] sm:$0xf]
    %v3782 = vld [vmem:[%s67 + $0xc] sm:$0xf]
    %v3783 = vpack.c.bf16 %v3734, %v3734
    %s3784 = scalar_lea.vmem %s67, 16
    %v3785 = vld [vmem:[%s3784] sm:$0xf]
    %v3786 = vld [vmem:[%s3784 + $0x4] sm:$0xf]
    %v3787 = vld [vmem:[%s3784 + $0x8] sm:$0xf]
    %v3788 = vld [vmem:[%s3784 + $0xc] sm:$0xf]
    %v3793 = vunpack.c.l.b16 %v3785
    %v3794 = vunpack.c.l.b16 %v3786
    %v3795 = vunpack.c.l.b16 %v3787
    %v3796 = vunpack.c.l.b16 %v3788
    %v3797 = vpack.c.b16 %v3794, %v3793
    %v3798 = vpack.c.b16 %v3796, %v3795
    %v3801 = vsel %vm744, %v3695, 0
    %3803 = vmatprep.subr.bf16.mxu0 0
    %3804 = vmatpush1.bf16.msra.mxu0 0
    %3805 = vmatprep.subr.bf16.mxu0 0
    %3806 = vmatpush1.bf16.msra.mxu0 0
    %3807 = vmatprep.subr.bf16.mxu0 0
    %3808 = vmatpush1.bf16.msra.mxu0 0
    %3809 = vmatprep.subr.bf16.mxu0 0
    %3810 = vmatpush1.bf16.msra.mxu0 0
    %3811 = vmatprep.subr.bf16.mxu0 0
    %3812 = vmatpush1.bf16.msra.mxu0 0
    %3813 = vmatprep.subr.bf16.mxu0 0
    %3814 = vmatpush1.bf16.msra.mxu0 0
    %3815 = vmatprep.subr.bf16.mxu0 0
    %3816 = vmatpush1.bf16.msra.mxu0 %v3798
    %3817 = vmatprep.subr.bf16.mxu0 0
    %3818 = vmatpush1.bf16.msra.mxu0 %v3797
    %3819 = vmatprep.subr.bf16.mxu0 0
    %3820 = vmatpush2.bf16.msra.mxu0 0
    %3821 = vmatprep.subr.bf16.mxu0 0
    %3822 = vmatpush2.bf16.msra.mxu0 0
    %3823 = vmatprep.subr.bf16.mxu0 0
    %3824 = vmatpush2.bf16.msra.mxu0 0
    %3825 = vmatprep.subr.bf16.mxu0 0
    %3826 = vmatpush2.bf16.msra.mxu0 0
    %3827 = vmatprep.subr.bf16.mxu0 0
    %3828 = vmatpush2.bf16.msra.mxu0 0
    %3829 = vmatprep.subr.bf16.mxu0 0
    %3830 = vmatpush2.bf16.msra.mxu0 0
    %3831 = vmatprep.subr.bf16.mxu0 0
    %3832 = vmatpush2.bf16.msra.mxu0 0
    %3833 = vmatprep.subr.bf16.mxu0 0
    %3834 = vmatpush2.bf16.msra.mxu0 0
    %3835 = vmatprep.mubr.bf16.mxu0 0
    %3836 = vmatmul.mubr.bf16.gmra.mxu0 %v3801
    %v3837 = vpop.f32.mrf.mxu0
    %v3838 = vadd.f32 0.0, %v3837
    %v3839 = vpop.f32.mrf.mxu0
    %v3840 = vpop.f32.mrf.mxu0
    %v3841 = vpop.f32.mrf.mxu0
    %3842 = vdwg.mxu0
    %v3847 = vunpack.c.l.b16 %v3779
    %v3848 = vunpack.c.l.b16 %v3780
    %v3849 = vunpack.c.l.b16 %v3781
    %v3850 = vunpack.c.l.b16 %v3782
    %v3851 = vpack.c.b16 %v3848, %v3847
    %v3852 = vpack.c.b16 %v3850, %v3849
    %v3856 = vsel %vm744, %v3783, 0
    %3858 = vmatprep.subr.bf16.mxu0 0
    %3859 = vmatpush1.bf16.msra.mxu0 0
    %3860 = vmatprep.subr.bf16.mxu0 0
    %3861 = vmatpush1.bf16.msra.mxu0 0
    %3862 = vmatprep.subr.bf16.mxu0 0
    %3863 = vmatpush1.bf16.msra.mxu0 0
    %3864 = vmatprep.subr.bf16.mxu0 0
    %3865 = vmatpush1.bf16.msra.mxu0 0
    %3866 = vmatprep.subr.bf16.mxu0 0
    %3867 = vmatpush1.bf16.msra.mxu0 0
    %3868 = vmatprep.subr.bf16.mxu0 0
    %3869 = vmatpush1.bf16.msra.mxu0 0
    %3870 = vmatprep.subr.bf16.mxu0 0
    %3871 = vmatpush1.bf16.msra.mxu0 %v3852
    %3872 = vmatprep.subr.bf16.mxu0 0
    %3873 = vmatpush1.bf16.msra.mxu0 %v3851
    %3874 = vmatprep.subr.bf16.mxu0 0
    %3875 = vmatpush2.bf16.msra.mxu0 0
    %3876 = vmatprep.subr.bf16.mxu0 0
    %3877 = vmatpush2.bf16.msra.mxu0 0
    %3878 = vmatprep.subr.bf16.mxu0 0
    %3879 = vmatpush2.bf16.msra.mxu0 0
    %3880 = vmatprep.subr.bf16.mxu0 0
    %3881 = vmatpush2.bf16.msra.mxu0 0
    %3882 = vmatprep.subr.bf16.mxu0 0
    %3883 = vmatpush2.bf16.msra.mxu0 0
    %3884 = vmatprep.subr.bf16.mxu0 0
    %3885 = vmatpush2.bf16.msra.mxu0 0
    %3886 = vmatprep.subr.bf16.mxu0 0
    %3887 = vmatpush2.bf16.msra.mxu0 0
    %3888 = vmatprep.subr.bf16.mxu0 0
    %3889 = vmatpush2.bf16.msra.mxu0 0
    %3890 = vmatprep.mubr.bf16.mxu0 0
    %3891 = vmatmul.mubr.bf16.gmra.mxu0 %v3856
    %v3892 = vpop.f32.mrf.mxu0
    %v3893 = vadd.f32 %v3838, %v3892
    %v3894 = vpop.f32.mrf.mxu0
    %v3895 = vpop.f32.mrf.mxu0
    %v3896 = vpop.f32.mrf.mxu0
    %3897 = vdwg.mxu0
    %s3898 = scalar_lea.vmem %s67, 32
    %v3899 = vld [vmem:[%s3898] sm:$0xf]
    %v3900 = vld [vmem:[%s3898 + $0x4] sm:$0xf]
    %v3901 = vld [vmem:[%s3898 + $0x8] sm:$0xf]
    %v3902 = vld [vmem:[%s3898 + $0xc] sm:$0xf]
    %v3903 = vpack.c.bf16 %v3774, %v3774
    %v3908 = vunpack.c.l.b16 %v3899
    %v3909 = vunpack.c.l.b16 %v3900
    %v3910 = vunpack.c.l.b16 %v3901
    %v3911 = vunpack.c.l.b16 %v3902
    %v3912 = vpack.c.b16 %v3909, %v3908
    %v3913 = vpack.c.b16 %v3911, %v3910
    %v3917 = vsel %vm744, %v3903, 0
    %3919 = vmatprep.subr.bf16.mxu0 0
    %3920 = vmatpush1.bf16.msra.mxu0 0
    %3921 = vmatprep.subr.bf16.mxu0 0
    %3922 = vmatpush1.bf16.msra.mxu0 0
    %3923 = vmatprep.subr.bf16.mxu0 0
    %3924 = vmatpush1.bf16.msra.mxu0 0
    %3925 = vmatprep.subr.bf16.mxu0 0
    %3926 = vmatpush1.bf16.msra.mxu0 0
    %3927 = vmatprep.subr.bf16.mxu0 0
    %3928 = vmatpush1.bf16.msra.mxu0 0
    %3929 = vmatprep.subr.bf16.mxu0 0
    %3930 = vmatpush1.bf16.msra.mxu0 0
    %3931 = vmatprep.subr.bf16.mxu0 0
    %3932 = vmatpush1.bf16.msra.mxu0 %v3913
    %3933 = vmatprep.subr.bf16.mxu0 0
    %3934 = vmatpush1.bf16.msra.mxu0 %v3912
    %3935 = vmatprep.subr.bf16.mxu0 0
    %3936 = vmatpush2.bf16.msra.mxu0 0
    %3937 = vmatprep.subr.bf16.mxu0 0
    %3938 = vmatpush2.bf16.msra.mxu0 0
    %3939 = vmatprep.subr.bf16.mxu0 0
    %3940 = vmatpush2.bf16.msra.mxu0 0
    %3941 = vmatprep.subr.bf16.mxu0 0
    %3942 = vmatpush2.bf16.msra.mxu0 0
    %3943 = vmatprep.subr.bf16.mxu0 0
    %3944 = vmatpush2.bf16.msra.mxu0 0
    %3945 = vmatprep.subr.bf16.mxu0 0
    %3946 = vmatpush2.bf16.msra.mxu0 0
    %3947 = vmatprep.subr.bf16.mxu0 0
    %3948 = vmatpush2.bf16.msra.mxu0 0
    %3949 = vmatprep.subr.bf16.mxu0 0
    %3950 = vmatpush2.bf16.msra.mxu0 0
    %3951 = vmatprep.mubr.bf16.mxu0 0
    %3952 = vmatmul.mubr.bf16.gmra.mxu0 %v3917
    %v3953 = vpop.f32.mrf.mxu0
    %v3954 = vadd.f32 0.0, %v3953
    %v3955 = vpop.f32.mrf.mxu0
    %v3956 = vpop.f32.mrf.mxu0
    %v3957 = vpop.f32.mrf.mxu0
    %3958 = vdwg.mxu0
    %v3959 = vadd.f32 %v3893, %v3954
    %v3960 = vld [vmem:[#allocation47] sm:$0x1]
    %v3962 = vlaneseq
    %v3963 = vshrl.u32 %v3962, 7
    %v3964 = vsub.s32 0, %v3963
    %v3965 = vrot.slane %v3960, %v3964
    %v3967 = vmul.f32 %v3959, %v3965
    %v3968 = vld [vmem:[#allocation49] sm:$0x1]
    %v3970 = vlaneseq
    %v3971 = vshrl.u32 %v3970, 7
    %v3972 = vsub.s32 0, %v3971
    %v3973 = vrot.slane %v3968, %v3972
    %v3975 = vadd.f32 %v3967, %v3973
    %v3976 = vadd.f32 %v3975, %v3396
    %vm3977 = vcmp.ge.f32.partialorder %v3976, 0.0
    %v3978 = vmul.f32 %v3976, 0.2
    %v3979 = vsel %vm3977, %v3976, %v3978
    %v3980 = vtanh.pop %v3979
    %v3981 = vld [vmem:[#allocation50] sm:$0x1]
    %v3982 = vpack.c.bf16 %v3980, %v3980
    %v3984 = vsel %vm3403, %v3981, 0
    %v3987 = vsel %vm3407, %v3982, 0
    %3989 = vmatprep.subr.bf16.mxu0 0
    %3990 = vmatpush1.bf16.msra.mxu0 0
    %3991 = vmatprep.subr.bf16.mxu0 0
    %3992 = vmatpush1.bf16.msra.mxu0 0
    %3993 = vmatprep.subr.bf16.mxu0 0
    %3994 = vmatpush1.bf16.msra.mxu0 0
    %3995 = vmatprep.subr.bf16.mxu0 0
    %3996 = vmatpush1.bf16.msra.mxu0 0
    %3997 = vmatprep.subr.bf16.mxu0 0
    %3998 = vmatpush1.bf16.msra.mxu0 0
    %3999 = vmatprep.subr.bf16.mxu0 0
    %4000 = vmatpush1.bf16.msra.mxu0 0
    %4001 = vmatprep.subr.bf16.mxu0 0
    %4002 = vmatpush1.bf16.msra.mxu0 0
    %4003 = vmatprep.subr.bf16.mxu0 0
    %4004 = vmatpush1.bf16.msra.mxu0 %v3987
    %4005 = vmatprep.subr.bf16.mxu0 0
    %4006 = vmatpush2.bf16.msra.mxu0 0
    %4007 = vmatprep.subr.bf16.mxu0 0
    %4008 = vmatpush2.bf16.msra.mxu0 0
    %4009 = vmatprep.subr.bf16.mxu0 0
    %4010 = vmatpush2.bf16.msra.mxu0 0
    %4011 = vmatprep.subr.bf16.mxu0 0
    %4012 = vmatpush2.bf16.msra.mxu0 0
    %4013 = vmatprep.subr.bf16.mxu0 0
    %4014 = vmatpush2.bf16.msra.mxu0 0
    %4015 = vmatprep.subr.bf16.mxu0 0
    %4016 = vmatpush2.bf16.msra.mxu0 0
    %4017 = vmatprep.subr.bf16.mxu0 0
    %4018 = vmatpush2.bf16.msra.mxu0 0
    %4019 = vmatprep.subr.bf16.mxu0 0
    %4020 = vmatpush2.bf16.msra.mxu0 0
    %4021 = vmatprep.mubr.bf16.mxu0 0
    %4022 = vmatmul.mubr.bf16.gmra.mxu0 %v3984
    %v4023 = vpop.f32.mrf.mxu0
    %v4024 = vadd.f32 0.0, %v4023
    %v4025 = vpop.f32.mrf.mxu0
    %v4026 = vpop.f32.mrf.mxu0
    %v4027 = vpop.f32.mrf.mxu0
    %4028 = vdwg.mxu0
    %v4029 = vld [vmem:[#allocation52] sm:$0xf]
    %v4030 = vld [vmem:[#allocation52 + $0x4] sm:$0xf]
    %v4031 = vld [vmem:[#allocation52 + $0x8] sm:$0xf]
    %v4032 = vld [vmem:[#allocation52 + $0xc] sm:$0xf]
    %v4033 = vpack.c.bf16 %v4024, %v4024
    %v4038 = vunpack.c.l.b16 %v4029
    %v4039 = vunpack.c.l.b16 %v4030
    %v4040 = vunpack.c.l.b16 %v4031
    %v4041 = vunpack.c.l.b16 %v4032
    %v4042 = vpack.c.b16 %v4039, %v4038
    %v4043 = vpack.c.b16 %v4041, %v4040
    %v4047 = vsel %vm744, %v4033, 0
    %4049 = vmatprep.subr.bf16.mxu0 0
    %4050 = vmatpush1.bf16.msra.mxu0 0
    %4051 = vmatprep.subr.bf16.mxu0 0
    %4052 = vmatpush1.bf16.msra.mxu0 0
    %4053 = vmatprep.subr.bf16.mxu0 0
    %4054 = vmatpush1.bf16.msra.mxu0 0
    %4055 = vmatprep.subr.bf16.mxu0 0
    %4056 = vmatpush1.bf16.msra.mxu0 0
    %4057 = vmatprep.subr.bf16.mxu0 0
    %4058 = vmatpush1.bf16.msra.mxu0 0
    %4059 = vmatprep.subr.bf16.mxu0 0
    %4060 = vmatpush1.bf16.msra.mxu0 0
    %4061 = vmatprep.subr.bf16.mxu0 0
    %4062 = vmatpush1.bf16.msra.mxu0 %v4043
    %4063 = vmatprep.subr.bf16.mxu0 0
    %4064 = vmatpush1.bf16.msra.mxu0 %v4042
    %4065 = vmatprep.subr.bf16.mxu0 0
    %4066 = vmatpush2.bf16.msra.mxu0 0
    %4067 = vmatprep.subr.bf16.mxu0 0
    %4068 = vmatpush2.bf16.msra.mxu0 0
    %4069 = vmatprep.subr.bf16.mxu0 0
    %4070 = vmatpush2.bf16.msra.mxu0 0
    %4071 = vmatprep.subr.bf16.mxu0 0
    %4072 = vmatpush2.bf16.msra.mxu0 0
    %4073 = vmatprep.subr.bf16.mxu0 0
    %4074 = vmatpush2.bf16.msra.mxu0 0
    %4075 = vmatprep.subr.bf16.mxu0 0
    %4076 = vmatpush2.bf16.msra.mxu0 0
    %4077 = vmatprep.subr.bf16.mxu0 0
    %4078 = vmatpush2.bf16.msra.mxu0 0
    %4079 = vmatprep.subr.bf16.mxu0 0
    %4080 = vmatpush2.bf16.msra.mxu0 0
    %4081 = vmatprep.mubr.bf16.mxu0 0
    %4082 = vmatmul.mubr.bf16.gmra.mxu0 %v4047
    %v4083 = vpop.f32.mrf.mxu0
    %v4084 = vadd.f32 0.0, %v4083
    %v4085 = vpop.f32.mrf.mxu0
    %v4086 = vpop.f32.mrf.mxu0
    %v4087 = vpop.f32.mrf.mxu0
    %4088 = vdwg.mxu0
    %v4089 = vld [vmem:[#allocation53] sm:$0xf]
    %v4090 = vld [vmem:[#allocation53 + $0x4] sm:$0xf]
    %v4091 = vpack.c.bf16 %v4084, %v4084
    %v4094 = vunpack.c.l.b16 %v4089
    %v4095 = vunpack.c.l.b16 %v4090
    %v4096 = vpack.c.b16 %v4095, %v4094
    %v4099 = vsel %vm1577, %v4091, 0
    %4101 = vmatprep.subr.bf16.mxu0 0
    %4102 = vmatpush1.bf16.msra.mxu0 0
    %4103 = vmatprep.subr.bf16.mxu0 0
    %4104 = vmatpush1.bf16.msra.mxu0 0
    %4105 = vmatprep.subr.bf16.mxu0 0
    %4106 = vmatpush1.bf16.msra.mxu0 0
    %4107 = vmatprep.subr.bf16.mxu0 0
    %4108 = vmatpush1.bf16.msra.mxu0 0
    %4109 = vmatprep.subr.bf16.mxu0 0
    %4110 = vmatpush1.bf16.msra.mxu0 0
    %4111 = vmatprep.subr.bf16.mxu0 0
    %4112 = vmatpush1.bf16.msra.mxu0 0
    %4113 = vmatprep.subr.bf16.mxu0 0
    %4114 = vmatpush1.bf16.msra.mxu0 0
    %4115 = vmatprep.subr.bf16.mxu0 0
    %4116 = vmatpush1.bf16.msra.mxu0 %v4096
    %4117 = vmatprep.subr.bf16.mxu0 0
    %4118 = vmatpush2.bf16.msra.mxu0 0
    %4119 = vmatprep.subr.bf16.mxu0 0
    %4120 = vmatpush2.bf16.msra.mxu0 0
    %4121 = vmatprep.subr.bf16.mxu0 0
    %4122 = vmatpush2.bf16.msra.mxu0 0
    %4123 = vmatprep.subr.bf16.mxu0 0
    %4124 = vmatpush2.bf16.msra.mxu0 0
    %4125 = vmatprep.subr.bf16.mxu0 0
    %4126 = vmatpush2.bf16.msra.mxu0 0
    %4127 = vmatprep.subr.bf16.mxu0 0
    %4128 = vmatpush2.bf16.msra.mxu0 0
    %4129 = vmatprep.subr.bf16.mxu0 0
    %4130 = vmatpush2.bf16.msra.mxu0 0
    %4131 = vmatprep.subr.bf16.mxu0 0
    %4132 = vmatpush2.bf16.msra.mxu0 0
    %4133 = vmatprep.mubr.bf16.mxu0 0
    %4134 = vmatmul.mubr.bf16.gmra.mxu0 %v4099
    %v4135 = vpop.f32.mrf.mxu0
    %v4136 = vadd.f32 0.0, %v4135
    %v4137 = vpop.f32.mrf.mxu0
    %v4138 = vpop.f32.mrf.mxu0
    %v4139 = vpop.f32.mrf.mxu0
    %4140 = vdwg.mxu0
    %v4141 = vld [vmem:[#allocation55] sm:$0x1]
    %v4143 = vlaneseq
    %v4144 = vshrl.u32 %v4143, 7
    %v4145 = vsub.s32 0, %v4144
    %v4146 = vrot.slane %v4141, %v4145
    %v4148 = vmul.f32 %v4136, %v4146
    %v4149 = vld [vmem:[#allocation56] sm:$0x1]
    %v4151 = vlaneseq
    %v4152 = vshrl.u32 %v4151, 7
    %v4153 = vsub.s32 0, %v4152
    %v4154 = vrot.slane %v4149, %v4153
    %v4156 = vadd.f32 %v4148, %v4154
    %vm4157 = vcmp.ge.f32.partialorder %v4156, 0.0
    %v4158 = vmul.f32 %v4156, 0.2
    %v4159 = vsel %vm4157, %v4156, %v4158
    %v4160 = vld [vmem:[#allocation58] sm:$0xf]
    %v4161 = vld [vmem:[#allocation58 + $0x4] sm:$0xf]
    %v4162 = vpack.c.bf16 %v4159, %v4159
    %v4165 = vunpack.c.l.b16 %v4160
    %v4166 = vunpack.c.l.b16 %v4161
    %v4167 = vpack.c.b16 %v4166, %v4165
    %v4170 = vsel %vm1577, %v4162, 0
    %4172 = vmatprep.subr.bf16.mxu0 0
    %4173 = vmatpush1.bf16.msra.mxu0 0
    %4174 = vmatprep.subr.bf16.mxu0 0
    %4175 = vmatpush1.bf16.msra.mxu0 0
    %4176 = vmatprep.subr.bf16.mxu0 0
    %4177 = vmatpush1.bf16.msra.mxu0 0
    %4178 = vmatprep.subr.bf16.mxu0 0
    %4179 = vmatpush1.bf16.msra.mxu0 0
    %4180 = vmatprep.subr.bf16.mxu0 0
    %4181 = vmatpush1.bf16.msra.mxu0 0
    %4182 = vmatprep.subr.bf16.mxu0 0
    %4183 = vmatpush1.bf16.msra.mxu0 0
    %4184 = vmatprep.subr.bf16.mxu0 0
    %4185 = vmatpush1.bf16.msra.mxu0 0
    %4186 = vmatprep.subr.bf16.mxu0 0
    %4187 = vmatpush1.bf16.msra.mxu0 %v4167
    %4188 = vmatprep.subr.bf16.mxu0 0
    %4189 = vmatpush2.bf16.msra.mxu0 0
    %4190 = vmatprep.subr.bf16.mxu0 0
    %4191 = vmatpush2.bf16.msra.mxu0 0
    %4192 = vmatprep.subr.bf16.mxu0 0
    %4193 = vmatpush2.bf16.msra.mxu0 0
    %4194 = vmatprep.subr.bf16.mxu0 0
    %4195 = vmatpush2.bf16.msra.mxu0 0
    %4196 = vmatprep.subr.bf16.mxu0 0
    %4197 = vmatpush2.bf16.msra.mxu0 0
    %4198 = vmatprep.subr.bf16.mxu0 0
    %4199 = vmatpush2.bf16.msra.mxu0 0
    %4200 = vmatprep.subr.bf16.mxu0 0
    %4201 = vmatpush2.bf16.msra.mxu0 0
    %4202 = vmatprep.subr.bf16.mxu0 0
    %4203 = vmatpush2.bf16.msra.mxu0 0
    %4204 = vmatprep.mubr.bf16.mxu0 0
    %4205 = vmatmul.mubr.bf16.gmra.mxu0 %v4170
    %v4206 = vpop.f32.mrf.mxu0
    %v4207 = vadd.f32 0.0, %v4206
    %v4208 = vpop.f32.mrf.mxu0
    %v4209 = vpop.f32.mrf.mxu0
    %v4210 = vpop.f32.mrf.mxu0
    %4211 = vdwg.mxu0
    %v4212 = vld [vmem:[#allocation59] sm:$0x1]
    %v4214 = vlaneseq
    %v4215 = vshrl.u32 %v4214, 7
    %v4216 = vsub.s32 0, %v4215
    %v4217 = vrot.slane %v4212, %v4216
    %v4219 = vmul.f32 %v4207, %v4217
    %v4220 = vld [vmem:[#allocation61] sm:$0x1]
    %v4222 = vlaneseq
    %v4223 = vshrl.u32 %v4222, 7
    %v4224 = vsub.s32 0, %v4223
    %v4225 = vrot.slane %v4220, %v4224
    %v4227 = vadd.f32 %v4219, %v4225
    %v4228 = vadd.f32 %v4227, %v4084
    %vm4229 = vcmp.ge.f32.partialorder %v4228, 0.0
    %v4230 = vmul.f32 %v4228, 0.2
    %v4231 = vsel %vm4229, %v4228, %v4230
    %v4232 = vtanh.pop %v4231
    %v4233 = vld [vmem:[%s89] sm:$0xff]
    %v4234 = vld [vmem:[%s89 + $0x8] sm:$0xff]
    %v4235 = vld [vmem:[%s89 + $0x10] sm:$0xff]
    %v4236 = vld [vmem:[%s89 + $0x18] sm:$0xff]
    %v4237 = vpack.c.bf16 %v4232, %v4232
    %v4238 = vld [vmem:[#allocation62] sm:$0xf]
    %v4240 = vlaneseq
    %v4241 = vshrl.u32 %v4240, 7
    %v4242 = vsub.s32 0, %v4241
    %v4243 = vrot.slane %v4238, %v4242
    %v4244 = vlaneseq
    %v4245 = vshrl.u32 %v4244, 7
    %v4246 = vsub.s32 1, %v4245
    %v4247 = vrot.slane %v4238, %v4246
    %v4248 = vlaneseq
    %v4249 = vshrl.u32 %v4248, 7
    %v4250 = vsub.s32 2, %v4249
    %v4251 = vrot.slane %v4238, %v4250
    %v4252 = vlaneseq
    %v4253 = vshrl.u32 %v4252, 7
    %v4254 = vsub.s32 3, %v4253
    %v4255 = vrot.slane %v4238, %v4254
    %v4264 = vunpack.c.l.b16 %v4233
    %v4265 = vunpack.c.h.b16 %v4233
    %v4266 = vunpack.c.l.b16 %v4234
    %v4267 = vunpack.c.h.b16 %v4234
    %v4268 = vunpack.c.l.b16 %v4235
    %v4269 = vunpack.c.h.b16 %v4235
    %v4270 = vunpack.c.l.b16 %v4236
    %v4271 = vunpack.c.h.b16 %v4236
    %v4272 = vpack.c.b16 %v4268, %v4264
    %v4273 = vpack.c.b16 %v4269, %v4265
    %v4274 = vpack.c.b16 %v4270, %v4266
    %v4275 = vpack.c.b16 %v4271, %v4267
    %v4281 = vsel %vm1577, %v4237, 0
    %4283 = vmatprep.subr.bf16.mxu0 0
    %4284 = vmatpush1.bf16.msra.mxu0 0
    %4285 = vmatprep.subr.bf16.mxu0 0
    %4286 = vmatpush1.bf16.msra.mxu0 0
    %4287 = vmatprep.subr.bf16.mxu0 0
    %4288 = vmatpush1.bf16.msra.mxu0 0
    %4289 = vmatprep.subr.bf16.mxu0 0
    %4290 = vmatpush1.bf16.msra.mxu0 0
    %4291 = vmatprep.subr.bf16.mxu0 0
    %4292 = vmatpush1.bf16.msra.mxu0 0
    %4293 = vmatprep.subr.bf16.mxu0 0
    %4294 = vmatpush1.bf16.msra.mxu0 0
    %4295 = vmatprep.subr.bf16.mxu0 0
    %4296 = vmatpush1.bf16.msra.mxu0 0
    %4297 = vmatprep.subr.bf16.mxu0 %v4273
    %4298 = vmatpush1.bf16.msra.mxu0 %v4272
    %4299 = vmatprep.subr.bf16.mxu0 0
    %4300 = vmatpush2.bf16.msra.mxu0 0
    %4301 = vmatprep.subr.bf16.mxu0 0
    %4302 = vmatpush2.bf16.msra.mxu0 0
    %4303 = vmatprep.subr.bf16.mxu0 0
    %4304 = vmatpush2.bf16.msra.mxu0 0
    %4305 = vmatprep.subr.bf16.mxu0 0
    %4306 = vmatpush2.bf16.msra.mxu0 0
    %4307 = vmatprep.subr.bf16.mxu0 0
    %4308 = vmatpush2.bf16.msra.mxu0 0
    %4309 = vmatprep.subr.bf16.mxu0 0
    %4310 = vmatpush2.bf16.msra.mxu0 0
    %4311 = vmatprep.subr.bf16.mxu0 0
    %4312 = vmatpush2.bf16.msra.mxu0 0
    %4313 = vmatprep.subr.bf16.mxu0 0
    %4314 = vmatpush2.bf16.msra.mxu0 0
    %4315 = vmatprep.mubr.bf16.mxu0 0
    %4316 = vmatmul.mubr.bf16.gmra.mxu0 %v4281
    %v4317 = vpop.f32.mrf.mxu0
    %v4318 = vadd.f32 %v4243, %v4317
    %v4319 = vpop.f32.mrf.mxu0
    %v4320 = vadd.f32 %v4247, %v4319
    %v4321 = vpop.f32.mrf.mxu0
    %v4322 = vpop.f32.mrf.mxu0
    %4323 = vdwg.mxu0
    %4324 = vmatprep.subr.bf16.mxu0 0
    %4325 = vmatpush1.bf16.msra.mxu0 0
    %4326 = vmatprep.subr.bf16.mxu0 0
    %4327 = vmatpush1.bf16.msra.mxu0 0
    %4328 = vmatprep.subr.bf16.mxu0 0
    %4329 = vmatpush1.bf16.msra.mxu0 0
    %4330 = vmatprep.subr.bf16.mxu0 0
    %4331 = vmatpush1.bf16.msra.mxu0 0
    %4332 = vmatprep.subr.bf16.mxu0 0
    %4333 = vmatpush1.bf16.msra.mxu0 0
    %4334 = vmatprep.subr.bf16.mxu0 0
    %4335 = vmatpush1.bf16.msra.mxu0 0
    %4336 = vmatprep.subr.bf16.mxu0 0
    %4337 = vmatpush1.bf16.msra.mxu0 0
    %4338 = vmatprep.subr.bf16.mxu0 %v4275
    %4339 = vmatpush1.bf16.msra.mxu0 %v4274
    %4340 = vmatprep.subr.bf16.mxu0 0
    %4341 = vmatpush2.bf16.msra.mxu0 0
    %4342 = vmatprep.subr.bf16.mxu0 0
    %4343 = vmatpush2.bf16.msra.mxu0 0
    %4344 = vmatprep.subr.bf16.mxu0 0
    %4345 = vmatpush2.bf16.msra.mxu0 0
    %4346 = vmatprep.subr.bf16.mxu0 0
    %4347 = vmatpush2.bf16.msra.mxu0 0
    %4348 = vmatprep.subr.bf16.mxu0 0
    %4349 = vmatpush2.bf16.msra.mxu0 0
    %4350 = vmatprep.subr.bf16.mxu0 0
    %4351 = vmatpush2.bf16.msra.mxu0 0
    %4352 = vmatprep.subr.bf16.mxu0 0
    %4353 = vmatpush2.bf16.msra.mxu0 0
    %4354 = vmatprep.subr.bf16.mxu0 0
    %4355 = vmatpush2.bf16.msra.mxu0 0
    %4356 = vmatprep.mubr.bf16.mxu0 0
    %4357 = vmatmul.mubr.bf16.gmra.mxu0 %v4281
    %v4358 = vpop.f32.mrf.mxu0
    %v4359 = vadd.f32 %v4251, %v4358
    %v4360 = vpop.f32.mrf.mxu0
    %v4361 = vadd.f32 %v4255, %v4360
    %v4362 = vpop.f32.mrf.mxu0
    %v4363 = vpop.f32.mrf.mxu0
    %4364 = vdwg.mxu0
    %v4365 = vmax.f32 %v4318, 0.0
    %v4366 = vmax.f32 %v4320, 0.0
    %v4367 = vmax.f32 %v4359, 0.0
    %v4368 = vmax.f32 %v4361, 0.0
    %v4369 = vld [vmem:[#allocation64] sm:$0xff]
    %v4370 = vld [vmem:[#allocation64 + $0x8] sm:$0xff]
    %v4371 = vld [vmem:[#allocation64 + $0x10] sm:$0xff]
    %v4372 = vld [vmem:[#allocation64 + $0x18] sm:$0xff]
    %v4373 = vld [vmem:[#allocation64 + $0x20] sm:$0xff]
    %v4374 = vld [vmem:[#allocation64 + $0x28] sm:$0xff]
    %v4375 = vld [vmem:[#allocation64 + $0x30] sm:$0xff]
    %v4376 = vld [vmem:[#allocation64 + $0x38] sm:$0xff]
    %v4377 = vld [vmem:[#allocation64 + $0x40] sm:$0xff]
    %v4378 = vld [vmem:[#allocation64 + $0x48] sm:$0xff]
    %v4379 = vld [vmem:[#allocation64 + $0x50] sm:$0xff]
    %v4380 = vld [vmem:[#allocation64 + $0x58] sm:$0xff]
    %v4381 = vld [vmem:[#allocation64 + $0x60] sm:$0xff]
    %v4382 = vld [vmem:[#allocation64 + $0x68] sm:$0xff]
    %v4383 = vld [vmem:[#allocation64 + $0x70] sm:$0xff]
    %v4384 = vld [vmem:[#allocation64 + $0x78] sm:$0xff]
    %v4385 = vld [vmem:[#allocation64 + $0x80] sm:$0xff]
    %v4386 = vld [vmem:[#allocation64 + $0x88] sm:$0xff]
    %v4387 = vld [vmem:[#allocation64 + $0x90] sm:$0xff]
    %v4388 = vld [vmem:[#allocation64 + $0x98] sm:$0xff]
    %v4389 = vld [vmem:[#allocation64 + $0xa0] sm:$0xff]
    %v4390 = vld [vmem:[#allocation64 + $0xa8] sm:$0xff]
    %v4391 = vld [vmem:[#allocation64 + $0xb0] sm:$0xff]
    %v4392 = vld [vmem:[#allocation64 + $0xb8] sm:$0xff]
    %v4393 = vld [vmem:[#allocation64 + $0xc0] sm:$0xff]
    %v4394 = vld [vmem:[#allocation64 + $0xc8] sm:$0xff]
    %v4395 = vld [vmem:[#allocation64 + $0xd0] sm:$0xff]
    %v4396 = vld [vmem:[#allocation64 + $0xd8] sm:$0xff]
    %v4397 = vld [vmem:[#allocation64 + $0xe0] sm:$0xff]
    %v4398 = vld [vmem:[#allocation64 + $0xe8] sm:$0xff]
    %v4399 = vld [vmem:[#allocation64 + $0xf0] sm:$0xff]
    %v4400 = vld [vmem:[#allocation64 + $0xf8] sm:$0xff]
    %v4401 = vld [vmem:[#allocation64 + $0x100] sm:$0xff]
    %v4402 = vld [vmem:[#allocation64 + $0x108] sm:$0xff]
    %v4403 = vld [vmem:[#allocation64 + $0x110] sm:$0xff]
    %v4404 = vld [vmem:[#allocation64 + $0x118] sm:$0xff]
    %v4405 = vld [vmem:[#allocation64 + $0x120] sm:$0xff]
    %v4406 = vld [vmem:[#allocation64 + $0x128] sm:$0xff]
    %v4407 = vld [vmem:[#allocation64 + $0x130] sm:$0xff]
    %v4408 = vld [vmem:[#allocation64 + $0x138] sm:$0xff]
    %v4409 = vld [vmem:[#allocation64 + $0x140] sm:$0xff]
    %v4410 = vld [vmem:[#allocation64 + $0x148] sm:$0xff]
    %v4411 = vld [vmem:[#allocation64 + $0x150] sm:$0xff]
    %v4412 = vld [vmem:[#allocation64 + $0x158] sm:$0xff]
    %v4413 = vld [vmem:[#allocation64 + $0x160] sm:$0xff]
    %v4414 = vld [vmem:[#allocation64 + $0x168] sm:$0xff]
    %v4415 = vld [vmem:[#allocation64 + $0x170] sm:$0xff]
    %v4416 = vld [vmem:[#allocation64 + $0x178] sm:$0xff]
    %v4417 = vld [vmem:[#allocation64 + $0x180] sm:$0xff]
    %v4418 = vld [vmem:[#allocation64 + $0x188] sm:$0xff]
    %v4419 = vld [vmem:[#allocation64 + $0x190] sm:$0xff]
    %v4420 = vld [vmem:[#allocation64 + $0x198] sm:$0xff]
    %v4421 = vld [vmem:[#allocation64 + $0x1a0] sm:$0xff]
    %v4422 = vld [vmem:[#allocation64 + $0x1a8] sm:$0xff]
    %v4423 = vld [vmem:[#allocation64 + $0x1b0] sm:$0xff]
    %v4424 = vld [vmem:[#allocation64 + $0x1b8] sm:$0xff]
    %v4425 = vld [vmem:[#allocation64 + $0x1c0] sm:$0xff]
    %v4426 = vld [vmem:[#allocation64 + $0x1c8] sm:$0xff]
    %v4427 = vld [vmem:[#allocation64 + $0x1d0] sm:$0xff]
    %v4428 = vld [vmem:[#allocation64 + $0x1d8] sm:$0xff]
    %v4429 = vld [vmem:[#allocation64 + $0x1e0] sm:$0xff]
    %v4430 = vld [vmem:[#allocation64 + $0x1e8] sm:$0xff]
    %v4431 = vld [vmem:[#allocation64 + $0x1f0] sm:$0xff]
    %v4432 = vld [vmem:[#allocation64 + $0x1f8] sm:$0xff]
    %v4433 = vld [vmem:[#allocation64 + $0x200] sm:$0xff]
    %v4434 = vld [vmem:[#allocation64 + $0x208] sm:$0xff]
    %v4435 = vld [vmem:[#allocation64 + $0x210] sm:$0xff]
    %v4436 = vld [vmem:[#allocation64 + $0x218] sm:$0xff]
    %v4437 = vld [vmem:[#allocation64 + $0x220] sm:$0xff]
    %v4438 = vld [vmem:[#allocation64 + $0x228] sm:$0xff]
    %v4439 = vld [vmem:[#allocation64 + $0x230] sm:$0xff]
    %v4440 = vld [vmem:[#allocation64 + $0x238] sm:$0xff]
    %v4441 = vld [vmem:[#allocation64 + $0x240] sm:$0xff]
    %v4442 = vld [vmem:[#allocation64 + $0x248] sm:$0xff]
    %v4443 = vld [vmem:[#allocation64 + $0x250] sm:$0xff]
    %v4444 = vld [vmem:[#allocation64 + $0x258] sm:$0xff]
    %v4445 = vld [vmem:[#allocation64 + $0x260] sm:$0xff]
    %v4446 = vld [vmem:[#allocation64 + $0x268] sm:$0xff]
    %v4447 = vld [vmem:[#allocation64 + $0x270] sm:$0xff]
    %v4448 = vld [vmem:[#allocation64 + $0x278] sm:$0xff]
    %v4449 = vld [vmem:[#allocation64 + $0x280] sm:$0xff]
    %v4450 = vld [vmem:[#allocation64 + $0x288] sm:$0xff]
    %v4451 = vld [vmem:[#allocation64 + $0x290] sm:$0xff]
    %v4452 = vld [vmem:[#allocation64 + $0x298] sm:$0xff]
    %v4453 = vld [vmem:[#allocation64 + $0x2a0] sm:$0xff]
    %v4454 = vld [vmem:[#allocation64 + $0x2a8] sm:$0xff]
    %v4455 = vld [vmem:[#allocation64 + $0x2b0] sm:$0xff]
    %v4456 = vld [vmem:[#allocation64 + $0x2b8] sm:$0xff]
    %v4457 = vld [vmem:[#allocation64 + $0x2c0] sm:$0xff]
    %v4458 = vld [vmem:[#allocation64 + $0x2c8] sm:$0xff]
    %v4459 = vld [vmem:[#allocation64 + $0x2d0] sm:$0xff]
    %v4460 = vld [vmem:[#allocation64 + $0x2d8] sm:$0xff]
    %v4461 = vld [vmem:[#allocation64 + $0x2e0] sm:$0xff]
    %v4462 = vld [vmem:[#allocation64 + $0x2e8] sm:$0xff]
    %v4463 = vld [vmem:[#allocation64 + $0x2f0] sm:$0xff]
    %v4464 = vld [vmem:[#allocation64 + $0x2f8] sm:$0xff]
    %v4465 = vld [vmem:[#allocation64 + $0x300] sm:$0xff]
    %v4466 = vld [vmem:[#allocation64 + $0x308] sm:$0xff]
    %v4467 = vld [vmem:[#allocation64 + $0x310] sm:$0xff]
    %v4468 = vld [vmem:[#allocation64 + $0x318] sm:$0xff]
    %v4469 = vld [vmem:[#allocation64 + $0x320] sm:$0xff]
    %v4470 = vld [vmem:[#allocation64 + $0x328] sm:$0xff]
    %v4471 = vld [vmem:[#allocation64 + $0x330] sm:$0xff]
    %v4472 = vld [vmem:[#allocation64 + $0x338] sm:$0xff]
    %v4473 = vld [vmem:[#allocation64 + $0x340] sm:$0xff]
    %v4474 = vld [vmem:[#allocation64 + $0x348] sm:$0xff]
    %v4475 = vld [vmem:[#allocation64 + $0x350] sm:$0xff]
    %v4476 = vld [vmem:[#allocation64 + $0x358] sm:$0xff]
    %v4477 = vld [vmem:[#allocation64 + $0x360] sm:$0xff]
    %v4478 = vld [vmem:[#allocation64 + $0x368] sm:$0xff]
    %v4479 = vld [vmem:[#allocation64 + $0x370] sm:$0xff]
    %v4480 = vld [vmem:[#allocation64 + $0x378] sm:$0xff]
    %v4481 = vld [vmem:[#allocation64 + $0x380] sm:$0xff]
    %v4482 = vld [vmem:[#allocation64 + $0x388] sm:$0xff]
    %v4483 = vld [vmem:[#allocation64 + $0x390] sm:$0xff]
    %v4484 = vld [vmem:[#allocation64 + $0x398] sm:$0xff]
    %v4485 = vld [vmem:[#allocation64 + $0x3a0] sm:$0xff]
    %v4486 = vld [vmem:[#allocation64 + $0x3a8] sm:$0xff]
    %v4487 = vld [vmem:[#allocation64 + $0x3b0] sm:$0xff]
    %v4488 = vld [vmem:[#allocation64 + $0x3b8] sm:$0xff]
    %v4489 = vld [vmem:[#allocation64 + $0x3c0] sm:$0xff]
    %v4490 = vld [vmem:[#allocation64 + $0x3c8] sm:$0xff]
    %v4491 = vld [vmem:[#allocation64 + $0x3d0] sm:$0xff]
    %v4492 = vld [vmem:[#allocation64 + $0x3d8] sm:$0xff]
    %v4493 = vld [vmem:[#allocation64 + $0x3e0] sm:$0xff]
    %v4494 = vld [vmem:[#allocation64 + $0x3e8] sm:$0xff]
    %v4495 = vld [vmem:[#allocation64 + $0x3f0] sm:$0xff]
    %v4496 = vld [vmem:[#allocation64 + $0x3f8] sm:$0xff]
    %v4497 = vpack.c.bf16 %v4365, %v4365
    %v4498 = vpack.c.bf16 %v4366, %v4366
    %v4499 = vpack.c.bf16 %v4367, %v4367
    %v4500 = vpack.c.bf16 %v4368, %v4368
    %v4501 = vld [vmem:[#allocation65] sm:$0xf]
    %v4503 = vlaneseq
    %v4504 = vshrl.u32 %v4503, 7
    %v4505 = vsub.s32 0, %v4504
    %v4506 = vrot.slane %v4501, %v4505
    %v4507 = vlaneseq
    %v4508 = vshrl.u32 %v4507, 7
    %v4509 = vsub.s32 1, %v4508
    %v4510 = vrot.slane %v4501, %v4509
    %v4511 = vlaneseq
    %v4512 = vshrl.u32 %v4511, 7
    %v4513 = vsub.s32 2, %v4512
    %v4514 = vrot.slane %v4501, %v4513
    %v4515 = vlaneseq
    %v4516 = vshrl.u32 %v4515, 7
    %v4517 = vsub.s32 3, %v4516
    %v4518 = vrot.slane %v4501, %v4517
    %v4651 = vunpack.c.l.b16 %v4369
    %v4652 = vunpack.c.h.b16 %v4369
    %v4653 = vunpack.c.l.b16 %v4370
    %v4654 = vunpack.c.h.b16 %v4370
    %v4655 = vunpack.c.l.b16 %v4371
    %v4656 = vunpack.c.h.b16 %v4371
    %v4657 = vunpack.c.l.b16 %v4372
    %v4658 = vunpack.c.h.b16 %v4372
    %v4659 = vunpack.c.l.b16 %v4373
    %v4660 = vunpack.c.h.b16 %v4373
    %v4661 = vunpack.c.l.b16 %v4374
    %v4662 = vunpack.c.h.b16 %v4374
    %v4663 = vunpack.c.l.b16 %v4375
    %v4664 = vunpack.c.h.b16 %v4375
    %v4665 = vunpack.c.l.b16 %v4376
    %v4666 = vunpack.c.h.b16 %v4376
    %v4667 = vunpack.c.l.b16 %v4377
    %v4668 = vunpack.c.h.b16 %v4377
    %v4669 = vunpack.c.l.b16 %v4378
    %v4670 = vunpack.c.h.b16 %v4378
    %v4671 = vunpack.c.l.b16 %v4379
    %v4672 = vunpack.c.h.b16 %v4379
    %v4673 = vunpack.c.l.b16 %v4380
    %v4674 = vunpack.c.h.b16 %v4380
    %v4675 = vunpack.c.l.b16 %v4381
    %v4676 = vunpack.c.h.b16 %v4381
    %v4677 = vunpack.c.l.b16 %v4382
    %v4678 = vunpack.c.h.b16 %v4382
    %v4679 = vunpack.c.l.b16 %v4383
    %v4680 = vunpack.c.h.b16 %v4383
    %v4681 = vunpack.c.l.b16 %v4384
    %v4682 = vunpack.c.h.b16 %v4384
    %v4683 = vunpack.c.l.b16 %v4385
    %v4684 = vunpack.c.h.b16 %v4385
    %v4685 = vunpack.c.l.b16 %v4386
    %v4686 = vunpack.c.h.b16 %v4386
    %v4687 = vunpack.c.l.b16 %v4387
    %v4688 = vunpack.c.h.b16 %v4387
    %v4689 = vunpack.c.l.b16 %v4388
    %v4690 = vunpack.c.h.b16 %v4388
    %v4691 = vunpack.c.l.b16 %v4389
    %v4692 = vunpack.c.h.b16 %v4389
    %v4693 = vunpack.c.l.b16 %v4390
    %v4694 = vunpack.c.h.b16 %v4390
    %v4695 = vunpack.c.l.b16 %v4391
    %v4696 = vunpack.c.h.b16 %v4391
    %v4697 = vunpack.c.l.b16 %v4392
    %v4698 = vunpack.c.h.b16 %v4392
    %v4699 = vunpack.c.l.b16 %v4393
    %v4700 = vunpack.c.h.b16 %v4393
    %v4701 = vunpack.c.l.b16 %v4394
    %v4702 = vunpack.c.h.b16 %v4394
    %v4703 = vunpack.c.l.b16 %v4395
    %v4704 = vunpack.c.h.b16 %v4395
    %v4705 = vunpack.c.l.b16 %v4396
    %v4706 = vunpack.c.h.b16 %v4396
    %v4707 = vunpack.c.l.b16 %v4397
    %v4708 = vunpack.c.h.b16 %v4397
    %v4709 = vunpack.c.l.b16 %v4398
    %v4710 = vunpack.c.h.b16 %v4398
    %v4711 = vunpack.c.l.b16 %v4399
    %v4712 = vunpack.c.h.b16 %v4399
    %v4713 = vunpack.c.l.b16 %v4400
    %v4714 = vunpack.c.h.b16 %v4400
    %v4715 = vunpack.c.l.b16 %v4401
    %v4716 = vunpack.c.h.b16 %v4401
    %v4717 = vunpack.c.l.b16 %v4402
    %v4718 = vunpack.c.h.b16 %v4402
    %v4719 = vunpack.c.l.b16 %v4403
    %v4720 = vunpack.c.h.b16 %v4403
    %v4721 = vunpack.c.l.b16 %v4404
    %v4722 = vunpack.c.h.b16 %v4404
    %v4723 = vunpack.c.l.b16 %v4405
    %v4724 = vunpack.c.h.b16 %v4405
    %v4725 = vunpack.c.l.b16 %v4406
    %v4726 = vunpack.c.h.b16 %v4406
    %v4727 = vunpack.c.l.b16 %v4407
    %v4728 = vunpack.c.h.b16 %v4407
    %v4729 = vunpack.c.l.b16 %v4408
    %v4730 = vunpack.c.h.b16 %v4408
    %v4731 = vunpack.c.l.b16 %v4409
    %v4732 = vunpack.c.h.b16 %v4409
    %v4733 = vunpack.c.l.b16 %v4410
    %v4734 = vunpack.c.h.b16 %v4410
    %v4735 = vunpack.c.l.b16 %v4411
    %v4736 = vunpack.c.h.b16 %v4411
    %v4737 = vunpack.c.l.b16 %v4412
    %v4738 = vunpack.c.h.b16 %v4412
    %v4739 = vunpack.c.l.b16 %v4413
    %v4740 = vunpack.c.h.b16 %v4413
    %v4741 = vunpack.c.l.b16 %v4414
    %v4742 = vunpack.c.h.b16 %v4414
    %v4743 = vunpack.c.l.b16 %v4415
    %v4744 = vunpack.c.h.b16 %v4415
    %v4745 = vunpack.c.l.b16 %v4416
    %v4746 = vunpack.c.h.b16 %v4416
    %v4747 = vunpack.c.l.b16 %v4417
    %v4748 = vunpack.c.h.b16 %v4417
    %v4749 = vunpack.c.l.b16 %v4418
    %v4750 = vunpack.c.h.b16 %v4418
    %v4751 = vunpack.c.l.b16 %v4419
    %v4752 = vunpack.c.h.b16 %v4419
    %v4753 = vunpack.c.l.b16 %v4420
    %v4754 = vunpack.c.h.b16 %v4420
    %v4755 = vunpack.c.l.b16 %v4421
    %v4756 = vunpack.c.h.b16 %v4421
    %v4757 = vunpack.c.l.b16 %v4422
    %v4758 = vunpack.c.h.b16 %v4422
    %v4759 = vunpack.c.l.b16 %v4423
    %v4760 = vunpack.c.h.b16 %v4423
    %v4761 = vunpack.c.l.b16 %v4424
    %v4762 = vunpack.c.h.b16 %v4424
    %v4763 = vunpack.c.l.b16 %v4425
    %v4764 = vunpack.c.h.b16 %v4425
    %v4765 = vunpack.c.l.b16 %v4426
    %v4766 = vunpack.c.h.b16 %v4426
    %v4767 = vunpack.c.l.b16 %v4427
    %v4768 = vunpack.c.h.b16 %v4427
    %v4769 = vunpack.c.l.b16 %v4428
    %v4770 = vunpack.c.h.b16 %v4428
    %v4771 = vunpack.c.l.b16 %v4429
    %v4772 = vunpack.c.h.b16 %v4429
    %v4773 = vunpack.c.l.b16 %v4430
    %v4774 = vunpack.c.h.b16 %v4430
    %v4775 = vunpack.c.l.b16 %v4431
    %v4776 = vunpack.c.h.b16 %v4431
    %v4777 = vunpack.c.l.b16 %v4432
    %v4778 = vunpack.c.h.b16 %v4432
    %v4779 = vunpack.c.l.b16 %v4433
    %v4780 = vunpack.c.h.b16 %v4433
    %v4781 = vunpack.c.l.b16 %v4434
    %v4782 = vunpack.c.h.b16 %v4434
    %v4783 = vunpack.c.l.b16 %v4435
    %v4784 = vunpack.c.h.b16 %v4435
    %v4785 = vunpack.c.l.b16 %v4436
    %v4786 = vunpack.c.h.b16 %v4436
    %v4787 = vunpack.c.l.b16 %v4437
    %v4788 = vunpack.c.h.b16 %v4437
    %v4789 = vunpack.c.l.b16 %v4438
    %v4790 = vunpack.c.h.b16 %v4438
    %v4791 = vunpack.c.l.b16 %v4439
    %v4792 = vunpack.c.h.b16 %v4439
    %v4793 = vunpack.c.l.b16 %v4440
    %v4794 = vunpack.c.h.b16 %v4440
    %v4795 = vunpack.c.l.b16 %v4441
    %v4796 = vunpack.c.h.b16 %v4441
    %v4797 = vunpack.c.l.b16 %v4442
    %v4798 = vunpack.c.h.b16 %v4442
    %v4799 = vunpack.c.l.b16 %v4443
    %v4800 = vunpack.c.h.b16 %v4443
    %v4801 = vunpack.c.l.b16 %v4444
    %v4802 = vunpack.c.h.b16 %v4444
    %v4803 = vunpack.c.l.b16 %v4445
    %v4804 = vunpack.c.h.b16 %v4445
    %v4805 = vunpack.c.l.b16 %v4446
    %v4806 = vunpack.c.h.b16 %v4446
    %v4807 = vunpack.c.l.b16 %v4447
    %v4808 = vunpack.c.h.b16 %v4447
    %v4809 = vunpack.c.l.b16 %v4448
    %v4810 = vunpack.c.h.b16 %v4448
    %v4811 = vunpack.c.l.b16 %v4449
    %v4812 = vunpack.c.h.b16 %v4449
    %v4813 = vunpack.c.l.b16 %v4450
    %v4814 = vunpack.c.h.b16 %v4450
    %v4815 = vunpack.c.l.b16 %v4451
    %v4816 = vunpack.c.h.b16 %v4451
    %v4817 = vunpack.c.l.b16 %v4452
    %v4818 = vunpack.c.h.b16 %v4452
    %v4819 = vunpack.c.l.b16 %v4453
    %v4820 = vunpack.c.h.b16 %v4453
    %v4821 = vunpack.c.l.b16 %v4454
    %v4822 = vunpack.c.h.b16 %v4454
    %v4823 = vunpack.c.l.b16 %v4455
    %v4824 = vunpack.c.h.b16 %v4455
    %v4825 = vunpack.c.l.b16 %v4456
    %v4826 = vunpack.c.h.b16 %v4456
    %v4827 = vunpack.c.l.b16 %v4457
    %v4828 = vunpack.c.h.b16 %v4457
    %v4829 = vunpack.c.l.b16 %v4458
    %v4830 = vunpack.c.h.b16 %v4458
    %v4831 = vunpack.c.l.b16 %v4459
    %v4832 = vunpack.c.h.b16 %v4459
    %v4833 = vunpack.c.l.b16 %v4460
    %v4834 = vunpack.c.h.b16 %v4460
    %v4835 = vunpack.c.l.b16 %v4461
    %v4836 = vunpack.c.h.b16 %v4461
    %v4837 = vunpack.c.l.b16 %v4462
    %v4838 = vunpack.c.h.b16 %v4462
    %v4839 = vunpack.c.l.b16 %v4463
    %v4840 = vunpack.c.h.b16 %v4463
    %v4841 = vunpack.c.l.b16 %v4464
    %v4842 = vunpack.c.h.b16 %v4464
    %v4843 = vunpack.c.l.b16 %v4465
    %v4844 = vunpack.c.h.b16 %v4465
    %v4845 = vunpack.c.l.b16 %v4466
    %v4846 = vunpack.c.h.b16 %v4466
    %v4847 = vunpack.c.l.b16 %v4467
    %v4848 = vunpack.c.h.b16 %v4467
    %v4849 = vunpack.c.l.b16 %v4468
    %v4850 = vunpack.c.h.b16 %v4468
    %v4851 = vunpack.c.l.b16 %v4469
    %v4852 = vunpack.c.h.b16 %v4469
    %v4853 = vunpack.c.l.b16 %v4470
    %v4854 = vunpack.c.h.b16 %v4470
    %v4855 = vunpack.c.l.b16 %v4471
    %v4856 = vunpack.c.h.b16 %v4471
    %v4857 = vunpack.c.l.b16 %v4472
    %v4858 = vunpack.c.h.b16 %v4472
    %v4859 = vunpack.c.l.b16 %v4473
    %v4860 = vunpack.c.h.b16 %v4473
    %v4861 = vunpack.c.l.b16 %v4474
    %v4862 = vunpack.c.h.b16 %v4474
    %v4863 = vunpack.c.l.b16 %v4475
    %v4864 = vunpack.c.h.b16 %v4475
    %v4865 = vunpack.c.l.b16 %v4476
    %v4866 = vunpack.c.h.b16 %v4476
    %v4867 = vunpack.c.l.b16 %v4477
    %v4868 = vunpack.c.h.b16 %v4477
    %v4869 = vunpack.c.l.b16 %v4478
    %v4870 = vunpack.c.h.b16 %v4478
    %v4871 = vunpack.c.l.b16 %v4479
    %v4872 = vunpack.c.h.b16 %v4479
    %v4873 = vunpack.c.l.b16 %v4480
    %v4874 = vunpack.c.h.b16 %v4480
    %v4875 = vunpack.c.l.b16 %v4481
    %v4876 = vunpack.c.h.b16 %v4481
    %v4877 = vunpack.c.l.b16 %v4482
    %v4878 = vunpack.c.h.b16 %v4482
    %v4879 = vunpack.c.l.b16 %v4483
    %v4880 = vunpack.c.h.b16 %v4483
    %v4881 = vunpack.c.l.b16 %v4484
    %v4882 = vunpack.c.h.b16 %v4484
    %v4883 = vunpack.c.l.b16 %v4485
    %v4884 = vunpack.c.h.b16 %v4485
    %v4885 = vunpack.c.l.b16 %v4486
    %v4886 = vunpack.c.h.b16 %v4486
    %v4887 = vunpack.c.l.b16 %v4487
    %v4888 = vunpack.c.h.b16 %v4487
    %v4889 = vunpack.c.l.b16 %v4488
    %v4890 = vunpack.c.h.b16 %v4488
    %v4891 = vunpack.c.l.b16 %v4489
    %v4892 = vunpack.c.h.b16 %v4489
    %v4893 = vunpack.c.l.b16 %v4490
    %v4894 = vunpack.c.h.b16 %v4490
    %v4895 = vunpack.c.l.b16 %v4491
    %v4896 = vunpack.c.h.b16 %v4491
    %v4897 = vunpack.c.l.b16 %v4492
    %v4898 = vunpack.c.h.b16 %v4492
    %v4899 = vunpack.c.l.b16 %v4493
    %v4900 = vunpack.c.h.b16 %v4493
    %v4901 = vunpack.c.l.b16 %v4494
    %v4902 = vunpack.c.h.b16 %v4494
    %v4903 = vunpack.c.l.b16 %v4495
    %v4904 = vunpack.c.h.b16 %v4495
    %v4905 = vunpack.c.l.b16 %v4496
    %v4906 = vunpack.c.h.b16 %v4496
    %v4907 = vpack.c.b16 %v4655, %v4651
    %v4908 = vpack.c.b16 %v4656, %v4652
    %v4909 = vpack.c.b16 %v4657, %v4653
    %v4910 = vpack.c.b16 %v4658, %v4654
    %v4911 = vpack.c.b16 %v4663, %v4659
    %v4912 = vpack.c.b16 %v4664, %v4660
    %v4913 = vpack.c.b16 %v4665, %v4661
    %v4914 = vpack.c.b16 %v4666, %v4662
    %v4915 = vpack.c.b16 %v4671, %v4667
    %v4916 = vpack.c.b16 %v4672, %v4668
    %v4917 = vpack.c.b16 %v4673, %v4669
    %v4918 = vpack.c.b16 %v4674, %v4670
    %v4919 = vpack.c.b16 %v4679, %v4675
    %v4920 = vpack.c.b16 %v4680, %v4676
    %v4921 = vpack.c.b16 %v4681, %v4677
    %v4922 = vpack.c.b16 %v4682, %v4678
    %v4923 = vpack.c.b16 %v4687, %v4683
    %v4924 = vpack.c.b16 %v4688, %v4684
    %v4925 = vpack.c.b16 %v4689, %v4685
    %v4926 = vpack.c.b16 %v4690, %v4686
    %v4927 = vpack.c.b16 %v4695, %v4691
    %v4928 = vpack.c.b16 %v4696, %v4692
    %v4929 = vpack.c.b16 %v4697, %v4693
    %v4930 = vpack.c.b16 %v4698, %v4694
    %v4931 = vpack.c.b16 %v4703, %v4699
    %v4932 = vpack.c.b16 %v4704, %v4700
    %v4933 = vpack.c.b16 %v4705, %v4701
    %v4934 = vpack.c.b16 %v4706, %v4702
    %v4935 = vpack.c.b16 %v4711, %v4707
    %v4936 = vpack.c.b16 %v4712, %v4708
    %v4937 = vpack.c.b16 %v4713, %v4709
    %v4938 = vpack.c.b16 %v4714, %v4710
    %v4939 = vpack.c.b16 %v4719, %v4715
    %v4940 = vpack.c.b16 %v4720, %v4716
    %v4941 = vpack.c.b16 %v4721, %v4717
    %v4942 = vpack.c.b16 %v4722, %v4718
    %v4943 = vpack.c.b16 %v4727, %v4723
    %v4944 = vpack.c.b16 %v4728, %v4724
    %v4945 = vpack.c.b16 %v4729, %v4725
    %v4946 = vpack.c.b16 %v4730, %v4726
    %v4947 = vpack.c.b16 %v4735, %v4731
    %v4948 = vpack.c.b16 %v4736, %v4732
    %v4949 = vpack.c.b16 %v4737, %v4733
    %v4950 = vpack.c.b16 %v4738, %v4734
    %v4951 = vpack.c.b16 %v4743, %v4739
    %v4952 = vpack.c.b16 %v4744, %v4740
    %v4953 = vpack.c.b16 %v4745, %v4741
    %v4954 = vpack.c.b16 %v4746, %v4742
    %v4955 = vpack.c.b16 %v4751, %v4747
    %v4956 = vpack.c.b16 %v4752, %v4748
    %v4957 = vpack.c.b16 %v4753, %v4749
    %v4958 = vpack.c.b16 %v4754, %v4750
    %v4959 = vpack.c.b16 %v4759, %v4755
    %v4960 = vpack.c.b16 %v4760, %v4756
    %v4961 = vpack.c.b16 %v4761, %v4757
    %v4962 = vpack.c.b16 %v4762, %v4758
    %v4963 = vpack.c.b16 %v4767, %v4763
    %v4964 = vpack.c.b16 %v4768, %v4764
    %v4965 = vpack.c.b16 %v4769, %v4765
    %v4966 = vpack.c.b16 %v4770, %v4766
    %v4967 = vpack.c.b16 %v4775, %v4771
    %v4968 = vpack.c.b16 %v4776, %v4772
    %v4969 = vpack.c.b16 %v4777, %v4773
    %v4970 = vpack.c.b16 %v4778, %v4774
    %v4971 = vpack.c.b16 %v4783, %v4779
    %v4972 = vpack.c.b16 %v4784, %v4780
    %v4973 = vpack.c.b16 %v4785, %v4781
    %v4974 = vpack.c.b16 %v4786, %v4782
    %v4975 = vpack.c.b16 %v4791, %v4787
    %v4976 = vpack.c.b16 %v4792, %v4788
    %v4977 = vpack.c.b16 %v4793, %v4789
    %v4978 = vpack.c.b16 %v4794, %v4790
    %v4979 = vpack.c.b16 %v4799, %v4795
    %v4980 = vpack.c.b16 %v4800, %v4796
    %v4981 = vpack.c.b16 %v4801, %v4797
    %v4982 = vpack.c.b16 %v4802, %v4798
    %v4983 = vpack.c.b16 %v4807, %v4803
    %v4984 = vpack.c.b16 %v4808, %v4804
    %v4985 = vpack.c.b16 %v4809, %v4805
    %v4986 = vpack.c.b16 %v4810, %v4806
    %v4987 = vpack.c.b16 %v4815, %v4811
    %v4988 = vpack.c.b16 %v4816, %v4812
    %v4989 = vpack.c.b16 %v4817, %v4813
    %v4990 = vpack.c.b16 %v4818, %v4814
    %v4991 = vpack.c.b16 %v4823, %v4819
    %v4992 = vpack.c.b16 %v4824, %v4820
    %v4993 = vpack.c.b16 %v4825, %v4821
    %v4994 = vpack.c.b16 %v4826, %v4822
    %v4995 = vpack.c.b16 %v4831, %v4827
    %v4996 = vpack.c.b16 %v4832, %v4828
    %v4997 = vpack.c.b16 %v4833, %v4829
    %v4998 = vpack.c.b16 %v4834, %v4830
    %v4999 = vpack.c.b16 %v4839, %v4835
    %v5000 = vpack.c.b16 %v4840, %v4836
    %v5001 = vpack.c.b16 %v4841, %v4837
    %v5002 = vpack.c.b16 %v4842, %v4838
    %v5003 = vpack.c.b16 %v4847, %v4843
    %v5004 = vpack.c.b16 %v4848, %v4844
    %v5005 = vpack.c.b16 %v4849, %v4845
    %v5006 = vpack.c.b16 %v4850, %v4846
    %v5007 = vpack.c.b16 %v4855, %v4851
    %v5008 = vpack.c.b16 %v4856, %v4852
    %v5009 = vpack.c.b16 %v4857, %v4853
    %v5010 = vpack.c.b16 %v4858, %v4854
    %v5011 = vpack.c.b16 %v4863, %v4859
    %v5012 = vpack.c.b16 %v4864, %v4860
    %v5013 = vpack.c.b16 %v4865, %v4861
    %v5014 = vpack.c.b16 %v4866, %v4862
    %v5015 = vpack.c.b16 %v4871, %v4867
    %v5016 = vpack.c.b16 %v4872, %v4868
    %v5017 = vpack.c.b16 %v4873, %v4869
    %v5018 = vpack.c.b16 %v4874, %v4870
    %v5019 = vpack.c.b16 %v4879, %v4875
    %v5020 = vpack.c.b16 %v4880, %v4876
    %v5021 = vpack.c.b16 %v4881, %v4877
    %v5022 = vpack.c.b16 %v4882, %v4878
    %v5023 = vpack.c.b16 %v4887, %v4883
    %v5024 = vpack.c.b16 %v4888, %v4884
    %v5025 = vpack.c.b16 %v4889, %v4885
    %v5026 = vpack.c.b16 %v4890, %v4886
    %v5027 = vpack.c.b16 %v4895, %v4891
    %v5028 = vpack.c.b16 %v4896, %v4892
    %v5029 = vpack.c.b16 %v4897, %v4893
    %v5030 = vpack.c.b16 %v4898, %v4894
    %v5031 = vpack.c.b16 %v4903, %v4899
    %v5032 = vpack.c.b16 %v4904, %v4900
    %v5033 = vpack.c.b16 %v4905, %v4901
    %v5034 = vpack.c.b16 %v4906, %v4902
    %5163 = vmatprep.subr.bf16.mxu0 %v4936
    %5164 = vmatpush1.bf16.msra.mxu0 %v4935
    %5165 = vmatprep.subr.bf16.mxu0 %v4932
    %5166 = vmatpush1.bf16.msra.mxu0 %v4931
    %5167 = vmatprep.subr.bf16.mxu0 %v4928
    %5168 = vmatpush1.bf16.msra.mxu0 %v4927
    %5169 = vmatprep.subr.bf16.mxu0 %v4924
    %5170 = vmatpush1.bf16.msra.mxu0 %v4923
    %5171 = vmatprep.subr.bf16.mxu0 %v4920
    %5172 = vmatpush1.bf16.msra.mxu0 %v4919
    %5173 = vmatprep.subr.bf16.mxu0 %v4916
    %5174 = vmatpush1.bf16.msra.mxu0 %v4915
    %5175 = vmatprep.subr.bf16.mxu0 %v4912
    %5176 = vmatpush1.bf16.msra.mxu0 %v4911
    %5177 = vmatprep.subr.bf16.mxu0 %v4908
    %5178 = vmatpush1.bf16.msra.mxu0 %v4907
    %5179 = vmatprep.subr.bf16.mxu0 %v4968
    %5180 = vmatpush2.bf16.msra.mxu0 %v4967
    %5181 = vmatprep.subr.bf16.mxu0 %v4964
    %5182 = vmatpush2.bf16.msra.mxu0 %v4963
    %5183 = vmatprep.subr.bf16.mxu0 %v4960
    %5184 = vmatpush2.bf16.msra.mxu0 %v4959
    %5185 = vmatprep.subr.bf16.mxu0 %v4956
    %5186 = vmatpush2.bf16.msra.mxu0 %v4955
    %5187 = vmatprep.subr.bf16.mxu0 %v4952
    %5188 = vmatpush2.bf16.msra.mxu0 %v4951
    %5189 = vmatprep.subr.bf16.mxu0 %v4948
    %5190 = vmatpush2.bf16.msra.mxu0 %v4947
    %5191 = vmatprep.subr.bf16.mxu0 %v4944
    %5192 = vmatpush2.bf16.msra.mxu0 %v4943
    %5193 = vmatprep.subr.bf16.mxu0 %v4940
    %5194 = vmatpush2.bf16.msra.mxu0 %v4939
    %5195 = vmatprep.mubr.bf16.mxu0 %v4498
    %5196 = vmatmul.mubr.bf16.gmra.mxu0 %v4497
    %v5197 = vpop.f32.mrf.mxu0
    %v5198 = vadd.f32 %v4506, %v5197
    %v5199 = vpop.f32.mrf.mxu0
    %v5200 = vadd.f32 %v4510, %v5199
    %v5201 = vpop.f32.mrf.mxu0
    %v5202 = vpop.f32.mrf.mxu0
    %5203 = vdwg.mxu0
    %5204 = vmatprep.subr.bf16.mxu0 %v5000
    %5205 = vmatpush1.bf16.msra.mxu0 %v4999
    %5206 = vmatprep.subr.bf16.mxu0 %v4996
    %5207 = vmatpush1.bf16.msra.mxu0 %v4995
    %5208 = vmatprep.subr.bf16.mxu0 %v4992
    %5209 = vmatpush1.bf16.msra.mxu0 %v4991
    %5210 = vmatprep.subr.bf16.mxu0 %v4988
    %5211 = vmatpush1.bf16.msra.mxu0 %v4987
    %5212 = vmatprep.subr.bf16.mxu0 %v4984
    %5213 = vmatpush1.bf16.msra.mxu0 %v4983
    %5214 = vmatprep.subr.bf16.mxu0 %v4980
    %5215 = vmatpush1.bf16.msra.mxu0 %v4979
    %5216 = vmatprep.subr.bf16.mxu0 %v4976
    %5217 = vmatpush1.bf16.msra.mxu0 %v4975
    %5218 = vmatprep.subr.bf16.mxu0 %v4972
    %5219 = vmatpush1.bf16.msra.mxu0 %v4971
    %5220 = vmatprep.subr.bf16.mxu0 %v5032
    %5221 = vmatpush2.bf16.msra.mxu0 %v5031
    %5222 = vmatprep.subr.bf16.mxu0 %v5028
    %5223 = vmatpush2.bf16.msra.mxu0 %v5027
    %5224 = vmatprep.subr.bf16.mxu0 %v5024
    %5225 = vmatpush2.bf16.msra.mxu0 %v5023
    %5226 = vmatprep.subr.bf16.mxu0 %v5020
    %5227 = vmatpush2.bf16.msra.mxu0 %v5019
    %5228 = vmatprep.subr.bf16.mxu0 %v5016
    %5229 = vmatpush2.bf16.msra.mxu0 %v5015
    %5230 = vmatprep.subr.bf16.mxu0 %v5012
    %5231 = vmatpush2.bf16.msra.mxu0 %v5011
    %5232 = vmatprep.subr.bf16.mxu0 %v5008
    %5233 = vmatpush2.bf16.msra.mxu0 %v5007
    %5234 = vmatprep.subr.bf16.mxu0 %v5004
    %5235 = vmatpush2.bf16.msra.mxu0 %v5003
    %5236 = vmatprep.mubr.bf16.mxu0 %v4500
    %5237 = vmatmul.mubr.bf16.gmra.mxu0 %v4499
    %v5238 = vpop.f32.mrf.mxu0
    %v5239 = vadd.f32 %v5198, %v5238
    %v5240 = vpop.f32.mrf.mxu0
    %v5241 = vadd.f32 %v5200, %v5240
    %v5242 = vpop.f32.mrf.mxu0
    %v5243 = vpop.f32.mrf.mxu0
    %5244 = vdwg.mxu0
    %5245 = vmatprep.subr.bf16.mxu0 %v4938
    %5246 = vmatpush1.bf16.msra.mxu0 %v4937
    %5247 = vmatprep.subr.bf16.mxu0 %v4934
    %5248 = vmatpush1.bf16.msra.mxu0 %v4933
    %5249 = vmatprep.subr.bf16.mxu0 %v4930
    %5250 = vmatpush1.bf16.msra.mxu0 %v4929
    %5251 = vmatprep.subr.bf16.mxu0 %v4926
    %5252 = vmatpush1.bf16.msra.mxu0 %v4925
    %5253 = vmatprep.subr.bf16.mxu0 %v4922
    %5254 = vmatpush1.bf16.msra.mxu0 %v4921
    %5255 = vmatprep.subr.bf16.mxu0 %v4918
    %5256 = vmatpush1.bf16.msra.mxu0 %v4917
    %5257 = vmatprep.subr.bf16.mxu0 %v4914
    %5258 = vmatpush1.bf16.msra.mxu0 %v4913
    %5259 = vmatprep.subr.bf16.mxu0 %v4910
    %5260 = vmatpush1.bf16.msra.mxu0 %v4909
    %5261 = vmatprep.subr.bf16.mxu0 %v4970
    %5262 = vmatpush2.bf16.msra.mxu0 %v4969
    %5263 = vmatprep.subr.bf16.mxu0 %v4966
    %5264 = vmatpush2.bf16.msra.mxu0 %v4965
    %5265 = vmatprep.subr.bf16.mxu0 %v4962
    %5266 = vmatpush2.bf16.msra.mxu0 %v4961
    %5267 = vmatprep.subr.bf16.mxu0 %v4958
    %5268 = vmatpush2.bf16.msra.mxu0 %v4957
    %5269 = vmatprep.subr.bf16.mxu0 %v4954
    %5270 = vmatpush2.bf16.msra.mxu0 %v4953
    %5271 = vmatprep.subr.bf16.mxu0 %v4950
    %5272 = vmatpush2.bf16.msra.mxu0 %v4949
    %5273 = vmatprep.subr.bf16.mxu0 %v4946
    %5274 = vmatpush2.bf16.msra.mxu0 %v4945
    %5275 = vmatprep.subr.bf16.mxu0 %v4942
    %5276 = vmatpush2.bf16.msra.mxu0 %v4941
    %5277 = vmatprep.mubr.bf16.mxu0 %v4498
    %5278 = vmatmul.mubr.bf16.gmra.mxu0 %v4497
    %v5279 = vpop.f32.mrf.mxu0
    %v5280 = vadd.f32 %v4514, %v5279
    %v5281 = vpop.f32.mrf.mxu0
    %v5282 = vadd.f32 %v4518, %v5281
    %v5283 = vpop.f32.mrf.mxu0
    %v5284 = vpop.f32.mrf.mxu0
    %5285 = vdwg.mxu0
    %5286 = vmatprep.subr.bf16.mxu0 %v5002
    %5287 = vmatpush1.bf16.msra.mxu0 %v5001
    %5288 = vmatprep.subr.bf16.mxu0 %v4998
    %5289 = vmatpush1.bf16.msra.mxu0 %v4997
    %5290 = vmatprep.subr.bf16.mxu0 %v4994
    %5291 = vmatpush1.bf16.msra.mxu0 %v4993
    %5292 = vmatprep.subr.bf16.mxu0 %v4990
    %5293 = vmatpush1.bf16.msra.mxu0 %v4989
    %5294 = vmatprep.subr.bf16.mxu0 %v4986
    %5295 = vmatpush1.bf16.msra.mxu0 %v4985
    %5296 = vmatprep.subr.bf16.mxu0 %v4982
    %5297 = vmatpush1.bf16.msra.mxu0 %v4981
    %5298 = vmatprep.subr.bf16.mxu0 %v4978
    %5299 = vmatpush1.bf16.msra.mxu0 %v4977
    %5300 = vmatprep.subr.bf16.mxu0 %v4974
    %5301 = vmatpush1.bf16.msra.mxu0 %v4973
    %5302 = vmatprep.subr.bf16.mxu0 %v5034
    %5303 = vmatpush2.bf16.msra.mxu0 %v5033
    %5304 = vmatprep.subr.bf16.mxu0 %v5030
    %5305 = vmatpush2.bf16.msra.mxu0 %v5029
    %5306 = vmatprep.subr.bf16.mxu0 %v5026
    %5307 = vmatpush2.bf16.msra.mxu0 %v5025
    %5308 = vmatprep.subr.bf16.mxu0 %v5022
    %5309 = vmatpush2.bf16.msra.mxu0 %v5021
    %5310 = vmatprep.subr.bf16.mxu0 %v5018
    %5311 = vmatpush2.bf16.msra.mxu0 %v5017
    %5312 = vmatprep.subr.bf16.mxu0 %v5014
    %5313 = vmatpush2.bf16.msra.mxu0 %v5013
    %5314 = vmatprep.subr.bf16.mxu0 %v5010
    %5315 = vmatpush2.bf16.msra.mxu0 %v5009
    %5316 = vmatprep.subr.bf16.mxu0 %v5006
    %5317 = vmatpush2.bf16.msra.mxu0 %v5005
    %5318 = vmatprep.mubr.bf16.mxu0 %v4500
    %5319 = vmatmul.mubr.bf16.gmra.mxu0 %v4499
    %v5320 = vpop.f32.mrf.mxu0
    %v5321 = vadd.f32 %v5280, %v5320
    %v5322 = vpop.f32.mrf.mxu0
    %v5323 = vadd.f32 %v5282, %v5322
    %v5324 = vpop.f32.mrf.mxu0
    %v5325 = vpop.f32.mrf.mxu0
    %5326 = vdwg.mxu0
    %v5327 = vmax.f32 %v5239, 0.0
    %v5328 = vmax.f32 %v5241, 0.0
    %v5329 = vmax.f32 %v5321, 0.0
    %v5330 = vmax.f32 %v5323, 0.0
    %v5331 = vld [vmem:[%s97] sm:$0xf]
    %v5332 = vld [vmem:[%s97 + $0x4] sm:$0xf]
    %v5333 = vld [vmem:[%s97 + $0x8] sm:$0xf]
    %v5334 = vld [vmem:[%s97 + $0xc] sm:$0xf]
    %v5335 = vld [vmem:[%s97 + $0x10] sm:$0xf]
    %v5336 = vld [vmem:[%s97 + $0x14] sm:$0xf]
    %v5337 = vld [vmem:[%s97 + $0x18] sm:$0xf]
    %v5338 = vld [vmem:[%s97 + $0x1c] sm:$0xf]
    %v5339 = vld [vmem:[%s97 + $0x20] sm:$0xf]
    %v5340 = vld [vmem:[%s97 + $0x24] sm:$0xf]
    %v5341 = vld [vmem:[%s97 + $0x28] sm:$0xf]
    %v5342 = vld [vmem:[%s97 + $0x2c] sm:$0xf]
    %v5343 = vld [vmem:[%s97 + $0x30] sm:$0xf]
    %v5344 = vld [vmem:[%s97 + $0x34] sm:$0xf]
    %v5345 = vld [vmem:[%s97 + $0x38] sm:$0xf]
    %v5346 = vld [vmem:[%s97 + $0x3c] sm:$0xf]
    %v5347 = vld [vmem:[%s97 + $0x40] sm:$0xf]
    %v5348 = vld [vmem:[%s97 + $0x44] sm:$0xf]
    %v5349 = vld [vmem:[%s97 + $0x48] sm:$0xf]
    %v5350 = vld [vmem:[%s97 + $0x4c] sm:$0xf]
    %v5351 = vld [vmem:[%s97 + $0x50] sm:$0xf]
    %v5352 = vld [vmem:[%s97 + $0x54] sm:$0xf]
    %v5353 = vld [vmem:[%s97 + $0x58] sm:$0xf]
    %v5354 = vld [vmem:[%s97 + $0x5c] sm:$0xf]
    %v5355 = vld [vmem:[%s97 + $0x60] sm:$0xf]
    %v5356 = vld [vmem:[%s97 + $0x64] sm:$0xf]
    %v5357 = vld [vmem:[%s97 + $0x68] sm:$0xf]
    %v5358 = vld [vmem:[%s97 + $0x6c] sm:$0xf]
    %v5359 = vld [vmem:[%s97 + $0x70] sm:$0xf]
    %v5360 = vld [vmem:[%s97 + $0x74] sm:$0xf]
    %v5361 = vld [vmem:[%s97 + $0x78] sm:$0xf]
    %v5362 = vld [vmem:[%s97 + $0x7c] sm:$0xf]
    %v5363 = vld [vmem:[%s97 + $0x80] sm:$0xf]
    %v5364 = vld [vmem:[%s97 + $0x84] sm:$0xf]
    %v5365 = vld [vmem:[%s97 + $0x88] sm:$0xf]
    %v5366 = vld [vmem:[%s97 + $0x8c] sm:$0xf]
    %v5367 = vld [vmem:[%s97 + $0x90] sm:$0xf]
    %v5368 = vld [vmem:[%s97 + $0x94] sm:$0xf]
    %v5369 = vld [vmem:[%s97 + $0x98] sm:$0xf]
    %v5370 = vld [vmem:[%s97 + $0x9c] sm:$0xf]
    %v5371 = vld [vmem:[%s97 + $0xa0] sm:$0xf]
    %v5372 = vld [vmem:[%s97 + $0xa4] sm:$0xf]
    %v5373 = vld [vmem:[%s97 + $0xa8] sm:$0xf]
    %v5374 = vld [vmem:[%s97 + $0xac] sm:$0xf]
    %v5375 = vld [vmem:[%s97 + $0xb0] sm:$0xf]
    %v5376 = vld [vmem:[%s97 + $0xb4] sm:$0xf]
    %v5377 = vld [vmem:[%s97 + $0xb8] sm:$0xf]
    %v5378 = vld [vmem:[%s97 + $0xbc] sm:$0xf]
    %v5379 = vld [vmem:[%s97 + $0xc0] sm:$0xf]
    %v5380 = vld [vmem:[%s97 + $0xc4] sm:$0xf]
    %v5381 = vld [vmem:[%s97 + $0xc8] sm:$0xf]
    %v5382 = vld [vmem:[%s97 + $0xcc] sm:$0xf]
    %v5383 = vld [vmem:[%s97 + $0xd0] sm:$0xf]
    %v5384 = vld [vmem:[%s97 + $0xd4] sm:$0xf]
    %v5385 = vld [vmem:[%s97 + $0xd8] sm:$0xf]
    %v5386 = vld [vmem:[%s97 + $0xdc] sm:$0xf]
    %v5387 = vld [vmem:[%s97 + $0xe0] sm:$0xf]
    %v5388 = vld [vmem:[%s97 + $0xe4] sm:$0xf]
    %v5389 = vld [vmem:[%s97 + $0xe8] sm:$0xf]
    %v5390 = vld [vmem:[%s97 + $0xec] sm:$0xf]
    %v5391 = vld [vmem:[%s97 + $0xf0] sm:$0xf]
    %v5392 = vld [vmem:[%s97 + $0xf4] sm:$0xf]
    %v5393 = vld [vmem:[%s97 + $0xf8] sm:$0xf]
    %v5394 = vld [vmem:[%s97 + $0xfc] sm:$0xf]
    %v5395 = vpack.c.bf16 %v5327, %v5327
    %v5396 = vpack.c.bf16 %v5328, %v5328
    %v5397 = vpack.c.bf16 %v5329, %v5329
    %v5398 = vpack.c.bf16 %v5330, %v5330
    %v5399 = vld [vmem:[%s99] sm:$0x1]
    %v5401 = vlaneseq
    %v5402 = vshrl.u32 %v5401, 7
    %v5403 = vsub.s32 0, %v5402
    %v5404 = vrot.slane %v5399, %v5403
    %v5470 = vunpack.c.l.b16 %v5331
    %v5471 = vunpack.c.l.b16 %v5332
    %v5472 = vunpack.c.l.b16 %v5333
    %v5473 = vunpack.c.l.b16 %v5334
    %v5474 = vunpack.c.l.b16 %v5335
    %v5475 = vunpack.c.l.b16 %v5336
    %v5476 = vunpack.c.l.b16 %v5337
    %v5477 = vunpack.c.l.b16 %v5338
    %v5478 = vunpack.c.l.b16 %v5339
    %v5479 = vunpack.c.l.b16 %v5340
    %v5480 = vunpack.c.l.b16 %v5341
    %v5481 = vunpack.c.l.b16 %v5342
    %v5482 = vunpack.c.l.b16 %v5343
    %v5483 = vunpack.c.l.b16 %v5344
    %v5484 = vunpack.c.l.b16 %v5345
    %v5485 = vunpack.c.l.b16 %v5346
    %v5486 = vunpack.c.l.b16 %v5347
    %v5487 = vunpack.c.l.b16 %v5348
    %v5488 = vunpack.c.l.b16 %v5349
    %v5489 = vunpack.c.l.b16 %v5350
    %v5490 = vunpack.c.l.b16 %v5351
    %v5491 = vunpack.c.l.b16 %v5352
    %v5492 = vunpack.c.l.b16 %v5353
    %v5493 = vunpack.c.l.b16 %v5354
    %v5494 = vunpack.c.l.b16 %v5355
    %v5495 = vunpack.c.l.b16 %v5356
    %v5496 = vunpack.c.l.b16 %v5357
    %v5497 = vunpack.c.l.b16 %v5358
    %v5498 = vunpack.c.l.b16 %v5359
    %v5499 = vunpack.c.l.b16 %v5360
    %v5500 = vunpack.c.l.b16 %v5361
    %v5501 = vunpack.c.l.b16 %v5362
    %v5502 = vunpack.c.l.b16 %v5363
    %v5503 = vunpack.c.l.b16 %v5364
    %v5504 = vunpack.c.l.b16 %v5365
    %v5505 = vunpack.c.l.b16 %v5366
    %v5506 = vunpack.c.l.b16 %v5367
    %v5507 = vunpack.c.l.b16 %v5368
    %v5508 = vunpack.c.l.b16 %v5369
    %v5509 = vunpack.c.l.b16 %v5370
    %v5510 = vunpack.c.l.b16 %v5371
    %v5511 = vunpack.c.l.b16 %v5372
    %v5512 = vunpack.c.l.b16 %v5373
    %v5513 = vunpack.c.l.b16 %v5374
    %v5514 = vunpack.c.l.b16 %v5375
    %v5515 = vunpack.c.l.b16 %v5376
    %v5516 = vunpack.c.l.b16 %v5377
    %v5517 = vunpack.c.l.b16 %v5378
    %v5518 = vunpack.c.l.b16 %v5379
    %v5519 = vunpack.c.l.b16 %v5380
    %v5520 = vunpack.c.l.b16 %v5381
    %v5521 = vunpack.c.l.b16 %v5382
    %v5522 = vunpack.c.l.b16 %v5383
    %v5523 = vunpack.c.l.b16 %v5384
    %v5524 = vunpack.c.l.b16 %v5385
    %v5525 = vunpack.c.l.b16 %v5386
    %v5526 = vunpack.c.l.b16 %v5387
    %v5527 = vunpack.c.l.b16 %v5388
    %v5528 = vunpack.c.l.b16 %v5389
    %v5529 = vunpack.c.l.b16 %v5390
    %v5530 = vunpack.c.l.b16 %v5391
    %v5531 = vunpack.c.l.b16 %v5392
    %v5532 = vunpack.c.l.b16 %v5393
    %v5533 = vunpack.c.l.b16 %v5394
    %v5534 = vpack.c.b16 %v5471, %v5470
    %v5535 = vpack.c.b16 %v5473, %v5472
    %v5536 = vpack.c.b16 %v5475, %v5474
    %v5537 = vpack.c.b16 %v5477, %v5476
    %v5538 = vpack.c.b16 %v5479, %v5478
    %v5539 = vpack.c.b16 %v5481, %v5480
    %v5540 = vpack.c.b16 %v5483, %v5482
    %v5541 = vpack.c.b16 %v5485, %v5484
    %v5542 = vpack.c.b16 %v5487, %v5486
    %v5543 = vpack.c.b16 %v5489, %v5488
    %v5544 = vpack.c.b16 %v5491, %v5490
    %v5545 = vpack.c.b16 %v5493, %v5492
    %v5546 = vpack.c.b16 %v5495, %v5494
    %v5547 = vpack.c.b16 %v5497, %v5496
    %v5548 = vpack.c.b16 %v5499, %v5498
    %v5549 = vpack.c.b16 %v5501, %v5500
    %v5550 = vpack.c.b16 %v5503, %v5502
    %v5551 = vpack.c.b16 %v5505, %v5504
    %v5552 = vpack.c.b16 %v5507, %v5506
    %v5553 = vpack.c.b16 %v5509, %v5508
    %v5554 = vpack.c.b16 %v5511, %v5510
    %v5555 = vpack.c.b16 %v5513, %v5512
    %v5556 = vpack.c.b16 %v5515, %v5514
    %v5557 = vpack.c.b16 %v5517, %v5516
    %v5558 = vpack.c.b16 %v5519, %v5518
    %v5559 = vpack.c.b16 %v5521, %v5520
    %v5560 = vpack.c.b16 %v5523, %v5522
    %v5561 = vpack.c.b16 %v5525, %v5524
    %v5562 = vpack.c.b16 %v5527, %v5526
    %v5563 = vpack.c.b16 %v5529, %v5528
    %v5564 = vpack.c.b16 %v5531, %v5530
    %v5565 = vpack.c.b16 %v5533, %v5532
    %5598 = vmatprep.subr.bf16.mxu0 0
    %5599 = vmatpush1.bf16.msra.mxu0 %v5541
    %5600 = vmatprep.subr.bf16.mxu0 0
    %5601 = vmatpush1.bf16.msra.mxu0 %v5540
    %5602 = vmatprep.subr.bf16.mxu0 0
    %5603 = vmatpush1.bf16.msra.mxu0 %v5539
    %5604 = vmatprep.subr.bf16.mxu0 0
    %5605 = vmatpush1.bf16.msra.mxu0 %v5538
    %5606 = vmatprep.subr.bf16.mxu0 0
    %5607 = vmatpush1.bf16.msra.mxu0 %v5537
    %5608 = vmatprep.subr.bf16.mxu0 0
    %5609 = vmatpush1.bf16.msra.mxu0 %v5536
    %5610 = vmatprep.subr.bf16.mxu0 0
    %5611 = vmatpush1.bf16.msra.mxu0 %v5535
    %5612 = vmatprep.subr.bf16.mxu0 0
    %5613 = vmatpush1.bf16.msra.mxu0 %v5534
    %5614 = vmatprep.subr.bf16.mxu0 0
    %5615 = vmatpush2.bf16.msra.mxu0 %v5549
    %5616 = vmatprep.subr.bf16.mxu0 0
    %5617 = vmatpush2.bf16.msra.mxu0 %v5548
    %5618 = vmatprep.subr.bf16.mxu0 0
    %5619 = vmatpush2.bf16.msra.mxu0 %v5547
    %5620 = vmatprep.subr.bf16.mxu0 0
    %5621 = vmatpush2.bf16.msra.mxu0 %v5546
    %5622 = vmatprep.subr.bf16.mxu0 0
    %5623 = vmatpush2.bf16.msra.mxu0 %v5545
    %5624 = vmatprep.subr.bf16.mxu0 0
    %5625 = vmatpush2.bf16.msra.mxu0 %v5544
    %5626 = vmatprep.subr.bf16.mxu0 0
    %5627 = vmatpush2.bf16.msra.mxu0 %v5543
    %5628 = vmatprep.subr.bf16.mxu0 0
    %5629 = vmatpush2.bf16.msra.mxu0 %v5542
    %5630 = vmatprep.mubr.bf16.mxu0 %v5396
    %5631 = vmatmul.mubr.bf16.gmra.mxu0 %v5395
    %v5632 = vpop.f32.mrf.mxu0
    %v5633 = vadd.f32 %v5404, %v5632
    %v5634 = vpop.f32.mrf.mxu0
    %v5635 = vpop.f32.mrf.mxu0
    %v5636 = vpop.f32.mrf.mxu0
    %5637 = vdwg.mxu0
    %5638 = vmatprep.subr.bf16.mxu0 0
    %5639 = vmatpush1.bf16.msra.mxu0 %v5557
    %5640 = vmatprep.subr.bf16.mxu0 0
    %5641 = vmatpush1.bf16.msra.mxu0 %v5556
    %5642 = vmatprep.subr.bf16.mxu0 0
    %5643 = vmatpush1.bf16.msra.mxu0 %v5555
    %5644 = vmatprep.subr.bf16.mxu0 0
    %5645 = vmatpush1.bf16.msra.mxu0 %v5554
    %5646 = vmatprep.subr.bf16.mxu0 0
    %5647 = vmatpush1.bf16.msra.mxu0 %v5553
    %5648 = vmatprep.subr.bf16.mxu0 0
    %5649 = vmatpush1.bf16.msra.mxu0 %v5552
    %5650 = vmatprep.subr.bf16.mxu0 0
    %5651 = vmatpush1.bf16.msra.mxu0 %v5551
    %5652 = vmatprep.subr.bf16.mxu0 0
    %5653 = vmatpush1.bf16.msra.mxu0 %v5550
    %5654 = vmatprep.subr.bf16.mxu0 0
    %5655 = vmatpush2.bf16.msra.mxu0 %v5565
    %5656 = vmatprep.subr.bf16.mxu0 0
    %5657 = vmatpush2.bf16.msra.mxu0 %v5564
    %5658 = vmatprep.subr.bf16.mxu0 0
    %5659 = vmatpush2.bf16.msra.mxu0 %v5563
    %5660 = vmatprep.subr.bf16.mxu0 0
    %5661 = vmatpush2.bf16.msra.mxu0 %v5562
    %5662 = vmatprep.subr.bf16.mxu0 0
    %5663 = vmatpush2.bf16.msra.mxu0 %v5561
    %5664 = vmatprep.subr.bf16.mxu0 0
    %5665 = vmatpush2.bf16.msra.mxu0 %v5560
    %5666 = vmatprep.subr.bf16.mxu0 0
    %5667 = vmatpush2.bf16.msra.mxu0 %v5559
    %5668 = vmatprep.subr.bf16.mxu0 0
    %5669 = vmatpush2.bf16.msra.mxu0 %v5558
    %5670 = vmatprep.mubr.bf16.mxu0 %v5398
    %5671 = vmatmul.mubr.bf16.gmra.mxu0 %v5397
    %v5672 = vpop.f32.mrf.mxu0
    %v5673 = vadd.f32 %v5633, %v5672
    %v5674 = vpop.f32.mrf.mxu0
    %v5675 = vpop.f32.mrf.mxu0
    %v5676 = vpop.f32.mrf.mxu0
    %5677 = vdwg.mxu0
    %vm5678 = vcmask 58368
    %5679 = vst.msk [vmem:[#allocation67] sm:$0x3] %vm5678, %v5673
    // Predicated region
    $region370: #{forward.1} parent=1 // pred_check
      _
    $region371: #{forward.1} parent=1 // pred_check_branch
      %5681 = sbr.rel (0) target = $region373
    $region372: #{forward.1} parent=1 // pred_region
      %s5683 = ssub.s32 32, 32
      %5684 = vsyncadd [#allocation4], %s5683
      %s5686 = sshll.u32 [#allocation67], 4
      %s5687 = int_to_ptr.vmem [resolvable:$true] %s5686
      %5689 = dma.vmem_to_hbm [thread:$0]  %s5687, 32, %s101, [#allocation4]
    $region373: #{forward.1} parent=1 // pred_fallthru
      _
    // Predicated region
    $region374: #{forward.1} parent=1 // pred_check
      _
    $region375: #{forward.1} parent=1 // pred_check_branch
      %5691 = sbr.rel (0) target = $region377
    $region376: #{forward.1} parent=1 // pred_region
      %5692 = dma.done [#allocation4], 32
    $region377: #{forward.1} parent=1 // pred_fallthru
      _
    %5693 = vsyncpa [#allocation3], 1
    %5694 = vsyncpa [#allocation6], 1
    %5695 = vsyncpa [#allocation9], 1
    %5696 = vsyncpa [#allocation12], 1
    %5697 = vsyncpa [#allocation15], 1
    %5698 = vsyncpa [#allocation18], 1
    %5699 = vsyncpa [#allocation21], 1
    %5700 = vsyncpa [#allocation24], 1
    %5701 = vsyncpa [#allocation27], 1
    %5702 = vsyncpa [#allocation30], 1
    %5703 = vsyncpa [#allocation33], 1
    %5704 = vsyncpa [#allocation36], 1
    %5705 = vsyncpa [#allocation39], 1
    %5706 = vsyncpa [#allocation42], 1
    %5707 = vsyncpa [#allocation45], 1
    %5708 = vsyncpa [#allocation48], 1
    %5709 = vsyncpa [#allocation51], 1
    %5710 = vsyncpa [#allocation54], 1
    %5711 = vsyncpa [#allocation57], 1
    %5712 = vsyncpa [#allocation60], 1
    %5713 = vsyncpa [#allocation63], 1
    %5714 = vsyncpa [#allocation66], 1
    %5715 = vsyncpa [#allocation4], 1

</llo_original>
